<compile_context>
chip_gen: v7x
topology: tpu7x:2x2x1
jax: 0.10.0
libtpu: 0.0.40
codegen_flags: <defaults>
</compile_context>

<pallas_src>
import math
from functools import partial

import jax
import jax.numpy as jnp
from jax.experimental import pallas as pl
from jax.experimental.pallas import tpu as pltpu


# ----------------------------------------------------------------------------
# In-kernel helpers (pure jnp / lax — safe Mosaic lowerings)
# ----------------------------------------------------------------------------

_SQRT1_2 = 1.0 / math.sqrt(2.0)


def _gelu(x):
    # Exact (erf-based) nn.GELU(); erf via Abramowitz–Stegun 7.1.26 (|err| < 1.5e-7),
    # composed only of ops with guaranteed Mosaic lowerings (exp / mul / add / where).
    z = x * _SQRT1_2
    a = jnp.abs(z)
    t = 1.0 / (1.0 + 0.3275911 * a)
    poly = t * (0.254829592 + t * (-0.284496736 + t * (1.421413741
           + t * (-1.453152027 + t * 1.061405429))))
    erf_a = 1.0 - poly * jnp.exp(-a * a)
    erf_z = jnp.where(z >= 0.0, erf_a, -erf_a)
    return 0.5 * x * (1.0 + erf_z)


def _layernorm(x, g, b, eps=1e-5):
    mu = jnp.mean(x, axis=-1, keepdims=True)
    xc = x - mu
    var = jnp.mean(xc * xc, axis=-1, keepdims=True)
    return xc * jax.lax.rsqrt(var + eps) * g + b


def _softmax(s):
    m = jnp.max(s, axis=-1, keepdims=True)
    e = jnp.exp(s - m)
    return e / jnp.sum(e, axis=-1, keepdims=True)


# ----------------------------------------------------------------------------
# The fused whole-network kernel (single grid step, everything VMEM-resident)
# ----------------------------------------------------------------------------

def _tmsanet_kernel(cols_ref, wcomb_ref, bcomb_ref, s2_ref, t2_ref, pool_ref,
                    ln1g_ref, ln1b_ref, wkeys_ref, bkeys_ref, wqkv_ref, bqkv_ref,
                    wkl_ref, bkl_ref, wo_ref, bo_ref, ln2g_ref, ln2b_ref,
                    wff1_ref, bff1_ref, wff2_ref, bff2_ref,
                    clsw_ref, clsb_ref,
                    o_ref, kc_ref,
                    *, B, N, E, H, depth):
    dk = E // H
    scale = 1.0 / math.sqrt(dk)
    BN = B * N

    # Per-head column masks, built once and shared by every layer / batch item.
    col = jax.lax.broadcasted_iota(jnp.int32, (1, E), 1)
    masks = [((col >= h * dk) & (col < (h + 1) * dk)).astype(jnp.float32)
             for h in range(H)]

    # ---------------- ExtractFeature (all batch items) -----------------------
    wcomb = wcomb_ref[...]                                           # (128, E)
    pool = pool_ref[...]                                             # (N, T)
    z_parts = []
    for b in range(B):
        sp = jnp.dot(cols_ref[b], wcomb,
                     preferred_element_type=jnp.float32) + bcomb_ref[...]   # (T, E)
        act = _gelu(sp) * s2_ref[...] + t2_ref[...]                  # BN2 after GELU
        z_parts.append(jnp.dot(pool, act, preferred_element_type=jnp.float32))
    z = jnp.concatenate(z_parts, axis=0)                             # (B*N, E)

    # Zero the key-conv im2col scratch once; the padded rows stay zero for every
    # layer (each layer fully overwrites the valid rows before reading).
    kc_ref[...] = jnp.zeros((BN, 5 * E), jnp.float32)

    # ---------------- Transformer encoder layers ------------------------------
    dn = (((1,), (1,)), ((), ()))          # contract last dims (q @ k^T)
    for d in range(depth):
        # LayerNorm 1 over the whole slab
        res = _layernorm(z, ln1g_ref[d], ln1b_ref[d])                # (B*N, E)

        # Multi-scale key conv: build (B*N, 5E) im2col slab in VMEM scratch,
        # then one K=5E matmul (k3 & k5 merged, BatchNorm folded at prep time).
        for b in range(B):
            base = b * N
            for j in range(5):
                off = j - 2
                lo = max(0, -off)
                hi = min(N, N - off)
                kc_ref[base + lo:base + hi, j * E:(j + 1) * E] = (
                    res[base + lo + off:base + hi + off, :])
        kl_feat = jnp.dot(kc_ref[...], wkeys_ref[d],
                          preferred_element_type=jnp.float32) + bkeys_ref[d]   # (B*N, 2E)
        kl = jnp.dot(kl_feat, wkl_ref[d],
                     preferred_element_type=jnp.float32) + bkl_ref[d]          # (B*N, E)

        # Fused Q | K_global | V projection for the whole slab
        qkv = jnp.dot(res, wqkv_ref[d],
                      preferred_element_type=jnp.float32) + bqkv_ref[d]
        q = qkv[:, 0:E] * scale            # 1/sqrt(dk) folded once into q
        kg = qkv[:, E:2 * E]
        v = qkv[:, 2 * E:3 * E]

        # Dual local/global attention.  Per batch item: stack all heads' masked
        # queries along rows and concatenate local/global keys along rows, so a
        # single MXU push yields every head's (N, 2N) score slab.
        attn_parts = []
        for b in range(B):
            rows = slice(b * N, (b + 1) * N)
            q_b, v_b = q[rows], v[rows]
            kcat = jnp.concatenate([kl[rows], kg[rows]], axis=0)     # (2N, E)
            q_stack = jnp.concatenate([q_b * m for m in masks], axis=0)  # (H*N, E)
            s = jax.lax.dot_general(q_stack, kcat, dn,
                                    preferred_element_type=jnp.float32)  # (H*N, 2N)
            p = _softmax(s[:, 0:N]) + _softmax(s[:, N:2 * N])        # P_local + P_global
            a_b = jnp.zeros((N, E), jnp.float32)
            for h in range(H):
                a_b = a_b + jnp.dot(p[h * N:(h + 1) * N, :], v_b * masks[h],
                                    preferred_element_type=jnp.float32)
            attn_parts.append(a_b)
        attn = jnp.concatenate(attn_parts, axis=0)                   # (B*N, E)
        attn = jnp.dot(attn, wo_ref[d],
                       preferred_element_type=jnp.float32) + bo_ref[d]
        out = z + attn

        # LayerNorm 2 + feed-forward (GELU fused), whole slab
        res2 = _layernorm(out, ln2g_ref[d], ln2b_ref[d])
        h1 = _gelu(jnp.dot(res2, wff1_ref[d],
                           preferred_element_type=jnp.float32) + bff1_ref[d])
        ff = jnp.dot(h1, wff2_ref[d],
                     preferred_element_type=jnp.float32) + bff2_ref[d]
        z = out + ff

    # ---------------- Classifier ----------------------------------------------
    # Weight rows are pre-permuted to (n, e) order, so the flatten is expressed as
    # a sum of per-position matmuls (no in-kernel sublane->lane reshape needed).
    for b in range(B):
        logits = clsb_ref[...]                                       # (1, nc)
        for n in range(N):
            logits = logits + jnp.dot(z[b * N + n:b * N + n + 1, :],
                                      clsw_ref[n * E:(n + 1) * E, :],
                                      preferred_element_type=jnp.float32)
        o_ref[b:b + 1, :] = logits


# ----------------------------------------------------------------------------
# pallas_call wrapper / forward pass
# ----------------------------------------------------------------------------

def _full_spec(a):
    nd = a.ndim
    return pl.BlockSpec(a.shape, lambda i, _nd=nd: (0,) * _nd)


def tmsanet_forward(x, prep, cfg):
    B, C, T = x.shape
    E, H, depth = cfg["embed_dim"], cfg["num_heads"], cfg["depth"]
    N = prep["pool_mat"].shape[0]
    nc = prep["cls_b"].shape[1]

    # Host-side im2col for the merged 31-tap temporal conv (one tiny XLA gather
    # fusion, ~64 KB intermediate), with the contraction dim padded to 128 lanes.
    # TODO(synk): for large T*C, build this unfold in-VMEM inside the fused kernel.
    CK = C * 31
    CKp = prep["w_comb"].shape[0]
    xp = jnp.pad(x, ((0, 0), (0, 0), (15, 15)))
    idx = jnp.arange(T)[:, None] + jnp.arange(31)[None, :]           # (T, 31)
    cols = xp[:, :, idx].transpose(0, 2, 1, 3).reshape(B, T, CK)
    cols = jnp.pad(cols, ((0, 0), (0, 0), (0, CKp - CK)))            # (B, T, 128)

    args = [cols, prep["w_comb"], prep["b_comb"], prep["bn2_s"], prep["bn2_t"],
            prep["pool_mat"],
            prep["ln1_g"], prep["ln1_b"], prep["w_keys"], prep["b_keys"],
            prep["w_qkv"], prep["b_qkv"], prep["w_kl"], prep["b_kl"],
            prep["w_o"], prep["b_o"], prep["ln2_g"], prep["ln2_b"],
            prep["w_ff1"], prep["b_ff1"], prep["w_ff2"], prep["b_ff2"],
            prep["cls_w"], prep["cls_b"]]

    kern = partial(_tmsanet_kernel, B=B, N=N, E=E, H=H, depth=depth)

    return pl.pallas_call(
        kern,
        out_shape=jax.ShapeDtypeStruct((B, nc), jnp.float32),
        grid=(1,),
        in_specs=[_full_spec(a) for a in args],
        out_specs=pl.BlockSpec((B, nc), lambda i: (0, 0)),
        scratch_shapes=[pltpu.VMEM((B * N, 5 * E), jnp.float32)],
    )(*args)


# ----------------------------------------------------------------------------
# Parameter init (mirrors PyTorch shapes) + fusion/folding prep
# ----------------------------------------------------------------------------

def init_params(key, C, T, E, H, fc_ratio, depth, num_classes, pool_size, pool_stride):
    N = (T - pool_size) // pool_stride + 1
    keys = iter(jax.random.split(key, 256))

    def nrm(shape, scale=0.1):
        return scale * jax.random.normal(next(keys), shape, dtype=jnp.float32)

    ones = lambda n: jnp.ones((n,), jnp.float32)
    zeros = lambda n: jnp.zeros((n,), jnp.float32)

    p = {
        "temp1_w": nrm((E, 31)), "temp1_b": nrm((E,)),
        "temp2_w": nrm((E, 15)), "temp2_b": nrm((E,)),
        "bn1_g": ones(E), "bn1_b": zeros(E), "bn1_m": zeros(E), "bn1_v": ones(E),
        "spat_w": nrm((E, E, C)), "spat_b": nrm((E,)),
        "bn2_g": ones(E), "bn2_b": zeros(E), "bn2_m": zeros(E), "bn2_v": ones(E),
    }
    layers = []
    for _ in range(depth):
        layers.append({
            "k3_w": nrm((E, E, 3)), "k3_b": nrm((E,)),
            "k5_w": nrm((E, E, 5)), "k5_b": nrm((E,)),
            "bnk_g": ones(2 * E), "bnk_b": zeros(2 * E),
            "bnk_m": zeros(2 * E), "bnk_v": ones(2 * E),
            "wq": nrm((E, E)), "bq": nrm((E,)),
            "wkl": nrm((2 * E, E)), "bkl": nrm((E,)),
            "wkg": nrm((E, E)), "bkg": nrm((E,)),
            "wv": nrm((E, E)), "bv": nrm((E,)),
            "wo": nrm((E, E)), "bo": nrm((E,)),
            "ln1_g": ones(E), "ln1_b": zeros(E),
            "ln2_g": ones(E), "ln2_b": zeros(E),
            "ff_w1": nrm((E, E * fc_ratio)), "ff_b1": nrm((E * fc_ratio,)),
            "ff_w2": nrm((E * fc_ratio, E)), "ff_b2": nrm((E,)),
        })
    p["layers"] = layers
    p["cls_w"] = nrm((E * N, num_classes))     # row order = (e, n), PyTorch flatten
    p["cls_b"] = nrm((num_classes,))
    return p


def prepare_params(params, cfg, C, T):
    """Fold eval-mode BatchNorms, merge convs / QKV projections, pre-permute and
    stack per-layer weights along a leading depth axis for the fused kernel."""
    E = cfg["embed_dim"]
    eps = 1e-5

    # ---- ExtractFeature: merge parallel temp convs (k=31 & k=15 summed), fold BN1,
    #      contract with the spatial conv into one (C*31 -> E) matmul, pad K to 128.
    wt = params["temp1_w"]                                           # (E, 31)
    wt = wt.at[:, 8:23].add(params["temp2_w"])                       # embed the 15-tap conv
    bt = params["temp1_b"] + params["temp2_b"]
    s1 = params["bn1_g"] * jax.lax.rsqrt(params["bn1_v"] + eps)
    wt = wt * s1[:, None]
    bt = (bt - params["bn1_m"]) * s1 + params["bn1_b"]
    ws = params["spat_w"]                                            # (Eo, Ei, C)
    w_comb = jnp.einsum("ej,oec->cjo", wt, ws).reshape(C * 31, E)
    CKp = ((C * 31 + 127) // 128) * 128
    w_comb = jnp.pad(w_comb, ((0, CKp - C * 31), (0, 0)))            # lane-aligned K
    b_comb = (jnp.einsum("e,oec->o", bt, ws) + params["spat_b"]).reshape(1, E)
    s2 = params["bn2_g"] * jax.lax.rsqrt(params["bn2_v"] + eps)
    t2 = params["bn2_b"] - params["bn2_m"] * s2

    P, S = cfg["pool_size"], cfg["pool_stride"]
    N = (T - P) // S + 1
    t_idx = jnp.arange(T)[None, :]
    n_idx = jnp.arange(N)[:, None]
    pool_mat = (((t_idx >= n_idx * S) & (t_idx < n_idx * S + P))
                .astype(jnp.float32) / float(P))                     # (N, T)

    layer_dicts = []
    for lay in params["layers"]:
        s_k = lay["bnk_g"] * jax.lax.rsqrt(lay["bnk_v"] + eps)       # (2E,)
        t_k = lay["bnk_b"] - lay["bnk_m"] * s_k
        # merged 5-tap key-conv weight: [zero-padded k3 | k5], BN folded, (5*E, 2E)
        wk = jnp.zeros((5, E, 2 * E), jnp.float32)
        wk = wk.at[1:4, :, :E].set(jnp.transpose(lay["k3_w"], (2, 1, 0)))
        wk = wk.at[:, :, E:].set(jnp.transpose(lay["k5_w"], (2, 1, 0)))
        wk = wk * s_k[None, None, :]
        b_cat = jnp.concatenate([lay["k3_b"], lay["k5_b"]])
        b_keys = (b_cat * s_k + t_k).reshape(1, 2 * E)
        layer_dicts.append(dict(
            ln1_g=lay["ln1_g"].reshape(1, E), ln1_b=lay["ln1_b"].reshape(1, E),
            w_keys=wk.reshape(5 * E, 2 * E), b_keys=b_keys,
            w_qkv=jnp.concatenate([lay["wq"], lay["wkg"], lay["wv"]], axis=1),
            b_qkv=jnp.concatenate([lay["bq"], lay["bkg"], lay["bv"]]).reshape(1, 3 * E),
            w_kl=lay["wkl"], b_kl=lay["bkl"].reshape(1, E),
            w_o=lay["wo"], b_o=lay["bo"].reshape(1, E),
            ln2_g=lay["ln2_g"].reshape(1, E), ln2_b=lay["ln2_b"].reshape(1, E),
            w_ff1=lay["ff_w1"], b_ff1=lay["ff_b1"].reshape(1, -1),
            w_ff2=lay["ff_w2"], b_ff2=lay["ff_b2"].reshape(1, E),
        ))
    stacked = {k: jnp.stack([ld[k] for ld in layer_dicts], axis=0)
               for k in layer_dicts[0]}

    num_classes = params["cls_b"].shape[0]
    # permute rows (e*N+n) -> (n*E+e) so the (N, E) slab can be consumed row-by-row
    cls_w = (params["cls_w"].reshape(E, N, num_classes)
             .transpose(1, 0, 2).reshape(N * E, num_classes))

    prep = dict(w_comb=w_comb, b_comb=b_comb,
                bn2_s=s2.reshape(1, E), bn2_t=t2.reshape(1, E),
                pool_mat=pool_mat,
                cls_w=cls_w, cls_b=params["cls_b"].reshape(1, num_classes),
                **stacked)
    return prep, N


# ----------------------------------------------------------------------------

if __name__ == "__main__":
    cfg = dict(
        in_planes=4, radix=1, time_points=64, num_classes=4,
        embed_dim=16, pool_size=8, pool_stride=8,
        num_heads=4, fc_ratio=2, depth=2,
    )
    B = 2
    C = cfg["in_planes"] * cfg["radix"]
    T = cfg["time_points"]

    root = jax.random.PRNGKey(0)
    k_param, k_x = jax.random.split(root)
    params = init_params(k_param, C, T, cfg["embed_dim"], cfg["num_heads"],
                         cfg["fc_ratio"], cfg["depth"], cfg["num_classes"],
                         cfg["pool_size"], cfg["pool_stride"])
    prep, N = prepare_params(params, cfg, C, T)

    x = jax.random.normal(k_x, (B, C, T), dtype=jnp.float32)

    fwd = jax.jit(lambda xx, pp: tmsanet_forward(xx, pp, cfg))
    logits = jax.block_until_ready(fwd(x, prep))

    assert logits.shape == (B, cfg["num_classes"])
    assert bool(jnp.all(jnp.isfinite(logits)))
    print("KERNEL_OK")
</pallas_src>

<mosaic_0001>
module attributes {stable_mosaic.version = 11 : i64} {
  func.func @_tmsanet_kernel(%arg0: i32, %arg1: memref<2x64x128xf32, #tpu.memory_space<vmem>>, %arg2: memref<128x16xf32, #tpu.memory_space<vmem>>, %arg3: memref<1x16xf32, #tpu.memory_space<vmem>>, %arg4: memref<1x16xf32, #tpu.memory_space<vmem>>, %arg5: memref<1x16xf32, #tpu.memory_space<vmem>>, %arg6: memref<8x64xf32, #tpu.memory_space<vmem>>, %arg7: memref<2x1x16xf32, #tpu.memory_space<vmem>>, %arg8: memref<2x1x16xf32, #tpu.memory_space<vmem>>, %arg9: memref<2x80x32xf32, #tpu.memory_space<vmem>>, %arg10: memref<2x1x32xf32, #tpu.memory_space<vmem>>, %arg11: memref<2x16x48xf32, #tpu.memory_space<vmem>>, %arg12: memref<2x1x48xf32, #tpu.memory_space<vmem>>, %arg13: memref<2x32x16xf32, #tpu.memory_space<vmem>>, %arg14: memref<2x1x16xf32, #tpu.memory_space<vmem>>, %arg15: memref<2x16x16xf32, #tpu.memory_space<vmem>>, %arg16: memref<2x1x16xf32, #tpu.memory_space<vmem>>, %arg17: memref<2x1x16xf32, #tpu.memory_space<vmem>>, %arg18: memref<2x1x16xf32, #tpu.memory_space<vmem>>, %arg19: memref<2x16x32xf32, #tpu.memory_space<vmem>>, %arg20: memref<2x1x32xf32, #tpu.memory_space<vmem>>, %arg21: memref<2x32x16xf32, #tpu.memory_space<vmem>>, %arg22: memref<2x1x16xf32, #tpu.memory_space<vmem>>, %arg23: memref<128x4xf32, #tpu.memory_space<vmem>>, %arg24: memref<1x4xf32, #tpu.memory_space<vmem>>, %arg25: memref<2x4xf32, #tpu.memory_space<vmem>>, %arg26: memref<16x80xf32, #tpu.memory_space<vmem>>) attributes {dimension_semantics = [#tpu.dimension_semantics<arbitrary>], iteration_bounds = array<i64: 1>, scalar_prefetch = 0 : i64, scratch_operands = 1 : i64, tpu.core_type = #tpu.core_type<tc>, window_params = [{pipeline_mode = #tpu.pipeline_mode<synchronous>, transform_indices = @transform_0, window_bounds = array<i64: 2, 64, 128>}, {pipeline_mode = #tpu.pipeline_mode<synchronous>, transform_indices = @transform_1, window_bounds = array<i64: 128, 16>}, {pipeline_mode = #tpu.pipeline_mode<synchronous>, transform_indices = @transform_2, window_bounds = array<i64: 1, 16>}, {pipeline_mode = #tpu.pipeline_mode<synchronous>, transform_indices = @transform_3, window_bounds = array<i64: 1, 16>}, {pipeline_mode = #tpu.pipeline_mode<synchronous>, transform_indices = @transform_4, window_bounds = array<i64: 1, 16>}, {pipeline_mode = #tpu.pipeline_mode<synchronous>, transform_indices = @transform_5, window_bounds = array<i64: 8, 64>}, {pipeline_mode = #tpu.pipeline_mode<synchronous>, transform_indices = @transform_6, window_bounds = array<i64: 2, 1, 16>}, {pipeline_mode = #tpu.pipeline_mode<synchronous>, transform_indices = @transform_7, window_bounds = array<i64: 2, 1, 16>}, {pipeline_mode = #tpu.pipeline_mode<synchronous>, transform_indices = @transform_8, window_bounds = array<i64: 2, 80, 32>}, {pipeline_mode = #tpu.pipeline_mode<synchronous>, transform_indices = @transform_9, window_bounds = array<i64: 2, 1, 32>}, {pipeline_mode = #tpu.pipeline_mode<synchronous>, transform_indices = @transform_10, window_bounds = array<i64: 2, 16, 48>}, {pipeline_mode = #tpu.pipeline_mode<synchronous>, transform_indices = @transform_11, window_bounds = array<i64: 2, 1, 48>}, {pipeline_mode = #tpu.pipeline_mode<synchronous>, transform_indices = @transform_12, window_bounds = array<i64: 2, 32, 16>}, {pipeline_mode = #tpu.pipeline_mode<synchronous>, transform_indices = @transform_13, window_bounds = array<i64: 2, 1, 16>}, {pipeline_mode = #tpu.pipeline_mode<synchronous>, transform_indices = @transform_14, window_bounds = array<i64: 2, 16, 16>}, {pipeline_mode = #tpu.pipeline_mode<synchronous>, transform_indices = @transform_15, window_bounds = array<i64: 2, 1, 16>}, {pipeline_mode = #tpu.pipeline_mode<synchronous>, transform_indices = @transform_16, window_bounds = array<i64: 2, 1, 16>}, {pipeline_mode = #tpu.pipeline_mode<synchronous>, transform_indices = @transform_17, window_bounds = array<i64: 2, 1, 16>}, {pipeline_mode = #tpu.pipeline_mode<synchronous>, transform_indices = @transform_18, window_bounds = array<i64: 2, 16, 32>}, {pipeline_mode = #tpu.pipeline_mode<synchronous>, transform_indices = @transform_19, window_bounds = array<i64: 2, 1, 32>}, {pipeline_mode = #tpu.pipeline_mode<synchronous>, transform_indices = @transform_20, window_bounds = array<i64: 2, 32, 16>}, {pipeline_mode = #tpu.pipeline_mode<synchronous>, transform_indices = @transform_21, window_bounds = array<i64: 2, 1, 16>}, {pipeline_mode = #tpu.pipeline_mode<synchronous>, transform_indices = @transform_22, window_bounds = array<i64: 128, 4>}, {pipeline_mode = #tpu.pipeline_mode<synchronous>, transform_indices = @transform_23, window_bounds = array<i64: 1, 4>}, {pipeline_mode = #tpu.pipeline_mode<synchronous>, transform_indices = @transform_24, window_bounds = array<i64: 2, 4>}]} {
    %0 = tpu.iota {dimensions = array<i32: 1>} : vector<1x16xi32>
    %c0_i32 = arith.constant 0 : i32
    %1 = vector.broadcast %c0_i32 : i32 to vector<1x16xi32>
    %2 = arith.cmpi sge, %0, %1 : vector<1x16xi32>
    %c4_i32 = arith.constant 4 : i32
    %3 = vector.broadcast %c4_i32 : i32 to vector<1x16xi32>
    %4 = arith.cmpi slt, %0, %3 : vector<1x16xi32>
    %5 = arith.andi %2, %4 : vector<1x16xi1>
    %6 = arith.extui %5 : vector<1x16xi1> to vector<1x16xi32>
    %7 = arith.sitofp %6 : vector<1x16xi32> to vector<1x16xf32>
    %c4_i32_0 = arith.constant 4 : i32
    %8 = vector.broadcast %c4_i32_0 : i32 to vector<1x16xi32>
    %9 = arith.cmpi sge, %0, %8 : vector<1x16xi32>
    %c8_i32 = arith.constant 8 : i32
    %10 = vector.broadcast %c8_i32 : i32 to vector<1x16xi32>
    %11 = arith.cmpi slt, %0, %10 : vector<1x16xi32>
    %12 = arith.andi %9, %11 : vector<1x16xi1>
    %13 = arith.extui %12 : vector<1x16xi1> to vector<1x16xi32>
    %14 = arith.sitofp %13 : vector<1x16xi32> to vector<1x16xf32>
    %c8_i32_1 = arith.constant 8 : i32
    %15 = vector.broadcast %c8_i32_1 : i32 to vector<1x16xi32>
    %16 = arith.cmpi sge, %0, %15 : vector<1x16xi32>
    %c12_i32 = arith.constant 12 : i32
    %17 = vector.broadcast %c12_i32 : i32 to vector<1x16xi32>
    %18 = arith.cmpi slt, %0, %17 : vector<1x16xi32>
    %19 = arith.andi %16, %18 : vector<1x16xi1>
    %20 = arith.extui %19 : vector<1x16xi1> to vector<1x16xi32>
    %21 = arith.sitofp %20 : vector<1x16xi32> to vector<1x16xf32>
    %c12_i32_2 = arith.constant 12 : i32
    %22 = vector.broadcast %c12_i32_2 : i32 to vector<1x16xi32>
    %23 = arith.cmpi sge, %0, %22 : vector<1x16xi32>
    %c16_i32 = arith.constant 16 : i32
    %24 = vector.broadcast %c16_i32 : i32 to vector<1x16xi32>
    %25 = arith.cmpi slt, %0, %24 : vector<1x16xi32>
    %26 = arith.andi %23, %25 : vector<1x16xi1>
    %27 = arith.extui %26 : vector<1x16xi1> to vector<1x16xi32>
    %28 = arith.sitofp %27 : vector<1x16xi32> to vector<1x16xf32>
    %c0 = arith.constant 0 : index
    %c0_3 = arith.constant 0 : index
    %29 = vector.load %arg2[%c0, %c0_3] : memref<128x16xf32, #tpu.memory_space<vmem>>, vector<128x16xf32>
    %c0_4 = arith.constant 0 : index
    %c0_5 = arith.constant 0 : index
    %30 = vector.load %arg6[%c0_4, %c0_5] : memref<8x64xf32, #tpu.memory_space<vmem>>, vector<8x64xf32>
    %c0_6 = arith.constant 0 : index
    %c0_7 = arith.constant 0 : index
    %c0_8 = arith.constant 0 : index
    %31 = vector.load %arg1[%c0_6, %c0_7, %c0_8] : memref<2x64x128xf32, #tpu.memory_space<vmem>>, vector<1x64x128xf32>
    %32 = vector.shape_cast %31 : vector<1x64x128xf32> to vector<64x128xf32>
    %cst = arith.constant dense<0.000000e+00> : vector<64x16xf32>
    %33 = tpu.matmul %32, %29, %cst {dimension_numbers = #tpu.dot_dimension_numbers<[1], [0], [0], [1], [0, 0, 1, 1], [], []>} : vector<64x128xf32>, vector<128x16xf32>, vector<64x16xf32> -> vector<64x16xf32>
    %c0_9 = arith.constant 0 : index
    %c0_10 = arith.constant 0 : index
    %34 = vector.load %arg3[%c0_9, %c0_10] : memref<1x16xf32, #tpu.memory_space<vmem>>, vector<1x16xf32>
    %35 = vector.broadcast %34 : vector<1x16xf32> to vector<64x16xf32>
    %36 = arith.addf %33, %35 : vector<64x16xf32>
    %cst_11 = arith.constant 0.707106769 : f32
    %37 = vector.broadcast %cst_11 : f32 to vector<64x16xf32>
    %38 = arith.mulf %36, %37 : vector<64x16xf32>
    %39 = math.absf %38 : vector<64x16xf32>
    %cst_12 = arith.constant 0.327591091 : f32
    %40 = vector.broadcast %cst_12 : f32 to vector<64x16xf32>
    %41 = arith.mulf %40, %39 : vector<64x16xf32>
    %cst_13 = arith.constant 1.000000e+00 : f32
    %42 = vector.broadcast %cst_13 : f32 to vector<64x16xf32>
    %43 = arith.addf %42, %41 : vector<64x16xf32>
    %cst_14 = arith.constant 1.000000e+00 : f32
    %44 = vector.broadcast %cst_14 : f32 to vector<64x16xf32>
    %45 = arith.divf %44, %43 : vector<64x16xf32>
    %cst_15 = arith.constant 1.06140542 : f32
    %46 = vector.broadcast %cst_15 : f32 to vector<64x16xf32>
    %47 = arith.mulf %45, %46 : vector<64x16xf32>
    %cst_16 = arith.constant -1.45315206 : f32
    %48 = vector.broadcast %cst_16 : f32 to vector<64x16xf32>
    %49 = arith.addf %48, %47 : vector<64x16xf32>
    %50 = arith.mulf %45, %49 : vector<64x16xf32>
    %cst_17 = arith.constant 1.42141378 : f32
    %51 = vector.broadcast %cst_17 : f32 to vector<64x16xf32>
    %52 = arith.addf %51, %50 : vector<64x16xf32>
    %53 = arith.mulf %45, %52 : vector<64x16xf32>
    %cst_18 = arith.constant -0.284496725 : f32
    %54 = vector.broadcast %cst_18 : f32 to vector<64x16xf32>
    %55 = arith.addf %54, %53 : vector<64x16xf32>
    %56 = arith.mulf %45, %55 : vector<64x16xf32>
    %cst_19 = arith.constant 0.254829586 : f32
    %57 = vector.broadcast %cst_19 : f32 to vector<64x16xf32>
    %58 = arith.addf %57, %56 : vector<64x16xf32>
    %59 = arith.mulf %45, %58 : vector<64x16xf32>
    %cst_20 = arith.constant 0.000000e+00 : f32
    %60 = vector.broadcast %cst_20 : f32 to vector<64x16xf32>
    %61 = arith.subf %60, %39 : vector<64x16xf32>
    %62 = arith.mulf %61, %39 : vector<64x16xf32>
    %63 = math.exp %62 : vector<64x16xf32>
    %64 = arith.mulf %59, %63 : vector<64x16xf32>
    %cst_21 = arith.constant 1.000000e+00 : f32
    %65 = vector.broadcast %cst_21 : f32 to vector<64x16xf32>
    %66 = arith.subf %65, %64 : vector<64x16xf32>
    %cst_22 = arith.constant 0.000000e+00 : f32
    %67 = vector.broadcast %cst_22 : f32 to vector<64x16xf32>
    %68 = arith.cmpf oge, %38, %67 : vector<64x16xf32>
    %cst_23 = arith.constant 0.000000e+00 : f32
    %69 = vector.broadcast %cst_23 : f32 to vector<64x16xf32>
    %70 = arith.subf %69, %66 : vector<64x16xf32>
    %71 = arith.select %68, %66, %70 : vector<64x16xi1>, vector<64x16xf32>
    %cst_24 = arith.constant 5.000000e-01 : f32
    %72 = vector.broadcast %cst_24 : f32 to vector<64x16xf32>
    %73 = arith.mulf %72, %36 : vector<64x16xf32>
    %cst_25 = arith.constant 1.000000e+00 : f32
    %74 = vector.broadcast %cst_25 : f32 to vector<64x16xf32>
    %75 = arith.addf %74, %71 : vector<64x16xf32>
    %76 = arith.mulf %73, %75 : vector<64x16xf32>
    %c0_26 = arith.constant 0 : index
    %c0_27 = arith.constant 0 : index
    %77 = vector.load %arg4[%c0_26, %c0_27] : memref<1x16xf32, #tpu.memory_space<vmem>>, vector<1x16xf32>
    %78 = vector.broadcast %77 : vector<1x16xf32> to vector<64x16xf32>
    %79 = arith.mulf %76, %78 : vector<64x16xf32>
    %c0_28 = arith.constant 0 : index
    %c0_29 = arith.constant 0 : index
    %80 = vector.load %arg5[%c0_28, %c0_29] : memref<1x16xf32, #tpu.memory_space<vmem>>, vector<1x16xf32>
    %81 = vector.broadcast %80 : vector<1x16xf32> to vector<64x16xf32>
    %82 = arith.addf %79, %81 : vector<64x16xf32>
    %cst_30 = arith.constant dense<0.000000e+00> : vector<8x16xf32>
    %83 = tpu.matmul %30, %82, %cst_30 {dimension_numbers = #tpu.dot_dimension_numbers<[1], [0], [0], [1], [0, 0, 1, 1], [], []>} : vector<8x64xf32>, vector<64x16xf32>, vector<8x16xf32> -> vector<8x16xf32>
    %c1 = arith.constant 1 : index
    %c0_31 = arith.constant 0 : index
    %c0_32 = arith.constant 0 : index
    %84 = vector.load %arg1[%c1, %c0_31, %c0_32] : memref<2x64x128xf32, #tpu.memory_space<vmem>>, vector<1x64x128xf32>
    %85 = vector.shape_cast %84 : vector<1x64x128xf32> to vector<64x128xf32>
    %cst_33 = arith.constant dense<0.000000e+00> : vector<64x16xf32>
    %86 = tpu.matmul %85, %29, %cst_33 {dimension_numbers = #tpu.dot_dimension_numbers<[1], [0], [0], [1], [0, 0, 1, 1], [], []>} : vector<64x128xf32>, vector<128x16xf32>, vector<64x16xf32> -> vector<64x16xf32>
    %c0_34 = arith.constant 0 : index
    %c0_35 = arith.constant 0 : index
    %87 = vector.load %arg3[%c0_34, %c0_35] : memref<1x16xf32, #tpu.memory_space<vmem>>, vector<1x16xf32>
    %88 = vector.broadcast %87 : vector<1x16xf32> to vector<64x16xf32>
    %89 = arith.addf %86, %88 : vector<64x16xf32>
    %cst_36 = arith.constant 0.707106769 : f32
    %90 = vector.broadcast %cst_36 : f32 to vector<64x16xf32>
    %91 = arith.mulf %89, %90 : vector<64x16xf32>
    %92 = math.absf %91 : vector<64x16xf32>
    %cst_37 = arith.constant 0.327591091 : f32
    %93 = vector.broadcast %cst_37 : f32 to vector<64x16xf32>
    %94 = arith.mulf %93, %92 : vector<64x16xf32>
    %cst_38 = arith.constant 1.000000e+00 : f32
    %95 = vector.broadcast %cst_38 : f32 to vector<64x16xf32>
    %96 = arith.addf %95, %94 : vector<64x16xf32>
    %cst_39 = arith.constant 1.000000e+00 : f32
    %97 = vector.broadcast %cst_39 : f32 to vector<64x16xf32>
    %98 = arith.divf %97, %96 : vector<64x16xf32>
    %cst_40 = arith.constant 1.06140542 : f32
    %99 = vector.broadcast %cst_40 : f32 to vector<64x16xf32>
    %100 = arith.mulf %98, %99 : vector<64x16xf32>
    %cst_41 = arith.constant -1.45315206 : f32
    %101 = vector.broadcast %cst_41 : f32 to vector<64x16xf32>
    %102 = arith.addf %101, %100 : vector<64x16xf32>
    %103 = arith.mulf %98, %102 : vector<64x16xf32>
    %cst_42 = arith.constant 1.42141378 : f32
    %104 = vector.broadcast %cst_42 : f32 to vector<64x16xf32>
    %105 = arith.addf %104, %103 : vector<64x16xf32>
    %106 = arith.mulf %98, %105 : vector<64x16xf32>
    %cst_43 = arith.constant -0.284496725 : f32
    %107 = vector.broadcast %cst_43 : f32 to vector<64x16xf32>
    %108 = arith.addf %107, %106 : vector<64x16xf32>
    %109 = arith.mulf %98, %108 : vector<64x16xf32>
    %cst_44 = arith.constant 0.254829586 : f32
    %110 = vector.broadcast %cst_44 : f32 to vector<64x16xf32>
    %111 = arith.addf %110, %109 : vector<64x16xf32>
    %112 = arith.mulf %98, %111 : vector<64x16xf32>
    %cst_45 = arith.constant 0.000000e+00 : f32
    %113 = vector.broadcast %cst_45 : f32 to vector<64x16xf32>
    %114 = arith.subf %113, %92 : vector<64x16xf32>
    %115 = arith.mulf %114, %92 : vector<64x16xf32>
    %116 = math.exp %115 : vector<64x16xf32>
    %117 = arith.mulf %112, %116 : vector<64x16xf32>
    %cst_46 = arith.constant 1.000000e+00 : f32
    %118 = vector.broadcast %cst_46 : f32 to vector<64x16xf32>
    %119 = arith.subf %118, %117 : vector<64x16xf32>
    %cst_47 = arith.constant 0.000000e+00 : f32
    %120 = vector.broadcast %cst_47 : f32 to vector<64x16xf32>
    %121 = arith.cmpf oge, %91, %120 : vector<64x16xf32>
    %cst_48 = arith.constant 0.000000e+00 : f32
    %122 = vector.broadcast %cst_48 : f32 to vector<64x16xf32>
    %123 = arith.subf %122, %119 : vector<64x16xf32>
    %124 = arith.select %121, %119, %123 : vector<64x16xi1>, vector<64x16xf32>
    %cst_49 = arith.constant 5.000000e-01 : f32
    %125 = vector.broadcast %cst_49 : f32 to vector<64x16xf32>
    %126 = arith.mulf %125, %89 : vector<64x16xf32>
    %cst_50 = arith.constant 1.000000e+00 : f32
    %127 = vector.broadcast %cst_50 : f32 to vector<64x16xf32>
    %128 = arith.addf %127, %124 : vector<64x16xf32>
    %129 = arith.mulf %126, %128 : vector<64x16xf32>
    %c0_51 = arith.constant 0 : index
    %c0_52 = arith.constant 0 : index
    %130 = vector.load %arg4[%c0_51, %c0_52] : memref<1x16xf32, #tpu.memory_space<vmem>>, vector<1x16xf32>
    %131 = vector.broadcast %130 : vector<1x16xf32> to vector<64x16xf32>
    %132 = arith.mulf %129, %131 : vector<64x16xf32>
    %c0_53 = arith.constant 0 : index
    %c0_54 = arith.constant 0 : index
    %133 = vector.load %arg5[%c0_53, %c0_54] : memref<1x16xf32, #tpu.memory_space<vmem>>, vector<1x16xf32>
    %134 = vector.broadcast %133 : vector<1x16xf32> to vector<64x16xf32>
    %135 = arith.addf %132, %134 : vector<64x16xf32>
    %cst_55 = arith.constant dense<0.000000e+00> : vector<8x16xf32>
    %136 = tpu.matmul %30, %135, %cst_55 {dimension_numbers = #tpu.dot_dimension_numbers<[1], [0], [0], [1], [0, 0, 1, 1], [], []>} : vector<8x64xf32>, vector<64x16xf32>, vector<8x16xf32> -> vector<8x16xf32>
    %137 = tpu.concatenate %83, %136 in 0 : vector<8x16xf32>, vector<8x16xf32> -> vector<16x16xf32>
    %cst_56 = arith.constant 0.000000e+00 : f32
    %138 = vector.broadcast %cst_56 : f32 to vector<16x80xf32>
    %c0_57 = arith.constant 0 : index
    %c0_58 = arith.constant 0 : index
    %139 = vector.load %arg26[%c0_57, %c0_58] : memref<16x80xf32, #tpu.memory_space<vmem>>, vector<16x80xf32>
    tpu.vector_store %arg26[%c0_57, %c0_58], %138 {strides = array<i32>} : memref<16x80xf32, #tpu.memory_space<vmem>>, vector<16x80xf32>,
    %c0_59 = arith.constant 0 : index
    %c0_60 = arith.constant 0 : index
    %c0_61 = arith.constant 0 : index
    %140 = vector.load %arg7[%c0_59, %c0_60, %c0_61] : memref<2x1x16xf32, #tpu.memory_space<vmem>>, vector<1x1x16xf32>
    %141 = vector.shape_cast %140 : vector<1x1x16xf32> to vector<1x16xf32>
    %c0_62 = arith.constant 0 : index
    %c0_63 = arith.constant 0 : index
    %c0_64 = arith.constant 0 : index
    %142 = vector.load %arg8[%c0_62, %c0_63, %c0_64] : memref<2x1x16xf32, #tpu.memory_space<vmem>>, vector<1x1x16xf32>
    %143 = vector.shape_cast %142 : vector<1x1x16xf32> to vector<1x16xf32>
    %cst_65 = arith.constant dense<0.000000e+00> : vector<16xf32>
    %144 = vector.multi_reduction <add>, %137, %cst_65 [1] : vector<16x16xf32> to vector<16xf32>
    %145 = vector.shape_cast %144 : vector<16xf32> to vector<16x1xf32>
    %cst_66 = arith.constant 1.600000e+01 : f32
    %146 = vector.broadcast %cst_66 : f32 to vector<16x1xf32>
    %147 = arith.divf %145, %146 : vector<16x1xf32>
    %148 = vector.broadcast %147 : vector<16x1xf32> to vector<16x16xf32>
    %149 = arith.subf %137, %148 : vector<16x16xf32>
    %150 = arith.mulf %149, %149 : vector<16x16xf32>
    %cst_67 = arith.constant dense<0.000000e+00> : vector<16xf32>
    %151 = vector.multi_reduction <add>, %150, %cst_67 [1] : vector<16x16xf32> to vector<16xf32>
    %152 = vector.shape_cast %151 : vector<16xf32> to vector<16x1xf32>
    %cst_68 = arith.constant 1.600000e+01 : f32
    %153 = vector.broadcast %cst_68 : f32 to vector<16x1xf32>
    %154 = arith.divf %152, %153 : vector<16x1xf32>
    %cst_69 = arith.constant 9.99999974E-6 : f32
    %155 = vector.broadcast %cst_69 : f32 to vector<16x1xf32>
    %156 = arith.addf %154, %155 : vector<16x1xf32>
    %157 = math.rsqrt %156 : vector<16x1xf32>
    %158 = vector.broadcast %157 : vector<16x1xf32> to vector<16x16xf32>
    %159 = arith.mulf %149, %158 : vector<16x16xf32>
    %160 = vector.broadcast %141 : vector<1x16xf32> to vector<16x16xf32>
    %161 = arith.mulf %159, %160 : vector<16x16xf32>
    %162 = vector.broadcast %143 : vector<1x16xf32> to vector<16x16xf32>
    %163 = arith.addf %161, %162 : vector<16x16xf32>
    %164 = vector.extract_strided_slice %163 {offsets = [0, 0], sizes = [6, 16], strides = [1, 1]} : vector<16x16xf32> to vector<6x16xf32>
    %c2 = arith.constant 2 : index
    %c0_70 = arith.constant 0 : index
    %165 = vector.load %arg26[%c2, %c0_70] : memref<16x80xf32, #tpu.memory_space<vmem>>, vector<6x16xf32>
    tpu.vector_store %arg26[%c2, %c0_70], %164 {strides = array<i32>} : memref<16x80xf32, #tpu.memory_space<vmem>>, vector<6x16xf32>,
    %166 = vector.extract_strided_slice %163 {offsets = [0, 0], sizes = [7, 16], strides = [1, 1]} : vector<16x16xf32> to vector<7x16xf32>
    %c1_71 = arith.constant 1 : index
    %c16 = arith.constant 16 : index
    %167 = vector.load %arg26[%c1_71, %c16] : memref<16x80xf32, #tpu.memory_space<vmem>>, vector<7x16xf32>
    tpu.vector_store %arg26[%c1_71, %c16], %166 {strides = array<i32>} : memref<16x80xf32, #tpu.memory_space<vmem>>, vector<7x16xf32>,
    %168 = vector.extract_strided_slice %163 {offsets = [0, 0], sizes = [8, 16], strides = [1, 1]} : vector<16x16xf32> to vector<8x16xf32>
    %c0_72 = arith.constant 0 : index
    %c32 = arith.constant 32 : index
    %169 = vector.load %arg26[%c0_72, %c32] : memref<16x80xf32, #tpu.memory_space<vmem>>, vector<8x16xf32>
    tpu.vector_store %arg26[%c0_72, %c32], %168 {strides = array<i32>} : memref<16x80xf32, #tpu.memory_space<vmem>>, vector<8x16xf32>,
    %170 = vector.extract_strided_slice %163 {offsets = [1, 0], sizes = [7, 16], strides = [1, 1]} : vector<16x16xf32> to vector<7x16xf32>
    %c0_73 = arith.constant 0 : index
    %c48 = arith.constant 48 : index
    %171 = vector.load %arg26[%c0_73, %c48] : memref<16x80xf32, #tpu.memory_space<vmem>>, vector<7x16xf32>
    tpu.vector_store %arg26[%c0_73, %c48], %170 {strides = array<i32>} : memref<16x80xf32, #tpu.memory_space<vmem>>, vector<7x16xf32>,
    %172 = vector.extract_strided_slice %163 {offsets = [2, 0], sizes = [6, 16], strides = [1, 1]} : vector<16x16xf32> to vector<6x16xf32>
    %c0_74 = arith.constant 0 : index
    %c64 = arith.constant 64 : index
    %173 = vector.load %arg26[%c0_74, %c64] : memref<16x80xf32, #tpu.memory_space<vmem>>, vector<6x16xf32>
    tpu.vector_store %arg26[%c0_74, %c64], %172 {strides = array<i32>} : memref<16x80xf32, #tpu.memory_space<vmem>>, vector<6x16xf32>,
    %174 = vector.extract_strided_slice %163 {offsets = [8, 0], sizes = [6, 16], strides = [1, 1]} : vector<16x16xf32> to vector<6x16xf32>
    %c10 = arith.constant 10 : index
    %c0_75 = arith.constant 0 : index
    %175 = vector.load %arg26[%c10, %c0_75] : memref<16x80xf32, #tpu.memory_space<vmem>>, vector<6x16xf32>
    tpu.vector_store %arg26[%c10, %c0_75], %174 {strides = array<i32>} : memref<16x80xf32, #tpu.memory_space<vmem>>, vector<6x16xf32>,
    %176 = vector.extract_strided_slice %163 {offsets = [8, 0], sizes = [7, 16], strides = [1, 1]} : vector<16x16xf32> to vector<7x16xf32>
    %c9 = arith.constant 9 : index
    %c16_76 = arith.constant 16 : index
    %177 = vector.load %arg26[%c9, %c16_76] : memref<16x80xf32, #tpu.memory_space<vmem>>, vector<7x16xf32>
    tpu.vector_store %arg26[%c9, %c16_76], %176 {strides = array<i32>} : memref<16x80xf32, #tpu.memory_space<vmem>>, vector<7x16xf32>,
    %178 = vector.extract_strided_slice %163 {offsets = [8, 0], sizes = [8, 16], strides = [1, 1]} : vector<16x16xf32> to vector<8x16xf32>
    %c8 = arith.constant 8 : index
    %c32_77 = arith.constant 32 : index
    %179 = vector.load %arg26[%c8, %c32_77] : memref<16x80xf32, #tpu.memory_space<vmem>>, vector<8x16xf32>
    tpu.vector_store %arg26[%c8, %c32_77], %178 {strides = array<i32>} : memref<16x80xf32, #tpu.memory_space<vmem>>, vector<8x16xf32>,
    %180 = vector.extract_strided_slice %163 {offsets = [9, 0], sizes = [7, 16], strides = [1, 1]} : vector<16x16xf32> to vector<7x16xf32>
    %c8_78 = arith.constant 8 : index
    %c48_79 = arith.constant 48 : index
    %181 = vector.load %arg26[%c8_78, %c48_79] : memref<16x80xf32, #tpu.memory_space<vmem>>, vector<7x16xf32>
    tpu.vector_store %arg26[%c8_78, %c48_79], %180 {strides = array<i32>} : memref<16x80xf32, #tpu.memory_space<vmem>>, vector<7x16xf32>,
    %182 = vector.extract_strided_slice %163 {offsets = [10, 0], sizes = [6, 16], strides = [1, 1]} : vector<16x16xf32> to vector<6x16xf32>
    %c8_80 = arith.constant 8 : index
    %c64_81 = arith.constant 64 : index
    %183 = vector.load %arg26[%c8_80, %c64_81] : memref<16x80xf32, #tpu.memory_space<vmem>>, vector<6x16xf32>
    tpu.vector_store %arg26[%c8_80, %c64_81], %182 {strides = array<i32>} : memref<16x80xf32, #tpu.memory_space<vmem>>, vector<6x16xf32>,
    %c0_82 = arith.constant 0 : index
    %c0_83 = arith.constant 0 : index
    %184 = vector.load %arg26[%c0_82, %c0_83] : memref<16x80xf32, #tpu.memory_space<vmem>>, vector<16x80xf32>
    %c0_84 = arith.constant 0 : index
    %c0_85 = arith.constant 0 : index
    %c0_86 = arith.constant 0 : index
    %185 = vector.load %arg9[%c0_84, %c0_85, %c0_86] : memref<2x80x32xf32, #tpu.memory_space<vmem>>, vector<1x80x32xf32>
    %186 = vector.shape_cast %185 : vector<1x80x32xf32> to vector<80x32xf32>
    %cst_87 = arith.constant dense<0.000000e+00> : vector<16x32xf32>
    %187 = tpu.matmul %184, %186, %cst_87 {dimension_numbers = #tpu.dot_dimension_numbers<[1], [0], [0], [1], [0, 0, 1, 1], [], []>} : vector<16x80xf32>, vector<80x32xf32>, vector<16x32xf32> -> vector<16x32xf32>
    %c0_88 = arith.constant 0 : index
    %c0_89 = arith.constant 0 : index
    %c0_90 = arith.constant 0 : index
    %188 = vector.load %arg10[%c0_88, %c0_89, %c0_90] : memref<2x1x32xf32, #tpu.memory_space<vmem>>, vector<1x1x32xf32>
    %189 = vector.shape_cast %188 : vector<1x1x32xf32> to vector<1x32xf32>
    %190 = vector.broadcast %189 : vector<1x32xf32> to vector<16x32xf32>
    %191 = arith.addf %187, %190 : vector<16x32xf32>
    %c0_91 = arith.constant 0 : index
    %c0_92 = arith.constant 0 : index
    %c0_93 = arith.constant 0 : index
    %192 = vector.load %arg13[%c0_91, %c0_92, %c0_93] : memref<2x32x16xf32, #tpu.memory_space<vmem>>, vector<1x32x16xf32>
    %193 = vector.shape_cast %192 : vector<1x32x16xf32> to vector<32x16xf32>
    %cst_94 = arith.constant dense<0.000000e+00> : vector<16x16xf32>
    %194 = tpu.matmul %191, %193, %cst_94 {dimension_numbers = #tpu.dot_dimension_numbers<[1], [0], [0], [1], [0, 0, 1, 1], [], []>} : vector<16x32xf32>, vector<32x16xf32>, vector<16x16xf32> -> vector<16x16xf32>
    %c0_95 = arith.constant 0 : index
    %c0_96 = arith.constant 0 : index
    %c0_97 = arith.constant 0 : index
    %195 = vector.load %arg14[%c0_95, %c0_96, %c0_97] : memref<2x1x16xf32, #tpu.memory_space<vmem>>, vector<1x1x16xf32>
    %196 = vector.shape_cast %195 : vector<1x1x16xf32> to vector<1x16xf32>
    %197 = vector.broadcast %196 : vector<1x16xf32> to vector<16x16xf32>
    %198 = arith.addf %194, %197 : vector<16x16xf32>
    %c0_98 = arith.constant 0 : index
    %c0_99 = arith.constant 0 : index
    %c0_100 = arith.constant 0 : index
    %199 = vector.load %arg11[%c0_98, %c0_99, %c0_100] : memref<2x16x48xf32, #tpu.memory_space<vmem>>, vector<1x16x48xf32>
    %200 = vector.shape_cast %199 : vector<1x16x48xf32> to vector<16x48xf32>
    %cst_101 = arith.constant dense<0.000000e+00> : vector<16x48xf32>
    %201 = tpu.matmul %163, %200, %cst_101 {dimension_numbers = #tpu.dot_dimension_numbers<[1], [0], [0], [1], [0, 0, 1, 1], [], []>} : vector<16x16xf32>, vector<16x48xf32>, vector<16x48xf32> -> vector<16x48xf32>
    %c0_102 = arith.constant 0 : index
    %c0_103 = arith.constant 0 : index
    %c0_104 = arith.constant 0 : index
    %202 = vector.load %arg12[%c0_102, %c0_103, %c0_104] : memref<2x1x48xf32, #tpu.memory_space<vmem>>, vector<1x1x48xf32>
    %203 = vector.shape_cast %202 : vector<1x1x48xf32> to vector<1x48xf32>
    %204 = vector.broadcast %203 : vector<1x48xf32> to vector<16x48xf32>
    %205 = arith.addf %201, %204 : vector<16x48xf32>
    %206 = vector.extract_strided_slice %205 {offsets = [0, 0], sizes = [16, 16], strides = [1, 1]} : vector<16x48xf32> to vector<16x16xf32>
    %cst_105 = arith.constant 5.000000e-01 : f32
    %207 = vector.broadcast %cst_105 : f32 to vector<16x16xf32>
    %208 = arith.mulf %206, %207 : vector<16x16xf32>
    %209 = vector.extract_strided_slice %205 {offsets = [0, 16], sizes = [16, 16], strides = [1, 1]} : vector<16x48xf32> to vector<16x16xf32>
    %210 = vector.extract_strided_slice %205 {offsets = [0, 32], sizes = [16, 16], strides = [1, 1]} : vector<16x48xf32> to vector<16x16xf32>
    %211 = vector.extract_strided_slice %208 {offsets = [0, 0], sizes = [8, 16], strides = [1, 1]} : vector<16x16xf32> to vector<8x16xf32>
    %212 = vector.extract_strided_slice %210 {offsets = [0, 0], sizes = [8, 16], strides = [1, 1]} : vector<16x16xf32> to vector<8x16xf32>
    %213 = vector.extract_strided_slice %198 {offsets = [0, 0], sizes = [8, 16], strides = [1, 1]} : vector<16x16xf32> to vector<8x16xf32>
    %214 = vector.extract_strided_slice %209 {offsets = [0, 0], sizes = [8, 16], strides = [1, 1]} : vector<16x16xf32> to vector<8x16xf32>
    %215 = tpu.concatenate %213, %214 in 0 : vector<8x16xf32>, vector<8x16xf32> -> vector<16x16xf32>
    %216 = vector.broadcast %7 : vector<1x16xf32> to vector<8x16xf32>
    %217 = arith.mulf %211, %216 : vector<8x16xf32>
    %218 = vector.broadcast %14 : vector<1x16xf32> to vector<8x16xf32>
    %219 = arith.mulf %211, %218 : vector<8x16xf32>
    %220 = vector.broadcast %21 : vector<1x16xf32> to vector<8x16xf32>
    %221 = arith.mulf %211, %220 : vector<8x16xf32>
    %222 = vector.broadcast %28 : vector<1x16xf32> to vector<8x16xf32>
    %223 = arith.mulf %211, %222 : vector<8x16xf32>
    %224 = tpu.concatenate %217, %219, %221, %223 in 0 : vector<8x16xf32>, vector<8x16xf32>, vector<8x16xf32>, vector<8x16xf32> -> vector<32x16xf32>
    %cst_106 = arith.constant dense<0.000000e+00> : vector<32x16xf32>
    %225 = tpu.matmul %224, %215, %cst_106 {dimension_numbers = #tpu.dot_dimension_numbers<[1], [1], [0], [0], [0, 0, 1, 0], [], []>} : vector<32x16xf32>, vector<16x16xf32>, vector<32x16xf32> -> vector<32x16xf32>
    %226 = vector.extract_strided_slice %225 {offsets = [0, 0], sizes = [32, 8], strides = [1, 1]} : vector<32x16xf32> to vector<32x8xf32>
    %cst_107 = arith.constant dense<0xFF800000> : vector<32xf32>
    %227 = vector.multi_reduction <maximumf>, %226, %cst_107 [1] : vector<32x8xf32> to vector<32xf32>
    %228 = vector.shape_cast %227 : vector<32xf32> to vector<32x1xf32>
    %229 = vector.broadcast %228 : vector<32x1xf32> to vector<32x8xf32>
    %230 = arith.subf %226, %229 : vector<32x8xf32>
    %231 = math.exp %230 : vector<32x8xf32>
    %cst_108 = arith.constant dense<0.000000e+00> : vector<32xf32>
    %232 = vector.multi_reduction <add>, %231, %cst_108 [1] : vector<32x8xf32> to vector<32xf32>
    %233 = vector.shape_cast %232 : vector<32xf32> to vector<32x1xf32>
    %234 = vector.broadcast %233 : vector<32x1xf32> to vector<32x8xf32>
    %235 = arith.divf %231, %234 : vector<32x8xf32>
    %236 = vector.extract_strided_slice %225 {offsets = [0, 8], sizes = [32, 8], strides = [1, 1]} : vector<32x16xf32> to vector<32x8xf32>
    %cst_109 = arith.constant dense<0xFF800000> : vector<32xf32>
    %237 = vector.multi_reduction <maximumf>, %236, %cst_109 [1] : vector<32x8xf32> to vector<32xf32>
    %238 = vector.shape_cast %237 : vector<32xf32> to vector<32x1xf32>
    %239 = vector.broadcast %238 : vector<32x1xf32> to vector<32x8xf32>
    %240 = arith.subf %236, %239 : vector<32x8xf32>
    %241 = math.exp %240 : vector<32x8xf32>
    %cst_110 = arith.constant dense<0.000000e+00> : vector<32xf32>
    %242 = vector.multi_reduction <add>, %241, %cst_110 [1] : vector<32x8xf32> to vector<32xf32>
    %243 = vector.shape_cast %242 : vector<32xf32> to vector<32x1xf32>
    %244 = vector.broadcast %243 : vector<32x1xf32> to vector<32x8xf32>
    %245 = arith.divf %241, %244 : vector<32x8xf32>
    %246 = arith.addf %235, %245 : vector<32x8xf32>
    %cst_111 = arith.constant 0.000000e+00 : f32
    %247 = vector.broadcast %cst_111 : f32 to vector<8x16xf32>
    %248 = vector.extract_strided_slice %246 {offsets = [0, 0], sizes = [8, 8], strides = [1, 1]} : vector<32x8xf32> to vector<8x8xf32>
    %249 = vector.broadcast %7 : vector<1x16xf32> to vector<8x16xf32>
    %250 = arith.mulf %212, %249 : vector<8x16xf32>
    %cst_112 = arith.constant dense<0.000000e+00> : vector<8x16xf32>
    %251 = tpu.matmul %248, %250, %cst_112 {dimension_numbers = #tpu.dot_dimension_numbers<[1], [0], [0], [1], [0, 0, 1, 1], [], []>} : vector<8x8xf32>, vector<8x16xf32>, vector<8x16xf32> -> vector<8x16xf32>
    %252 = arith.addf %247, %251 : vector<8x16xf32>
    %253 = vector.extract_strided_slice %246 {offsets = [8, 0], sizes = [8, 8], strides = [1, 1]} : vector<32x8xf32> to vector<8x8xf32>
    %254 = vector.broadcast %14 : vector<1x16xf32> to vector<8x16xf32>
    %255 = arith.mulf %212, %254 : vector<8x16xf32>
    %cst_113 = arith.constant dense<0.000000e+00> : vector<8x16xf32>
    %256 = tpu.matmul %253, %255, %cst_113 {dimension_numbers = #tpu.dot_dimension_numbers<[1], [0], [0], [1], [0, 0, 1, 1], [], []>} : vector<8x8xf32>, vector<8x16xf32>, vector<8x16xf32> -> vector<8x16xf32>
    %257 = arith.addf %252, %256 : vector<8x16xf32>
    %258 = vector.extract_strided_slice %246 {offsets = [16, 0], sizes = [8, 8], strides = [1, 1]} : vector<32x8xf32> to vector<8x8xf32>
    %259 = vector.broadcast %21 : vector<1x16xf32> to vector<8x16xf32>
    %260 = arith.mulf %212, %259 : vector<8x16xf32>
    %cst_114 = arith.constant dense<0.000000e+00> : vector<8x16xf32>
    %261 = tpu.matmul %258, %260, %cst_114 {dimension_numbers = #tpu.dot_dimension_numbers<[1], [0], [0], [1], [0, 0, 1, 1], [], []>} : vector<8x8xf32>, vector<8x16xf32>, vector<8x16xf32> -> vector<8x16xf32>
    %262 = arith.addf %257, %261 : vector<8x16xf32>
    %263 = vector.extract_strided_slice %246 {offsets = [24, 0], sizes = [8, 8], strides = [1, 1]} : vector<32x8xf32> to vector<8x8xf32>
    %264 = vector.broadcast %28 : vector<1x16xf32> to vector<8x16xf32>
    %265 = arith.mulf %212, %264 : vector<8x16xf32>
    %cst_115 = arith.constant dense<0.000000e+00> : vector<8x16xf32>
    %266 = tpu.matmul %263, %265, %cst_115 {dimension_numbers = #tpu.dot_dimension_numbers<[1], [0], [0], [1], [0, 0, 1, 1], [], []>} : vector<8x8xf32>, vector<8x16xf32>, vector<8x16xf32> -> vector<8x16xf32>
    %267 = arith.addf %262, %266 : vector<8x16xf32>
    %268 = vector.extract_strided_slice %208 {offsets = [8, 0], sizes = [8, 16], strides = [1, 1]} : vector<16x16xf32> to vector<8x16xf32>
    %269 = vector.extract_strided_slice %210 {offsets = [8, 0], sizes = [8, 16], strides = [1, 1]} : vector<16x16xf32> to vector<8x16xf32>
    %270 = vector.extract_strided_slice %198 {offsets = [8, 0], sizes = [8, 16], strides = [1, 1]} : vector<16x16xf32> to vector<8x16xf32>
    %271 = vector.extract_strided_slice %209 {offsets = [8, 0], sizes = [8, 16], strides = [1, 1]} : vector<16x16xf32> to vector<8x16xf32>
    %272 = tpu.concatenate %270, %271 in 0 : vector<8x16xf32>, vector<8x16xf32> -> vector<16x16xf32>
    %273 = vector.broadcast %7 : vector<1x16xf32> to vector<8x16xf32>
    %274 = arith.mulf %268, %273 : vector<8x16xf32>
    %275 = vector.broadcast %14 : vector<1x16xf32> to vector<8x16xf32>
    %276 = arith.mulf %268, %275 : vector<8x16xf32>
    %277 = vector.broadcast %21 : vector<1x16xf32> to vector<8x16xf32>
    %278 = arith.mulf %268, %277 : vector<8x16xf32>
    %279 = vector.broadcast %28 : vector<1x16xf32> to vector<8x16xf32>
    %280 = arith.mulf %268, %279 : vector<8x16xf32>
    %281 = tpu.concatenate %274, %276, %278, %280 in 0 : vector<8x16xf32>, vector<8x16xf32>, vector<8x16xf32>, vector<8x16xf32> -> vector<32x16xf32>
    %cst_116 = arith.constant dense<0.000000e+00> : vector<32x16xf32>
    %282 = tpu.matmul %281, %272, %cst_116 {dimension_numbers = #tpu.dot_dimension_numbers<[1], [1], [0], [0], [0, 0, 1, 0], [], []>} : vector<32x16xf32>, vector<16x16xf32>, vector<32x16xf32> -> vector<32x16xf32>
    %283 = vector.extract_strided_slice %282 {offsets = [0, 0], sizes = [32, 8], strides = [1, 1]} : vector<32x16xf32> to vector<32x8xf32>
    %cst_117 = arith.constant dense<0xFF800000> : vector<32xf32>
    %284 = vector.multi_reduction <maximumf>, %283, %cst_117 [1] : vector<32x8xf32> to vector<32xf32>
    %285 = vector.shape_cast %284 : vector<32xf32> to vector<32x1xf32>
    %286 = vector.broadcast %285 : vector<32x1xf32> to vector<32x8xf32>
    %287 = arith.subf %283, %286 : vector<32x8xf32>
    %288 = math.exp %287 : vector<32x8xf32>
    %cst_118 = arith.constant dense<0.000000e+00> : vector<32xf32>
    %289 = vector.multi_reduction <add>, %288, %cst_118 [1] : vector<32x8xf32> to vector<32xf32>
    %290 = vector.shape_cast %289 : vector<32xf32> to vector<32x1xf32>
    %291 = vector.broadcast %290 : vector<32x1xf32> to vector<32x8xf32>
    %292 = arith.divf %288, %291 : vector<32x8xf32>
    %293 = vector.extract_strided_slice %282 {offsets = [0, 8], sizes = [32, 8], strides = [1, 1]} : vector<32x16xf32> to vector<32x8xf32>
    %cst_119 = arith.constant dense<0xFF800000> : vector<32xf32>
    %294 = vector.multi_reduction <maximumf>, %293, %cst_119 [1] : vector<32x8xf32> to vector<32xf32>
    %295 = vector.shape_cast %294 : vector<32xf32> to vector<32x1xf32>
    %296 = vector.broadcast %295 : vector<32x1xf32> to vector<32x8xf32>
    %297 = arith.subf %293, %296 : vector<32x8xf32>
    %298 = math.exp %297 : vector<32x8xf32>
    %cst_120 = arith.constant dense<0.000000e+00> : vector<32xf32>
    %299 = vector.multi_reduction <add>, %298, %cst_120 [1] : vector<32x8xf32> to vector<32xf32>
    %300 = vector.shape_cast %299 : vector<32xf32> to vector<32x1xf32>
    %301 = vector.broadcast %300 : vector<32x1xf32> to vector<32x8xf32>
    %302 = arith.divf %298, %301 : vector<32x8xf32>
    %303 = arith.addf %292, %302 : vector<32x8xf32>
    %cst_121 = arith.constant 0.000000e+00 : f32
    %304 = vector.broadcast %cst_121 : f32 to vector<8x16xf32>
    %305 = vector.extract_strided_slice %303 {offsets = [0, 0], sizes = [8, 8], strides = [1, 1]} : vector<32x8xf32> to vector<8x8xf32>
    %306 = vector.broadcast %7 : vector<1x16xf32> to vector<8x16xf32>
    %307 = arith.mulf %269, %306 : vector<8x16xf32>
    %cst_122 = arith.constant dense<0.000000e+00> : vector<8x16xf32>
    %308 = tpu.matmul %305, %307, %cst_122 {dimension_numbers = #tpu.dot_dimension_numbers<[1], [0], [0], [1], [0, 0, 1, 1], [], []>} : vector<8x8xf32>, vector<8x16xf32>, vector<8x16xf32> -> vector<8x16xf32>
    %309 = arith.addf %304, %308 : vector<8x16xf32>
    %310 = vector.extract_strided_slice %303 {offsets = [8, 0], sizes = [8, 8], strides = [1, 1]} : vector<32x8xf32> to vector<8x8xf32>
    %311 = vector.broadcast %14 : vector<1x16xf32> to vector<8x16xf32>
    %312 = arith.mulf %269, %311 : vector<8x16xf32>
    %cst_123 = arith.constant dense<0.000000e+00> : vector<8x16xf32>
    %313 = tpu.matmul %310, %312, %cst_123 {dimension_numbers = #tpu.dot_dimension_numbers<[1], [0], [0], [1], [0, 0, 1, 1], [], []>} : vector<8x8xf32>, vector<8x16xf32>, vector<8x16xf32> -> vector<8x16xf32>
    %314 = arith.addf %309, %313 : vector<8x16xf32>
    %315 = vector.extract_strided_slice %303 {offsets = [16, 0], sizes = [8, 8], strides = [1, 1]} : vector<32x8xf32> to vector<8x8xf32>
    %316 = vector.broadcast %21 : vector<1x16xf32> to vector<8x16xf32>
    %317 = arith.mulf %269, %316 : vector<8x16xf32>
    %cst_124 = arith.constant dense<0.000000e+00> : vector<8x16xf32>
    %318 = tpu.matmul %315, %317, %cst_124 {dimension_numbers = #tpu.dot_dimension_numbers<[1], [0], [0], [1], [0, 0, 1, 1], [], []>} : vector<8x8xf32>, vector<8x16xf32>, vector<8x16xf32> -> vector<8x16xf32>
    %319 = arith.addf %314, %318 : vector<8x16xf32>
    %320 = vector.extract_strided_slice %303 {offsets = [24, 0], sizes = [8, 8], strides = [1, 1]} : vector<32x8xf32> to vector<8x8xf32>
    %321 = vector.broadcast %28 : vector<1x16xf32> to vector<8x16xf32>
    %322 = arith.mulf %269, %321 : vector<8x16xf32>
    %cst_125 = arith.constant dense<0.000000e+00> : vector<8x16xf32>
    %323 = tpu.matmul %320, %322, %cst_125 {dimension_numbers = #tpu.dot_dimension_numbers<[1], [0], [0], [1], [0, 0, 1, 1], [], []>} : vector<8x8xf32>, vector<8x16xf32>, vector<8x16xf32> -> vector<8x16xf32>
    %324 = arith.addf %319, %323 : vector<8x16xf32>
    %325 = tpu.concatenate %267, %324 in 0 : vector<8x16xf32>, vector<8x16xf32> -> vector<16x16xf32>
    %c0_126 = arith.constant 0 : index
    %c0_127 = arith.constant 0 : index
    %c0_128 = arith.constant 0 : index
    %326 = vector.load %arg15[%c0_126, %c0_127, %c0_128] : memref<2x16x16xf32, #tpu.memory_space<vmem>>, vector<1x16x16xf32>
    %327 = vector.shape_cast %326 : vector<1x16x16xf32> to vector<16x16xf32>
    %cst_129 = arith.constant dense<0.000000e+00> : vector<16x16xf32>
    %328 = tpu.matmul %325, %327, %cst_129 {dimension_numbers = #tpu.dot_dimension_numbers<[1], [0], [0], [1], [0, 0, 1, 1], [], []>} : vector<16x16xf32>, vector<16x16xf32>, vector<16x16xf32> -> vector<16x16xf32>
    %c0_130 = arith.constant 0 : index
    %c0_131 = arith.constant 0 : index
    %c0_132 = arith.constant 0 : index
    %329 = vector.load %arg16[%c0_130, %c0_131, %c0_132] : memref<2x1x16xf32, #tpu.memory_space<vmem>>, vector<1x1x16xf32>
    %330 = vector.shape_cast %329 : vector<1x1x16xf32> to vector<1x16xf32>
    %331 = vector.broadcast %330 : vector<1x16xf32> to vector<16x16xf32>
    %332 = arith.addf %328, %331 : vector<16x16xf32>
    %333 = arith.addf %137, %332 : vector<16x16xf32>
    %c0_133 = arith.constant 0 : index
    %c0_134 = arith.constant 0 : index
    %c0_135 = arith.constant 0 : index
    %334 = vector.load %arg17[%c0_133, %c0_134, %c0_135] : memref<2x1x16xf32, #tpu.memory_space<vmem>>, vector<1x1x16xf32>
    %335 = vector.shape_cast %334 : vector<1x1x16xf32> to vector<1x16xf32>
    %c0_136 = arith.constant 0 : index
    %c0_137 = arith.constant 0 : index
    %c0_138 = arith.constant 0 : index
    %336 = vector.load %arg18[%c0_136, %c0_137, %c0_138] : memref<2x1x16xf32, #tpu.memory_space<vmem>>, vector<1x1x16xf32>
    %337 = vector.shape_cast %336 : vector<1x1x16xf32> to vector<1x16xf32>
    %cst_139 = arith.constant dense<0.000000e+00> : vector<16xf32>
    %338 = vector.multi_reduction <add>, %333, %cst_139 [1] : vector<16x16xf32> to vector<16xf32>
    %339 = vector.shape_cast %338 : vector<16xf32> to vector<16x1xf32>
    %cst_140 = arith.constant 1.600000e+01 : f32
    %340 = vector.broadcast %cst_140 : f32 to vector<16x1xf32>
    %341 = arith.divf %339, %340 : vector<16x1xf32>
    %342 = vector.broadcast %341 : vector<16x1xf32> to vector<16x16xf32>
    %343 = arith.subf %333, %342 : vector<16x16xf32>
    %344 = arith.mulf %343, %343 : vector<16x16xf32>
    %cst_141 = arith.constant dense<0.000000e+00> : vector<16xf32>
    %345 = vector.multi_reduction <add>, %344, %cst_141 [1] : vector<16x16xf32> to vector<16xf32>
    %346 = vector.shape_cast %345 : vector<16xf32> to vector<16x1xf32>
    %cst_142 = arith.constant 1.600000e+01 : f32
    %347 = vector.broadcast %cst_142 : f32 to vector<16x1xf32>
    %348 = arith.divf %346, %347 : vector<16x1xf32>
    %cst_143 = arith.constant 9.99999974E-6 : f32
    %349 = vector.broadcast %cst_143 : f32 to vector<16x1xf32>
    %350 = arith.addf %348, %349 : vector<16x1xf32>
    %351 = math.rsqrt %350 : vector<16x1xf32>
    %352 = vector.broadcast %351 : vector<16x1xf32> to vector<16x16xf32>
    %353 = arith.mulf %343, %352 : vector<16x16xf32>
    %354 = vector.broadcast %335 : vector<1x16xf32> to vector<16x16xf32>
    %355 = arith.mulf %353, %354 : vector<16x16xf32>
    %356 = vector.broadcast %337 : vector<1x16xf32> to vector<16x16xf32>
    %357 = arith.addf %355, %356 : vector<16x16xf32>
    %c0_144 = arith.constant 0 : index
    %c0_145 = arith.constant 0 : index
    %c0_146 = arith.constant 0 : index
    %358 = vector.load %arg19[%c0_144, %c0_145, %c0_146] : memref<2x16x32xf32, #tpu.memory_space<vmem>>, vector<1x16x32xf32>
    %359 = vector.shape_cast %358 : vector<1x16x32xf32> to vector<16x32xf32>
    %cst_147 = arith.constant dense<0.000000e+00> : vector<16x32xf32>
    %360 = tpu.matmul %357, %359, %cst_147 {dimension_numbers = #tpu.dot_dimension_numbers<[1], [0], [0], [1], [0, 0, 1, 1], [], []>} : vector<16x16xf32>, vector<16x32xf32>, vector<16x32xf32> -> vector<16x32xf32>
    %c0_148 = arith.constant 0 : index
    %c0_149 = arith.constant 0 : index
    %c0_150 = arith.constant 0 : index
    %361 = vector.load %arg20[%c0_148, %c0_149, %c0_150] : memref<2x1x32xf32, #tpu.memory_space<vmem>>, vector<1x1x32xf32>
    %362 = vector.shape_cast %361 : vector<1x1x32xf32> to vector<1x32xf32>
    %363 = vector.broadcast %362 : vector<1x32xf32> to vector<16x32xf32>
    %364 = arith.addf %360, %363 : vector<16x32xf32>
    %cst_151 = arith.constant 0.707106769 : f32
    %365 = vector.broadcast %cst_151 : f32 to vector<16x32xf32>
    %366 = arith.mulf %364, %365 : vector<16x32xf32>
    %367 = math.absf %366 : vector<16x32xf32>
    %cst_152 = arith.constant 0.327591091 : f32
    %368 = vector.broadcast %cst_152 : f32 to vector<16x32xf32>
    %369 = arith.mulf %368, %367 : vector<16x32xf32>
    %cst_153 = arith.constant 1.000000e+00 : f32
    %370 = vector.broadcast %cst_153 : f32 to vector<16x32xf32>
    %371 = arith.addf %370, %369 : vector<16x32xf32>
    %cst_154 = arith.constant 1.000000e+00 : f32
    %372 = vector.broadcast %cst_154 : f32 to vector<16x32xf32>
    %373 = arith.divf %372, %371 : vector<16x32xf32>
    %cst_155 = arith.constant 1.06140542 : f32
    %374 = vector.broadcast %cst_155 : f32 to vector<16x32xf32>
    %375 = arith.mulf %373, %374 : vector<16x32xf32>
    %cst_156 = arith.constant -1.45315206 : f32
    %376 = vector.broadcast %cst_156 : f32 to vector<16x32xf32>
    %377 = arith.addf %376, %375 : vector<16x32xf32>
    %378 = arith.mulf %373, %377 : vector<16x32xf32>
    %cst_157 = arith.constant 1.42141378 : f32
    %379 = vector.broadcast %cst_157 : f32 to vector<16x32xf32>
    %380 = arith.addf %379, %378 : vector<16x32xf32>
    %381 = arith.mulf %373, %380 : vector<16x32xf32>
    %cst_158 = arith.constant -0.284496725 : f32
    %382 = vector.broadcast %cst_158 : f32 to vector<16x32xf32>
    %383 = arith.addf %382, %381 : vector<16x32xf32>
    %384 = arith.mulf %373, %383 : vector<16x32xf32>
    %cst_159 = arith.constant 0.254829586 : f32
    %385 = vector.broadcast %cst_159 : f32 to vector<16x32xf32>
    %386 = arith.addf %385, %384 : vector<16x32xf32>
    %387 = arith.mulf %373, %386 : vector<16x32xf32>
    %cst_160 = arith.constant 0.000000e+00 : f32
    %388 = vector.broadcast %cst_160 : f32 to vector<16x32xf32>
    %389 = arith.subf %388, %367 : vector<16x32xf32>
    %390 = arith.mulf %389, %367 : vector<16x32xf32>
    %391 = math.exp %390 : vector<16x32xf32>
    %392 = arith.mulf %387, %391 : vector<16x32xf32>
    %cst_161 = arith.constant 1.000000e+00 : f32
    %393 = vector.broadcast %cst_161 : f32 to vector<16x32xf32>
    %394 = arith.subf %393, %392 : vector<16x32xf32>
    %cst_162 = arith.constant 0.000000e+00 : f32
    %395 = vector.broadcast %cst_162 : f32 to vector<16x32xf32>
    %396 = arith.cmpf oge, %366, %395 : vector<16x32xf32>
    %cst_163 = arith.constant 0.000000e+00 : f32
    %397 = vector.broadcast %cst_163 : f32 to vector<16x32xf32>
    %398 = arith.subf %397, %394 : vector<16x32xf32>
    %399 = arith.select %396, %394, %398 : vector<16x32xi1>, vector<16x32xf32>
    %cst_164 = arith.constant 5.000000e-01 : f32
    %400 = vector.broadcast %cst_164 : f32 to vector<16x32xf32>
    %401 = arith.mulf %400, %364 : vector<16x32xf32>
    %cst_165 = arith.constant 1.000000e+00 : f32
    %402 = vector.broadcast %cst_165 : f32 to vector<16x32xf32>
    %403 = arith.addf %402, %399 : vector<16x32xf32>
    %404 = arith.mulf %401, %403 : vector<16x32xf32>
    %c0_166 = arith.constant 0 : index
    %c0_167 = arith.constant 0 : index
    %c0_168 = arith.constant 0 : index
    %405 = vector.load %arg21[%c0_166, %c0_167, %c0_168] : memref<2x32x16xf32, #tpu.memory_space<vmem>>, vector<1x32x16xf32>
    %406 = vector.shape_cast %405 : vector<1x32x16xf32> to vector<32x16xf32>
    %cst_169 = arith.constant dense<0.000000e+00> : vector<16x16xf32>
    %407 = tpu.matmul %404, %406, %cst_169 {dimension_numbers = #tpu.dot_dimension_numbers<[1], [0], [0], [1], [0, 0, 1, 1], [], []>} : vector<16x32xf32>, vector<32x16xf32>, vector<16x16xf32> -> vector<16x16xf32>
    %c0_170 = arith.constant 0 : index
    %c0_171 = arith.constant 0 : index
    %c0_172 = arith.constant 0 : index
    %408 = vector.load %arg22[%c0_170, %c0_171, %c0_172] : memref<2x1x16xf32, #tpu.memory_space<vmem>>, vector<1x1x16xf32>
    %409 = vector.shape_cast %408 : vector<1x1x16xf32> to vector<1x16xf32>
    %410 = vector.broadcast %409 : vector<1x16xf32> to vector<16x16xf32>
    %411 = arith.addf %407, %410 : vector<16x16xf32>
    %412 = arith.addf %333, %411 : vector<16x16xf32>
    %c1_173 = arith.constant 1 : index
    %c0_174 = arith.constant 0 : index
    %c0_175 = arith.constant 0 : index
    %413 = vector.load %arg7[%c1_173, %c0_174, %c0_175] : memref<2x1x16xf32, #tpu.memory_space<vmem>>, vector<1x1x16xf32>
    %414 = vector.shape_cast %413 : vector<1x1x16xf32> to vector<1x16xf32>
    %c1_176 = arith.constant 1 : index
    %c0_177 = arith.constant 0 : index
    %c0_178 = arith.constant 0 : index
    %415 = vector.load %arg8[%c1_176, %c0_177, %c0_178] : memref<2x1x16xf32, #tpu.memory_space<vmem>>, vector<1x1x16xf32>
    %416 = vector.shape_cast %415 : vector<1x1x16xf32> to vector<1x16xf32>
    %cst_179 = arith.constant dense<0.000000e+00> : vector<16xf32>
    %417 = vector.multi_reduction <add>, %412, %cst_179 [1] : vector<16x16xf32> to vector<16xf32>
    %418 = vector.shape_cast %417 : vector<16xf32> to vector<16x1xf32>
    %cst_180 = arith.constant 1.600000e+01 : f32
    %419 = vector.broadcast %cst_180 : f32 to vector<16x1xf32>
    %420 = arith.divf %418, %419 : vector<16x1xf32>
    %421 = vector.broadcast %420 : vector<16x1xf32> to vector<16x16xf32>
    %422 = arith.subf %412, %421 : vector<16x16xf32>
    %423 = arith.mulf %422, %422 : vector<16x16xf32>
    %cst_181 = arith.constant dense<0.000000e+00> : vector<16xf32>
    %424 = vector.multi_reduction <add>, %423, %cst_181 [1] : vector<16x16xf32> to vector<16xf32>
    %425 = vector.shape_cast %424 : vector<16xf32> to vector<16x1xf32>
    %cst_182 = arith.constant 1.600000e+01 : f32
    %426 = vector.broadcast %cst_182 : f32 to vector<16x1xf32>
    %427 = arith.divf %425, %426 : vector<16x1xf32>
    %cst_183 = arith.constant 9.99999974E-6 : f32
    %428 = vector.broadcast %cst_183 : f32 to vector<16x1xf32>
    %429 = arith.addf %427, %428 : vector<16x1xf32>
    %430 = math.rsqrt %429 : vector<16x1xf32>
    %431 = vector.broadcast %430 : vector<16x1xf32> to vector<16x16xf32>
    %432 = arith.mulf %422, %431 : vector<16x16xf32>
    %433 = vector.broadcast %414 : vector<1x16xf32> to vector<16x16xf32>
    %434 = arith.mulf %432, %433 : vector<16x16xf32>
    %435 = vector.broadcast %416 : vector<1x16xf32> to vector<16x16xf32>
    %436 = arith.addf %434, %435 : vector<16x16xf32>
    %437 = vector.extract_strided_slice %436 {offsets = [0, 0], sizes = [6, 16], strides = [1, 1]} : vector<16x16xf32> to vector<6x16xf32>
    %c2_184 = arith.constant 2 : index
    %c0_185 = arith.constant 0 : index
    %438 = vector.load %arg26[%c2_184, %c0_185] : memref<16x80xf32, #tpu.memory_space<vmem>>, vector<6x16xf32>
    tpu.vector_store %arg26[%c2_184, %c0_185], %437 {strides = array<i32>} : memref<16x80xf32, #tpu.memory_space<vmem>>, vector<6x16xf32>,
    %439 = vector.extract_strided_slice %436 {offsets = [0, 0], sizes = [7, 16], strides = [1, 1]} : vector<16x16xf32> to vector<7x16xf32>
    %c1_186 = arith.constant 1 : index
    %c16_187 = arith.constant 16 : index
    %440 = vector.load %arg26[%c1_186, %c16_187] : memref<16x80xf32, #tpu.memory_space<vmem>>, vector<7x16xf32>
    tpu.vector_store %arg26[%c1_186, %c16_187], %439 {strides = array<i32>} : memref<16x80xf32, #tpu.memory_space<vmem>>, vector<7x16xf32>,
    %441 = vector.extract_strided_slice %436 {offsets = [0, 0], sizes = [8, 16], strides = [1, 1]} : vector<16x16xf32> to vector<8x16xf32>
    %c0_188 = arith.constant 0 : index
    %c32_189 = arith.constant 32 : index
    %442 = vector.load %arg26[%c0_188, %c32_189] : memref<16x80xf32, #tpu.memory_space<vmem>>, vector<8x16xf32>
    tpu.vector_store %arg26[%c0_188, %c32_189], %441 {strides = array<i32>} : memref<16x80xf32, #tpu.memory_space<vmem>>, vector<8x16xf32>,
    %443 = vector.extract_strided_slice %436 {offsets = [1, 0], sizes = [7, 16], strides = [1, 1]} : vector<16x16xf32> to vector<7x16xf32>
    %c0_190 = arith.constant 0 : index
    %c48_191 = arith.constant 48 : index
    %444 = vector.load %arg26[%c0_190, %c48_191] : memref<16x80xf32, #tpu.memory_space<vmem>>, vector<7x16xf32>
    tpu.vector_store %arg26[%c0_190, %c48_191], %443 {strides = array<i32>} : memref<16x80xf32, #tpu.memory_space<vmem>>, vector<7x16xf32>,
    %445 = vector.extract_strided_slice %436 {offsets = [2, 0], sizes = [6, 16], strides = [1, 1]} : vector<16x16xf32> to vector<6x16xf32>
    %c0_192 = arith.constant 0 : index
    %c64_193 = arith.constant 64 : index
    %446 = vector.load %arg26[%c0_192, %c64_193] : memref<16x80xf32, #tpu.memory_space<vmem>>, vector<6x16xf32>
    tpu.vector_store %arg26[%c0_192, %c64_193], %445 {strides = array<i32>} : memref<16x80xf32, #tpu.memory_space<vmem>>, vector<6x16xf32>,
    %447 = vector.extract_strided_slice %436 {offsets = [8, 0], sizes = [6, 16], strides = [1, 1]} : vector<16x16xf32> to vector<6x16xf32>
    %c10_194 = arith.constant 10 : index
    %c0_195 = arith.constant 0 : index
    %448 = vector.load %arg26[%c10_194, %c0_195] : memref<16x80xf32, #tpu.memory_space<vmem>>, vector<6x16xf32>
    tpu.vector_store %arg26[%c10_194, %c0_195], %447 {strides = array<i32>} : memref<16x80xf32, #tpu.memory_space<vmem>>, vector<6x16xf32>,
    %449 = vector.extract_strided_slice %436 {offsets = [8, 0], sizes = [7, 16], strides = [1, 1]} : vector<16x16xf32> to vector<7x16xf32>
    %c9_196 = arith.constant 9 : index
    %c16_197 = arith.constant 16 : index
    %450 = vector.load %arg26[%c9_196, %c16_197] : memref<16x80xf32, #tpu.memory_space<vmem>>, vector<7x16xf32>
    tpu.vector_store %arg26[%c9_196, %c16_197], %449 {strides = array<i32>} : memref<16x80xf32, #tpu.memory_space<vmem>>, vector<7x16xf32>,
    %451 = vector.extract_strided_slice %436 {offsets = [8, 0], sizes = [8, 16], strides = [1, 1]} : vector<16x16xf32> to vector<8x16xf32>
    %c8_198 = arith.constant 8 : index
    %c32_199 = arith.constant 32 : index
    %452 = vector.load %arg26[%c8_198, %c32_199] : memref<16x80xf32, #tpu.memory_space<vmem>>, vector<8x16xf32>
    tpu.vector_store %arg26[%c8_198, %c32_199], %451 {strides = array<i32>} : memref<16x80xf32, #tpu.memory_space<vmem>>, vector<8x16xf32>,
    %453 = vector.extract_strided_slice %436 {offsets = [9, 0], sizes = [7, 16], strides = [1, 1]} : vector<16x16xf32> to vector<7x16xf32>
    %c8_200 = arith.constant 8 : index
    %c48_201 = arith.constant 48 : index
    %454 = vector.load %arg26[%c8_200, %c48_201] : memref<16x80xf32, #tpu.memory_space<vmem>>, vector<7x16xf32>
    tpu.vector_store %arg26[%c8_200, %c48_201], %453 {strides = array<i32>} : memref<16x80xf32, #tpu.memory_space<vmem>>, vector<7x16xf32>,
    %455 = vector.extract_strided_slice %436 {offsets = [10, 0], sizes = [6, 16], strides = [1, 1]} : vector<16x16xf32> to vector<6x16xf32>
    %c8_202 = arith.constant 8 : index
    %c64_203 = arith.constant 64 : index
    %456 = vector.load %arg26[%c8_202, %c64_203] : memref<16x80xf32, #tpu.memory_space<vmem>>, vector<6x16xf32>
    tpu.vector_store %arg26[%c8_202, %c64_203], %455 {strides = array<i32>} : memref<16x80xf32, #tpu.memory_space<vmem>>, vector<6x16xf32>,
    %c0_204 = arith.constant 0 : index
    %c0_205 = arith.constant 0 : index
    %457 = vector.load %arg26[%c0_204, %c0_205] : memref<16x80xf32, #tpu.memory_space<vmem>>, vector<16x80xf32>
    %c1_206 = arith.constant 1 : index
    %c0_207 = arith.constant 0 : index
    %c0_208 = arith.constant 0 : index
    %458 = vector.load %arg9[%c1_206, %c0_207, %c0_208] : memref<2x80x32xf32, #tpu.memory_space<vmem>>, vector<1x80x32xf32>
    %459 = vector.shape_cast %458 : vector<1x80x32xf32> to vector<80x32xf32>
    %cst_209 = arith.constant dense<0.000000e+00> : vector<16x32xf32>
    %460 = tpu.matmul %457, %459, %cst_209 {dimension_numbers = #tpu.dot_dimension_numbers<[1], [0], [0], [1], [0, 0, 1, 1], [], []>} : vector<16x80xf32>, vector<80x32xf32>, vector<16x32xf32> -> vector<16x32xf32>
    %c1_210 = arith.constant 1 : index
    %c0_211 = arith.constant 0 : index
    %c0_212 = arith.constant 0 : index
    %461 = vector.load %arg10[%c1_210, %c0_211, %c0_212] : memref<2x1x32xf32, #tpu.memory_space<vmem>>, vector<1x1x32xf32>
    %462 = vector.shape_cast %461 : vector<1x1x32xf32> to vector<1x32xf32>
    %463 = vector.broadcast %462 : vector<1x32xf32> to vector<16x32xf32>
    %464 = arith.addf %460, %463 : vector<16x32xf32>
    %c1_213 = arith.constant 1 : index
    %c0_214 = arith.constant 0 : index
    %c0_215 = arith.constant 0 : index
    %465 = vector.load %arg13[%c1_213, %c0_214, %c0_215] : memref<2x32x16xf32, #tpu.memory_space<vmem>>, vector<1x32x16xf32>
    %466 = vector.shape_cast %465 : vector<1x32x16xf32> to vector<32x16xf32>
    %cst_216 = arith.constant dense<0.000000e+00> : vector<16x16xf32>
    %467 = tpu.matmul %464, %466, %cst_216 {dimension_numbers = #tpu.dot_dimension_numbers<[1], [0], [0], [1], [0, 0, 1, 1], [], []>} : vector<16x32xf32>, vector<32x16xf32>, vector<16x16xf32> -> vector<16x16xf32>
    %c1_217 = arith.constant 1 : index
    %c0_218 = arith.constant 0 : index
    %c0_219 = arith.constant 0 : index
    %468 = vector.load %arg14[%c1_217, %c0_218, %c0_219] : memref<2x1x16xf32, #tpu.memory_space<vmem>>, vector<1x1x16xf32>
    %469 = vector.shape_cast %468 : vector<1x1x16xf32> to vector<1x16xf32>
    %470 = vector.broadcast %469 : vector<1x16xf32> to vector<16x16xf32>
    %471 = arith.addf %467, %470 : vector<16x16xf32>
    %c1_220 = arith.constant 1 : index
    %c0_221 = arith.constant 0 : index
    %c0_222 = arith.constant 0 : index
    %472 = vector.load %arg11[%c1_220, %c0_221, %c0_222] : memref<2x16x48xf32, #tpu.memory_space<vmem>>, vector<1x16x48xf32>
    %473 = vector.shape_cast %472 : vector<1x16x48xf32> to vector<16x48xf32>
    %cst_223 = arith.constant dense<0.000000e+00> : vector<16x48xf32>
    %474 = tpu.matmul %436, %473, %cst_223 {dimension_numbers = #tpu.dot_dimension_numbers<[1], [0], [0], [1], [0, 0, 1, 1], [], []>} : vector<16x16xf32>, vector<16x48xf32>, vector<16x48xf32> -> vector<16x48xf32>
    %c1_224 = arith.constant 1 : index
    %c0_225 = arith.constant 0 : index
    %c0_226 = arith.constant 0 : index
    %475 = vector.load %arg12[%c1_224, %c0_225, %c0_226] : memref<2x1x48xf32, #tpu.memory_space<vmem>>, vector<1x1x48xf32>
    %476 = vector.shape_cast %475 : vector<1x1x48xf32> to vector<1x48xf32>
    %477 = vector.broadcast %476 : vector<1x48xf32> to vector<16x48xf32>
    %478 = arith.addf %474, %477 : vector<16x48xf32>
    %479 = vector.extract_strided_slice %478 {offsets = [0, 0], sizes = [16, 16], strides = [1, 1]} : vector<16x48xf32> to vector<16x16xf32>
    %cst_227 = arith.constant 5.000000e-01 : f32
    %480 = vector.broadcast %cst_227 : f32 to vector<16x16xf32>
    %481 = arith.mulf %479, %480 : vector<16x16xf32>
    %482 = vector.extract_strided_slice %478 {offsets = [0, 16], sizes = [16, 16], strides = [1, 1]} : vector<16x48xf32> to vector<16x16xf32>
    %483 = vector.extract_strided_slice %478 {offsets = [0, 32], sizes = [16, 16], strides = [1, 1]} : vector<16x48xf32> to vector<16x16xf32>
    %484 = vector.extract_strided_slice %481 {offsets = [0, 0], sizes = [8, 16], strides = [1, 1]} : vector<16x16xf32> to vector<8x16xf32>
    %485 = vector.extract_strided_slice %483 {offsets = [0, 0], sizes = [8, 16], strides = [1, 1]} : vector<16x16xf32> to vector<8x16xf32>
    %486 = vector.extract_strided_slice %471 {offsets = [0, 0], sizes = [8, 16], strides = [1, 1]} : vector<16x16xf32> to vector<8x16xf32>
    %487 = vector.extract_strided_slice %482 {offsets = [0, 0], sizes = [8, 16], strides = [1, 1]} : vector<16x16xf32> to vector<8x16xf32>
    %488 = tpu.concatenate %486, %487 in 0 : vector<8x16xf32>, vector<8x16xf32> -> vector<16x16xf32>
    %489 = vector.broadcast %7 : vector<1x16xf32> to vector<8x16xf32>
    %490 = arith.mulf %484, %489 : vector<8x16xf32>
    %491 = vector.broadcast %14 : vector<1x16xf32> to vector<8x16xf32>
    %492 = arith.mulf %484, %491 : vector<8x16xf32>
    %493 = vector.broadcast %21 : vector<1x16xf32> to vector<8x16xf32>
    %494 = arith.mulf %484, %493 : vector<8x16xf32>
    %495 = vector.broadcast %28 : vector<1x16xf32> to vector<8x16xf32>
    %496 = arith.mulf %484, %495 : vector<8x16xf32>
    %497 = tpu.concatenate %490, %492, %494, %496 in 0 : vector<8x16xf32>, vector<8x16xf32>, vector<8x16xf32>, vector<8x16xf32> -> vector<32x16xf32>
    %cst_228 = arith.constant dense<0.000000e+00> : vector<32x16xf32>
    %498 = tpu.matmul %497, %488, %cst_228 {dimension_numbers = #tpu.dot_dimension_numbers<[1], [1], [0], [0], [0, 0, 1, 0], [], []>} : vector<32x16xf32>, vector<16x16xf32>, vector<32x16xf32> -> vector<32x16xf32>
    %499 = vector.extract_strided_slice %498 {offsets = [0, 0], sizes = [32, 8], strides = [1, 1]} : vector<32x16xf32> to vector<32x8xf32>
    %cst_229 = arith.constant dense<0xFF800000> : vector<32xf32>
    %500 = vector.multi_reduction <maximumf>, %499, %cst_229 [1] : vector<32x8xf32> to vector<32xf32>
    %501 = vector.shape_cast %500 : vector<32xf32> to vector<32x1xf32>
    %502 = vector.broadcast %501 : vector<32x1xf32> to vector<32x8xf32>
    %503 = arith.subf %499, %502 : vector<32x8xf32>
    %504 = math.exp %503 : vector<32x8xf32>
    %cst_230 = arith.constant dense<0.000000e+00> : vector<32xf32>
    %505 = vector.multi_reduction <add>, %504, %cst_230 [1] : vector<32x8xf32> to vector<32xf32>
    %506 = vector.shape_cast %505 : vector<32xf32> to vector<32x1xf32>
    %507 = vector.broadcast %506 : vector<32x1xf32> to vector<32x8xf32>
    %508 = arith.divf %504, %507 : vector<32x8xf32>
    %509 = vector.extract_strided_slice %498 {offsets = [0, 8], sizes = [32, 8], strides = [1, 1]} : vector<32x16xf32> to vector<32x8xf32>
    %cst_231 = arith.constant dense<0xFF800000> : vector<32xf32>
    %510 = vector.multi_reduction <maximumf>, %509, %cst_231 [1] : vector<32x8xf32> to vector<32xf32>
    %511 = vector.shape_cast %510 : vector<32xf32> to vector<32x1xf32>
    %512 = vector.broadcast %511 : vector<32x1xf32> to vector<32x8xf32>
    %513 = arith.subf %509, %512 : vector<32x8xf32>
    %514 = math.exp %513 : vector<32x8xf32>
    %cst_232 = arith.constant dense<0.000000e+00> : vector<32xf32>
    %515 = vector.multi_reduction <add>, %514, %cst_232 [1] : vector<32x8xf32> to vector<32xf32>
    %516 = vector.shape_cast %515 : vector<32xf32> to vector<32x1xf32>
    %517 = vector.broadcast %516 : vector<32x1xf32> to vector<32x8xf32>
    %518 = arith.divf %514, %517 : vector<32x8xf32>
    %519 = arith.addf %508, %518 : vector<32x8xf32>
    %cst_233 = arith.constant 0.000000e+00 : f32
    %520 = vector.broadcast %cst_233 : f32 to vector<8x16xf32>
    %521 = vector.extract_strided_slice %519 {offsets = [0, 0], sizes = [8, 8], strides = [1, 1]} : vector<32x8xf32> to vector<8x8xf32>
    %522 = vector.broadcast %7 : vector<1x16xf32> to vector<8x16xf32>
    %523 = arith.mulf %485, %522 : vector<8x16xf32>
    %cst_234 = arith.constant dense<0.000000e+00> : vector<8x16xf32>
    %524 = tpu.matmul %521, %523, %cst_234 {dimension_numbers = #tpu.dot_dimension_numbers<[1], [0], [0], [1], [0, 0, 1, 1], [], []>} : vector<8x8xf32>, vector<8x16xf32>, vector<8x16xf32> -> vector<8x16xf32>
    %525 = arith.addf %520, %524 : vector<8x16xf32>
    %526 = vector.extract_strided_slice %519 {offsets = [8, 0], sizes = [8, 8], strides = [1, 1]} : vector<32x8xf32> to vector<8x8xf32>
    %527 = vector.broadcast %14 : vector<1x16xf32> to vector<8x16xf32>
    %528 = arith.mulf %485, %527 : vector<8x16xf32>
    %cst_235 = arith.constant dense<0.000000e+00> : vector<8x16xf32>
    %529 = tpu.matmul %526, %528, %cst_235 {dimension_numbers = #tpu.dot_dimension_numbers<[1], [0], [0], [1], [0, 0, 1, 1], [], []>} : vector<8x8xf32>, vector<8x16xf32>, vector<8x16xf32> -> vector<8x16xf32>
    %530 = arith.addf %525, %529 : vector<8x16xf32>
    %531 = vector.extract_strided_slice %519 {offsets = [16, 0], sizes = [8, 8], strides = [1, 1]} : vector<32x8xf32> to vector<8x8xf32>
    %532 = vector.broadcast %21 : vector<1x16xf32> to vector<8x16xf32>
    %533 = arith.mulf %485, %532 : vector<8x16xf32>
    %cst_236 = arith.constant dense<0.000000e+00> : vector<8x16xf32>
    %534 = tpu.matmul %531, %533, %cst_236 {dimension_numbers = #tpu.dot_dimension_numbers<[1], [0], [0], [1], [0, 0, 1, 1], [], []>} : vector<8x8xf32>, vector<8x16xf32>, vector<8x16xf32> -> vector<8x16xf32>
    %535 = arith.addf %530, %534 : vector<8x16xf32>
    %536 = vector.extract_strided_slice %519 {offsets = [24, 0], sizes = [8, 8], strides = [1, 1]} : vector<32x8xf32> to vector<8x8xf32>
    %537 = vector.broadcast %28 : vector<1x16xf32> to vector<8x16xf32>
    %538 = arith.mulf %485, %537 : vector<8x16xf32>
    %cst_237 = arith.constant dense<0.000000e+00> : vector<8x16xf32>
    %539 = tpu.matmul %536, %538, %cst_237 {dimension_numbers = #tpu.dot_dimension_numbers<[1], [0], [0], [1], [0, 0, 1, 1], [], []>} : vector<8x8xf32>, vector<8x16xf32>, vector<8x16xf32> -> vector<8x16xf32>
    %540 = arith.addf %535, %539 : vector<8x16xf32>
    %541 = vector.extract_strided_slice %481 {offsets = [8, 0], sizes = [8, 16], strides = [1, 1]} : vector<16x16xf32> to vector<8x16xf32>
    %542 = vector.extract_strided_slice %483 {offsets = [8, 0], sizes = [8, 16], strides = [1, 1]} : vector<16x16xf32> to vector<8x16xf32>
    %543 = vector.extract_strided_slice %471 {offsets = [8, 0], sizes = [8, 16], strides = [1, 1]} : vector<16x16xf32> to vector<8x16xf32>
    %544 = vector.extract_strided_slice %482 {offsets = [8, 0], sizes = [8, 16], strides = [1, 1]} : vector<16x16xf32> to vector<8x16xf32>
    %545 = tpu.concatenate %543, %544 in 0 : vector<8x16xf32>, vector<8x16xf32> -> vector<16x16xf32>
    %546 = vector.broadcast %7 : vector<1x16xf32> to vector<8x16xf32>
    %547 = arith.mulf %541, %546 : vector<8x16xf32>
    %548 = vector.broadcast %14 : vector<1x16xf32> to vector<8x16xf32>
    %549 = arith.mulf %541, %548 : vector<8x16xf32>
    %550 = vector.broadcast %21 : vector<1x16xf32> to vector<8x16xf32>
    %551 = arith.mulf %541, %550 : vector<8x16xf32>
    %552 = vector.broadcast %28 : vector<1x16xf32> to vector<8x16xf32>
    %553 = arith.mulf %541, %552 : vector<8x16xf32>
    %554 = tpu.concatenate %547, %549, %551, %553 in 0 : vector<8x16xf32>, vector<8x16xf32>, vector<8x16xf32>, vector<8x16xf32> -> vector<32x16xf32>
    %cst_238 = arith.constant dense<0.000000e+00> : vector<32x16xf32>
    %555 = tpu.matmul %554, %545, %cst_238 {dimension_numbers = #tpu.dot_dimension_numbers<[1], [1], [0], [0], [0, 0, 1, 0], [], []>} : vector<32x16xf32>, vector<16x16xf32>, vector<32x16xf32> -> vector<32x16xf32>
    %556 = vector.extract_strided_slice %555 {offsets = [0, 0], sizes = [32, 8], strides = [1, 1]} : vector<32x16xf32> to vector<32x8xf32>
    %cst_239 = arith.constant dense<0xFF800000> : vector<32xf32>
    %557 = vector.multi_reduction <maximumf>, %556, %cst_239 [1] : vector<32x8xf32> to vector<32xf32>
    %558 = vector.shape_cast %557 : vector<32xf32> to vector<32x1xf32>
    %559 = vector.broadcast %558 : vector<32x1xf32> to vector<32x8xf32>
    %560 = arith.subf %556, %559 : vector<32x8xf32>
    %561 = math.exp %560 : vector<32x8xf32>
    %cst_240 = arith.constant dense<0.000000e+00> : vector<32xf32>
    %562 = vector.multi_reduction <add>, %561, %cst_240 [1] : vector<32x8xf32> to vector<32xf32>
    %563 = vector.shape_cast %562 : vector<32xf32> to vector<32x1xf32>
    %564 = vector.broadcast %563 : vector<32x1xf32> to vector<32x8xf32>
    %565 = arith.divf %561, %564 : vector<32x8xf32>
    %566 = vector.extract_strided_slice %555 {offsets = [0, 8], sizes = [32, 8], strides = [1, 1]} : vector<32x16xf32> to vector<32x8xf32>
    %cst_241 = arith.constant dense<0xFF800000> : vector<32xf32>
    %567 = vector.multi_reduction <maximumf>, %566, %cst_241 [1] : vector<32x8xf32> to vector<32xf32>
    %568 = vector.shape_cast %567 : vector<32xf32> to vector<32x1xf32>
    %569 = vector.broadcast %568 : vector<32x1xf32> to vector<32x8xf32>
    %570 = arith.subf %566, %569 : vector<32x8xf32>
    %571 = math.exp %570 : vector<32x8xf32>
    %cst_242 = arith.constant dense<0.000000e+00> : vector<32xf32>
    %572 = vector.multi_reduction <add>, %571, %cst_242 [1] : vector<32x8xf32> to vector<32xf32>
    %573 = vector.shape_cast %572 : vector<32xf32> to vector<32x1xf32>
    %574 = vector.broadcast %573 : vector<32x1xf32> to vector<32x8xf32>
    %575 = arith.divf %571, %574 : vector<32x8xf32>
    %576 = arith.addf %565, %575 : vector<32x8xf32>
    %cst_243 = arith.constant 0.000000e+00 : f32
    %577 = vector.broadcast %cst_243 : f32 to vector<8x16xf32>
    %578 = vector.extract_strided_slice %576 {offsets = [0, 0], sizes = [8, 8], strides = [1, 1]} : vector<32x8xf32> to vector<8x8xf32>
    %579 = vector.broadcast %7 : vector<1x16xf32> to vector<8x16xf32>
    %580 = arith.mulf %542, %579 : vector<8x16xf32>
    %cst_244 = arith.constant dense<0.000000e+00> : vector<8x16xf32>
    %581 = tpu.matmul %578, %580, %cst_244 {dimension_numbers = #tpu.dot_dimension_numbers<[1], [0], [0], [1], [0, 0, 1, 1], [], []>} : vector<8x8xf32>, vector<8x16xf32>, vector<8x16xf32> -> vector<8x16xf32>
    %582 = arith.addf %577, %581 : vector<8x16xf32>
    %583 = vector.extract_strided_slice %576 {offsets = [8, 0], sizes = [8, 8], strides = [1, 1]} : vector<32x8xf32> to vector<8x8xf32>
    %584 = vector.broadcast %14 : vector<1x16xf32> to vector<8x16xf32>
    %585 = arith.mulf %542, %584 : vector<8x16xf32>
    %cst_245 = arith.constant dense<0.000000e+00> : vector<8x16xf32>
    %586 = tpu.matmul %583, %585, %cst_245 {dimension_numbers = #tpu.dot_dimension_numbers<[1], [0], [0], [1], [0, 0, 1, 1], [], []>} : vector<8x8xf32>, vector<8x16xf32>, vector<8x16xf32> -> vector<8x16xf32>
    %587 = arith.addf %582, %586 : vector<8x16xf32>
    %588 = vector.extract_strided_slice %576 {offsets = [16, 0], sizes = [8, 8], strides = [1, 1]} : vector<32x8xf32> to vector<8x8xf32>
    %589 = vector.broadcast %21 : vector<1x16xf32> to vector<8x16xf32>
    %590 = arith.mulf %542, %589 : vector<8x16xf32>
    %cst_246 = arith.constant dense<0.000000e+00> : vector<8x16xf32>
    %591 = tpu.matmul %588, %590, %cst_246 {dimension_numbers = #tpu.dot_dimension_numbers<[1], [0], [0], [1], [0, 0, 1, 1], [], []>} : vector<8x8xf32>, vector<8x16xf32>, vector<8x16xf32> -> vector<8x16xf32>
    %592 = arith.addf %587, %591 : vector<8x16xf32>
    %593 = vector.extract_strided_slice %576 {offsets = [24, 0], sizes = [8, 8], strides = [1, 1]} : vector<32x8xf32> to vector<8x8xf32>
    %594 = vector.broadcast %28 : vector<1x16xf32> to vector<8x16xf32>
    %595 = arith.mulf %542, %594 : vector<8x16xf32>
    %cst_247 = arith.constant dense<0.000000e+00> : vector<8x16xf32>
    %596 = tpu.matmul %593, %595, %cst_247 {dimension_numbers = #tpu.dot_dimension_numbers<[1], [0], [0], [1], [0, 0, 1, 1], [], []>} : vector<8x8xf32>, vector<8x16xf32>, vector<8x16xf32> -> vector<8x16xf32>
    %597 = arith.addf %592, %596 : vector<8x16xf32>
    %598 = tpu.concatenate %540, %597 in 0 : vector<8x16xf32>, vector<8x16xf32> -> vector<16x16xf32>
    %c1_248 = arith.constant 1 : index
    %c0_249 = arith.constant 0 : index
    %c0_250 = arith.constant 0 : index
    %599 = vector.load %arg15[%c1_248, %c0_249, %c0_250] : memref<2x16x16xf32, #tpu.memory_space<vmem>>, vector<1x16x16xf32>
    %600 = vector.shape_cast %599 : vector<1x16x16xf32> to vector<16x16xf32>
    %cst_251 = arith.constant dense<0.000000e+00> : vector<16x16xf32>
    %601 = tpu.matmul %598, %600, %cst_251 {dimension_numbers = #tpu.dot_dimension_numbers<[1], [0], [0], [1], [0, 0, 1, 1], [], []>} : vector<16x16xf32>, vector<16x16xf32>, vector<16x16xf32> -> vector<16x16xf32>
    %c1_252 = arith.constant 1 : index
    %c0_253 = arith.constant 0 : index
    %c0_254 = arith.constant 0 : index
    %602 = vector.load %arg16[%c1_252, %c0_253, %c0_254] : memref<2x1x16xf32, #tpu.memory_space<vmem>>, vector<1x1x16xf32>
    %603 = vector.shape_cast %602 : vector<1x1x16xf32> to vector<1x16xf32>
    %604 = vector.broadcast %603 : vector<1x16xf32> to vector<16x16xf32>
    %605 = arith.addf %601, %604 : vector<16x16xf32>
    %606 = arith.addf %412, %605 : vector<16x16xf32>
    %c1_255 = arith.constant 1 : index
    %c0_256 = arith.constant 0 : index
    %c0_257 = arith.constant 0 : index
    %607 = vector.load %arg17[%c1_255, %c0_256, %c0_257] : memref<2x1x16xf32, #tpu.memory_space<vmem>>, vector<1x1x16xf32>
    %608 = vector.shape_cast %607 : vector<1x1x16xf32> to vector<1x16xf32>
    %c1_258 = arith.constant 1 : index
    %c0_259 = arith.constant 0 : index
    %c0_260 = arith.constant 0 : index
    %609 = vector.load %arg18[%c1_258, %c0_259, %c0_260] : memref<2x1x16xf32, #tpu.memory_space<vmem>>, vector<1x1x16xf32>
    %610 = vector.shape_cast %609 : vector<1x1x16xf32> to vector<1x16xf32>
    %cst_261 = arith.constant dense<0.000000e+00> : vector<16xf32>
    %611 = vector.multi_reduction <add>, %606, %cst_261 [1] : vector<16x16xf32> to vector<16xf32>
    %612 = vector.shape_cast %611 : vector<16xf32> to vector<16x1xf32>
    %cst_262 = arith.constant 1.600000e+01 : f32
    %613 = vector.broadcast %cst_262 : f32 to vector<16x1xf32>
    %614 = arith.divf %612, %613 : vector<16x1xf32>
    %615 = vector.broadcast %614 : vector<16x1xf32> to vector<16x16xf32>
    %616 = arith.subf %606, %615 : vector<16x16xf32>
    %617 = arith.mulf %616, %616 : vector<16x16xf32>
    %cst_263 = arith.constant dense<0.000000e+00> : vector<16xf32>
    %618 = vector.multi_reduction <add>, %617, %cst_263 [1] : vector<16x16xf32> to vector<16xf32>
    %619 = vector.shape_cast %618 : vector<16xf32> to vector<16x1xf32>
    %cst_264 = arith.constant 1.600000e+01 : f32
    %620 = vector.broadcast %cst_264 : f32 to vector<16x1xf32>
    %621 = arith.divf %619, %620 : vector<16x1xf32>
    %cst_265 = arith.constant 9.99999974E-6 : f32
    %622 = vector.broadcast %cst_265 : f32 to vector<16x1xf32>
    %623 = arith.addf %621, %622 : vector<16x1xf32>
    %624 = math.rsqrt %623 : vector<16x1xf32>
    %625 = vector.broadcast %624 : vector<16x1xf32> to vector<16x16xf32>
    %626 = arith.mulf %616, %625 : vector<16x16xf32>
    %627 = vector.broadcast %608 : vector<1x16xf32> to vector<16x16xf32>
    %628 = arith.mulf %626, %627 : vector<16x16xf32>
    %629 = vector.broadcast %610 : vector<1x16xf32> to vector<16x16xf32>
    %630 = arith.addf %628, %629 : vector<16x16xf32>
    %c1_266 = arith.constant 1 : index
    %c0_267 = arith.constant 0 : index
    %c0_268 = arith.constant 0 : index
    %631 = vector.load %arg19[%c1_266, %c0_267, %c0_268] : memref<2x16x32xf32, #tpu.memory_space<vmem>>, vector<1x16x32xf32>
    %632 = vector.shape_cast %631 : vector<1x16x32xf32> to vector<16x32xf32>
    %cst_269 = arith.constant dense<0.000000e+00> : vector<16x32xf32>
    %633 = tpu.matmul %630, %632, %cst_269 {dimension_numbers = #tpu.dot_dimension_numbers<[1], [0], [0], [1], [0, 0, 1, 1], [], []>} : vector<16x16xf32>, vector<16x32xf32>, vector<16x32xf32> -> vector<16x32xf32>
    %c1_270 = arith.constant 1 : index
    %c0_271 = arith.constant 0 : index
    %c0_272 = arith.constant 0 : index
    %634 = vector.load %arg20[%c1_270, %c0_271, %c0_272] : memref<2x1x32xf32, #tpu.memory_space<vmem>>, vector<1x1x32xf32>
    %635 = vector.shape_cast %634 : vector<1x1x32xf32> to vector<1x32xf32>
    %636 = vector.broadcast %635 : vector<1x32xf32> to vector<16x32xf32>
    %637 = arith.addf %633, %636 : vector<16x32xf32>
    %cst_273 = arith.constant 0.707106769 : f32
    %638 = vector.broadcast %cst_273 : f32 to vector<16x32xf32>
    %639 = arith.mulf %637, %638 : vector<16x32xf32>
    %640 = math.absf %639 : vector<16x32xf32>
    %cst_274 = arith.constant 0.327591091 : f32
    %641 = vector.broadcast %cst_274 : f32 to vector<16x32xf32>
    %642 = arith.mulf %641, %640 : vector<16x32xf32>
    %cst_275 = arith.constant 1.000000e+00 : f32
    %643 = vector.broadcast %cst_275 : f32 to vector<16x32xf32>
    %644 = arith.addf %643, %642 : vector<16x32xf32>
    %cst_276 = arith.constant 1.000000e+00 : f32
    %645 = vector.broadcast %cst_276 : f32 to vector<16x32xf32>
    %646 = arith.divf %645, %644 : vector<16x32xf32>
    %cst_277 = arith.constant 1.06140542 : f32
    %647 = vector.broadcast %cst_277 : f32 to vector<16x32xf32>
    %648 = arith.mulf %646, %647 : vector<16x32xf32>
    %cst_278 = arith.constant -1.45315206 : f32
    %649 = vector.broadcast %cst_278 : f32 to vector<16x32xf32>
    %650 = arith.addf %649, %648 : vector<16x32xf32>
    %651 = arith.mulf %646, %650 : vector<16x32xf32>
    %cst_279 = arith.constant 1.42141378 : f32
    %652 = vector.broadcast %cst_279 : f32 to vector<16x32xf32>
    %653 = arith.addf %652, %651 : vector<16x32xf32>
    %654 = arith.mulf %646, %653 : vector<16x32xf32>
    %cst_280 = arith.constant -0.284496725 : f32
    %655 = vector.broadcast %cst_280 : f32 to vector<16x32xf32>
    %656 = arith.addf %655, %654 : vector<16x32xf32>
    %657 = arith.mulf %646, %656 : vector<16x32xf32>
    %cst_281 = arith.constant 0.254829586 : f32
    %658 = vector.broadcast %cst_281 : f32 to vector<16x32xf32>
    %659 = arith.addf %658, %657 : vector<16x32xf32>
    %660 = arith.mulf %646, %659 : vector<16x32xf32>
    %cst_282 = arith.constant 0.000000e+00 : f32
    %661 = vector.broadcast %cst_282 : f32 to vector<16x32xf32>
    %662 = arith.subf %661, %640 : vector<16x32xf32>
    %663 = arith.mulf %662, %640 : vector<16x32xf32>
    %664 = math.exp %663 : vector<16x32xf32>
    %665 = arith.mulf %660, %664 : vector<16x32xf32>
    %cst_283 = arith.constant 1.000000e+00 : f32
    %666 = vector.broadcast %cst_283 : f32 to vector<16x32xf32>
    %667 = arith.subf %666, %665 : vector<16x32xf32>
    %cst_284 = arith.constant 0.000000e+00 : f32
    %668 = vector.broadcast %cst_284 : f32 to vector<16x32xf32>
    %669 = arith.cmpf oge, %639, %668 : vector<16x32xf32>
    %cst_285 = arith.constant 0.000000e+00 : f32
    %670 = vector.broadcast %cst_285 : f32 to vector<16x32xf32>
    %671 = arith.subf %670, %667 : vector<16x32xf32>
    %672 = arith.select %669, %667, %671 : vector<16x32xi1>, vector<16x32xf32>
    %cst_286 = arith.constant 5.000000e-01 : f32
    %673 = vector.broadcast %cst_286 : f32 to vector<16x32xf32>
    %674 = arith.mulf %673, %637 : vector<16x32xf32>
    %cst_287 = arith.constant 1.000000e+00 : f32
    %675 = vector.broadcast %cst_287 : f32 to vector<16x32xf32>
    %676 = arith.addf %675, %672 : vector<16x32xf32>
    %677 = arith.mulf %674, %676 : vector<16x32xf32>
    %c1_288 = arith.constant 1 : index
    %c0_289 = arith.constant 0 : index
    %c0_290 = arith.constant 0 : index
    %678 = vector.load %arg21[%c1_288, %c0_289, %c0_290] : memref<2x32x16xf32, #tpu.memory_space<vmem>>, vector<1x32x16xf32>
    %679 = vector.shape_cast %678 : vector<1x32x16xf32> to vector<32x16xf32>
    %cst_291 = arith.constant dense<0.000000e+00> : vector<16x16xf32>
    %680 = tpu.matmul %677, %679, %cst_291 {dimension_numbers = #tpu.dot_dimension_numbers<[1], [0], [0], [1], [0, 0, 1, 1], [], []>} : vector<16x32xf32>, vector<32x16xf32>, vector<16x16xf32> -> vector<16x16xf32>
    %c1_292 = arith.constant 1 : index
    %c0_293 = arith.constant 0 : index
    %c0_294 = arith.constant 0 : index
    %681 = vector.load %arg22[%c1_292, %c0_293, %c0_294] : memref<2x1x16xf32, #tpu.memory_space<vmem>>, vector<1x1x16xf32>
    %682 = vector.shape_cast %681 : vector<1x1x16xf32> to vector<1x16xf32>
    %683 = vector.broadcast %682 : vector<1x16xf32> to vector<16x16xf32>
    %684 = arith.addf %680, %683 : vector<16x16xf32>
    %685 = arith.addf %606, %684 : vector<16x16xf32>
    %c0_295 = arith.constant 0 : index
    %c0_296 = arith.constant 0 : index
    %686 = vector.load %arg24[%c0_295, %c0_296] : memref<1x4xf32, #tpu.memory_space<vmem>>, vector<1x4xf32>
    %687 = vector.extract_strided_slice %685 {offsets = [0, 0], sizes = [1, 16], strides = [1, 1]} : vector<16x16xf32> to vector<1x16xf32>
    %c0_297 = arith.constant 0 : index
    %c0_298 = arith.constant 0 : index
    %688 = vector.load %arg23[%c0_297, %c0_298] : memref<128x4xf32, #tpu.memory_space<vmem>>, vector<16x4xf32>
    %cst_299 = arith.constant dense<0.000000e+00> : vector<1x4xf32>
    %689 = tpu.matmul %687, %688, %cst_299 {dimension_numbers = #tpu.dot_dimension_numbers<[1], [0], [0], [1], [0, 0, 1, 1], [], []>} : vector<1x16xf32>, vector<16x4xf32>, vector<1x4xf32> -> vector<1x4xf32>
    %690 = arith.addf %686, %689 : vector<1x4xf32>
    %691 = vector.extract_strided_slice %685 {offsets = [1, 0], sizes = [1, 16], strides = [1, 1]} : vector<16x16xf32> to vector<1x16xf32>
    %c16_300 = arith.constant 16 : index
    %c0_301 = arith.constant 0 : index
    %692 = vector.load %arg23[%c16_300, %c0_301] : memref<128x4xf32, #tpu.memory_space<vmem>>, vector<16x4xf32>
    %cst_302 = arith.constant dense<0.000000e+00> : vector<1x4xf32>
    %693 = tpu.matmul %691, %692, %cst_302 {dimension_numbers = #tpu.dot_dimension_numbers<[1], [0], [0], [1], [0, 0, 1, 1], [], []>} : vector<1x16xf32>, vector<16x4xf32>, vector<1x4xf32> -> vector<1x4xf32>
    %694 = arith.addf %690, %693 : vector<1x4xf32>
    %695 = vector.extract_strided_slice %685 {offsets = [2, 0], sizes = [1, 16], strides = [1, 1]} : vector<16x16xf32> to vector<1x16xf32>
    %c32_303 = arith.constant 32 : index
    %c0_304 = arith.constant 0 : index
    %696 = vector.load %arg23[%c32_303, %c0_304] : memref<128x4xf32, #tpu.memory_space<vmem>>, vector<16x4xf32>
    %cst_305 = arith.constant dense<0.000000e+00> : vector<1x4xf32>
    %697 = tpu.matmul %695, %696, %cst_305 {dimension_numbers = #tpu.dot_dimension_numbers<[1], [0], [0], [1], [0, 0, 1, 1], [], []>} : vector<1x16xf32>, vector<16x4xf32>, vector<1x4xf32> -> vector<1x4xf32>
    %698 = arith.addf %694, %697 : vector<1x4xf32>
    %699 = vector.extract_strided_slice %685 {offsets = [3, 0], sizes = [1, 16], strides = [1, 1]} : vector<16x16xf32> to vector<1x16xf32>
    %c48_306 = arith.constant 48 : index
    %c0_307 = arith.constant 0 : index
    %700 = vector.load %arg23[%c48_306, %c0_307] : memref<128x4xf32, #tpu.memory_space<vmem>>, vector<16x4xf32>
    %cst_308 = arith.constant dense<0.000000e+00> : vector<1x4xf32>
    %701 = tpu.matmul %699, %700, %cst_308 {dimension_numbers = #tpu.dot_dimension_numbers<[1], [0], [0], [1], [0, 0, 1, 1], [], []>} : vector<1x16xf32>, vector<16x4xf32>, vector<1x4xf32> -> vector<1x4xf32>
    %702 = arith.addf %698, %701 : vector<1x4xf32>
    %703 = vector.extract_strided_slice %685 {offsets = [4, 0], sizes = [1, 16], strides = [1, 1]} : vector<16x16xf32> to vector<1x16xf32>
    %c64_309 = arith.constant 64 : index
    %c0_310 = arith.constant 0 : index
    %704 = vector.load %arg23[%c64_309, %c0_310] : memref<128x4xf32, #tpu.memory_space<vmem>>, vector<16x4xf32>
    %cst_311 = arith.constant dense<0.000000e+00> : vector<1x4xf32>
    %705 = tpu.matmul %703, %704, %cst_311 {dimension_numbers = #tpu.dot_dimension_numbers<[1], [0], [0], [1], [0, 0, 1, 1], [], []>} : vector<1x16xf32>, vector<16x4xf32>, vector<1x4xf32> -> vector<1x4xf32>
    %706 = arith.addf %702, %705 : vector<1x4xf32>
    %707 = vector.extract_strided_slice %685 {offsets = [5, 0], sizes = [1, 16], strides = [1, 1]} : vector<16x16xf32> to vector<1x16xf32>
    %c80 = arith.constant 80 : index
    %c0_312 = arith.constant 0 : index
    %708 = vector.load %arg23[%c80, %c0_312] : memref<128x4xf32, #tpu.memory_space<vmem>>, vector<16x4xf32>
    %cst_313 = arith.constant dense<0.000000e+00> : vector<1x4xf32>
    %709 = tpu.matmul %707, %708, %cst_313 {dimension_numbers = #tpu.dot_dimension_numbers<[1], [0], [0], [1], [0, 0, 1, 1], [], []>} : vector<1x16xf32>, vector<16x4xf32>, vector<1x4xf32> -> vector<1x4xf32>
    %710 = arith.addf %706, %709 : vector<1x4xf32>
    %711 = vector.extract_strided_slice %685 {offsets = [6, 0], sizes = [1, 16], strides = [1, 1]} : vector<16x16xf32> to vector<1x16xf32>
    %c96 = arith.constant 96 : index
    %c0_314 = arith.constant 0 : index
    %712 = vector.load %arg23[%c96, %c0_314] : memref<128x4xf32, #tpu.memory_space<vmem>>, vector<16x4xf32>
    %cst_315 = arith.constant dense<0.000000e+00> : vector<1x4xf32>
    %713 = tpu.matmul %711, %712, %cst_315 {dimension_numbers = #tpu.dot_dimension_numbers<[1], [0], [0], [1], [0, 0, 1, 1], [], []>} : vector<1x16xf32>, vector<16x4xf32>, vector<1x4xf32> -> vector<1x4xf32>
    %714 = arith.addf %710, %713 : vector<1x4xf32>
    %715 = vector.extract_strided_slice %685 {offsets = [7, 0], sizes = [1, 16], strides = [1, 1]} : vector<16x16xf32> to vector<1x16xf32>
    %c112 = arith.constant 112 : index
    %c0_316 = arith.constant 0 : index
    %716 = vector.load %arg23[%c112, %c0_316] : memref<128x4xf32, #tpu.memory_space<vmem>>, vector<16x4xf32>
    %cst_317 = arith.constant dense<0.000000e+00> : vector<1x4xf32>
    %717 = tpu.matmul %715, %716, %cst_317 {dimension_numbers = #tpu.dot_dimension_numbers<[1], [0], [0], [1], [0, 0, 1, 1], [], []>} : vector<1x16xf32>, vector<16x4xf32>, vector<1x4xf32> -> vector<1x4xf32>
    %718 = arith.addf %714, %717 : vector<1x4xf32>
    %c0_318 = arith.constant 0 : index
    %c0_319 = arith.constant 0 : index
    %719 = vector.load %arg25[%c0_318, %c0_319] : memref<2x4xf32, #tpu.memory_space<vmem>>, vector<1x4xf32>
    tpu.vector_store %arg25[%c0_318, %c0_319], %718 {strides = array<i32>} : memref<2x4xf32, #tpu.memory_space<vmem>>, vector<1x4xf32>,
    %c0_320 = arith.constant 0 : index
    %c0_321 = arith.constant 0 : index
    %720 = vector.load %arg24[%c0_320, %c0_321] : memref<1x4xf32, #tpu.memory_space<vmem>>, vector<1x4xf32>
    %721 = vector.extract_strided_slice %685 {offsets = [8, 0], sizes = [1, 16], strides = [1, 1]} : vector<16x16xf32> to vector<1x16xf32>
    %c0_322 = arith.constant 0 : index
    %c0_323 = arith.constant 0 : index
    %722 = vector.load %arg23[%c0_322, %c0_323] : memref<128x4xf32, #tpu.memory_space<vmem>>, vector<16x4xf32>
    %cst_324 = arith.constant dense<0.000000e+00> : vector<1x4xf32>
    %723 = tpu.matmul %721, %722, %cst_324 {dimension_numbers = #tpu.dot_dimension_numbers<[1], [0], [0], [1], [0, 0, 1, 1], [], []>} : vector<1x16xf32>, vector<16x4xf32>, vector<1x4xf32> -> vector<1x4xf32>
    %724 = arith.addf %720, %723 : vector<1x4xf32>
    %725 = vector.extract_strided_slice %685 {offsets = [9, 0], sizes = [1, 16], strides = [1, 1]} : vector<16x16xf32> to vector<1x16xf32>
    %c16_325 = arith.constant 16 : index
    %c0_326 = arith.constant 0 : index
    %726 = vector.load %arg23[%c16_325, %c0_326] : memref<128x4xf32, #tpu.memory_space<vmem>>, vector<16x4xf32>
    %cst_327 = arith.constant dense<0.000000e+00> : vector<1x4xf32>
    %727 = tpu.matmul %725, %726, %cst_327 {dimension_numbers = #tpu.dot_dimension_numbers<[1], [0], [0], [1], [0, 0, 1, 1], [], []>} : vector<1x16xf32>, vector<16x4xf32>, vector<1x4xf32> -> vector<1x4xf32>
    %728 = arith.addf %724, %727 : vector<1x4xf32>
    %729 = vector.extract_strided_slice %685 {offsets = [10, 0], sizes = [1, 16], strides = [1, 1]} : vector<16x16xf32> to vector<1x16xf32>
    %c32_328 = arith.constant 32 : index
    %c0_329 = arith.constant 0 : index
    %730 = vector.load %arg23[%c32_328, %c0_329] : memref<128x4xf32, #tpu.memory_space<vmem>>, vector<16x4xf32>
    %cst_330 = arith.constant dense<0.000000e+00> : vector<1x4xf32>
    %731 = tpu.matmul %729, %730, %cst_330 {dimension_numbers = #tpu.dot_dimension_numbers<[1], [0], [0], [1], [0, 0, 1, 1], [], []>} : vector<1x16xf32>, vector<16x4xf32>, vector<1x4xf32> -> vector<1x4xf32>
    %732 = arith.addf %728, %731 : vector<1x4xf32>
    %733 = vector.extract_strided_slice %685 {offsets = [11, 0], sizes = [1, 16], strides = [1, 1]} : vector<16x16xf32> to vector<1x16xf32>
    %c48_331 = arith.constant 48 : index
    %c0_332 = arith.constant 0 : index
    %734 = vector.load %arg23[%c48_331, %c0_332] : memref<128x4xf32, #tpu.memory_space<vmem>>, vector<16x4xf32>
    %cst_333 = arith.constant dense<0.000000e+00> : vector<1x4xf32>
    %735 = tpu.matmul %733, %734, %cst_333 {dimension_numbers = #tpu.dot_dimension_numbers<[1], [0], [0], [1], [0, 0, 1, 1], [], []>} : vector<1x16xf32>, vector<16x4xf32>, vector<1x4xf32> -> vector<1x4xf32>
    %736 = arith.addf %732, %735 : vector<1x4xf32>
    %737 = vector.extract_strided_slice %685 {offsets = [12, 0], sizes = [1, 16], strides = [1, 1]} : vector<16x16xf32> to vector<1x16xf32>
    %c64_334 = arith.constant 64 : index
    %c0_335 = arith.constant 0 : index
    %738 = vector.load %arg23[%c64_334, %c0_335] : memref<128x4xf32, #tpu.memory_space<vmem>>, vector<16x4xf32>
    %cst_336 = arith.constant dense<0.000000e+00> : vector<1x4xf32>
    %739 = tpu.matmul %737, %738, %cst_336 {dimension_numbers = #tpu.dot_dimension_numbers<[1], [0], [0], [1], [0, 0, 1, 1], [], []>} : vector<1x16xf32>, vector<16x4xf32>, vector<1x4xf32> -> vector<1x4xf32>
    %740 = arith.addf %736, %739 : vector<1x4xf32>
    %741 = vector.extract_strided_slice %685 {offsets = [13, 0], sizes = [1, 16], strides = [1, 1]} : vector<16x16xf32> to vector<1x16xf32>
    %c80_337 = arith.constant 80 : index
    %c0_338 = arith.constant 0 : index
    %742 = vector.load %arg23[%c80_337, %c0_338] : memref<128x4xf32, #tpu.memory_space<vmem>>, vector<16x4xf32>
    %cst_339 = arith.constant dense<0.000000e+00> : vector<1x4xf32>
    %743 = tpu.matmul %741, %742, %cst_339 {dimension_numbers = #tpu.dot_dimension_numbers<[1], [0], [0], [1], [0, 0, 1, 1], [], []>} : vector<1x16xf32>, vector<16x4xf32>, vector<1x4xf32> -> vector<1x4xf32>
    %744 = arith.addf %740, %743 : vector<1x4xf32>
    %745 = vector.extract_strided_slice %685 {offsets = [14, 0], sizes = [1, 16], strides = [1, 1]} : vector<16x16xf32> to vector<1x16xf32>
    %c96_340 = arith.constant 96 : index
    %c0_341 = arith.constant 0 : index
    %746 = vector.load %arg23[%c96_340, %c0_341] : memref<128x4xf32, #tpu.memory_space<vmem>>, vector<16x4xf32>
    %cst_342 = arith.constant dense<0.000000e+00> : vector<1x4xf32>
    %747 = tpu.matmul %745, %746, %cst_342 {dimension_numbers = #tpu.dot_dimension_numbers<[1], [0], [0], [1], [0, 0, 1, 1], [], []>} : vector<1x16xf32>, vector<16x4xf32>, vector<1x4xf32> -> vector<1x4xf32>
    %748 = arith.addf %744, %747 : vector<1x4xf32>
    %749 = vector.extract_strided_slice %685 {offsets = [15, 0], sizes = [1, 16], strides = [1, 1]} : vector<16x16xf32> to vector<1x16xf32>
    %c112_343 = arith.constant 112 : index
    %c0_344 = arith.constant 0 : index
    %750 = vector.load %arg23[%c112_343, %c0_344] : memref<128x4xf32, #tpu.memory_space<vmem>>, vector<16x4xf32>
    %cst_345 = arith.constant dense<0.000000e+00> : vector<1x4xf32>
    %751 = tpu.matmul %749, %750, %cst_345 {dimension_numbers = #tpu.dot_dimension_numbers<[1], [0], [0], [1], [0, 0, 1, 1], [], []>} : vector<1x16xf32>, vector<16x4xf32>, vector<1x4xf32> -> vector<1x4xf32>
    %752 = arith.addf %748, %751 : vector<1x4xf32>
    %c1_346 = arith.constant 1 : index
    %c0_347 = arith.constant 0 : index
    %753 = vector.load %arg25[%c1_346, %c0_347] : memref<2x4xf32, #tpu.memory_space<vmem>>, vector<1x4xf32>
    tpu.vector_store %arg25[%c1_346, %c0_347], %752 {strides = array<i32>} : memref<2x4xf32, #tpu.memory_space<vmem>>, vector<1x4xf32>,
    return
  }
  func.func @transform_0(%arg0: i32) -> (i32, i32, i32) {
    %c0_i32 = arith.constant 0 : i32
    %c0_i32_0 = arith.constant 0 : i32
    %c0_i32_1 = arith.constant 0 : i32
    %c0_i32_2 = arith.constant 0 : i32
    return %c0_i32, %c0_i32_0, %c0_i32_1 : i32, i32, i32
  }
  func.func @transform_1(%arg0: i32) -> (i32, i32) {
    %c0_i32 = arith.constant 0 : i32
    %c0_i32_0 = arith.constant 0 : i32
    %c0_i32_1 = arith.constant 0 : i32
    return %c0_i32, %c0_i32_0 : i32, i32
  }
  func.func @transform_2(%arg0: i32) -> (i32, i32) {
    %c0_i32 = arith.constant 0 : i32
    %c0_i32_0 = arith.constant 0 : i32
    %c0_i32_1 = arith.constant 0 : i32
    return %c0_i32, %c0_i32_0 : i32, i32
  }
  func.func @transform_3(%arg0: i32) -> (i32, i32) {
    %c0_i32 = arith.constant 0 : i32
    %c0_i32_0 = arith.constant 0 : i32
    %c0_i32_1 = arith.constant 0 : i32
    return %c0_i32, %c0_i32_0 : i32, i32
  }
  func.func @transform_4(%arg0: i32) -> (i32, i32) {
    %c0_i32 = arith.constant 0 : i32
    %c0_i32_0 = arith.constant 0 : i32
    %c0_i32_1 = arith.constant 0 : i32
    return %c0_i32, %c0_i32_0 : i32, i32
  }
  func.func @transform_5(%arg0: i32) -> (i32, i32) {
    %c0_i32 = arith.constant 0 : i32
    %c0_i32_0 = arith.constant 0 : i32
    %c0_i32_1 = arith.constant 0 : i32
    return %c0_i32, %c0_i32_0 : i32, i32
  }
  func.func @transform_6(%arg0: i32) -> (i32, i32, i32) {
    %c0_i32 = arith.constant 0 : i32
    %c0_i32_0 = arith.constant 0 : i32
    %c0_i32_1 = arith.constant 0 : i32
    %c0_i32_2 = arith.constant 0 : i32
    return %c0_i32, %c0_i32_0, %c0_i32_1 : i32, i32, i32
  }
  func.func @transform_7(%arg0: i32) -> (i32, i32, i32) {
    %c0_i32 = arith.constant 0 : i32
    %c0_i32_0 = arith.constant 0 : i32
    %c0_i32_1 = arith.constant 0 : i32
    %c0_i32_2 = arith.constant 0 : i32
    return %c0_i32, %c0_i32_0, %c0_i32_1 : i32, i32, i32
  }
  func.func @transform_8(%arg0: i32) -> (i32, i32, i32) {
    %c0_i32 = arith.constant 0 : i32
    %c0_i32_0 = arith.constant 0 : i32
    %c0_i32_1 = arith.constant 0 : i32
    %c0_i32_2 = arith.constant 0 : i32
    return %c0_i32, %c0_i32_0, %c0_i32_1 : i32, i32, i32
  }
  func.func @transform_9(%arg0: i32) -> (i32, i32, i32) {
    %c0_i32 = arith.constant 0 : i32
    %c0_i32_0 = arith.constant 0 : i32
    %c0_i32_1 = arith.constant 0 : i32
    %c0_i32_2 = arith.constant 0 : i32
    return %c0_i32, %c0_i32_0, %c0_i32_1 : i32, i32, i32
  }
  func.func @transform_10(%arg0: i32) -> (i32, i32, i32) {
    %c0_i32 = arith.constant 0 : i32
    %c0_i32_0 = arith.constant 0 : i32
    %c0_i32_1 = arith.constant 0 : i32
    %c0_i32_2 = arith.constant 0 : i32
    return %c0_i32, %c0_i32_0, %c0_i32_1 : i32, i32, i32
  }
  func.func @transform_11(%arg0: i32) -> (i32, i32, i32) {
    %c0_i32 = arith.constant 0 : i32
    %c0_i32_0 = arith.constant 0 : i32
    %c0_i32_1 = arith.constant 0 : i32
    %c0_i32_2 = arith.constant 0 : i32
    return %c0_i32, %c0_i32_0, %c0_i32_1 : i32, i32, i32
  }
  func.func @transform_12(%arg0: i32) -> (i32, i32, i32) {
    %c0_i32 = arith.constant 0 : i32
    %c0_i32_0 = arith.constant 0 : i32
    %c0_i32_1 = arith.constant 0 : i32
    %c0_i32_2 = arith.constant 0 : i32
    return %c0_i32, %c0_i32_0, %c0_i32_1 : i32, i32, i32
  }
  func.func @transform_13(%arg0: i32) -> (i32, i32, i32) {
    %c0_i32 = arith.constant 0 : i32
    %c0_i32_0 = arith.constant 0 : i32
    %c0_i32_1 = arith.constant 0 : i32
    %c0_i32_2 = arith.constant 0 : i32
    return %c0_i32, %c0_i32_0, %c0_i32_1 : i32, i32, i32
  }
  func.func @transform_14(%arg0: i32) -> (i32, i32, i32) {
    %c0_i32 = arith.constant 0 : i32
    %c0_i32_0 = arith.constant 0 : i32
    %c0_i32_1 = arith.constant 0 : i32
    %c0_i32_2 = arith.constant 0 : i32
    return %c0_i32, %c0_i32_0, %c0_i32_1 : i32, i32, i32
  }
  func.func @transform_15(%arg0: i32) -> (i32, i32, i32) {
    %c0_i32 = arith.constant 0 : i32
    %c0_i32_0 = arith.constant 0 : i32
    %c0_i32_1 = arith.constant 0 : i32
    %c0_i32_2 = arith.constant 0 : i32
    return %c0_i32, %c0_i32_0, %c0_i32_1 : i32, i32, i32
  }
  func.func @transform_16(%arg0: i32) -> (i32, i32, i32) {
    %c0_i32 = arith.constant 0 : i32
    %c0_i32_0 = arith.constant 0 : i32
    %c0_i32_1 = arith.constant 0 : i32
    %c0_i32_2 = arith.constant 0 : i32
    return %c0_i32, %c0_i32_0, %c0_i32_1 : i32, i32, i32
  }
  func.func @transform_17(%arg0: i32) -> (i32, i32, i32) {
    %c0_i32 = arith.constant 0 : i32
    %c0_i32_0 = arith.constant 0 : i32
    %c0_i32_1 = arith.constant 0 : i32
    %c0_i32_2 = arith.constant 0 : i32
    return %c0_i32, %c0_i32_0, %c0_i32_1 : i32, i32, i32
  }
  func.func @transform_18(%arg0: i32) -> (i32, i32, i32) {
    %c0_i32 = arith.constant 0 : i32
    %c0_i32_0 = arith.constant 0 : i32
    %c0_i32_1 = arith.constant 0 : i32
    %c0_i32_2 = arith.constant 0 : i32
    return %c0_i32, %c0_i32_0, %c0_i32_1 : i32, i32, i32
  }
  func.func @transform_19(%arg0: i32) -> (i32, i32, i32) {
    %c0_i32 = arith.constant 0 : i32
    %c0_i32_0 = arith.constant 0 : i32
    %c0_i32_1 = arith.constant 0 : i32
    %c0_i32_2 = arith.constant 0 : i32
    return %c0_i32, %c0_i32_0, %c0_i32_1 : i32, i32, i32
  }
  func.func @transform_20(%arg0: i32) -> (i32, i32, i32) {
    %c0_i32 = arith.constant 0 : i32
    %c0_i32_0 = arith.constant 0 : i32
    %c0_i32_1 = arith.constant 0 : i32
    %c0_i32_2 = arith.constant 0 : i32
    return %c0_i32, %c0_i32_0, %c0_i32_1 : i32, i32, i32
  }
  func.func @transform_21(%arg0: i32) -> (i32, i32, i32) {
    %c0_i32 = arith.constant 0 : i32
    %c0_i32_0 = arith.constant 0 : i32
    %c0_i32_1 = arith.constant 0 : i32
    %c0_i32_2 = arith.constant 0 : i32
    return %c0_i32, %c0_i32_0, %c0_i32_1 : i32, i32, i32
  }
  func.func @transform_22(%arg0: i32) -> (i32, i32) {
    %c0_i32 = arith.constant 0 : i32
    %c0_i32_0 = arith.constant 0 : i32
    %c0_i32_1 = arith.constant 0 : i32
    return %c0_i32, %c0_i32_0 : i32, i32
  }
  func.func @transform_23(%arg0: i32) -> (i32, i32) {
    %c0_i32 = arith.constant 0 : i32
    %c0_i32_0 = arith.constant 0 : i32
    %c0_i32_1 = arith.constant 0 : i32
    return %c0_i32, %c0_i32_0 : i32, i32
  }
  func.func @transform_24(%arg0: i32) -> (i32, i32) {
    %c0_i32 = arith.constant 0 : i32
    %c0_i32_0 = arith.constant 0 : i32
    %c0_i32_1 = arith.constant 0 : i32
    return %c0_i32, %c0_i32_0 : i32, i32
  }
}

</mosaic_0001>

<llo_original>
// kernel: _lambda_.1
$region0: #{_lambda_.1}
  #allocation0 [shape = 'u32[]', space=smem, size = 0x4, offset = 0x4, fixed_abs, tag = 'smem constant byte address 0x4 - core index']
  #allocation1 [shape = 'u32[144,128]{1,0:T(1,128)}', space=vmem, size = 0x12000, scoped, tag = 'internal scratch']
  #allocation2 [shape = 'f32[16,80]{1,0:T(8,128)}', space=vmem, size = 0x2000, scoped, tag = 'scratch operand']
  %s0 = inlined_call_operand.vmem [shape: f32[2,64,128], index: 0, kind: input, shape index: {}]
  %s1 = inlined_call_operand.vmem [shape: f32[128,16], index: 1, kind: input, shape index: {}]
  %s2 = inlined_call_operand.vmem [shape: f32[1,16], index: 2, kind: input, shape index: {}]
  %s3 = inlined_call_operand.vmem [shape: f32[1,16], index: 3, kind: input, shape index: {}]
  %s4 = inlined_call_operand.vmem [shape: f32[1,16], index: 4, kind: input, shape index: {}]
  %s5 = inlined_call_operand.vmem [shape: f32[8,64], index: 5, kind: input, shape index: {}]
  %s6 = inlined_call_operand.vmem [shape: f32[2,1,16], index: 6, kind: input, shape index: {}]
  %s7 = inlined_call_operand.vmem [shape: f32[2,1,16], index: 7, kind: input, shape index: {}]
  %s8 = inlined_call_operand.vmem [shape: f32[2,80,32], index: 8, kind: input, shape index: {}]
  %s9 = inlined_call_operand.vmem [shape: f32[2,1,32], index: 9, kind: input, shape index: {}]
  %s10 = inlined_call_operand.vmem [shape: f32[2,16,48], index: 10, kind: input, shape index: {}]
  %s11 = inlined_call_operand.vmem [shape: f32[2,1,48], index: 11, kind: input, shape index: {}]
  %s12 = inlined_call_operand.vmem [shape: f32[2,32,16], index: 12, kind: input, shape index: {}]
  %s13 = inlined_call_operand.vmem [shape: f32[2,1,16], index: 13, kind: input, shape index: {}]
  %s14 = inlined_call_operand.vmem [shape: f32[2,16,16], index: 14, kind: input, shape index: {}]
  %s15 = inlined_call_operand.vmem [shape: f32[2,1,16], index: 15, kind: input, shape index: {}]
  %s16 = inlined_call_operand.vmem [shape: f32[2,1,16], index: 16, kind: input, shape index: {}]
  %s17 = inlined_call_operand.vmem [shape: f32[2,1,16], index: 17, kind: input, shape index: {}]
  %s18 = inlined_call_operand.vmem [shape: f32[2,16,32], index: 18, kind: input, shape index: {}]
  %s19 = inlined_call_operand.vmem [shape: f32[2,1,32], index: 19, kind: input, shape index: {}]
  %s20 = inlined_call_operand.vmem [shape: f32[2,32,16], index: 20, kind: input, shape index: {}]
  %s21 = inlined_call_operand.vmem [shape: f32[2,1,16], index: 21, kind: input, shape index: {}]
  %s22 = inlined_call_operand.vmem [shape: f32[128,4], index: 22, kind: input, shape index: {}]
  %s23 = inlined_call_operand.vmem [shape: f32[1,4], index: 23, kind: input, shape index: {}]
  %s24 = inlined_call_operand.hbm [shape: f32[2,4], index: 24, kind: output, shape index: {}]
  %s25 = sld [smem:[#allocation0]]
  $region106: #{_lambda_.1} parent=0
    _
  %s27 = ssub.s32 1, %s25
  %s28 = scalar_select 0, %s27, %s25
  $region1: #{_lambda_.1} parent=0
    #allocation3 [shape = 'u8[1024]{0}', space=vmem, size = 0x400, scoped, tag = 'output window, operand 0, single buffered']
    #allocation4 [shape = 's32[1]{0}', space=sflag, size = 0x4, scoped, tag = 'scoped memory for _lambda_.1']
    %29 = vsyncpa [#allocation4], 0
    // Predicated region
    $region2: #{_lambda_.1} parent=1 // pred_check
      _
    $region3: #{_lambda_.1} parent=1 // pred_check_branch
      %31 = sbr.rel (0) target = $region5
    $region4: #{_lambda_.1} parent=1 // pred_region
      _
    $region5: #{_lambda_.1} parent=1 // pred_fallthru
      _
    // Predicated region
    $region6: #{_lambda_.1} parent=1 // pred_check
      _
    $region7: #{_lambda_.1} parent=1 // pred_check_branch
      %33 = sbr.rel (0) target = $region9
    $region8: #{_lambda_.1} parent=1 // pred_region
      _
    $region9: #{_lambda_.1} parent=1 // pred_fallthru
      _
    // Predicated region
    $region10: #{_lambda_.1} parent=1 // pred_check
      _
    $region11: #{_lambda_.1} parent=1 // pred_check_branch
      %35 = sbr.rel (0) target = $region13
    $region12: #{_lambda_.1} parent=1 // pred_region
      _
    $region13: #{_lambda_.1} parent=1 // pred_fallthru
      _
    // Predicated region
    $region14: #{_lambda_.1} parent=1 // pred_check
      _
    $region15: #{_lambda_.1} parent=1 // pred_check_branch
      %37 = sbr.rel (0) target = $region17
    $region16: #{_lambda_.1} parent=1 // pred_region
      _
    $region17: #{_lambda_.1} parent=1 // pred_fallthru
      _
    // Predicated region
    $region18: #{_lambda_.1} parent=1 // pred_check
      _
    $region19: #{_lambda_.1} parent=1 // pred_check_branch
      %39 = sbr.rel (0) target = $region21
    $region20: #{_lambda_.1} parent=1 // pred_region
      _
    $region21: #{_lambda_.1} parent=1 // pred_fallthru
      _
    // Predicated region
    $region22: #{_lambda_.1} parent=1 // pred_check
      _
    $region23: #{_lambda_.1} parent=1 // pred_check_branch
      %41 = sbr.rel (0) target = $region25
    $region24: #{_lambda_.1} parent=1 // pred_region
      _
    $region25: #{_lambda_.1} parent=1 // pred_fallthru
      _
    // Predicated region
    $region26: #{_lambda_.1} parent=1 // pred_check
      _
    $region27: #{_lambda_.1} parent=1 // pred_check_branch
      %43 = sbr.rel (0) target = $region29
    $region28: #{_lambda_.1} parent=1 // pred_region
      _
    $region29: #{_lambda_.1} parent=1 // pred_fallthru
      _
    // Predicated region
    $region30: #{_lambda_.1} parent=1 // pred_check
      _
    $region31: #{_lambda_.1} parent=1 // pred_check_branch
      %45 = sbr.rel (0) target = $region33
    $region32: #{_lambda_.1} parent=1 // pred_region
      _
    $region33: #{_lambda_.1} parent=1 // pred_fallthru
      _
    // Predicated region
    $region34: #{_lambda_.1} parent=1 // pred_check
      _
    $region35: #{_lambda_.1} parent=1 // pred_check_branch
      %47 = sbr.rel (0) target = $region37
    $region36: #{_lambda_.1} parent=1 // pred_region
      _
    $region37: #{_lambda_.1} parent=1 // pred_fallthru
      _
    // Predicated region
    $region38: #{_lambda_.1} parent=1 // pred_check
      _
    $region39: #{_lambda_.1} parent=1 // pred_check_branch
      %49 = sbr.rel (0) target = $region41
    $region40: #{_lambda_.1} parent=1 // pred_region
      _
    $region41: #{_lambda_.1} parent=1 // pred_fallthru
      _
    // Predicated region
    $region42: #{_lambda_.1} parent=1 // pred_check
      _
    $region43: #{_lambda_.1} parent=1 // pred_check_branch
      %51 = sbr.rel (0) target = $region45
    $region44: #{_lambda_.1} parent=1 // pred_region
      _
    $region45: #{_lambda_.1} parent=1 // pred_fallthru
      _
    // Predicated region
    $region46: #{_lambda_.1} parent=1 // pred_check
      _
    $region47: #{_lambda_.1} parent=1 // pred_check_branch
      %53 = sbr.rel (0) target = $region49
    $region48: #{_lambda_.1} parent=1 // pred_region
      _
    $region49: #{_lambda_.1} parent=1 // pred_fallthru
      _
    // Predicated region
    $region50: #{_lambda_.1} parent=1 // pred_check
      _
    $region51: #{_lambda_.1} parent=1 // pred_check_branch
      %55 = sbr.rel (0) target = $region53
    $region52: #{_lambda_.1} parent=1 // pred_region
      _
    $region53: #{_lambda_.1} parent=1 // pred_fallthru
      _
    // Predicated region
    $region54: #{_lambda_.1} parent=1 // pred_check
      _
    $region55: #{_lambda_.1} parent=1 // pred_check_branch
      %57 = sbr.rel (0) target = $region57
    $region56: #{_lambda_.1} parent=1 // pred_region
      _
    $region57: #{_lambda_.1} parent=1 // pred_fallthru
      _
    // Predicated region
    $region58: #{_lambda_.1} parent=1 // pred_check
      _
    $region59: #{_lambda_.1} parent=1 // pred_check_branch
      %59 = sbr.rel (0) target = $region61
    $region60: #{_lambda_.1} parent=1 // pred_region
      _
    $region61: #{_lambda_.1} parent=1 // pred_fallthru
      _
    // Predicated region
    $region62: #{_lambda_.1} parent=1 // pred_check
      _
    $region63: #{_lambda_.1} parent=1 // pred_check_branch
      %61 = sbr.rel (0) target = $region65
    $region64: #{_lambda_.1} parent=1 // pred_region
      _
    $region65: #{_lambda_.1} parent=1 // pred_fallthru
      _
    // Predicated region
    $region66: #{_lambda_.1} parent=1 // pred_check
      _
    $region67: #{_lambda_.1} parent=1 // pred_check_branch
      %63 = sbr.rel (0) target = $region69
    $region68: #{_lambda_.1} parent=1 // pred_region
      _
    $region69: #{_lambda_.1} parent=1 // pred_fallthru
      _
    // Predicated region
    $region70: #{_lambda_.1} parent=1 // pred_check
      _
    $region71: #{_lambda_.1} parent=1 // pred_check_branch
      %65 = sbr.rel (0) target = $region73
    $region72: #{_lambda_.1} parent=1 // pred_region
      _
    $region73: #{_lambda_.1} parent=1 // pred_fallthru
      _
    // Predicated region
    $region74: #{_lambda_.1} parent=1 // pred_check
      _
    $region75: #{_lambda_.1} parent=1 // pred_check_branch
      %67 = sbr.rel (0) target = $region77
    $region76: #{_lambda_.1} parent=1 // pred_region
      _
    $region77: #{_lambda_.1} parent=1 // pred_fallthru
      _
    // Predicated region
    $region78: #{_lambda_.1} parent=1 // pred_check
      _
    $region79: #{_lambda_.1} parent=1 // pred_check_branch
      %69 = sbr.rel (0) target = $region81
    $region80: #{_lambda_.1} parent=1 // pred_region
      _
    $region81: #{_lambda_.1} parent=1 // pred_fallthru
      _
    // Predicated region
    $region82: #{_lambda_.1} parent=1 // pred_check
      _
    $region83: #{_lambda_.1} parent=1 // pred_check_branch
      %71 = sbr.rel (0) target = $region85
    $region84: #{_lambda_.1} parent=1 // pred_region
      _
    $region85: #{_lambda_.1} parent=1 // pred_fallthru
      _
    // Predicated region
    $region86: #{_lambda_.1} parent=1 // pred_check
      _
    $region87: #{_lambda_.1} parent=1 // pred_check_branch
      %73 = sbr.rel (0) target = $region89
    $region88: #{_lambda_.1} parent=1 // pred_region
      _
    $region89: #{_lambda_.1} parent=1 // pred_fallthru
      _
    // Predicated region
    $region90: #{_lambda_.1} parent=1 // pred_check
      _
    $region91: #{_lambda_.1} parent=1 // pred_check_branch
      %75 = sbr.rel (0) target = $region93
    $region92: #{_lambda_.1} parent=1 // pred_region
      _
    $region93: #{_lambda_.1} parent=1 // pred_fallthru
      _
    // Predicated region
    $region94: #{_lambda_.1} parent=1 // pred_check
      _
    $region95: #{_lambda_.1} parent=1 // pred_check_branch
      %77 = sbr.rel (0) target = $region97
    $region96: #{_lambda_.1} parent=1 // pred_region
      _
    $region97: #{_lambda_.1} parent=1 // pred_fallthru
      _
    %v78 = vlaneseq
    %v79 = vand.u32 %v78, 127
    %vm80 = vcmp.ge.s32.totalorder %v79, 0
    %vm81 = vcmp.lt.s32.totalorder %v79, 4
    %vm82 = vmand %vm80, %vm81
    %v83 = vsel %vm82, 1, 0
    %v84 = vcvt.s32.f32 %v83
    %vm85 = vcmp.ge.s32.totalorder %v79, 4
    %vm86 = vcmp.lt.s32.totalorder %v79, 8
    %vm87 = vmand %vm85, %vm86
    %v88 = vsel %vm87, 1, 0
    %v89 = vcvt.s32.f32 %v88
    %vm90 = vcmp.ge.s32.totalorder %v79, 8
    %vm91 = vcmp.lt.s32.totalorder %v79, 12
    %vm92 = vmand %vm90, %vm91
    %v93 = vsel %vm92, 1, 0
    %v94 = vcvt.s32.f32 %v93
    %vm95 = vcmp.ge.s32.totalorder %v79, 12
    %vm96 = vcmp.lt.s32.totalorder %v79, 16
    %vm97 = vmand %vm95, %vm96
    %v98 = vsel %vm97, 1, 0
    %v99 = vcvt.s32.f32 %v98
    %v100 = vld [vmem:[%s1] sm:$0xff]
    %v101 = vld [vmem:[%s1 + $0x8] sm:$0xff]
    %v102 = vld [vmem:[%s1 + $0x10] sm:$0xff]
    %v103 = vld [vmem:[%s1 + $0x18] sm:$0xff]
    %v104 = vld [vmem:[%s1 + $0x20] sm:$0xff]
    %v105 = vld [vmem:[%s1 + $0x28] sm:$0xff]
    %v106 = vld [vmem:[%s1 + $0x30] sm:$0xff]
    %v107 = vld [vmem:[%s1 + $0x38] sm:$0xff]
    %v108 = vld [vmem:[%s1 + $0x40] sm:$0xff]
    %v109 = vld [vmem:[%s1 + $0x48] sm:$0xff]
    %v110 = vld [vmem:[%s1 + $0x50] sm:$0xff]
    %v111 = vld [vmem:[%s1 + $0x58] sm:$0xff]
    %v112 = vld [vmem:[%s1 + $0x60] sm:$0xff]
    %v113 = vld [vmem:[%s1 + $0x68] sm:$0xff]
    %v114 = vld [vmem:[%s1 + $0x70] sm:$0xff]
    %v115 = vld [vmem:[%s1 + $0x78] sm:$0xff]
    %v116 = vld [vmem:[%s5] sm:$0xff]
    %v117 = vld [vmem:[%s0] sm:$0xff]
    %v118 = vld [vmem:[%s0 + $0x8] sm:$0xff]
    %v119 = vld [vmem:[%s0 + $0x10] sm:$0xff]
    %v120 = vld [vmem:[%s0 + $0x18] sm:$0xff]
    %v121 = vld [vmem:[%s0 + $0x20] sm:$0xff]
    %v122 = vld [vmem:[%s0 + $0x28] sm:$0xff]
    %v123 = vld [vmem:[%s0 + $0x30] sm:$0xff]
    %v124 = vld [vmem:[%s0 + $0x38] sm:$0xff]
    %v125 = vld [vmem:[%s2] sm:$0x1]
    %v127 = vlaneseq
    %v128 = vshrl.u32 %v127, 7
    %v129 = vsub.s32 0, %v128
    %v130 = vrot.slane %v125, %v129
    %132 = vmatprep.subr.mxu0 0.0
    %133 = vmatpush1.msra.mxu0 %v100
    %134 = vmatprep.subr.mxu0 0.0
    %135 = vmatpush1.msra.mxu0 %v101
    %136 = vmatprep.subr.mxu0 0.0
    %137 = vmatpush1.msra.mxu0 %v102
    %138 = vmatprep.subr.mxu0 0.0
    %139 = vmatpush1.msra.mxu0 %v103
    %140 = vmatprep.subr.mxu0 0.0
    %141 = vmatpush1.msra.mxu0 %v104
    %142 = vmatprep.subr.mxu0 0.0
    %143 = vmatpush1.msra.mxu0 %v105
    %144 = vmatprep.subr.mxu0 0.0
    %145 = vmatpush1.msra.mxu0 %v106
    %146 = vmatprep.subr.mxu0 0.0
    %147 = vmatpush1.msra.mxu0 %v107
    %148 = vmatprep.subr.mxu0 0.0
    %149 = vmatpush1.msra.mxu0 %v108
    %150 = vmatprep.subr.mxu0 0.0
    %151 = vmatpush1.msra.mxu0 %v109
    %152 = vmatprep.subr.mxu0 0.0
    %153 = vmatpush1.msra.mxu0 %v110
    %154 = vmatprep.subr.mxu0 0.0
    %155 = vmatpush1.msra.mxu0 %v111
    %156 = vmatprep.subr.mxu0 0.0
    %157 = vmatpush1.msra.mxu0 %v112
    %158 = vmatprep.subr.mxu0 0.0
    %159 = vmatpush1.msra.mxu0 %v113
    %160 = vmatprep.subr.mxu0 0.0
    %161 = vmatpush1.msra.mxu0 %v114
    %162 = vmatprep.subr.mxu0 0.0
    %163 = vmatpush1.msra.mxu0 %v115
    %164 = vmatprep.subr.mxu0 0.0
    %165 = vmatpush1.msra.mxu0 0.0
    %166 = vmatprep.subr.mxu0 0.0
    %167 = vmatpush1.msra.mxu0 0.0
    %168 = vmatprep.subr.mxu0 0.0
    %169 = vmatpush1.msra.mxu0 0.0
    %170 = vmatprep.subr.mxu0 0.0
    %171 = vmatpush1.msra.mxu0 0.0
    %172 = vmatprep.subr.mxu0 0.0
    %173 = vmatpush1.msra.mxu0 0.0
    %174 = vmatprep.subr.mxu0 0.0
    %175 = vmatpush1.msra.mxu0 0.0
    %176 = vmatprep.subr.mxu0 0.0
    %177 = vmatpush1.msra.mxu0 0.0
    %178 = vmatprep.subr.mxu0 0.0
    %179 = vmatpush1.msra.mxu0 0.0
    %180 = vmatprep.subr.mxu0 0.0
    %181 = vmatpush1.msra.mxu0 0.0
    %182 = vmatprep.subr.mxu0 0.0
    %183 = vmatpush1.msra.mxu0 0.0
    %184 = vmatprep.subr.mxu0 0.0
    %185 = vmatpush1.msra.mxu0 0.0
    %186 = vmatprep.subr.mxu0 0.0
    %187 = vmatpush1.msra.mxu0 0.0
    %188 = vmatprep.subr.mxu0 0.0
    %189 = vmatpush1.msra.mxu0 0.0
    %190 = vmatprep.subr.mxu0 0.0
    %191 = vmatpush1.msra.mxu0 0.0
    %192 = vmatprep.subr.mxu0 0.0
    %193 = vmatpush1.msra.mxu0 0.0
    %194 = vmatprep.subr.mxu0 0.0
    %195 = vmatpush1.msra.mxu0 0.0
    %196 = vmatprep.mubr.f32.mxu0 0.0
    %197 = vmatmul.mubr.f32.gmra.mrb[0].mxu0 %v117
    %v198 = vpop.f32.mrb[0].mxu0
    %v199 = vadd.f32 %v130, %v198
    %v200 = vpop.f32.mrb[0].mxu0
    %201 = vmatprep.mubr.f32.mxu0 0.0
    %202 = vmatmul.mubr.f32.gmra.mrb[0].mxu0 %v118
    %v203 = vpop.f32.mrb[0].mxu0
    %v204 = vadd.f32 %v130, %v203
    %v205 = vpop.f32.mrb[0].mxu0
    %206 = vmatprep.mubr.f32.mxu0 0.0
    %207 = vmatmul.mubr.f32.gmra.mrb[0].mxu0 %v119
    %v208 = vpop.f32.mrb[0].mxu0
    %v209 = vadd.f32 %v130, %v208
    %v210 = vpop.f32.mrb[0].mxu0
    %211 = vmatprep.mubr.f32.mxu0 0.0
    %212 = vmatmul.mubr.f32.gmra.mrb[0].mxu0 %v120
    %v213 = vpop.f32.mrb[0].mxu0
    %v214 = vadd.f32 %v130, %v213
    %v215 = vpop.f32.mrb[0].mxu0
    %216 = vmatprep.mubr.f32.mxu0 0.0
    %217 = vmatmul.mubr.f32.gmra.mrb[0].mxu0 %v121
    %v218 = vpop.f32.mrb[0].mxu0
    %v219 = vadd.f32 %v130, %v218
    %v220 = vpop.f32.mrb[0].mxu0
    %221 = vmatprep.mubr.f32.mxu0 0.0
    %222 = vmatmul.mubr.f32.gmra.mrb[0].mxu0 %v122
    %v223 = vpop.f32.mrb[0].mxu0
    %v224 = vadd.f32 %v130, %v223
    %v225 = vpop.f32.mrb[0].mxu0
    %226 = vmatprep.mubr.f32.mxu0 0.0
    %227 = vmatmul.mubr.f32.gmra.mrb[0].mxu0 %v123
    %v228 = vpop.f32.mrb[0].mxu0
    %v229 = vadd.f32 %v130, %v228
    %v230 = vpop.f32.mrb[0].mxu0
    %231 = vmatprep.mubr.f32.mxu0 0.0
    %232 = vmatmul.mubr.f32.gmra.mrb[0].mxu0 %v124
    %v233 = vpop.f32.mrb[0].mxu0
    %v234 = vadd.f32 %v130, %v233
    %v235 = vpop.f32.mrb[0].mxu0
    %236 = vdwg.mxu0
    %v237 = vmul.f32 %v199, 0.70710677
    %v238 = vmul.f32 %v204, 0.70710677
    %v239 = vmul.f32 %v209, 0.70710677
    %v240 = vmul.f32 %v214, 0.70710677
    %v241 = vmul.f32 %v219, 0.70710677
    %v242 = vmul.f32 %v224, 0.70710677
    %v243 = vmul.f32 %v229, 0.70710677
    %v244 = vmul.f32 %v234, 0.70710677
    %v245 = vand.u32 2147483647, %v237
    %v246 = vand.u32 2147483647, %v238
    %v247 = vand.u32 2147483647, %v239
    %v248 = vand.u32 2147483647, %v240
    %v249 = vand.u32 2147483647, %v241
    %v250 = vand.u32 2147483647, %v242
    %v251 = vand.u32 2147483647, %v243
    %v252 = vand.u32 2147483647, %v244
    %v253 = vmul.f32 %v245, 0.3275911
    %v254 = vmul.f32 %v246, 0.3275911
    %v255 = vmul.f32 %v247, 0.3275911
    %v256 = vmul.f32 %v248, 0.3275911
    %v257 = vmul.f32 %v249, 0.3275911
    %v258 = vmul.f32 %v250, 0.3275911
    %v259 = vmul.f32 %v251, 0.3275911
    %v260 = vmul.f32 %v252, 0.3275911
    %v261 = vadd.f32 %v253, 1.0
    %v262 = vadd.f32 %v254, 1.0
    %v263 = vadd.f32 %v255, 1.0
    %v264 = vadd.f32 %v256, 1.0
    %v265 = vadd.f32 %v257, 1.0
    %v266 = vadd.f32 %v258, 1.0
    %v267 = vadd.f32 %v259, 1.0
    %v268 = vadd.f32 %v260, 1.0
    %v269 = vrcp.pop %v261
    %v270 = vmul.f32 1.0, %v269
    %v271 = vrcp.pop %v262
    %v272 = vmul.f32 1.0, %v271
    %v273 = vrcp.pop %v263
    %v274 = vmul.f32 1.0, %v273
    %v275 = vrcp.pop %v264
    %v276 = vmul.f32 1.0, %v275
    %v277 = vrcp.pop %v265
    %v278 = vmul.f32 1.0, %v277
    %v279 = vrcp.pop %v266
    %v280 = vmul.f32 1.0, %v279
    %v281 = vrcp.pop %v267
    %v282 = vmul.f32 1.0, %v281
    %v283 = vrcp.pop %v268
    %v284 = vmul.f32 1.0, %v283
    %v285 = vmul.f32 %v270, 1.0614054
    %v286 = vmul.f32 %v272, 1.0614054
    %v287 = vmul.f32 %v274, 1.0614054
    %v288 = vmul.f32 %v276, 1.0614054
    %v289 = vmul.f32 %v278, 1.0614054
    %v290 = vmul.f32 %v280, 1.0614054
    %v291 = vmul.f32 %v282, 1.0614054
    %v292 = vmul.f32 %v284, 1.0614054
    %v293 = vadd.f32 %v285, -1.4531521
    %v294 = vadd.f32 %v286, -1.4531521
    %v295 = vadd.f32 %v287, -1.4531521
    %v296 = vadd.f32 %v288, -1.4531521
    %v297 = vadd.f32 %v289, -1.4531521
    %v298 = vadd.f32 %v290, -1.4531521
    %v299 = vadd.f32 %v291, -1.4531521
    %v300 = vadd.f32 %v292, -1.4531521
    %v301 = vmul.f32 %v270, %v293
    %v302 = vmul.f32 %v272, %v294
    %v303 = vmul.f32 %v274, %v295
    %v304 = vmul.f32 %v276, %v296
    %v305 = vmul.f32 %v278, %v297
    %v306 = vmul.f32 %v280, %v298
    %v307 = vmul.f32 %v282, %v299
    %v308 = vmul.f32 %v284, %v300
    %v309 = vadd.f32 %v301, 1.4214138
    %v310 = vadd.f32 %v302, 1.4214138
    %v311 = vadd.f32 %v303, 1.4214138
    %v312 = vadd.f32 %v304, 1.4214138
    %v313 = vadd.f32 %v305, 1.4214138
    %v314 = vadd.f32 %v306, 1.4214138
    %v315 = vadd.f32 %v307, 1.4214138
    %v316 = vadd.f32 %v308, 1.4214138
    %v317 = vmul.f32 %v270, %v309
    %v318 = vmul.f32 %v272, %v310
    %v319 = vmul.f32 %v274, %v311
    %v320 = vmul.f32 %v276, %v312
    %v321 = vmul.f32 %v278, %v313
    %v322 = vmul.f32 %v280, %v314
    %v323 = vmul.f32 %v282, %v315
    %v324 = vmul.f32 %v284, %v316
    %v325 = vadd.f32 %v317, -0.28449672
    %v326 = vadd.f32 %v318, -0.28449672
    %v327 = vadd.f32 %v319, -0.28449672
    %v328 = vadd.f32 %v320, -0.28449672
    %v329 = vadd.f32 %v321, -0.28449672
    %v330 = vadd.f32 %v322, -0.28449672
    %v331 = vadd.f32 %v323, -0.28449672
    %v332 = vadd.f32 %v324, -0.28449672
    %v333 = vmul.f32 %v270, %v325
    %v334 = vmul.f32 %v272, %v326
    %v335 = vmul.f32 %v274, %v327
    %v336 = vmul.f32 %v276, %v328
    %v337 = vmul.f32 %v278, %v329
    %v338 = vmul.f32 %v280, %v330
    %v339 = vmul.f32 %v282, %v331
    %v340 = vmul.f32 %v284, %v332
    %v341 = vadd.f32 %v333, 0.2548296
    %v342 = vadd.f32 %v334, 0.2548296
    %v343 = vadd.f32 %v335, 0.2548296
    %v344 = vadd.f32 %v336, 0.2548296
    %v345 = vadd.f32 %v337, 0.2548296
    %v346 = vadd.f32 %v338, 0.2548296
    %v347 = vadd.f32 %v339, 0.2548296
    %v348 = vadd.f32 %v340, 0.2548296
    %v349 = vmul.f32 %v270, %v341
    %v350 = vmul.f32 %v272, %v342
    %v351 = vmul.f32 %v274, %v343
    %v352 = vmul.f32 %v276, %v344
    %v353 = vmul.f32 %v278, %v345
    %v354 = vmul.f32 %v280, %v346
    %v355 = vmul.f32 %v282, %v347
    %v356 = vmul.f32 %v284, %v348
    %v357 = vsub.f32 0.0, %v245
    %v358 = vsub.f32 0.0, %v246
    %v359 = vsub.f32 0.0, %v247
    %v360 = vsub.f32 0.0, %v248
    %v361 = vsub.f32 0.0, %v249
    %v362 = vsub.f32 0.0, %v250
    %v363 = vsub.f32 0.0, %v251
    %v364 = vsub.f32 0.0, %v252
    %v365 = vmul.f32 %v357, %v245
    %v366 = vmul.f32 %v358, %v246
    %v367 = vmul.f32 %v359, %v247
    %v368 = vmul.f32 %v360, %v248
    %v369 = vmul.f32 %v361, %v249
    %v370 = vmul.f32 %v362, %v250
    %v371 = vmul.f32 %v363, %v251
    %v372 = vmul.f32 %v364, %v252
    %v373 = vmul.f32 %v365, 1.442695
    %v374 = vpow.pop %v373
    %v375 = vmul.f32 %v366, 1.442695
    %v376 = vpow.pop %v375
    %v377 = vmul.f32 %v367, 1.442695
    %v378 = vpow.pop %v377
    %v379 = vmul.f32 %v368, 1.442695
    %v380 = vpow.pop %v379
    %v381 = vmul.f32 %v369, 1.442695
    %v382 = vpow.pop %v381
    %v383 = vmul.f32 %v370, 1.442695
    %v384 = vpow.pop %v383
    %v385 = vmul.f32 %v371, 1.442695
    %v386 = vpow.pop %v385
    %v387 = vmul.f32 %v372, 1.442695
    %v388 = vpow.pop %v387
    %v389 = vmul.f32 %v349, %v374
    %v390 = vmul.f32 %v350, %v376
    %v391 = vmul.f32 %v351, %v378
    %v392 = vmul.f32 %v352, %v380
    %v393 = vmul.f32 %v353, %v382
    %v394 = vmul.f32 %v354, %v384
    %v395 = vmul.f32 %v355, %v386
    %v396 = vmul.f32 %v356, %v388
    %v397 = vsub.f32 1.0, %v389
    %v398 = vsub.f32 1.0, %v390
    %v399 = vsub.f32 1.0, %v391
    %v400 = vsub.f32 1.0, %v392
    %v401 = vsub.f32 1.0, %v393
    %v402 = vsub.f32 1.0, %v394
    %v403 = vsub.f32 1.0, %v395
    %v404 = vsub.f32 1.0, %v396
    %vm405 = vcmp.ge.f32.partialorder %v237, 0.0
    %vm406 = vcmp.ge.f32.partialorder %v238, 0.0
    %vm407 = vcmp.ge.f32.partialorder %v239, 0.0
    %vm408 = vcmp.ge.f32.partialorder %v240, 0.0
    %vm409 = vcmp.ge.f32.partialorder %v241, 0.0
    %vm410 = vcmp.ge.f32.partialorder %v242, 0.0
    %vm411 = vcmp.ge.f32.partialorder %v243, 0.0
    %vm412 = vcmp.ge.f32.partialorder %v244, 0.0
    %v413 = vsub.f32 0.0, %v397
    %v414 = vsub.f32 0.0, %v398
    %v415 = vsub.f32 0.0, %v399
    %v416 = vsub.f32 0.0, %v400
    %v417 = vsub.f32 0.0, %v401
    %v418 = vsub.f32 0.0, %v402
    %v419 = vsub.f32 0.0, %v403
    %v420 = vsub.f32 0.0, %v404
    %v421 = vsel %vm405, %v397, %v413
    %v422 = vsel %vm406, %v398, %v414
    %v423 = vsel %vm407, %v399, %v415
    %v424 = vsel %vm408, %v400, %v416
    %v425 = vsel %vm409, %v401, %v417
    %v426 = vsel %vm410, %v402, %v418
    %v427 = vsel %vm411, %v403, %v419
    %v428 = vsel %vm412, %v404, %v420
    %v429 = vmul.f32 %v199, 0.5
    %v430 = vmul.f32 %v204, 0.5
    %v431 = vmul.f32 %v209, 0.5
    %v432 = vmul.f32 %v214, 0.5
    %v433 = vmul.f32 %v219, 0.5
    %v434 = vmul.f32 %v224, 0.5
    %v435 = vmul.f32 %v229, 0.5
    %v436 = vmul.f32 %v234, 0.5
    %v437 = vadd.f32 %v421, 1.0
    %v438 = vadd.f32 %v422, 1.0
    %v439 = vadd.f32 %v423, 1.0
    %v440 = vadd.f32 %v424, 1.0
    %v441 = vadd.f32 %v425, 1.0
    %v442 = vadd.f32 %v426, 1.0
    %v443 = vadd.f32 %v427, 1.0
    %v444 = vadd.f32 %v428, 1.0
    %v445 = vmul.f32 %v429, %v437
    %v446 = vmul.f32 %v430, %v438
    %v447 = vmul.f32 %v431, %v439
    %v448 = vmul.f32 %v432, %v440
    %v449 = vmul.f32 %v433, %v441
    %v450 = vmul.f32 %v434, %v442
    %v451 = vmul.f32 %v435, %v443
    %v452 = vmul.f32 %v436, %v444
    %v453 = vld [vmem:[%s3] sm:$0x1]
    %v455 = vlaneseq
    %v456 = vshrl.u32 %v455, 7
    %v457 = vsub.s32 0, %v456
    %v458 = vrot.slane %v453, %v457
    %v460 = vmul.f32 %v445, %v458
    %v461 = vmul.f32 %v446, %v458
    %v462 = vmul.f32 %v447, %v458
    %v463 = vmul.f32 %v448, %v458
    %v464 = vmul.f32 %v449, %v458
    %v465 = vmul.f32 %v450, %v458
    %v466 = vmul.f32 %v451, %v458
    %v467 = vmul.f32 %v452, %v458
    %v468 = vld [vmem:[%s4] sm:$0x1]
    %v470 = vlaneseq
    %v471 = vshrl.u32 %v470, 7
    %v472 = vsub.s32 0, %v471
    %v473 = vrot.slane %v468, %v472
    %v475 = vadd.f32 %v460, %v473
    %v476 = vadd.f32 %v461, %v473
    %v477 = vadd.f32 %v462, %v473
    %v478 = vadd.f32 %v463, %v473
    %v479 = vadd.f32 %v464, %v473
    %v480 = vadd.f32 %v465, %v473
    %v481 = vadd.f32 %v466, %v473
    %v482 = vadd.f32 %v467, %v473
    %vm483 = vcmask 523264
    %v485 = vsel %vm483, %v116, 0
    %487 = vmatprep.subr.mxu0 0.0
    %488 = vmatpush1.msra.mxu0 %v475
    %489 = vmatprep.subr.mxu0 0.0
    %490 = vmatpush1.msra.mxu0 %v476
    %491 = vmatprep.subr.mxu0 0.0
    %492 = vmatpush1.msra.mxu0 %v477
    %493 = vmatprep.subr.mxu0 0.0
    %494 = vmatpush1.msra.mxu0 %v478
    %495 = vmatprep.subr.mxu0 0.0
    %496 = vmatpush1.msra.mxu0 %v479
    %497 = vmatprep.subr.mxu0 0.0
    %498 = vmatpush1.msra.mxu0 %v480
    %499 = vmatprep.subr.mxu0 0.0
    %500 = vmatpush1.msra.mxu0 %v481
    %501 = vmatprep.subr.mxu0 0.0
    %502 = vmatpush1.msra.mxu0 %v482
    %503 = vmatprep.subr.mxu0 0.0
    %504 = vmatpush1.msra.mxu0 0.0
    %505 = vmatprep.subr.mxu0 0.0
    %506 = vmatpush1.msra.mxu0 0.0
    %507 = vmatprep.subr.mxu0 0.0
    %508 = vmatpush1.msra.mxu0 0.0
    %509 = vmatprep.subr.mxu0 0.0
    %510 = vmatpush1.msra.mxu0 0.0
    %511 = vmatprep.subr.mxu0 0.0
    %512 = vmatpush1.msra.mxu0 0.0
    %513 = vmatprep.subr.mxu0 0.0
    %514 = vmatpush1.msra.mxu0 0.0
    %515 = vmatprep.subr.mxu0 0.0
    %516 = vmatpush1.msra.mxu0 0.0
    %517 = vmatprep.subr.mxu0 0.0
    %518 = vmatpush1.msra.mxu0 0.0
    %519 = vmatprep.subr.mxu0 0.0
    %520 = vmatpush1.msra.mxu0 0.0
    %521 = vmatprep.subr.mxu0 0.0
    %522 = vmatpush1.msra.mxu0 0.0
    %523 = vmatprep.subr.mxu0 0.0
    %524 = vmatpush1.msra.mxu0 0.0
    %525 = vmatprep.subr.mxu0 0.0
    %526 = vmatpush1.msra.mxu0 0.0
    %527 = vmatprep.subr.mxu0 0.0
    %528 = vmatpush1.msra.mxu0 0.0
    %529 = vmatprep.subr.mxu0 0.0
    %530 = vmatpush1.msra.mxu0 0.0
    %531 = vmatprep.subr.mxu0 0.0
    %532 = vmatpush1.msra.mxu0 0.0
    %533 = vmatprep.subr.mxu0 0.0
    %534 = vmatpush1.msra.mxu0 0.0
    %535 = vmatprep.subr.mxu0 0.0
    %536 = vmatpush1.msra.mxu0 0.0
    %537 = vmatprep.subr.mxu0 0.0
    %538 = vmatpush1.msra.mxu0 0.0
    %539 = vmatprep.subr.mxu0 0.0
    %540 = vmatpush1.msra.mxu0 0.0
    %541 = vmatprep.subr.mxu0 0.0
    %542 = vmatpush1.msra.mxu0 0.0
    %543 = vmatprep.subr.mxu0 0.0
    %544 = vmatpush1.msra.mxu0 0.0
    %545 = vmatprep.subr.mxu0 0.0
    %546 = vmatpush1.msra.mxu0 0.0
    %547 = vmatprep.subr.mxu0 0.0
    %548 = vmatpush1.msra.mxu0 0.0
    %549 = vmatprep.subr.mxu0 0.0
    %550 = vmatpush1.msra.mxu0 0.0
    %551 = vmatprep.mubr.f32.mxu0 0.0
    %552 = vmatmul.mubr.f32.gmra.mrb[0].mxu0 %v485
    %v553 = vpop.f32.mrb[0].mxu0
    %v554 = vadd.f32 0.0, %v553
    %v555 = vpop.f32.mrb[0].mxu0
    %556 = vdwg.mxu0
    %s557 = scalar_lea.vmem %s0, 64
    %v558 = vld [vmem:[%s557] sm:$0xff]
    %v559 = vld [vmem:[%s557 + $0x8] sm:$0xff]
    %v560 = vld [vmem:[%s557 + $0x10] sm:$0xff]
    %v561 = vld [vmem:[%s557 + $0x18] sm:$0xff]
    %v562 = vld [vmem:[%s557 + $0x20] sm:$0xff]
    %v563 = vld [vmem:[%s557 + $0x28] sm:$0xff]
    %v564 = vld [vmem:[%s557 + $0x30] sm:$0xff]
    %v565 = vld [vmem:[%s557 + $0x38] sm:$0xff]
    %566 = vmatprep.subr.mxu0 0.0
    %567 = vmatpush1.msra.mxu0 %v100
    %568 = vmatprep.subr.mxu0 0.0
    %569 = vmatpush1.msra.mxu0 %v101
    %570 = vmatprep.subr.mxu0 0.0
    %571 = vmatpush1.msra.mxu0 %v102
    %572 = vmatprep.subr.mxu0 0.0
    %573 = vmatpush1.msra.mxu0 %v103
    %574 = vmatprep.subr.mxu0 0.0
    %575 = vmatpush1.msra.mxu0 %v104
    %576 = vmatprep.subr.mxu0 0.0
    %577 = vmatpush1.msra.mxu0 %v105
    %578 = vmatprep.subr.mxu0 0.0
    %579 = vmatpush1.msra.mxu0 %v106
    %580 = vmatprep.subr.mxu0 0.0
    %581 = vmatpush1.msra.mxu0 %v107
    %582 = vmatprep.subr.mxu0 0.0
    %583 = vmatpush1.msra.mxu0 %v108
    %584 = vmatprep.subr.mxu0 0.0
    %585 = vmatpush1.msra.mxu0 %v109
    %586 = vmatprep.subr.mxu0 0.0
    %587 = vmatpush1.msra.mxu0 %v110
    %588 = vmatprep.subr.mxu0 0.0
    %589 = vmatpush1.msra.mxu0 %v111
    %590 = vmatprep.subr.mxu0 0.0
    %591 = vmatpush1.msra.mxu0 %v112
    %592 = vmatprep.subr.mxu0 0.0
    %593 = vmatpush1.msra.mxu0 %v113
    %594 = vmatprep.subr.mxu0 0.0
    %595 = vmatpush1.msra.mxu0 %v114
    %596 = vmatprep.subr.mxu0 0.0
    %597 = vmatpush1.msra.mxu0 %v115
    %598 = vmatprep.subr.mxu0 0.0
    %599 = vmatpush1.msra.mxu0 0.0
    %600 = vmatprep.subr.mxu0 0.0
    %601 = vmatpush1.msra.mxu0 0.0
    %602 = vmatprep.subr.mxu0 0.0
    %603 = vmatpush1.msra.mxu0 0.0
    %604 = vmatprep.subr.mxu0 0.0
    %605 = vmatpush1.msra.mxu0 0.0
    %606 = vmatprep.subr.mxu0 0.0
    %607 = vmatpush1.msra.mxu0 0.0
    %608 = vmatprep.subr.mxu0 0.0
    %609 = vmatpush1.msra.mxu0 0.0
    %610 = vmatprep.subr.mxu0 0.0
    %611 = vmatpush1.msra.mxu0 0.0
    %612 = vmatprep.subr.mxu0 0.0
    %613 = vmatpush1.msra.mxu0 0.0
    %614 = vmatprep.subr.mxu0 0.0
    %615 = vmatpush1.msra.mxu0 0.0
    %616 = vmatprep.subr.mxu0 0.0
    %617 = vmatpush1.msra.mxu0 0.0
    %618 = vmatprep.subr.mxu0 0.0
    %619 = vmatpush1.msra.mxu0 0.0
    %620 = vmatprep.subr.mxu0 0.0
    %621 = vmatpush1.msra.mxu0 0.0
    %622 = vmatprep.subr.mxu0 0.0
    %623 = vmatpush1.msra.mxu0 0.0
    %624 = vmatprep.subr.mxu0 0.0
    %625 = vmatpush1.msra.mxu0 0.0
    %626 = vmatprep.subr.mxu0 0.0
    %627 = vmatpush1.msra.mxu0 0.0
    %628 = vmatprep.subr.mxu0 0.0
    %629 = vmatpush1.msra.mxu0 0.0
    %630 = vmatprep.mubr.f32.mxu0 0.0
    %631 = vmatmul.mubr.f32.gmra.mrb[0].mxu0 %v558
    %v632 = vpop.f32.mrb[0].mxu0
    %v633 = vadd.f32 %v130, %v632
    %v634 = vpop.f32.mrb[0].mxu0
    %635 = vmatprep.mubr.f32.mxu0 0.0
    %636 = vmatmul.mubr.f32.gmra.mrb[0].mxu0 %v559
    %v637 = vpop.f32.mrb[0].mxu0
    %v638 = vadd.f32 %v130, %v637
    %v639 = vpop.f32.mrb[0].mxu0
    %640 = vmatprep.mubr.f32.mxu0 0.0
    %641 = vmatmul.mubr.f32.gmra.mrb[0].mxu0 %v560
    %v642 = vpop.f32.mrb[0].mxu0
    %v643 = vadd.f32 %v130, %v642
    %v644 = vpop.f32.mrb[0].mxu0
    %645 = vmatprep.mubr.f32.mxu0 0.0
    %646 = vmatmul.mubr.f32.gmra.mrb[0].mxu0 %v561
    %v647 = vpop.f32.mrb[0].mxu0
    %v648 = vadd.f32 %v130, %v647
    %v649 = vpop.f32.mrb[0].mxu0
    %650 = vmatprep.mubr.f32.mxu0 0.0
    %651 = vmatmul.mubr.f32.gmra.mrb[0].mxu0 %v562
    %v652 = vpop.f32.mrb[0].mxu0
    %v653 = vadd.f32 %v130, %v652
    %v654 = vpop.f32.mrb[0].mxu0
    %655 = vmatprep.mubr.f32.mxu0 0.0
    %656 = vmatmul.mubr.f32.gmra.mrb[0].mxu0 %v563
    %v657 = vpop.f32.mrb[0].mxu0
    %v658 = vadd.f32 %v130, %v657
    %v659 = vpop.f32.mrb[0].mxu0
    %660 = vmatprep.mubr.f32.mxu0 0.0
    %661 = vmatmul.mubr.f32.gmra.mrb[0].mxu0 %v564
    %v662 = vpop.f32.mrb[0].mxu0
    %v663 = vadd.f32 %v130, %v662
    %v664 = vpop.f32.mrb[0].mxu0
    %665 = vmatprep.mubr.f32.mxu0 0.0
    %666 = vmatmul.mubr.f32.gmra.mrb[0].mxu0 %v565
    %v667 = vpop.f32.mrb[0].mxu0
    %v668 = vadd.f32 %v130, %v667
    %v669 = vpop.f32.mrb[0].mxu0
    %670 = vdwg.mxu0
    %v671 = vmul.f32 %v633, 0.70710677
    %v672 = vmul.f32 %v638, 0.70710677
    %v673 = vmul.f32 %v643, 0.70710677
    %v674 = vmul.f32 %v648, 0.70710677
    %v675 = vmul.f32 %v653, 0.70710677
    %v676 = vmul.f32 %v658, 0.70710677
    %v677 = vmul.f32 %v663, 0.70710677
    %v678 = vmul.f32 %v668, 0.70710677
    %v679 = vand.u32 2147483647, %v671
    %v680 = vand.u32 2147483647, %v672
    %v681 = vand.u32 2147483647, %v673
    %v682 = vand.u32 2147483647, %v674
    %v683 = vand.u32 2147483647, %v675
    %v684 = vand.u32 2147483647, %v676
    %v685 = vand.u32 2147483647, %v677
    %v686 = vand.u32 2147483647, %v678
    %v687 = vmul.f32 %v679, 0.3275911
    %v688 = vmul.f32 %v680, 0.3275911
    %v689 = vmul.f32 %v681, 0.3275911
    %v690 = vmul.f32 %v682, 0.3275911
    %v691 = vmul.f32 %v683, 0.3275911
    %v692 = vmul.f32 %v684, 0.3275911
    %v693 = vmul.f32 %v685, 0.3275911
    %v694 = vmul.f32 %v686, 0.3275911
    %v695 = vadd.f32 %v687, 1.0
    %v696 = vadd.f32 %v688, 1.0
    %v697 = vadd.f32 %v689, 1.0
    %v698 = vadd.f32 %v690, 1.0
    %v699 = vadd.f32 %v691, 1.0
    %v700 = vadd.f32 %v692, 1.0
    %v701 = vadd.f32 %v693, 1.0
    %v702 = vadd.f32 %v694, 1.0
    %v703 = vrcp.pop %v695
    %v704 = vmul.f32 1.0, %v703
    %v705 = vrcp.pop %v696
    %v706 = vmul.f32 1.0, %v705
    %v707 = vrcp.pop %v697
    %v708 = vmul.f32 1.0, %v707
    %v709 = vrcp.pop %v698
    %v710 = vmul.f32 1.0, %v709
    %v711 = vrcp.pop %v699
    %v712 = vmul.f32 1.0, %v711
    %v713 = vrcp.pop %v700
    %v714 = vmul.f32 1.0, %v713
    %v715 = vrcp.pop %v701
    %v716 = vmul.f32 1.0, %v715
    %v717 = vrcp.pop %v702
    %v718 = vmul.f32 1.0, %v717
    %v719 = vmul.f32 %v704, 1.0614054
    %v720 = vmul.f32 %v706, 1.0614054
    %v721 = vmul.f32 %v708, 1.0614054
    %v722 = vmul.f32 %v710, 1.0614054
    %v723 = vmul.f32 %v712, 1.0614054
    %v724 = vmul.f32 %v714, 1.0614054
    %v725 = vmul.f32 %v716, 1.0614054
    %v726 = vmul.f32 %v718, 1.0614054
    %v727 = vadd.f32 %v719, -1.4531521
    %v728 = vadd.f32 %v720, -1.4531521
    %v729 = vadd.f32 %v721, -1.4531521
    %v730 = vadd.f32 %v722, -1.4531521
    %v731 = vadd.f32 %v723, -1.4531521
    %v732 = vadd.f32 %v724, -1.4531521
    %v733 = vadd.f32 %v725, -1.4531521
    %v734 = vadd.f32 %v726, -1.4531521
    %v735 = vmul.f32 %v704, %v727
    %v736 = vmul.f32 %v706, %v728
    %v737 = vmul.f32 %v708, %v729
    %v738 = vmul.f32 %v710, %v730
    %v739 = vmul.f32 %v712, %v731
    %v740 = vmul.f32 %v714, %v732
    %v741 = vmul.f32 %v716, %v733
    %v742 = vmul.f32 %v718, %v734
    %v743 = vadd.f32 %v735, 1.4214138
    %v744 = vadd.f32 %v736, 1.4214138
    %v745 = vadd.f32 %v737, 1.4214138
    %v746 = vadd.f32 %v738, 1.4214138
    %v747 = vadd.f32 %v739, 1.4214138
    %v748 = vadd.f32 %v740, 1.4214138
    %v749 = vadd.f32 %v741, 1.4214138
    %v750 = vadd.f32 %v742, 1.4214138
    %v751 = vmul.f32 %v704, %v743
    %v752 = vmul.f32 %v706, %v744
    %v753 = vmul.f32 %v708, %v745
    %v754 = vmul.f32 %v710, %v746
    %v755 = vmul.f32 %v712, %v747
    %v756 = vmul.f32 %v714, %v748
    %v757 = vmul.f32 %v716, %v749
    %v758 = vmul.f32 %v718, %v750
    %v759 = vadd.f32 %v751, -0.28449672
    %v760 = vadd.f32 %v752, -0.28449672
    %v761 = vadd.f32 %v753, -0.28449672
    %v762 = vadd.f32 %v754, -0.28449672
    %v763 = vadd.f32 %v755, -0.28449672
    %v764 = vadd.f32 %v756, -0.28449672
    %v765 = vadd.f32 %v757, -0.28449672
    %v766 = vadd.f32 %v758, -0.28449672
    %v767 = vmul.f32 %v704, %v759
    %v768 = vmul.f32 %v706, %v760
    %v769 = vmul.f32 %v708, %v761
    %v770 = vmul.f32 %v710, %v762
    %v771 = vmul.f32 %v712, %v763
    %v772 = vmul.f32 %v714, %v764
    %v773 = vmul.f32 %v716, %v765
    %v774 = vmul.f32 %v718, %v766
    %v775 = vadd.f32 %v767, 0.2548296
    %v776 = vadd.f32 %v768, 0.2548296
    %v777 = vadd.f32 %v769, 0.2548296
    %v778 = vadd.f32 %v770, 0.2548296
    %v779 = vadd.f32 %v771, 0.2548296
    %v780 = vadd.f32 %v772, 0.2548296
    %v781 = vadd.f32 %v773, 0.2548296
    %v782 = vadd.f32 %v774, 0.2548296
    %v783 = vmul.f32 %v704, %v775
    %v784 = vmul.f32 %v706, %v776
    %v785 = vmul.f32 %v708, %v777
    %v786 = vmul.f32 %v710, %v778
    %v787 = vmul.f32 %v712, %v779
    %v788 = vmul.f32 %v714, %v780
    %v789 = vmul.f32 %v716, %v781
    %v790 = vmul.f32 %v718, %v782
    %v791 = vsub.f32 0.0, %v679
    %v792 = vsub.f32 0.0, %v680
    %v793 = vsub.f32 0.0, %v681
    %v794 = vsub.f32 0.0, %v682
    %v795 = vsub.f32 0.0, %v683
    %v796 = vsub.f32 0.0, %v684
    %v797 = vsub.f32 0.0, %v685
    %v798 = vsub.f32 0.0, %v686
    %v799 = vmul.f32 %v791, %v679
    %v800 = vmul.f32 %v792, %v680
    %v801 = vmul.f32 %v793, %v681
    %v802 = vmul.f32 %v794, %v682
    %v803 = vmul.f32 %v795, %v683
    %v804 = vmul.f32 %v796, %v684
    %v805 = vmul.f32 %v797, %v685
    %v806 = vmul.f32 %v798, %v686
    %v807 = vmul.f32 %v799, 1.442695
    %v808 = vpow.pop %v807
    %v809 = vmul.f32 %v800, 1.442695
    %v810 = vpow.pop %v809
    %v811 = vmul.f32 %v801, 1.442695
    %v812 = vpow.pop %v811
    %v813 = vmul.f32 %v802, 1.442695
    %v814 = vpow.pop %v813
    %v815 = vmul.f32 %v803, 1.442695
    %v816 = vpow.pop %v815
    %v817 = vmul.f32 %v804, 1.442695
    %v818 = vpow.pop %v817
    %v819 = vmul.f32 %v805, 1.442695
    %v820 = vpow.pop %v819
    %v821 = vmul.f32 %v806, 1.442695
    %v822 = vpow.pop %v821
    %v823 = vmul.f32 %v783, %v808
    %v824 = vmul.f32 %v784, %v810
    %v825 = vmul.f32 %v785, %v812
    %v826 = vmul.f32 %v786, %v814
    %v827 = vmul.f32 %v787, %v816
    %v828 = vmul.f32 %v788, %v818
    %v829 = vmul.f32 %v789, %v820
    %v830 = vmul.f32 %v790, %v822
    %v831 = vsub.f32 1.0, %v823
    %v832 = vsub.f32 1.0, %v824
    %v833 = vsub.f32 1.0, %v825
    %v834 = vsub.f32 1.0, %v826
    %v835 = vsub.f32 1.0, %v827
    %v836 = vsub.f32 1.0, %v828
    %v837 = vsub.f32 1.0, %v829
    %v838 = vsub.f32 1.0, %v830
    %vm839 = vcmp.ge.f32.partialorder %v671, 0.0
    %vm840 = vcmp.ge.f32.partialorder %v672, 0.0
    %vm841 = vcmp.ge.f32.partialorder %v673, 0.0
    %vm842 = vcmp.ge.f32.partialorder %v674, 0.0
    %vm843 = vcmp.ge.f32.partialorder %v675, 0.0
    %vm844 = vcmp.ge.f32.partialorder %v676, 0.0
    %vm845 = vcmp.ge.f32.partialorder %v677, 0.0
    %vm846 = vcmp.ge.f32.partialorder %v678, 0.0
    %v847 = vsub.f32 0.0, %v831
    %v848 = vsub.f32 0.0, %v832
    %v849 = vsub.f32 0.0, %v833
    %v850 = vsub.f32 0.0, %v834
    %v851 = vsub.f32 0.0, %v835
    %v852 = vsub.f32 0.0, %v836
    %v853 = vsub.f32 0.0, %v837
    %v854 = vsub.f32 0.0, %v838
    %v855 = vsel %vm839, %v831, %v847
    %v856 = vsel %vm840, %v832, %v848
    %v857 = vsel %vm841, %v833, %v849
    %v858 = vsel %vm842, %v834, %v850
    %v859 = vsel %vm843, %v835, %v851
    %v860 = vsel %vm844, %v836, %v852
    %v861 = vsel %vm845, %v837, %v853
    %v862 = vsel %vm846, %v838, %v854
    %v863 = vmul.f32 %v633, 0.5
    %v864 = vmul.f32 %v638, 0.5
    %v865 = vmul.f32 %v643, 0.5
    %v866 = vmul.f32 %v648, 0.5
    %v867 = vmul.f32 %v653, 0.5
    %v868 = vmul.f32 %v658, 0.5
    %v869 = vmul.f32 %v663, 0.5
    %v870 = vmul.f32 %v668, 0.5
    %v871 = vadd.f32 %v855, 1.0
    %v872 = vadd.f32 %v856, 1.0
    %v873 = vadd.f32 %v857, 1.0
    %v874 = vadd.f32 %v858, 1.0
    %v875 = vadd.f32 %v859, 1.0
    %v876 = vadd.f32 %v860, 1.0
    %v877 = vadd.f32 %v861, 1.0
    %v878 = vadd.f32 %v862, 1.0
    %v879 = vmul.f32 %v863, %v871
    %v880 = vmul.f32 %v864, %v872
    %v881 = vmul.f32 %v865, %v873
    %v882 = vmul.f32 %v866, %v874
    %v883 = vmul.f32 %v867, %v875
    %v884 = vmul.f32 %v868, %v876
    %v885 = vmul.f32 %v869, %v877
    %v886 = vmul.f32 %v870, %v878
    %v887 = vmul.f32 %v879, %v458
    %v888 = vmul.f32 %v880, %v458
    %v889 = vmul.f32 %v881, %v458
    %v890 = vmul.f32 %v882, %v458
    %v891 = vmul.f32 %v883, %v458
    %v892 = vmul.f32 %v884, %v458
    %v893 = vmul.f32 %v885, %v458
    %v894 = vmul.f32 %v886, %v458
    %v895 = vadd.f32 %v887, %v473
    %v896 = vadd.f32 %v888, %v473
    %v897 = vadd.f32 %v889, %v473
    %v898 = vadd.f32 %v890, %v473
    %v899 = vadd.f32 %v891, %v473
    %v900 = vadd.f32 %v892, %v473
    %v901 = vadd.f32 %v893, %v473
    %v902 = vadd.f32 %v894, %v473
    %903 = vmatprep.subr.mxu0 0.0
    %904 = vmatpush1.msra.mxu0 %v895
    %905 = vmatprep.subr.mxu0 0.0
    %906 = vmatpush1.msra.mxu0 %v896
    %907 = vmatprep.subr.mxu0 0.0
    %908 = vmatpush1.msra.mxu0 %v897
    %909 = vmatprep.subr.mxu0 0.0
    %910 = vmatpush1.msra.mxu0 %v898
    %911 = vmatprep.subr.mxu0 0.0
    %912 = vmatpush1.msra.mxu0 %v899
    %913 = vmatprep.subr.mxu0 0.0
    %914 = vmatpush1.msra.mxu0 %v900
    %915 = vmatprep.subr.mxu0 0.0
    %916 = vmatpush1.msra.mxu0 %v901
    %917 = vmatprep.subr.mxu0 0.0
    %918 = vmatpush1.msra.mxu0 %v902
    %919 = vmatprep.subr.mxu0 0.0
    %920 = vmatpush1.msra.mxu0 0.0
    %921 = vmatprep.subr.mxu0 0.0
    %922 = vmatpush1.msra.mxu0 0.0
    %923 = vmatprep.subr.mxu0 0.0
    %924 = vmatpush1.msra.mxu0 0.0
    %925 = vmatprep.subr.mxu0 0.0
    %926 = vmatpush1.msra.mxu0 0.0
    %927 = vmatprep.subr.mxu0 0.0
    %928 = vmatpush1.msra.mxu0 0.0
    %929 = vmatprep.subr.mxu0 0.0
    %930 = vmatpush1.msra.mxu0 0.0
    %931 = vmatprep.subr.mxu0 0.0
    %932 = vmatpush1.msra.mxu0 0.0
    %933 = vmatprep.subr.mxu0 0.0
    %934 = vmatpush1.msra.mxu0 0.0
    %935 = vmatprep.subr.mxu0 0.0
    %936 = vmatpush1.msra.mxu0 0.0
    %937 = vmatprep.subr.mxu0 0.0
    %938 = vmatpush1.msra.mxu0 0.0
    %939 = vmatprep.subr.mxu0 0.0
    %940 = vmatpush1.msra.mxu0 0.0
    %941 = vmatprep.subr.mxu0 0.0
    %942 = vmatpush1.msra.mxu0 0.0
    %943 = vmatprep.subr.mxu0 0.0
    %944 = vmatpush1.msra.mxu0 0.0
    %945 = vmatprep.subr.mxu0 0.0
    %946 = vmatpush1.msra.mxu0 0.0
    %947 = vmatprep.subr.mxu0 0.0
    %948 = vmatpush1.msra.mxu0 0.0
    %949 = vmatprep.subr.mxu0 0.0
    %950 = vmatpush1.msra.mxu0 0.0
    %951 = vmatprep.subr.mxu0 0.0
    %952 = vmatpush1.msra.mxu0 0.0
    %953 = vmatprep.subr.mxu0 0.0
    %954 = vmatpush1.msra.mxu0 0.0
    %955 = vmatprep.subr.mxu0 0.0
    %956 = vmatpush1.msra.mxu0 0.0
    %957 = vmatprep.subr.mxu0 0.0
    %958 = vmatpush1.msra.mxu0 0.0
    %959 = vmatprep.subr.mxu0 0.0
    %960 = vmatpush1.msra.mxu0 0.0
    %961 = vmatprep.subr.mxu0 0.0
    %962 = vmatpush1.msra.mxu0 0.0
    %963 = vmatprep.subr.mxu0 0.0
    %964 = vmatpush1.msra.mxu0 0.0
    %965 = vmatprep.subr.mxu0 0.0
    %966 = vmatpush1.msra.mxu0 0.0
    %967 = vmatprep.mubr.f32.mxu0 0.0
    %968 = vmatmul.mubr.f32.gmra.mrb[0].mxu0 %v485
    %v969 = vpop.f32.mrb[0].mxu0
    %v970 = vadd.f32 0.0, %v969
    %v971 = vpop.f32.mrb[0].mxu0
    %972 = vdwg.mxu0
    %vm973 = vcmask 654336
    %974 = vst.msk [vmem:[#allocation2] sm:$0xff] %vm973, 0.0
    %975 = vst.msk [vmem:[#allocation2 + $0x8] sm:$0xff] %vm973, 0.0
    %v976 = vld [vmem:[%s6] sm:$0x1]
    %v977 = vld [vmem:[%s7] sm:$0x1]
    %vm978 = vcmask 130048
    %v979 = vsel %vm978, %v554, 0.0
    %980 = vadd.xlane.f32.xlu0 %v979
    %v981 = vpop.xlane.xlu0 %980
    %v982 = vsel %vm978, %v970, 0.0
    %983 = vadd.xlane.f32.xlu0 %v982
    %v984 = vpop.xlane.xlu0 %983
    %v985 = vrcp.pop 16.0
    %v986 = vmul.f32 %v981, %v985
    %v987 = vmul.f32 %v984, %v985
    %v988 = vsub.f32 %v554, %v986
    %v989 = vsub.f32 %v970, %v987
    %v990 = vmul.f32 %v988, %v988
    %v991 = vmul.f32 %v989, %v989
    %v992 = vsel %vm978, %v990, 0.0
    %993 = vadd.xlane.f32.xlu0 %v992
    %v994 = vpop.xlane.xlu0 %993
    %v995 = vsel %vm978, %v991, 0.0
    %996 = vadd.xlane.f32.xlu0 %v995
    %v997 = vpop.xlane.xlu0 %996
    %v998 = vmul.f32 %v994, %v985
    %v999 = vmul.f32 %v997, %v985
    %v1000 = vadd.f32 %v998, 1e-05
    %v1001 = vadd.f32 %v999, 1e-05
    %v1002 = vrsqrt.pop %v1000
    %v1003 = vrsqrt.pop %v1001
    %v1004 = vmul.f32 %v988, %v1002
    %v1005 = vmul.f32 %v989, %v1003
    %v1007 = vlaneseq
    %v1008 = vshrl.u32 %v1007, 7
    %v1009 = vsub.s32 0, %v1008
    %v1010 = vrot.slane %v976, %v1009
    %v1012 = vmul.f32 %v1004, %v1010
    %v1013 = vmul.f32 %v1005, %v1010
    %v1015 = vlaneseq
    %v1016 = vshrl.u32 %v1015, 7
    %v1017 = vsub.s32 0, %v1016
    %v1018 = vrot.slane %v977, %v1017
    %v1020 = vadd.f32 %v1012, %v1018
    %v1021 = vadd.f32 %v1013, %v1018
    %vm1022 = vcmask 128000
    %1023 = vst.msk [vmem:[#allocation2 + $0x2] sm:$0x3f] %vm1022, %v1020
    %1025 = vrot.lane.b32.xlu0 %v1020, 16
    %v1026 = vpop.permute.xlu0 %1025
    %vm1028 = vcmask 260224
    %1029 = vst.msk [vmem:[#allocation2 + $0x1] sm:$0x7f] %vm1028, %v1026
    %1030 = vrot.lane.b32.xlu0 %v1020, 32
    %v1031 = vpop.permute.xlu0 %1030
    %vm1033 = vcmask 392448
    %1034 = vst.msk [vmem:[#allocation2] sm:$0xff] %vm1033, %v1031
    %1035 = vrot.lane.b32.xlu0 %v1020, 48
    %v1036 = vpop.permute.xlu0 %1035
    %vm1038 = vcmask 523649
    %1039 = vst.msk [vmem:[#allocation2 - $0x1] sm:$0xfe] %vm1038, %v1036
    %1040 = vrot.lane.b32.xlu0 %v1020, 64
    %v1041 = vpop.permute.xlu0 %1040
    %vm1043 = vcmask 654850
    %1044 = vst.msk [vmem:[#allocation2 - $0x2] sm:$0xfc] %vm1043, %v1041
    %1045 = vst.msk [vmem:[#allocation2 + $0xa] sm:$0x3f] %vm1022, %v1021
    %1047 = vrot.lane.b32.xlu0 %v1021, 16
    %v1048 = vpop.permute.xlu0 %1047
    %1050 = vst.msk [vmem:[#allocation2 + $0x9] sm:$0x7f] %vm1028, %v1048
    %1051 = vrot.lane.b32.xlu0 %v1021, 32
    %v1052 = vpop.permute.xlu0 %1051
    %1054 = vst.msk [vmem:[#allocation2 + $0x8] sm:$0xff] %vm1033, %v1052
    %1055 = vrot.lane.b32.xlu0 %v1021, 48
    %v1056 = vpop.permute.xlu0 %1055
    %1058 = vst.msk [vmem:[#allocation2 + $0x7] sm:$0xfe] %vm1038, %v1056
    %1059 = vrot.lane.b32.xlu0 %v1021, 64
    %v1060 = vpop.permute.xlu0 %1059
    %1062 = vst.msk [vmem:[#allocation2 + $0x6] sm:$0xfc] %vm1043, %v1060
    %v1063 = vld [vmem:[#allocation2] sm:$0xff]
    %v1064 = vld [vmem:[#allocation2 + $0x8] sm:$0xff]
    %v1065 = vld [vmem:[%s8] sm:$0xff]
    %v1066 = vld [vmem:[%s8 + $0x8] sm:$0xff]
    %v1067 = vld [vmem:[%s8 + $0x10] sm:$0xff]
    %v1068 = vld [vmem:[%s8 + $0x18] sm:$0xff]
    %v1069 = vld [vmem:[%s8 + $0x20] sm:$0xff]
    %v1070 = vld [vmem:[%s8 + $0x28] sm:$0xff]
    %v1071 = vld [vmem:[%s8 + $0x30] sm:$0xff]
    %v1072 = vld [vmem:[%s8 + $0x38] sm:$0xff]
    %v1073 = vld [vmem:[%s8 + $0x40] sm:$0xff]
    %v1074 = vld [vmem:[%s8 + $0x48] sm:$0xff]
    %v1075 = vld [vmem:[%s9] sm:$0x1]
    %v1077 = vlaneseq
    %v1078 = vshrl.u32 %v1077, 7
    %v1079 = vsub.s32 0, %v1078
    %v1080 = vrot.slane %v1075, %v1079
    %v1083 = vsel %vm973, %v1063, 0
    %v1086 = vsel %vm973, %v1064, 0
    %1088 = vmatprep.subr.mxu0 0.0
    %1089 = vmatpush1.msra.mxu0 %v1065
    %1090 = vmatprep.subr.mxu0 0.0
    %1091 = vmatpush1.msra.mxu0 %v1066
    %1092 = vmatprep.subr.mxu0 0.0
    %1093 = vmatpush1.msra.mxu0 %v1067
    %1094 = vmatprep.subr.mxu0 0.0
    %1095 = vmatpush1.msra.mxu0 %v1068
    %1096 = vmatprep.subr.mxu0 0.0
    %1097 = vmatpush1.msra.mxu0 %v1069
    %1098 = vmatprep.subr.mxu0 0.0
    %1099 = vmatpush1.msra.mxu0 %v1070
    %1100 = vmatprep.subr.mxu0 0.0
    %1101 = vmatpush1.msra.mxu0 %v1071
    %1102 = vmatprep.subr.mxu0 0.0
    %1103 = vmatpush1.msra.mxu0 %v1072
    %1104 = vmatprep.subr.mxu0 0.0
    %1105 = vmatpush1.msra.mxu0 %v1073
    %1106 = vmatprep.subr.mxu0 0.0
    %1107 = vmatpush1.msra.mxu0 %v1074
    %1108 = vmatprep.subr.mxu0 0.0
    %1109 = vmatpush1.msra.mxu0 0.0
    %1110 = vmatprep.subr.mxu0 0.0
    %1111 = vmatpush1.msra.mxu0 0.0
    %1112 = vmatprep.subr.mxu0 0.0
    %1113 = vmatpush1.msra.mxu0 0.0
    %1114 = vmatprep.subr.mxu0 0.0
    %1115 = vmatpush1.msra.mxu0 0.0
    %1116 = vmatprep.subr.mxu0 0.0
    %1117 = vmatpush1.msra.mxu0 0.0
    %1118 = vmatprep.subr.mxu0 0.0
    %1119 = vmatpush1.msra.mxu0 0.0
    %1120 = vmatprep.subr.mxu0 0.0
    %1121 = vmatpush1.msra.mxu0 0.0
    %1122 = vmatprep.subr.mxu0 0.0
    %1123 = vmatpush1.msra.mxu0 0.0
    %1124 = vmatprep.subr.mxu0 0.0
    %1125 = vmatpush1.msra.mxu0 0.0
    %1126 = vmatprep.subr.mxu0 0.0
    %1127 = vmatpush1.msra.mxu0 0.0
    %1128 = vmatprep.subr.mxu0 0.0
    %1129 = vmatpush1.msra.mxu0 0.0
    %1130 = vmatprep.subr.mxu0 0.0
    %1131 = vmatpush1.msra.mxu0 0.0
    %1132 = vmatprep.subr.mxu0 0.0
    %1133 = vmatpush1.msra.mxu0 0.0
    %1134 = vmatprep.subr.mxu0 0.0
    %1135 = vmatpush1.msra.mxu0 0.0
    %1136 = vmatprep.subr.mxu0 0.0
    %1137 = vmatpush1.msra.mxu0 0.0
    %1138 = vmatprep.subr.mxu0 0.0
    %1139 = vmatpush1.msra.mxu0 0.0
    %1140 = vmatprep.subr.mxu0 0.0
    %1141 = vmatpush1.msra.mxu0 0.0
    %1142 = vmatprep.subr.mxu0 0.0
    %1143 = vmatpush1.msra.mxu0 0.0
    %1144 = vmatprep.subr.mxu0 0.0
    %1145 = vmatpush1.msra.mxu0 0.0
    %1146 = vmatprep.subr.mxu0 0.0
    %1147 = vmatpush1.msra.mxu0 0.0
    %1148 = vmatprep.subr.mxu0 0.0
    %1149 = vmatpush1.msra.mxu0 0.0
    %1150 = vmatprep.subr.mxu0 0.0
    %1151 = vmatpush1.msra.mxu0 0.0
    %1152 = vmatprep.mubr.f32.mxu0 0.0
    %1153 = vmatmul.mubr.f32.gmra.mrb[0].mxu0 %v1083
    %v1154 = vpop.f32.mrb[0].mxu0
    %v1155 = vadd.f32 %v1080, %v1154
    %v1156 = vpop.f32.mrb[0].mxu0
    %1157 = vmatprep.mubr.f32.mxu0 0.0
    %1158 = vmatmul.mubr.f32.gmra.mrb[0].mxu0 %v1086
    %v1159 = vpop.f32.mrb[0].mxu0
    %v1160 = vadd.f32 %v1080, %v1159
    %v1161 = vpop.f32.mrb[0].mxu0
    %1162 = vdwg.mxu0
    %v1163 = vld [vmem:[%s12] sm:$0xff]
    %v1164 = vld [vmem:[%s12 + $0x8] sm:$0xff]
    %v1165 = vld [vmem:[%s12 + $0x10] sm:$0xff]
    %v1166 = vld [vmem:[%s12 + $0x18] sm:$0xff]
    %v1167 = vld [vmem:[%s13] sm:$0x1]
    %v1169 = vlaneseq
    %v1170 = vshrl.u32 %v1169, 7
    %v1171 = vsub.s32 0, %v1170
    %v1172 = vrot.slane %v1167, %v1171
    %vm1174 = vcmask 261120
    %v1176 = vsel %vm1174, %v1155, 0
    %v1179 = vsel %vm1174, %v1160, 0
    %1181 = vmatprep.subr.mxu0 0.0
    %1182 = vmatpush1.msra.mxu0 %v1163
    %1183 = vmatprep.subr.mxu0 0.0
    %1184 = vmatpush1.msra.mxu0 %v1164
    %1185 = vmatprep.subr.mxu0 0.0
    %1186 = vmatpush1.msra.mxu0 %v1165
    %1187 = vmatprep.subr.mxu0 0.0
    %1188 = vmatpush1.msra.mxu0 %v1166
    %1189 = vmatprep.subr.mxu0 0.0
    %1190 = vmatpush1.msra.mxu0 0.0
    %1191 = vmatprep.subr.mxu0 0.0
    %1192 = vmatpush1.msra.mxu0 0.0
    %1193 = vmatprep.subr.mxu0 0.0
    %1194 = vmatpush1.msra.mxu0 0.0
    %1195 = vmatprep.subr.mxu0 0.0
    %1196 = vmatpush1.msra.mxu0 0.0
    %1197 = vmatprep.subr.mxu0 0.0
    %1198 = vmatpush1.msra.mxu0 0.0
    %1199 = vmatprep.subr.mxu0 0.0
    %1200 = vmatpush1.msra.mxu0 0.0
    %1201 = vmatprep.subr.mxu0 0.0
    %1202 = vmatpush1.msra.mxu0 0.0
    %1203 = vmatprep.subr.mxu0 0.0
    %1204 = vmatpush1.msra.mxu0 0.0
    %1205 = vmatprep.subr.mxu0 0.0
    %1206 = vmatpush1.msra.mxu0 0.0
    %1207 = vmatprep.subr.mxu0 0.0
    %1208 = vmatpush1.msra.mxu0 0.0
    %1209 = vmatprep.subr.mxu0 0.0
    %1210 = vmatpush1.msra.mxu0 0.0
    %1211 = vmatprep.subr.mxu0 0.0
    %1212 = vmatpush1.msra.mxu0 0.0
    %1213 = vmatprep.subr.mxu0 0.0
    %1214 = vmatpush1.msra.mxu0 0.0
    %1215 = vmatprep.subr.mxu0 0.0
    %1216 = vmatpush1.msra.mxu0 0.0
    %1217 = vmatprep.subr.mxu0 0.0
    %1218 = vmatpush1.msra.mxu0 0.0
    %1219 = vmatprep.subr.mxu0 0.0
    %1220 = vmatpush1.msra.mxu0 0.0
    %1221 = vmatprep.subr.mxu0 0.0
    %1222 = vmatpush1.msra.mxu0 0.0
    %1223 = vmatprep.subr.mxu0 0.0
    %1224 = vmatpush1.msra.mxu0 0.0
    %1225 = vmatprep.subr.mxu0 0.0
    %1226 = vmatpush1.msra.mxu0 0.0
    %1227 = vmatprep.subr.mxu0 0.0
    %1228 = vmatpush1.msra.mxu0 0.0
    %1229 = vmatprep.subr.mxu0 0.0
    %1230 = vmatpush1.msra.mxu0 0.0
    %1231 = vmatprep.subr.mxu0 0.0
    %1232 = vmatpush1.msra.mxu0 0.0
    %1233 = vmatprep.subr.mxu0 0.0
    %1234 = vmatpush1.msra.mxu0 0.0
    %1235 = vmatprep.subr.mxu0 0.0
    %1236 = vmatpush1.msra.mxu0 0.0
    %1237 = vmatprep.subr.mxu0 0.0
    %1238 = vmatpush1.msra.mxu0 0.0
    %1239 = vmatprep.subr.mxu0 0.0
    %1240 = vmatpush1.msra.mxu0 0.0
    %1241 = vmatprep.subr.mxu0 0.0
    %1242 = vmatpush1.msra.mxu0 0.0
    %1243 = vmatprep.subr.mxu0 0.0
    %1244 = vmatpush1.msra.mxu0 0.0
    %1245 = vmatprep.mubr.f32.mxu0 0.0
    %1246 = vmatmul.mubr.f32.gmra.mrb[0].mxu0 %v1176
    %v1247 = vpop.f32.mrb[0].mxu0
    %v1248 = vadd.f32 %v1172, %v1247
    %v1249 = vpop.f32.mrb[0].mxu0
    %1250 = vmatprep.mubr.f32.mxu0 0.0
    %1251 = vmatmul.mubr.f32.gmra.mrb[0].mxu0 %v1179
    %v1252 = vpop.f32.mrb[0].mxu0
    %v1253 = vadd.f32 %v1172, %v1252
    %v1254 = vpop.f32.mrb[0].mxu0
    %1255 = vdwg.mxu0
    %v1256 = vld [vmem:[%s10] sm:$0xff]
    %v1257 = vld [vmem:[%s10 + $0x8] sm:$0xff]
    %v1258 = vld [vmem:[%s11] sm:$0x1]
    %v1260 = vlaneseq
    %v1261 = vshrl.u32 %v1260, 7
    %v1262 = vsub.s32 0, %v1261
    %v1263 = vrot.slane %v1258, %v1262
    %v1265 = vsel %vm978, %v1020, 0
    %v1267 = vsel %vm978, %v1021, 0
    %1269 = vmatprep.subr.mxu0 0.0
    %1270 = vmatpush1.msra.mxu0 %v1256
    %1271 = vmatprep.subr.mxu0 0.0
    %1272 = vmatpush1.msra.mxu0 %v1257
    %1273 = vmatprep.subr.mxu0 0.0
    %1274 = vmatpush1.msra.mxu0 0.0
    %1275 = vmatprep.subr.mxu0 0.0
    %1276 = vmatpush1.msra.mxu0 0.0
    %1277 = vmatprep.subr.mxu0 0.0
    %1278 = vmatpush1.msra.mxu0 0.0
    %1279 = vmatprep.subr.mxu0 0.0
    %1280 = vmatpush1.msra.mxu0 0.0
    %1281 = vmatprep.subr.mxu0 0.0
    %1282 = vmatpush1.msra.mxu0 0.0
    %1283 = vmatprep.subr.mxu0 0.0
    %1284 = vmatpush1.msra.mxu0 0.0
    %1285 = vmatprep.subr.mxu0 0.0
    %1286 = vmatpush1.msra.mxu0 0.0
    %1287 = vmatprep.subr.mxu0 0.0
    %1288 = vmatpush1.msra.mxu0 0.0
    %1289 = vmatprep.subr.mxu0 0.0
    %1290 = vmatpush1.msra.mxu0 0.0
    %1291 = vmatprep.subr.mxu0 0.0
    %1292 = vmatpush1.msra.mxu0 0.0
    %1293 = vmatprep.subr.mxu0 0.0
    %1294 = vmatpush1.msra.mxu0 0.0
    %1295 = vmatprep.subr.mxu0 0.0
    %1296 = vmatpush1.msra.mxu0 0.0
    %1297 = vmatprep.subr.mxu0 0.0
    %1298 = vmatpush1.msra.mxu0 0.0
    %1299 = vmatprep.subr.mxu0 0.0
    %1300 = vmatpush1.msra.mxu0 0.0
    %1301 = vmatprep.subr.mxu0 0.0
    %1302 = vmatpush1.msra.mxu0 0.0
    %1303 = vmatprep.subr.mxu0 0.0
    %1304 = vmatpush1.msra.mxu0 0.0
    %1305 = vmatprep.subr.mxu0 0.0
    %1306 = vmatpush1.msra.mxu0 0.0
    %1307 = vmatprep.subr.mxu0 0.0
    %1308 = vmatpush1.msra.mxu0 0.0
    %1309 = vmatprep.subr.mxu0 0.0
    %1310 = vmatpush1.msra.mxu0 0.0
    %1311 = vmatprep.subr.mxu0 0.0
    %1312 = vmatpush1.msra.mxu0 0.0
    %1313 = vmatprep.subr.mxu0 0.0
    %1314 = vmatpush1.msra.mxu0 0.0
    %1315 = vmatprep.subr.mxu0 0.0
    %1316 = vmatpush1.msra.mxu0 0.0
    %1317 = vmatprep.subr.mxu0 0.0
    %1318 = vmatpush1.msra.mxu0 0.0
    %1319 = vmatprep.subr.mxu0 0.0
    %1320 = vmatpush1.msra.mxu0 0.0
    %1321 = vmatprep.subr.mxu0 0.0
    %1322 = vmatpush1.msra.mxu0 0.0
    %1323 = vmatprep.subr.mxu0 0.0
    %1324 = vmatpush1.msra.mxu0 0.0
    %1325 = vmatprep.subr.mxu0 0.0
    %1326 = vmatpush1.msra.mxu0 0.0
    %1327 = vmatprep.subr.mxu0 0.0
    %1328 = vmatpush1.msra.mxu0 0.0
    %1329 = vmatprep.subr.mxu0 0.0
    %1330 = vmatpush1.msra.mxu0 0.0
    %1331 = vmatprep.subr.mxu0 0.0
    %1332 = vmatpush1.msra.mxu0 0.0
    %1333 = vmatprep.mubr.f32.mxu0 0.0
    %1334 = vmatmul.mubr.f32.gmra.mrb[0].mxu0 %v1265
    %v1335 = vpop.f32.mrb[0].mxu0
    %v1336 = vadd.f32 %v1263, %v1335
    %v1337 = vpop.f32.mrb[0].mxu0
    %1338 = vmatprep.mubr.f32.mxu0 0.0
    %1339 = vmatmul.mubr.f32.gmra.mrb[0].mxu0 %v1267
    %v1340 = vpop.f32.mrb[0].mxu0
    %v1341 = vadd.f32 %v1263, %v1340
    %v1342 = vpop.f32.mrb[0].mxu0
    %1343 = vdwg.mxu0
    %v1344 = vmul.f32 %v1336, 0.5
    %v1345 = vmul.f32 %v1341, 0.5
    %1347 = vrot.lane.b32.xlu0 %v1336, 112
    %v1348 = vpop.permute.xlu0 %1347
    %v1349 = vmul.f32 %v1344, %v84
    %v1350 = vmul.f32 %v1344, %v89
    %v1351 = vmul.f32 %v1344, %v94
    %v1352 = vmul.f32 %v1344, %v99
    %v1354 = vsel %vm978, %v1349, 0
    %v1357 = vsel %vm978, %v1350, 0
    %v1360 = vsel %vm978, %v1351, 0
    %v1363 = vsel %vm978, %v1352, 0
    %v1366 = vsel %vm978, %v1248, 0
    %v1368 = vsel %vm978, %v1348, 0
    %1370 = vmatprep.subr.mxu0 0.0
    %1371 = vmatpush1.xpose.msra.mxu0 %v1366
    %1372 = vmatprep.subr.mxu0 0.0
    %1373 = vmatpush1.xpose.msra.mxu0 %v1368
    %1374 = vmatprep.subr.mxu0 0.0
    %1375 = vmatpush1.xpose.msra.mxu0 0.0
    %1376 = vmatprep.subr.mxu0 0.0
    %1377 = vmatpush1.xpose.msra.mxu0 0.0
    %1378 = vmatprep.subr.mxu0 0.0
    %1379 = vmatpush1.xpose.msra.mxu0 0.0
    %1380 = vmatprep.subr.mxu0 0.0
    %1381 = vmatpush1.xpose.msra.mxu0 0.0
    %1382 = vmatprep.subr.mxu0 0.0
    %1383 = vmatpush1.xpose.msra.mxu0 0.0
    %1384 = vmatprep.subr.mxu0 0.0
    %1385 = vmatpush1.xpose.msra.mxu0 0.0
    %1386 = vmatprep.subr.mxu0 0.0
    %1387 = vmatpush1.xpose.msra.mxu0 0.0
    %1388 = vmatprep.subr.mxu0 0.0
    %1389 = vmatpush1.xpose.msra.mxu0 0.0
    %1390 = vmatprep.subr.mxu0 0.0
    %1391 = vmatpush1.xpose.msra.mxu0 0.0
    %1392 = vmatprep.subr.mxu0 0.0
    %1393 = vmatpush1.xpose.msra.mxu0 0.0
    %1394 = vmatprep.subr.mxu0 0.0
    %1395 = vmatpush1.xpose.msra.mxu0 0.0
    %1396 = vmatprep.subr.mxu0 0.0
    %1397 = vmatpush1.xpose.msra.mxu0 0.0
    %1398 = vmatprep.subr.mxu0 0.0
    %1399 = vmatpush1.xpose.msra.mxu0 0.0
    %1400 = vmatprep.subr.mxu0 0.0
    %1401 = vmatpush1.xpose.msra.mxu0 0.0
    %1402 = vmatprep.subr.mxu0 0.0
    %1403 = vmatpush1.xpose.msra.mxu0 0.0
    %1404 = vmatprep.subr.mxu0 0.0
    %1405 = vmatpush1.xpose.msra.mxu0 0.0
    %1406 = vmatprep.subr.mxu0 0.0
    %1407 = vmatpush1.xpose.msra.mxu0 0.0
    %1408 = vmatprep.subr.mxu0 0.0
    %1409 = vmatpush1.xpose.msra.mxu0 0.0
    %1410 = vmatprep.subr.mxu0 0.0
    %1411 = vmatpush1.xpose.msra.mxu0 0.0
    %1412 = vmatprep.subr.mxu0 0.0
    %1413 = vmatpush1.xpose.msra.mxu0 0.0
    %1414 = vmatprep.subr.mxu0 0.0
    %1415 = vmatpush1.xpose.msra.mxu0 0.0
    %1416 = vmatprep.subr.mxu0 0.0
    %1417 = vmatpush1.xpose.msra.mxu0 0.0
    %1418 = vmatprep.subr.mxu0 0.0
    %1419 = vmatpush1.xpose.msra.mxu0 0.0
    %1420 = vmatprep.subr.mxu0 0.0
    %1421 = vmatpush1.xpose.msra.mxu0 0.0
    %1422 = vmatprep.subr.mxu0 0.0
    %1423 = vmatpush1.xpose.msra.mxu0 0.0
    %1424 = vmatprep.subr.mxu0 0.0
    %1425 = vmatpush1.xpose.msra.mxu0 0.0
    %1426 = vmatprep.subr.mxu0 0.0
    %1427 = vmatpush1.xpose.msra.mxu0 0.0
    %1428 = vmatprep.subr.mxu0 0.0
    %1429 = vmatpush1.xpose.msra.mxu0 0.0
    %1430 = vmatprep.subr.mxu0 0.0
    %1431 = vmatpush1.xpose.msra.mxu0 0.0
    %1432 = vmatprep.subr.mxu0 0.0
    %1433 = vmatpush1.xpose.msra.mxu0 0.0
    %1434 = vmatprep.mubr.f32.mxu0 0.0
    %1435 = vmatmul.mubr.f32.gmra.mrb[0].mxu0 %v1354
    %v1436 = vpop.f32.mrb[0].mxu0
    %v1437 = vadd.f32 0.0, %v1436
    %v1438 = vpop.f32.mrb[0].mxu0
    %1439 = vmatprep.mubr.f32.mxu0 0.0
    %1440 = vmatmul.mubr.f32.gmra.mrb[0].mxu0 %v1357
    %v1441 = vpop.f32.mrb[0].mxu0
    %v1442 = vadd.f32 0.0, %v1441
    %v1443 = vpop.f32.mrb[0].mxu0
    %1444 = vmatprep.mubr.f32.mxu0 0.0
    %1445 = vmatmul.mubr.f32.gmra.mrb[0].mxu0 %v1360
    %v1446 = vpop.f32.mrb[0].mxu0
    %v1447 = vadd.f32 0.0, %v1446
    %v1448 = vpop.f32.mrb[0].mxu0
    %1449 = vmatprep.mubr.f32.mxu0 0.0
    %1450 = vmatmul.mubr.f32.gmra.mrb[0].mxu0 %v1363
    %v1451 = vpop.f32.mrb[0].mxu0
    %v1452 = vadd.f32 0.0, %v1451
    %v1453 = vpop.f32.mrb[0].mxu0
    %1454 = vdwg.mxu0
    %vm1455 = vcmask 64512
    %v1456 = vsel %vm1455, %v1437, -inf
    %1457 = vmax.xlane.f32.xlu0 %v1456
    %v1458 = vpop.xlane.xlu0 %1457
    %v1459 = vsel %vm1455, %v1442, -inf
    %1460 = vmax.xlane.f32.xlu0 %v1459
    %v1461 = vpop.xlane.xlu0 %1460
    %v1462 = vsel %vm1455, %v1447, -inf
    %1463 = vmax.xlane.f32.xlu0 %v1462
    %v1464 = vpop.xlane.xlu0 %1463
    %v1465 = vsel %vm1455, %v1452, -inf
    %1466 = vmax.xlane.f32.xlu0 %v1465
    %v1467 = vpop.xlane.xlu0 %1466
    %v1468 = vsub.f32 %v1437, %v1458
    %v1469 = vsub.f32 %v1442, %v1461
    %v1470 = vsub.f32 %v1447, %v1464
    %v1471 = vsub.f32 %v1452, %v1467
    %v1472 = vmul.f32 %v1468, 1.442695
    %v1473 = vpow.pop %v1472
    %v1474 = vmul.f32 %v1469, 1.442695
    %v1475 = vpow.pop %v1474
    %v1476 = vmul.f32 %v1470, 1.442695
    %v1477 = vpow.pop %v1476
    %v1478 = vmul.f32 %v1471, 1.442695
    %v1479 = vpow.pop %v1478
    %v1480 = vsel %vm1455, %v1473, 0.0
    %1481 = vadd.xlane.f32.xlu0 %v1480
    %v1482 = vpop.xlane.xlu0 %1481
    %v1483 = vsel %vm1455, %v1475, 0.0
    %1484 = vadd.xlane.f32.xlu0 %v1483
    %v1485 = vpop.xlane.xlu0 %1484
    %v1486 = vsel %vm1455, %v1477, 0.0
    %1487 = vadd.xlane.f32.xlu0 %v1486
    %v1488 = vpop.xlane.xlu0 %1487
    %v1489 = vsel %vm1455, %v1479, 0.0
    %1490 = vadd.xlane.f32.xlu0 %v1489
    %v1491 = vpop.xlane.xlu0 %1490
    %v1492 = vrcp.pop %v1482
    %v1493 = vmul.f32 %v1473, %v1492
    %v1494 = vrcp.pop %v1485
    %v1495 = vmul.f32 %v1475, %v1494
    %v1496 = vrcp.pop %v1488
    %v1497 = vmul.f32 %v1477, %v1496
    %v1498 = vrcp.pop %v1491
    %v1499 = vmul.f32 %v1479, %v1498
    %vm1500 = vcmask 130112
    %v1501 = vsel %vm1500, %v1437, -inf
    %1502 = vmax.xlane.f32.xlu0 %v1501
    %v1503 = vpop.xlane.xlu0 %1502
    %v1504 = vsel %vm1500, %v1442, -inf
    %1505 = vmax.xlane.f32.xlu0 %v1504
    %v1506 = vpop.xlane.xlu0 %1505
    %v1507 = vsel %vm1500, %v1447, -inf
    %1508 = vmax.xlane.f32.xlu0 %v1507
    %v1509 = vpop.xlane.xlu0 %1508
    %v1510 = vsel %vm1500, %v1452, -inf
    %1511 = vmax.xlane.f32.xlu0 %v1510
    %v1512 = vpop.xlane.xlu0 %1511
    %v1513 = vsub.f32 %v1437, %v1503
    %v1514 = vsub.f32 %v1442, %v1506
    %v1515 = vsub.f32 %v1447, %v1509
    %v1516 = vsub.f32 %v1452, %v1512
    %v1517 = vmul.f32 %v1513, 1.442695
    %v1518 = vpow.pop %v1517
    %v1519 = vmul.f32 %v1514, 1.442695
    %v1520 = vpow.pop %v1519
    %v1521 = vmul.f32 %v1515, 1.442695
    %v1522 = vpow.pop %v1521
    %v1523 = vmul.f32 %v1516, 1.442695
    %v1524 = vpow.pop %v1523
    %1529 = vrot.lane.b32.xlu0 %v1518, 120
    %v1530 = vpop.permute.xlu0 %1529
    %1531 = vrot.lane.b32.xlu0 %v1520, 120
    %v1532 = vpop.permute.xlu0 %1531
    %1533 = vrot.lane.b32.xlu0 %v1522, 120
    %v1534 = vpop.permute.xlu0 %1533
    %1535 = vrot.lane.b32.xlu0 %v1524, 120
    %v1536 = vpop.permute.xlu0 %1535
    %v1541 = vsel %vm1455, %v1530, 0.0
    %1542 = vadd.xlane.f32.xlu0 %v1541
    %v1543 = vpop.xlane.xlu0 %1542
    %v1544 = vsel %vm1455, %v1532, 0.0
    %1545 = vadd.xlane.f32.xlu0 %v1544
    %v1546 = vpop.xlane.xlu0 %1545
    %v1547 = vsel %vm1455, %v1534, 0.0
    %1548 = vadd.xlane.f32.xlu0 %v1547
    %v1549 = vpop.xlane.xlu0 %1548
    %v1550 = vsel %vm1455, %v1536, 0.0
    %1551 = vadd.xlane.f32.xlu0 %v1550
    %v1552 = vpop.xlane.xlu0 %1551
    %v1553 = vrcp.pop %v1543
    %v1554 = vmul.f32 %v1518, %v1553
    %v1555 = vrcp.pop %v1546
    %v1556 = vmul.f32 %v1520, %v1555
    %v1557 = vrcp.pop %v1549
    %v1558 = vmul.f32 %v1522, %v1557
    %v1559 = vrcp.pop %v1552
    %v1560 = vmul.f32 %v1524, %v1559
    %1565 = vrot.lane.b32.xlu0 %v1554, 120
    %v1566 = vpop.permute.xlu0 %1565
    %1567 = vrot.lane.b32.xlu0 %v1556, 120
    %v1568 = vpop.permute.xlu0 %1567
    %1569 = vrot.lane.b32.xlu0 %v1558, 120
    %v1570 = vpop.permute.xlu0 %1569
    %1571 = vrot.lane.b32.xlu0 %v1560, 120
    %v1572 = vpop.permute.xlu0 %1571
    %v1577 = vadd.f32 %v1493, %v1566
    %v1578 = vadd.f32 %v1495, %v1568
    %v1579 = vadd.f32 %v1497, %v1570
    %v1580 = vadd.f32 %v1499, %v1572
    %1582 = vrot.lane.b32.xlu0 %v84, 32
    %v1583 = vpop.permute.xlu0 %1582
    %v1585 = vmul.f32 %v1336, %v1583
    %1587 = vrot.lane.b32.xlu0 %v89, 32
    %v1588 = vpop.permute.xlu0 %1587
    %v1590 = vmul.f32 %v1336, %v1588
    %1592 = vrot.lane.b32.xlu0 %v1590, 96
    %v1593 = vpop.permute.xlu0 %1592
    %v1596 = vsel %vm1455, %v1578, 0
    %1598 = vmatprep.subr.mxu0 0.0
    %1599 = vmatpush1.msra.mxu0 %v1593
    %1600 = vmatprep.subr.mxu0 0.0
    %1601 = vmatpush1.msra.mxu0 0.0
    %1602 = vmatprep.subr.mxu0 0.0
    %1603 = vmatpush1.msra.mxu0 0.0
    %1604 = vmatprep.subr.mxu0 0.0
    %1605 = vmatpush1.msra.mxu0 0.0
    %1606 = vmatprep.subr.mxu0 0.0
    %1607 = vmatpush1.msra.mxu0 0.0
    %1608 = vmatprep.subr.mxu0 0.0
    %1609 = vmatpush1.msra.mxu0 0.0
    %1610 = vmatprep.subr.mxu0 0.0
    %1611 = vmatpush1.msra.mxu0 0.0
    %1612 = vmatprep.subr.mxu0 0.0
    %1613 = vmatpush1.msra.mxu0 0.0
    %1614 = vmatprep.subr.mxu0 0.0
    %1615 = vmatpush1.msra.mxu0 0.0
    %1616 = vmatprep.subr.mxu0 0.0
    %1617 = vmatpush1.msra.mxu0 0.0
    %1618 = vmatprep.subr.mxu0 0.0
    %1619 = vmatpush1.msra.mxu0 0.0
    %1620 = vmatprep.subr.mxu0 0.0
    %1621 = vmatpush1.msra.mxu0 0.0
    %1622 = vmatprep.subr.mxu0 0.0
    %1623 = vmatpush1.msra.mxu0 0.0
    %1624 = vmatprep.subr.mxu0 0.0
    %1625 = vmatpush1.msra.mxu0 0.0
    %1626 = vmatprep.subr.mxu0 0.0
    %1627 = vmatpush1.msra.mxu0 0.0
    %1628 = vmatprep.subr.mxu0 0.0
    %1629 = vmatpush1.msra.mxu0 0.0
    %1630 = vmatprep.subr.mxu0 0.0
    %1631 = vmatpush1.msra.mxu0 0.0
    %1632 = vmatprep.subr.mxu0 0.0
    %1633 = vmatpush1.msra.mxu0 0.0
    %1634 = vmatprep.subr.mxu0 0.0
    %1635 = vmatpush1.msra.mxu0 0.0
    %1636 = vmatprep.subr.mxu0 0.0
    %1637 = vmatpush1.msra.mxu0 0.0
    %1638 = vmatprep.subr.mxu0 0.0
    %1639 = vmatpush1.msra.mxu0 0.0
    %1640 = vmatprep.subr.mxu0 0.0
    %1641 = vmatpush1.msra.mxu0 0.0
    %1642 = vmatprep.subr.mxu0 0.0
    %1643 = vmatpush1.msra.mxu0 0.0
    %1644 = vmatprep.subr.mxu0 0.0
    %1645 = vmatpush1.msra.mxu0 0.0
    %1646 = vmatprep.subr.mxu0 0.0
    %1647 = vmatpush1.msra.mxu0 0.0
    %1648 = vmatprep.subr.mxu0 0.0
    %1649 = vmatpush1.msra.mxu0 0.0
    %1650 = vmatprep.subr.mxu0 0.0
    %1651 = vmatpush1.msra.mxu0 0.0
    %1652 = vmatprep.subr.mxu0 0.0
    %1653 = vmatpush1.msra.mxu0 0.0
    %1654 = vmatprep.subr.mxu0 0.0
    %1655 = vmatpush1.msra.mxu0 0.0
    %1656 = vmatprep.subr.mxu0 0.0
    %1657 = vmatpush1.msra.mxu0 0.0
    %1658 = vmatprep.subr.mxu0 0.0
    %1659 = vmatpush1.msra.mxu0 0.0
    %1660 = vmatprep.subr.mxu0 0.0
    %1661 = vmatpush1.msra.mxu0 0.0
    %1662 = vmatprep.mubr.f32.mxu0 0.0
    %1663 = vmatmul.mubr.f32.gmra.mrb[0].mxu0 %v1596
    %v1664 = vpop.f32.mrb[0].mxu0
    %v1665 = vadd.f32 0.0, %v1664
    %v1666 = vpop.f32.mrb[0].mxu0
    %1667 = vdwg.mxu0
    %1669 = vrot.lane.b32.xlu0 %v1585, 96
    %v1670 = vpop.permute.xlu0 %1669
    %v1673 = vsel %vm1455, %v1577, 0
    %1675 = vmatprep.subr.mxu0 0.0
    %1676 = vmatpush1.msra.mxu0 %v1670
    %1677 = vmatprep.subr.mxu0 0.0
    %1678 = vmatpush1.msra.mxu0 0.0
    %1679 = vmatprep.subr.mxu0 0.0
    %1680 = vmatpush1.msra.mxu0 0.0
    %1681 = vmatprep.subr.mxu0 0.0
    %1682 = vmatpush1.msra.mxu0 0.0
    %1683 = vmatprep.subr.mxu0 0.0
    %1684 = vmatpush1.msra.mxu0 0.0
    %1685 = vmatprep.subr.mxu0 0.0
    %1686 = vmatpush1.msra.mxu0 0.0
    %1687 = vmatprep.subr.mxu0 0.0
    %1688 = vmatpush1.msra.mxu0 0.0
    %1689 = vmatprep.subr.mxu0 0.0
    %1690 = vmatpush1.msra.mxu0 0.0
    %1691 = vmatprep.subr.mxu0 0.0
    %1692 = vmatpush1.msra.mxu0 0.0
    %1693 = vmatprep.subr.mxu0 0.0
    %1694 = vmatpush1.msra.mxu0 0.0
    %1695 = vmatprep.subr.mxu0 0.0
    %1696 = vmatpush1.msra.mxu0 0.0
    %1697 = vmatprep.subr.mxu0 0.0
    %1698 = vmatpush1.msra.mxu0 0.0
    %1699 = vmatprep.subr.mxu0 0.0
    %1700 = vmatpush1.msra.mxu0 0.0
    %1701 = vmatprep.subr.mxu0 0.0
    %1702 = vmatpush1.msra.mxu0 0.0
    %1703 = vmatprep.subr.mxu0 0.0
    %1704 = vmatpush1.msra.mxu0 0.0
    %1705 = vmatprep.subr.mxu0 0.0
    %1706 = vmatpush1.msra.mxu0 0.0
    %1707 = vmatprep.subr.mxu0 0.0
    %1708 = vmatpush1.msra.mxu0 0.0
    %1709 = vmatprep.subr.mxu0 0.0
    %1710 = vmatpush1.msra.mxu0 0.0
    %1711 = vmatprep.subr.mxu0 0.0
    %1712 = vmatpush1.msra.mxu0 0.0
    %1713 = vmatprep.subr.mxu0 0.0
    %1714 = vmatpush1.msra.mxu0 0.0
    %1715 = vmatprep.subr.mxu0 0.0
    %1716 = vmatpush1.msra.mxu0 0.0
    %1717 = vmatprep.subr.mxu0 0.0
    %1718 = vmatpush1.msra.mxu0 0.0
    %1719 = vmatprep.subr.mxu0 0.0
    %1720 = vmatpush1.msra.mxu0 0.0
    %1721 = vmatprep.subr.mxu0 0.0
    %1722 = vmatpush1.msra.mxu0 0.0
    %1723 = vmatprep.subr.mxu0 0.0
    %1724 = vmatpush1.msra.mxu0 0.0
    %1725 = vmatprep.subr.mxu0 0.0
    %1726 = vmatpush1.msra.mxu0 0.0
    %1727 = vmatprep.subr.mxu0 0.0
    %1728 = vmatpush1.msra.mxu0 0.0
    %1729 = vmatprep.subr.mxu0 0.0
    %1730 = vmatpush1.msra.mxu0 0.0
    %1731 = vmatprep.subr.mxu0 0.0
    %1732 = vmatpush1.msra.mxu0 0.0
    %1733 = vmatprep.subr.mxu0 0.0
    %1734 = vmatpush1.msra.mxu0 0.0
    %1735 = vmatprep.subr.mxu0 0.0
    %1736 = vmatpush1.msra.mxu0 0.0
    %1737 = vmatprep.subr.mxu0 0.0
    %1738 = vmatpush1.msra.mxu0 0.0
    %1739 = vmatprep.mubr.f32.mxu0 0.0
    %1740 = vmatmul.mubr.f32.gmra.mrb[0].mxu0 %v1673
    %v1741 = vpop.f32.mrb[0].mxu0
    %v1742 = vadd.f32 %v1665, %v1741
    %v1743 = vpop.f32.mrb[0].mxu0
    %1744 = vdwg.mxu0
    %1746 = vrot.lane.b32.xlu0 %v94, 32
    %v1747 = vpop.permute.xlu0 %1746
    %v1749 = vmul.f32 %v1336, %v1747
    %1751 = vrot.lane.b32.xlu0 %v1749, 96
    %v1752 = vpop.permute.xlu0 %1751
    %v1755 = vsel %vm1455, %v1579, 0
    %1757 = vmatprep.subr.mxu0 0.0
    %1758 = vmatpush1.msra.mxu0 %v1752
    %1759 = vmatprep.subr.mxu0 0.0
    %1760 = vmatpush1.msra.mxu0 0.0
    %1761 = vmatprep.subr.mxu0 0.0
    %1762 = vmatpush1.msra.mxu0 0.0
    %1763 = vmatprep.subr.mxu0 0.0
    %1764 = vmatpush1.msra.mxu0 0.0
    %1765 = vmatprep.subr.mxu0 0.0
    %1766 = vmatpush1.msra.mxu0 0.0
    %1767 = vmatprep.subr.mxu0 0.0
    %1768 = vmatpush1.msra.mxu0 0.0
    %1769 = vmatprep.subr.mxu0 0.0
    %1770 = vmatpush1.msra.mxu0 0.0
    %1771 = vmatprep.subr.mxu0 0.0
    %1772 = vmatpush1.msra.mxu0 0.0
    %1773 = vmatprep.subr.mxu0 0.0
    %1774 = vmatpush1.msra.mxu0 0.0
    %1775 = vmatprep.subr.mxu0 0.0
    %1776 = vmatpush1.msra.mxu0 0.0
    %1777 = vmatprep.subr.mxu0 0.0
    %1778 = vmatpush1.msra.mxu0 0.0
    %1779 = vmatprep.subr.mxu0 0.0
    %1780 = vmatpush1.msra.mxu0 0.0
    %1781 = vmatprep.subr.mxu0 0.0
    %1782 = vmatpush1.msra.mxu0 0.0
    %1783 = vmatprep.subr.mxu0 0.0
    %1784 = vmatpush1.msra.mxu0 0.0
    %1785 = vmatprep.subr.mxu0 0.0
    %1786 = vmatpush1.msra.mxu0 0.0
    %1787 = vmatprep.subr.mxu0 0.0
    %1788 = vmatpush1.msra.mxu0 0.0
    %1789 = vmatprep.subr.mxu0 0.0
    %1790 = vmatpush1.msra.mxu0 0.0
    %1791 = vmatprep.subr.mxu0 0.0
    %1792 = vmatpush1.msra.mxu0 0.0
    %1793 = vmatprep.subr.mxu0 0.0
    %1794 = vmatpush1.msra.mxu0 0.0
    %1795 = vmatprep.subr.mxu0 0.0
    %1796 = vmatpush1.msra.mxu0 0.0
    %1797 = vmatprep.subr.mxu0 0.0
    %1798 = vmatpush1.msra.mxu0 0.0
    %1799 = vmatprep.subr.mxu0 0.0
    %1800 = vmatpush1.msra.mxu0 0.0
    %1801 = vmatprep.subr.mxu0 0.0
    %1802 = vmatpush1.msra.mxu0 0.0
    %1803 = vmatprep.subr.mxu0 0.0
    %1804 = vmatpush1.msra.mxu0 0.0
    %1805 = vmatprep.subr.mxu0 0.0
    %1806 = vmatpush1.msra.mxu0 0.0
    %1807 = vmatprep.subr.mxu0 0.0
    %1808 = vmatpush1.msra.mxu0 0.0
    %1809 = vmatprep.subr.mxu0 0.0
    %1810 = vmatpush1.msra.mxu0 0.0
    %1811 = vmatprep.subr.mxu0 0.0
    %1812 = vmatpush1.msra.mxu0 0.0
    %1813 = vmatprep.subr.mxu0 0.0
    %1814 = vmatpush1.msra.mxu0 0.0
    %1815 = vmatprep.subr.mxu0 0.0
    %1816 = vmatpush1.msra.mxu0 0.0
    %1817 = vmatprep.subr.mxu0 0.0
    %1818 = vmatpush1.msra.mxu0 0.0
    %1819 = vmatprep.subr.mxu0 0.0
    %1820 = vmatpush1.msra.mxu0 0.0
    %1821 = vmatprep.mubr.f32.mxu0 0.0
    %1822 = vmatmul.mubr.f32.gmra.mrb[0].mxu0 %v1755
    %v1823 = vpop.f32.mrb[0].mxu0
    %v1824 = vadd.f32 0.0, %v1823
    %v1825 = vpop.f32.mrb[0].mxu0
    %1826 = vdwg.mxu0
    %v1827 = vadd.f32 %v1742, %v1824
    %1829 = vrot.lane.b32.xlu0 %v99, 32
    %v1830 = vpop.permute.xlu0 %1829
    %v1832 = vmul.f32 %v1336, %v1830
    %1834 = vrot.lane.b32.xlu0 %v1832, 96
    %v1835 = vpop.permute.xlu0 %1834
    %v1838 = vsel %vm1455, %v1580, 0
    %1840 = vmatprep.subr.mxu0 0.0
    %1841 = vmatpush1.msra.mxu0 %v1835
    %1842 = vmatprep.subr.mxu0 0.0
    %1843 = vmatpush1.msra.mxu0 0.0
    %1844 = vmatprep.subr.mxu0 0.0
    %1845 = vmatpush1.msra.mxu0 0.0
    %1846 = vmatprep.subr.mxu0 0.0
    %1847 = vmatpush1.msra.mxu0 0.0
    %1848 = vmatprep.subr.mxu0 0.0
    %1849 = vmatpush1.msra.mxu0 0.0
    %1850 = vmatprep.subr.mxu0 0.0
    %1851 = vmatpush1.msra.mxu0 0.0
    %1852 = vmatprep.subr.mxu0 0.0
    %1853 = vmatpush1.msra.mxu0 0.0
    %1854 = vmatprep.subr.mxu0 0.0
    %1855 = vmatpush1.msra.mxu0 0.0
    %1856 = vmatprep.subr.mxu0 0.0
    %1857 = vmatpush1.msra.mxu0 0.0
    %1858 = vmatprep.subr.mxu0 0.0
    %1859 = vmatpush1.msra.mxu0 0.0
    %1860 = vmatprep.subr.mxu0 0.0
    %1861 = vmatpush1.msra.mxu0 0.0
    %1862 = vmatprep.subr.mxu0 0.0
    %1863 = vmatpush1.msra.mxu0 0.0
    %1864 = vmatprep.subr.mxu0 0.0
    %1865 = vmatpush1.msra.mxu0 0.0
    %1866 = vmatprep.subr.mxu0 0.0
    %1867 = vmatpush1.msra.mxu0 0.0
    %1868 = vmatprep.subr.mxu0 0.0
    %1869 = vmatpush1.msra.mxu0 0.0
    %1870 = vmatprep.subr.mxu0 0.0
    %1871 = vmatpush1.msra.mxu0 0.0
    %1872 = vmatprep.subr.mxu0 0.0
    %1873 = vmatpush1.msra.mxu0 0.0
    %1874 = vmatprep.subr.mxu0 0.0
    %1875 = vmatpush1.msra.mxu0 0.0
    %1876 = vmatprep.subr.mxu0 0.0
    %1877 = vmatpush1.msra.mxu0 0.0
    %1878 = vmatprep.subr.mxu0 0.0
    %1879 = vmatpush1.msra.mxu0 0.0
    %1880 = vmatprep.subr.mxu0 0.0
    %1881 = vmatpush1.msra.mxu0 0.0
    %1882 = vmatprep.subr.mxu0 0.0
    %1883 = vmatpush1.msra.mxu0 0.0
    %1884 = vmatprep.subr.mxu0 0.0
    %1885 = vmatpush1.msra.mxu0 0.0
    %1886 = vmatprep.subr.mxu0 0.0
    %1887 = vmatpush1.msra.mxu0 0.0
    %1888 = vmatprep.subr.mxu0 0.0
    %1889 = vmatpush1.msra.mxu0 0.0
    %1890 = vmatprep.subr.mxu0 0.0
    %1891 = vmatpush1.msra.mxu0 0.0
    %1892 = vmatprep.subr.mxu0 0.0
    %1893 = vmatpush1.msra.mxu0 0.0
    %1894 = vmatprep.subr.mxu0 0.0
    %1895 = vmatpush1.msra.mxu0 0.0
    %1896 = vmatprep.subr.mxu0 0.0
    %1897 = vmatpush1.msra.mxu0 0.0
    %1898 = vmatprep.subr.mxu0 0.0
    %1899 = vmatpush1.msra.mxu0 0.0
    %1900 = vmatprep.subr.mxu0 0.0
    %1901 = vmatpush1.msra.mxu0 0.0
    %1902 = vmatprep.subr.mxu0 0.0
    %1903 = vmatpush1.msra.mxu0 0.0
    %1904 = vmatprep.mubr.f32.mxu0 0.0
    %1905 = vmatmul.mubr.f32.gmra.mrb[0].mxu0 %v1838
    %v1906 = vpop.f32.mrb[0].mxu0
    %v1907 = vadd.f32 0.0, %v1906
    %v1908 = vpop.f32.mrb[0].mxu0
    %1909 = vdwg.mxu0
    %v1910 = vadd.f32 %v1827, %v1907
    %1912 = vrot.lane.b32.xlu0 %v1341, 112
    %v1913 = vpop.permute.xlu0 %1912
    %v1914 = vmul.f32 %v1345, %v84
    %v1915 = vmul.f32 %v1345, %v89
    %v1916 = vmul.f32 %v1345, %v94
    %v1917 = vmul.f32 %v1345, %v99
    %v1919 = vsel %vm978, %v1914, 0
    %v1922 = vsel %vm978, %v1915, 0
    %v1925 = vsel %vm978, %v1916, 0
    %v1928 = vsel %vm978, %v1917, 0
    %v1931 = vsel %vm978, %v1253, 0
    %v1933 = vsel %vm978, %v1913, 0
    %1935 = vmatprep.subr.mxu0 0.0
    %1936 = vmatpush1.xpose.msra.mxu0 %v1931
    %1937 = vmatprep.subr.mxu0 0.0
    %1938 = vmatpush1.xpose.msra.mxu0 %v1933
    %1939 = vmatprep.subr.mxu0 0.0
    %1940 = vmatpush1.xpose.msra.mxu0 0.0
    %1941 = vmatprep.subr.mxu0 0.0
    %1942 = vmatpush1.xpose.msra.mxu0 0.0
    %1943 = vmatprep.subr.mxu0 0.0
    %1944 = vmatpush1.xpose.msra.mxu0 0.0
    %1945 = vmatprep.subr.mxu0 0.0
    %1946 = vmatpush1.xpose.msra.mxu0 0.0
    %1947 = vmatprep.subr.mxu0 0.0
    %1948 = vmatpush1.xpose.msra.mxu0 0.0
    %1949 = vmatprep.subr.mxu0 0.0
    %1950 = vmatpush1.xpose.msra.mxu0 0.0
    %1951 = vmatprep.subr.mxu0 0.0
    %1952 = vmatpush1.xpose.msra.mxu0 0.0
    %1953 = vmatprep.subr.mxu0 0.0
    %1954 = vmatpush1.xpose.msra.mxu0 0.0
    %1955 = vmatprep.subr.mxu0 0.0
    %1956 = vmatpush1.xpose.msra.mxu0 0.0
    %1957 = vmatprep.subr.mxu0 0.0
    %1958 = vmatpush1.xpose.msra.mxu0 0.0
    %1959 = vmatprep.subr.mxu0 0.0
    %1960 = vmatpush1.xpose.msra.mxu0 0.0
    %1961 = vmatprep.subr.mxu0 0.0
    %1962 = vmatpush1.xpose.msra.mxu0 0.0
    %1963 = vmatprep.subr.mxu0 0.0
    %1964 = vmatpush1.xpose.msra.mxu0 0.0
    %1965 = vmatprep.subr.mxu0 0.0
    %1966 = vmatpush1.xpose.msra.mxu0 0.0
    %1967 = vmatprep.subr.mxu0 0.0
    %1968 = vmatpush1.xpose.msra.mxu0 0.0
    %1969 = vmatprep.subr.mxu0 0.0
    %1970 = vmatpush1.xpose.msra.mxu0 0.0
    %1971 = vmatprep.subr.mxu0 0.0
    %1972 = vmatpush1.xpose.msra.mxu0 0.0
    %1973 = vmatprep.subr.mxu0 0.0
    %1974 = vmatpush1.xpose.msra.mxu0 0.0
    %1975 = vmatprep.subr.mxu0 0.0
    %1976 = vmatpush1.xpose.msra.mxu0 0.0
    %1977 = vmatprep.subr.mxu0 0.0
    %1978 = vmatpush1.xpose.msra.mxu0 0.0
    %1979 = vmatprep.subr.mxu0 0.0
    %1980 = vmatpush1.xpose.msra.mxu0 0.0
    %1981 = vmatprep.subr.mxu0 0.0
    %1982 = vmatpush1.xpose.msra.mxu0 0.0
    %1983 = vmatprep.subr.mxu0 0.0
    %1984 = vmatpush1.xpose.msra.mxu0 0.0
    %1985 = vmatprep.subr.mxu0 0.0
    %1986 = vmatpush1.xpose.msra.mxu0 0.0
    %1987 = vmatprep.subr.mxu0 0.0
    %1988 = vmatpush1.xpose.msra.mxu0 0.0
    %1989 = vmatprep.subr.mxu0 0.0
    %1990 = vmatpush1.xpose.msra.mxu0 0.0
    %1991 = vmatprep.subr.mxu0 0.0
    %1992 = vmatpush1.xpose.msra.mxu0 0.0
    %1993 = vmatprep.subr.mxu0 0.0
    %1994 = vmatpush1.xpose.msra.mxu0 0.0
    %1995 = vmatprep.subr.mxu0 0.0
    %1996 = vmatpush1.xpose.msra.mxu0 0.0
    %1997 = vmatprep.subr.mxu0 0.0
    %1998 = vmatpush1.xpose.msra.mxu0 0.0
    %1999 = vmatprep.mubr.f32.mxu0 0.0
    %2000 = vmatmul.mubr.f32.gmra.mrb[0].mxu0 %v1919
    %v2001 = vpop.f32.mrb[0].mxu0
    %v2002 = vadd.f32 0.0, %v2001
    %v2003 = vpop.f32.mrb[0].mxu0
    %2004 = vmatprep.mubr.f32.mxu0 0.0
    %2005 = vmatmul.mubr.f32.gmra.mrb[0].mxu0 %v1922
    %v2006 = vpop.f32.mrb[0].mxu0
    %v2007 = vadd.f32 0.0, %v2006
    %v2008 = vpop.f32.mrb[0].mxu0
    %2009 = vmatprep.mubr.f32.mxu0 0.0
    %2010 = vmatmul.mubr.f32.gmra.mrb[0].mxu0 %v1925
    %v2011 = vpop.f32.mrb[0].mxu0
    %v2012 = vadd.f32 0.0, %v2011
    %v2013 = vpop.f32.mrb[0].mxu0
    %2014 = vmatprep.mubr.f32.mxu0 0.0
    %2015 = vmatmul.mubr.f32.gmra.mrb[0].mxu0 %v1928
    %v2016 = vpop.f32.mrb[0].mxu0
    %v2017 = vadd.f32 0.0, %v2016
    %v2018 = vpop.f32.mrb[0].mxu0
    %2019 = vdwg.mxu0
    %v2020 = vsel %vm1455, %v2002, -inf
    %2021 = vmax.xlane.f32.xlu0 %v2020
    %v2022 = vpop.xlane.xlu0 %2021
    %v2023 = vsel %vm1455, %v2007, -inf
    %2024 = vmax.xlane.f32.xlu0 %v2023
    %v2025 = vpop.xlane.xlu0 %2024
    %v2026 = vsel %vm1455, %v2012, -inf
    %2027 = vmax.xlane.f32.xlu0 %v2026
    %v2028 = vpop.xlane.xlu0 %2027
    %v2029 = vsel %vm1455, %v2017, -inf
    %2030 = vmax.xlane.f32.xlu0 %v2029
    %v2031 = vpop.xlane.xlu0 %2030
    %v2032 = vsub.f32 %v2002, %v2022
    %v2033 = vsub.f32 %v2007, %v2025
    %v2034 = vsub.f32 %v2012, %v2028
    %v2035 = vsub.f32 %v2017, %v2031
    %v2036 = vmul.f32 %v2032, 1.442695
    %v2037 = vpow.pop %v2036
    %v2038 = vmul.f32 %v2033, 1.442695
    %v2039 = vpow.pop %v2038
    %v2040 = vmul.f32 %v2034, 1.442695
    %v2041 = vpow.pop %v2040
    %v2042 = vmul.f32 %v2035, 1.442695
    %v2043 = vpow.pop %v2042
    %v2044 = vsel %vm1455, %v2037, 0.0
    %2045 = vadd.xlane.f32.xlu0 %v2044
    %v2046 = vpop.xlane.xlu0 %2045
    %v2047 = vsel %vm1455, %v2039, 0.0
    %2048 = vadd.xlane.f32.xlu0 %v2047
    %v2049 = vpop.xlane.xlu0 %2048
    %v2050 = vsel %vm1455, %v2041, 0.0
    %2051 = vadd.xlane.f32.xlu0 %v2050
    %v2052 = vpop.xlane.xlu0 %2051
    %v2053 = vsel %vm1455, %v2043, 0.0
    %2054 = vadd.xlane.f32.xlu0 %v2053
    %v2055 = vpop.xlane.xlu0 %2054
    %v2056 = vrcp.pop %v2046
    %v2057 = vmul.f32 %v2037, %v2056
    %v2058 = vrcp.pop %v2049
    %v2059 = vmul.f32 %v2039, %v2058
    %v2060 = vrcp.pop %v2052
    %v2061 = vmul.f32 %v2041, %v2060
    %v2062 = vrcp.pop %v2055
    %v2063 = vmul.f32 %v2043, %v2062
    %v2064 = vsel %vm1500, %v2002, -inf
    %2065 = vmax.xlane.f32.xlu0 %v2064
    %v2066 = vpop.xlane.xlu0 %2065
    %v2067 = vsel %vm1500, %v2007, -inf
    %2068 = vmax.xlane.f32.xlu0 %v2067
    %v2069 = vpop.xlane.xlu0 %2068
    %v2070 = vsel %vm1500, %v2012, -inf
    %2071 = vmax.xlane.f32.xlu0 %v2070
    %v2072 = vpop.xlane.xlu0 %2071
    %v2073 = vsel %vm1500, %v2017, -inf
    %2074 = vmax.xlane.f32.xlu0 %v2073
    %v2075 = vpop.xlane.xlu0 %2074
    %v2076 = vsub.f32 %v2002, %v2066
    %v2077 = vsub.f32 %v2007, %v2069
    %v2078 = vsub.f32 %v2012, %v2072
    %v2079 = vsub.f32 %v2017, %v2075
    %v2080 = vmul.f32 %v2076, 1.442695
    %v2081 = vpow.pop %v2080
    %v2082 = vmul.f32 %v2077, 1.442695
    %v2083 = vpow.pop %v2082
    %v2084 = vmul.f32 %v2078, 1.442695
    %v2085 = vpow.pop %v2084
    %v2086 = vmul.f32 %v2079, 1.442695
    %v2087 = vpow.pop %v2086
    %2092 = vrot.lane.b32.xlu0 %v2081, 120
    %v2093 = vpop.permute.xlu0 %2092
    %2094 = vrot.lane.b32.xlu0 %v2083, 120
    %v2095 = vpop.permute.xlu0 %2094
    %2096 = vrot.lane.b32.xlu0 %v2085, 120
    %v2097 = vpop.permute.xlu0 %2096
    %2098 = vrot.lane.b32.xlu0 %v2087, 120
    %v2099 = vpop.permute.xlu0 %2098
    %v2104 = vsel %vm1455, %v2093, 0.0
    %2105 = vadd.xlane.f32.xlu0 %v2104
    %v2106 = vpop.xlane.xlu0 %2105
    %v2107 = vsel %vm1455, %v2095, 0.0
    %2108 = vadd.xlane.f32.xlu0 %v2107
    %v2109 = vpop.xlane.xlu0 %2108
    %v2110 = vsel %vm1455, %v2097, 0.0
    %2111 = vadd.xlane.f32.xlu0 %v2110
    %v2112 = vpop.xlane.xlu0 %2111
    %v2113 = vsel %vm1455, %v2099, 0.0
    %2114 = vadd.xlane.f32.xlu0 %v2113
    %v2115 = vpop.xlane.xlu0 %2114
    %v2116 = vrcp.pop %v2106
    %v2117 = vmul.f32 %v2081, %v2116
    %v2118 = vrcp.pop %v2109
    %v2119 = vmul.f32 %v2083, %v2118
    %v2120 = vrcp.pop %v2112
    %v2121 = vmul.f32 %v2085, %v2120
    %v2122 = vrcp.pop %v2115
    %v2123 = vmul.f32 %v2087, %v2122
    %2128 = vrot.lane.b32.xlu0 %v2117, 120
    %v2129 = vpop.permute.xlu0 %2128
    %2130 = vrot.lane.b32.xlu0 %v2119, 120
    %v2131 = vpop.permute.xlu0 %2130
    %2132 = vrot.lane.b32.xlu0 %v2121, 120
    %v2133 = vpop.permute.xlu0 %2132
    %2134 = vrot.lane.b32.xlu0 %v2123, 120
    %v2135 = vpop.permute.xlu0 %2134
    %v2140 = vadd.f32 %v2057, %v2129
    %v2141 = vadd.f32 %v2059, %v2131
    %v2142 = vadd.f32 %v2061, %v2133
    %v2143 = vadd.f32 %v2063, %v2135
    %v2144 = vmul.f32 %v1341, %v1583
    %v2145 = vmul.f32 %v1341, %v1588
    %2147 = vrot.lane.b32.xlu0 %v2145, 96
    %v2148 = vpop.permute.xlu0 %2147
    %v2151 = vsel %vm1455, %v2141, 0
    %2153 = vmatprep.subr.mxu0 0.0
    %2154 = vmatpush1.msra.mxu0 %v2148
    %2155 = vmatprep.subr.mxu0 0.0
    %2156 = vmatpush1.msra.mxu0 0.0
    %2157 = vmatprep.subr.mxu0 0.0
    %2158 = vmatpush1.msra.mxu0 0.0
    %2159 = vmatprep.subr.mxu0 0.0
    %2160 = vmatpush1.msra.mxu0 0.0
    %2161 = vmatprep.subr.mxu0 0.0
    %2162 = vmatpush1.msra.mxu0 0.0
    %2163 = vmatprep.subr.mxu0 0.0
    %2164 = vmatpush1.msra.mxu0 0.0
    %2165 = vmatprep.subr.mxu0 0.0
    %2166 = vmatpush1.msra.mxu0 0.0
    %2167 = vmatprep.subr.mxu0 0.0
    %2168 = vmatpush1.msra.mxu0 0.0
    %2169 = vmatprep.subr.mxu0 0.0
    %2170 = vmatpush1.msra.mxu0 0.0
    %2171 = vmatprep.subr.mxu0 0.0
    %2172 = vmatpush1.msra.mxu0 0.0
    %2173 = vmatprep.subr.mxu0 0.0
    %2174 = vmatpush1.msra.mxu0 0.0
    %2175 = vmatprep.subr.mxu0 0.0
    %2176 = vmatpush1.msra.mxu0 0.0
    %2177 = vmatprep.subr.mxu0 0.0
    %2178 = vmatpush1.msra.mxu0 0.0
    %2179 = vmatprep.subr.mxu0 0.0
    %2180 = vmatpush1.msra.mxu0 0.0
    %2181 = vmatprep.subr.mxu0 0.0
    %2182 = vmatpush1.msra.mxu0 0.0
    %2183 = vmatprep.subr.mxu0 0.0
    %2184 = vmatpush1.msra.mxu0 0.0
    %2185 = vmatprep.subr.mxu0 0.0
    %2186 = vmatpush1.msra.mxu0 0.0
    %2187 = vmatprep.subr.mxu0 0.0
    %2188 = vmatpush1.msra.mxu0 0.0
    %2189 = vmatprep.subr.mxu0 0.0
    %2190 = vmatpush1.msra.mxu0 0.0
    %2191 = vmatprep.subr.mxu0 0.0
    %2192 = vmatpush1.msra.mxu0 0.0
    %2193 = vmatprep.subr.mxu0 0.0
    %2194 = vmatpush1.msra.mxu0 0.0
    %2195 = vmatprep.subr.mxu0 0.0
    %2196 = vmatpush1.msra.mxu0 0.0
    %2197 = vmatprep.subr.mxu0 0.0
    %2198 = vmatpush1.msra.mxu0 0.0
    %2199 = vmatprep.subr.mxu0 0.0
    %2200 = vmatpush1.msra.mxu0 0.0
    %2201 = vmatprep.subr.mxu0 0.0
    %2202 = vmatpush1.msra.mxu0 0.0
    %2203 = vmatprep.subr.mxu0 0.0
    %2204 = vmatpush1.msra.mxu0 0.0
    %2205 = vmatprep.subr.mxu0 0.0
    %2206 = vmatpush1.msra.mxu0 0.0
    %2207 = vmatprep.subr.mxu0 0.0
    %2208 = vmatpush1.msra.mxu0 0.0
    %2209 = vmatprep.subr.mxu0 0.0
    %2210 = vmatpush1.msra.mxu0 0.0
    %2211 = vmatprep.subr.mxu0 0.0
    %2212 = vmatpush1.msra.mxu0 0.0
    %2213 = vmatprep.subr.mxu0 0.0
    %2214 = vmatpush1.msra.mxu0 0.0
    %2215 = vmatprep.subr.mxu0 0.0
    %2216 = vmatpush1.msra.mxu0 0.0
    %2217 = vmatprep.mubr.f32.mxu0 0.0
    %2218 = vmatmul.mubr.f32.gmra.mrb[0].mxu0 %v2151
    %v2219 = vpop.f32.mrb[0].mxu0
    %v2220 = vadd.f32 0.0, %v2219
    %v2221 = vpop.f32.mrb[0].mxu0
    %2222 = vdwg.mxu0
    %2224 = vrot.lane.b32.xlu0 %v2144, 96
    %v2225 = vpop.permute.xlu0 %2224
    %v2228 = vsel %vm1455, %v2140, 0
    %2230 = vmatprep.subr.mxu0 0.0
    %2231 = vmatpush1.msra.mxu0 %v2225
    %2232 = vmatprep.subr.mxu0 0.0
    %2233 = vmatpush1.msra.mxu0 0.0
    %2234 = vmatprep.subr.mxu0 0.0
    %2235 = vmatpush1.msra.mxu0 0.0
    %2236 = vmatprep.subr.mxu0 0.0
    %2237 = vmatpush1.msra.mxu0 0.0
    %2238 = vmatprep.subr.mxu0 0.0
    %2239 = vmatpush1.msra.mxu0 0.0
    %2240 = vmatprep.subr.mxu0 0.0
    %2241 = vmatpush1.msra.mxu0 0.0
    %2242 = vmatprep.subr.mxu0 0.0
    %2243 = vmatpush1.msra.mxu0 0.0
    %2244 = vmatprep.subr.mxu0 0.0
    %2245 = vmatpush1.msra.mxu0 0.0
    %2246 = vmatprep.subr.mxu0 0.0
    %2247 = vmatpush1.msra.mxu0 0.0
    %2248 = vmatprep.subr.mxu0 0.0
    %2249 = vmatpush1.msra.mxu0 0.0
    %2250 = vmatprep.subr.mxu0 0.0
    %2251 = vmatpush1.msra.mxu0 0.0
    %2252 = vmatprep.subr.mxu0 0.0
    %2253 = vmatpush1.msra.mxu0 0.0
    %2254 = vmatprep.subr.mxu0 0.0
    %2255 = vmatpush1.msra.mxu0 0.0
    %2256 = vmatprep.subr.mxu0 0.0
    %2257 = vmatpush1.msra.mxu0 0.0
    %2258 = vmatprep.subr.mxu0 0.0
    %2259 = vmatpush1.msra.mxu0 0.0
    %2260 = vmatprep.subr.mxu0 0.0
    %2261 = vmatpush1.msra.mxu0 0.0
    %2262 = vmatprep.subr.mxu0 0.0
    %2263 = vmatpush1.msra.mxu0 0.0
    %2264 = vmatprep.subr.mxu0 0.0
    %2265 = vmatpush1.msra.mxu0 0.0
    %2266 = vmatprep.subr.mxu0 0.0
    %2267 = vmatpush1.msra.mxu0 0.0
    %2268 = vmatprep.subr.mxu0 0.0
    %2269 = vmatpush1.msra.mxu0 0.0
    %2270 = vmatprep.subr.mxu0 0.0
    %2271 = vmatpush1.msra.mxu0 0.0
    %2272 = vmatprep.subr.mxu0 0.0
    %2273 = vmatpush1.msra.mxu0 0.0
    %2274 = vmatprep.subr.mxu0 0.0
    %2275 = vmatpush1.msra.mxu0 0.0
    %2276 = vmatprep.subr.mxu0 0.0
    %2277 = vmatpush1.msra.mxu0 0.0
    %2278 = vmatprep.subr.mxu0 0.0
    %2279 = vmatpush1.msra.mxu0 0.0
    %2280 = vmatprep.subr.mxu0 0.0
    %2281 = vmatpush1.msra.mxu0 0.0
    %2282 = vmatprep.subr.mxu0 0.0
    %2283 = vmatpush1.msra.mxu0 0.0
    %2284 = vmatprep.subr.mxu0 0.0
    %2285 = vmatpush1.msra.mxu0 0.0
    %2286 = vmatprep.subr.mxu0 0.0
    %2287 = vmatpush1.msra.mxu0 0.0
    %2288 = vmatprep.subr.mxu0 0.0
    %2289 = vmatpush1.msra.mxu0 0.0
    %2290 = vmatprep.subr.mxu0 0.0
    %2291 = vmatpush1.msra.mxu0 0.0
    %2292 = vmatprep.subr.mxu0 0.0
    %2293 = vmatpush1.msra.mxu0 0.0
    %2294 = vmatprep.mubr.f32.mxu0 0.0
    %2295 = vmatmul.mubr.f32.gmra.mrb[0].mxu0 %v2228
    %v2296 = vpop.f32.mrb[0].mxu0
    %v2297 = vadd.f32 %v2220, %v2296
    %v2298 = vpop.f32.mrb[0].mxu0
    %2299 = vdwg.mxu0
    %v2300 = vmul.f32 %v1341, %v1747
    %2302 = vrot.lane.b32.xlu0 %v2300, 96
    %v2303 = vpop.permute.xlu0 %2302
    %v2306 = vsel %vm1455, %v2142, 0
    %2308 = vmatprep.subr.mxu0 0.0
    %2309 = vmatpush1.msra.mxu0 %v2303
    %2310 = vmatprep.subr.mxu0 0.0
    %2311 = vmatpush1.msra.mxu0 0.0
    %2312 = vmatprep.subr.mxu0 0.0
    %2313 = vmatpush1.msra.mxu0 0.0
    %2314 = vmatprep.subr.mxu0 0.0
    %2315 = vmatpush1.msra.mxu0 0.0
    %2316 = vmatprep.subr.mxu0 0.0
    %2317 = vmatpush1.msra.mxu0 0.0
    %2318 = vmatprep.subr.mxu0 0.0
    %2319 = vmatpush1.msra.mxu0 0.0
    %2320 = vmatprep.subr.mxu0 0.0
    %2321 = vmatpush1.msra.mxu0 0.0
    %2322 = vmatprep.subr.mxu0 0.0
    %2323 = vmatpush1.msra.mxu0 0.0
    %2324 = vmatprep.subr.mxu0 0.0
    %2325 = vmatpush1.msra.mxu0 0.0
    %2326 = vmatprep.subr.mxu0 0.0
    %2327 = vmatpush1.msra.mxu0 0.0
    %2328 = vmatprep.subr.mxu0 0.0
    %2329 = vmatpush1.msra.mxu0 0.0
    %2330 = vmatprep.subr.mxu0 0.0
    %2331 = vmatpush1.msra.mxu0 0.0
    %2332 = vmatprep.subr.mxu0 0.0
    %2333 = vmatpush1.msra.mxu0 0.0
    %2334 = vmatprep.subr.mxu0 0.0
    %2335 = vmatpush1.msra.mxu0 0.0
    %2336 = vmatprep.subr.mxu0 0.0
    %2337 = vmatpush1.msra.mxu0 0.0
    %2338 = vmatprep.subr.mxu0 0.0
    %2339 = vmatpush1.msra.mxu0 0.0
    %2340 = vmatprep.subr.mxu0 0.0
    %2341 = vmatpush1.msra.mxu0 0.0
    %2342 = vmatprep.subr.mxu0 0.0
    %2343 = vmatpush1.msra.mxu0 0.0
    %2344 = vmatprep.subr.mxu0 0.0
    %2345 = vmatpush1.msra.mxu0 0.0
    %2346 = vmatprep.subr.mxu0 0.0
    %2347 = vmatpush1.msra.mxu0 0.0
    %2348 = vmatprep.subr.mxu0 0.0
    %2349 = vmatpush1.msra.mxu0 0.0
    %2350 = vmatprep.subr.mxu0 0.0
    %2351 = vmatpush1.msra.mxu0 0.0
    %2352 = vmatprep.subr.mxu0 0.0
    %2353 = vmatpush1.msra.mxu0 0.0
    %2354 = vmatprep.subr.mxu0 0.0
    %2355 = vmatpush1.msra.mxu0 0.0
    %2356 = vmatprep.subr.mxu0 0.0
    %2357 = vmatpush1.msra.mxu0 0.0
    %2358 = vmatprep.subr.mxu0 0.0
    %2359 = vmatpush1.msra.mxu0 0.0
    %2360 = vmatprep.subr.mxu0 0.0
    %2361 = vmatpush1.msra.mxu0 0.0
    %2362 = vmatprep.subr.mxu0 0.0
    %2363 = vmatpush1.msra.mxu0 0.0
    %2364 = vmatprep.subr.mxu0 0.0
    %2365 = vmatpush1.msra.mxu0 0.0
    %2366 = vmatprep.subr.mxu0 0.0
    %2367 = vmatpush1.msra.mxu0 0.0
    %2368 = vmatprep.subr.mxu0 0.0
    %2369 = vmatpush1.msra.mxu0 0.0
    %2370 = vmatprep.subr.mxu0 0.0
    %2371 = vmatpush1.msra.mxu0 0.0
    %2372 = vmatprep.mubr.f32.mxu0 0.0
    %2373 = vmatmul.mubr.f32.gmra.mrb[0].mxu0 %v2306
    %v2374 = vpop.f32.mrb[0].mxu0
    %v2375 = vadd.f32 0.0, %v2374
    %v2376 = vpop.f32.mrb[0].mxu0
    %2377 = vdwg.mxu0
    %v2378 = vadd.f32 %v2297, %v2375
    %v2379 = vmul.f32 %v1341, %v1830
    %2381 = vrot.lane.b32.xlu0 %v2379, 96
    %v2382 = vpop.permute.xlu0 %2381
    %v2385 = vsel %vm1455, %v2143, 0
    %2387 = vmatprep.subr.mxu0 0.0
    %2388 = vmatpush1.msra.mxu0 %v2382
    %2389 = vmatprep.subr.mxu0 0.0
    %2390 = vmatpush1.msra.mxu0 0.0
    %2391 = vmatprep.subr.mxu0 0.0
    %2392 = vmatpush1.msra.mxu0 0.0
    %2393 = vmatprep.subr.mxu0 0.0
    %2394 = vmatpush1.msra.mxu0 0.0
    %2395 = vmatprep.subr.mxu0 0.0
    %2396 = vmatpush1.msra.mxu0 0.0
    %2397 = vmatprep.subr.mxu0 0.0
    %2398 = vmatpush1.msra.mxu0 0.0
    %2399 = vmatprep.subr.mxu0 0.0
    %2400 = vmatpush1.msra.mxu0 0.0
    %2401 = vmatprep.subr.mxu0 0.0
    %2402 = vmatpush1.msra.mxu0 0.0
    %2403 = vmatprep.subr.mxu0 0.0
    %2404 = vmatpush1.msra.mxu0 0.0
    %2405 = vmatprep.subr.mxu0 0.0
    %2406 = vmatpush1.msra.mxu0 0.0
    %2407 = vmatprep.subr.mxu0 0.0
    %2408 = vmatpush1.msra.mxu0 0.0
    %2409 = vmatprep.subr.mxu0 0.0
    %2410 = vmatpush1.msra.mxu0 0.0
    %2411 = vmatprep.subr.mxu0 0.0
    %2412 = vmatpush1.msra.mxu0 0.0
    %2413 = vmatprep.subr.mxu0 0.0
    %2414 = vmatpush1.msra.mxu0 0.0
    %2415 = vmatprep.subr.mxu0 0.0
    %2416 = vmatpush1.msra.mxu0 0.0
    %2417 = vmatprep.subr.mxu0 0.0
    %2418 = vmatpush1.msra.mxu0 0.0
    %2419 = vmatprep.subr.mxu0 0.0
    %2420 = vmatpush1.msra.mxu0 0.0
    %2421 = vmatprep.subr.mxu0 0.0
    %2422 = vmatpush1.msra.mxu0 0.0
    %2423 = vmatprep.subr.mxu0 0.0
    %2424 = vmatpush1.msra.mxu0 0.0
    %2425 = vmatprep.subr.mxu0 0.0
    %2426 = vmatpush1.msra.mxu0 0.0
    %2427 = vmatprep.subr.mxu0 0.0
    %2428 = vmatpush1.msra.mxu0 0.0
    %2429 = vmatprep.subr.mxu0 0.0
    %2430 = vmatpush1.msra.mxu0 0.0
    %2431 = vmatprep.subr.mxu0 0.0
    %2432 = vmatpush1.msra.mxu0 0.0
    %2433 = vmatprep.subr.mxu0 0.0
    %2434 = vmatpush1.msra.mxu0 0.0
    %2435 = vmatprep.subr.mxu0 0.0
    %2436 = vmatpush1.msra.mxu0 0.0
    %2437 = vmatprep.subr.mxu0 0.0
    %2438 = vmatpush1.msra.mxu0 0.0
    %2439 = vmatprep.subr.mxu0 0.0
    %2440 = vmatpush1.msra.mxu0 0.0
    %2441 = vmatprep.subr.mxu0 0.0
    %2442 = vmatpush1.msra.mxu0 0.0
    %2443 = vmatprep.subr.mxu0 0.0
    %2444 = vmatpush1.msra.mxu0 0.0
    %2445 = vmatprep.subr.mxu0 0.0
    %2446 = vmatpush1.msra.mxu0 0.0
    %2447 = vmatprep.subr.mxu0 0.0
    %2448 = vmatpush1.msra.mxu0 0.0
    %2449 = vmatprep.subr.mxu0 0.0
    %2450 = vmatpush1.msra.mxu0 0.0
    %2451 = vmatprep.mubr.f32.mxu0 0.0
    %2452 = vmatmul.mubr.f32.gmra.mrb[0].mxu0 %v2385
    %v2453 = vpop.f32.mrb[0].mxu0
    %v2454 = vadd.f32 0.0, %v2453
    %v2455 = vpop.f32.mrb[0].mxu0
    %2456 = vdwg.mxu0
    %v2457 = vadd.f32 %v2378, %v2454
    %v2458 = vld [vmem:[%s14] sm:$0xff]
    %v2459 = vld [vmem:[%s14 + $0x8] sm:$0xff]
    %v2460 = vld [vmem:[%s15] sm:$0x1]
    %v2462 = vlaneseq
    %v2463 = vshrl.u32 %v2462, 7
    %v2464 = vsub.s32 0, %v2463
    %v2465 = vrot.slane %v2460, %v2464
    %v2468 = vsel %vm978, %v1910, 0
    %v2471 = vsel %vm978, %v2457, 0
    %2473 = vmatprep.subr.mxu0 0.0
    %2474 = vmatpush1.msra.mxu0 %v2458
    %2475 = vmatprep.subr.mxu0 0.0
    %2476 = vmatpush1.msra.mxu0 %v2459
    %2477 = vmatprep.subr.mxu0 0.0
    %2478 = vmatpush1.msra.mxu0 0.0
    %2479 = vmatprep.subr.mxu0 0.0
    %2480 = vmatpush1.msra.mxu0 0.0
    %2481 = vmatprep.subr.mxu0 0.0
    %2482 = vmatpush1.msra.mxu0 0.0
    %2483 = vmatprep.subr.mxu0 0.0
    %2484 = vmatpush1.msra.mxu0 0.0
    %2485 = vmatprep.subr.mxu0 0.0
    %2486 = vmatpush1.msra.mxu0 0.0
    %2487 = vmatprep.subr.mxu0 0.0
    %2488 = vmatpush1.msra.mxu0 0.0
    %2489 = vmatprep.subr.mxu0 0.0
    %2490 = vmatpush1.msra.mxu0 0.0
    %2491 = vmatprep.subr.mxu0 0.0
    %2492 = vmatpush1.msra.mxu0 0.0
    %2493 = vmatprep.subr.mxu0 0.0
    %2494 = vmatpush1.msra.mxu0 0.0
    %2495 = vmatprep.subr.mxu0 0.0
    %2496 = vmatpush1.msra.mxu0 0.0
    %2497 = vmatprep.subr.mxu0 0.0
    %2498 = vmatpush1.msra.mxu0 0.0
    %2499 = vmatprep.subr.mxu0 0.0
    %2500 = vmatpush1.msra.mxu0 0.0
    %2501 = vmatprep.subr.mxu0 0.0
    %2502 = vmatpush1.msra.mxu0 0.0
    %2503 = vmatprep.subr.mxu0 0.0
    %2504 = vmatpush1.msra.mxu0 0.0
    %2505 = vmatprep.subr.mxu0 0.0
    %2506 = vmatpush1.msra.mxu0 0.0
    %2507 = vmatprep.subr.mxu0 0.0
    %2508 = vmatpush1.msra.mxu0 0.0
    %2509 = vmatprep.subr.mxu0 0.0
    %2510 = vmatpush1.msra.mxu0 0.0
    %2511 = vmatprep.subr.mxu0 0.0
    %2512 = vmatpush1.msra.mxu0 0.0
    %2513 = vmatprep.subr.mxu0 0.0
    %2514 = vmatpush1.msra.mxu0 0.0
    %2515 = vmatprep.subr.mxu0 0.0
    %2516 = vmatpush1.msra.mxu0 0.0
    %2517 = vmatprep.subr.mxu0 0.0
    %2518 = vmatpush1.msra.mxu0 0.0
    %2519 = vmatprep.subr.mxu0 0.0
    %2520 = vmatpush1.msra.mxu0 0.0
    %2521 = vmatprep.subr.mxu0 0.0
    %2522 = vmatpush1.msra.mxu0 0.0
    %2523 = vmatprep.subr.mxu0 0.0
    %2524 = vmatpush1.msra.mxu0 0.0
    %2525 = vmatprep.subr.mxu0 0.0
    %2526 = vmatpush1.msra.mxu0 0.0
    %2527 = vmatprep.subr.mxu0 0.0
    %2528 = vmatpush1.msra.mxu0 0.0
    %2529 = vmatprep.subr.mxu0 0.0
    %2530 = vmatpush1.msra.mxu0 0.0
    %2531 = vmatprep.subr.mxu0 0.0
    %2532 = vmatpush1.msra.mxu0 0.0
    %2533 = vmatprep.subr.mxu0 0.0
    %2534 = vmatpush1.msra.mxu0 0.0
    %2535 = vmatprep.subr.mxu0 0.0
    %2536 = vmatpush1.msra.mxu0 0.0
    %2537 = vmatprep.mubr.f32.mxu0 0.0
    %2538 = vmatmul.mubr.f32.gmra.mrb[0].mxu0 %v2468
    %v2539 = vpop.f32.mrb[0].mxu0
    %v2540 = vadd.f32 %v2465, %v2539
    %v2541 = vpop.f32.mrb[0].mxu0
    %2542 = vmatprep.mubr.f32.mxu0 0.0
    %2543 = vmatmul.mubr.f32.gmra.mrb[0].mxu0 %v2471
    %v2544 = vpop.f32.mrb[0].mxu0
    %v2545 = vadd.f32 %v2465, %v2544
    %v2546 = vpop.f32.mrb[0].mxu0
    %2547 = vdwg.mxu0
    %v2548 = vadd.f32 %v554, %v2540
    %v2549 = vadd.f32 %v970, %v2545
    %v2550 = vld [vmem:[%s16] sm:$0x1]
    %v2551 = vld [vmem:[%s17] sm:$0x1]
    %v2552 = vsel %vm978, %v2548, 0.0
    %2553 = vadd.xlane.f32.xlu0 %v2552
    %v2554 = vpop.xlane.xlu0 %2553
    %v2555 = vsel %vm978, %v2549, 0.0
    %2556 = vadd.xlane.f32.xlu0 %v2555
    %v2557 = vpop.xlane.xlu0 %2556
    %v2558 = vmul.f32 %v2554, %v985
    %v2559 = vmul.f32 %v2557, %v985
    %v2560 = vsub.f32 %v2548, %v2558
    %v2561 = vsub.f32 %v2549, %v2559
    %v2562 = vmul.f32 %v2560, %v2560
    %v2563 = vmul.f32 %v2561, %v2561
    %v2564 = vsel %vm978, %v2562, 0.0
    %2565 = vadd.xlane.f32.xlu0 %v2564
    %v2566 = vpop.xlane.xlu0 %2565
    %v2567 = vsel %vm978, %v2563, 0.0
    %2568 = vadd.xlane.f32.xlu0 %v2567
    %v2569 = vpop.xlane.xlu0 %2568
    %v2570 = vmul.f32 %v2566, %v985
    %v2571 = vmul.f32 %v2569, %v985
    %v2572 = vadd.f32 %v2570, 1e-05
    %v2573 = vadd.f32 %v2571, 1e-05
    %v2574 = vrsqrt.pop %v2572
    %v2575 = vrsqrt.pop %v2573
    %v2576 = vmul.f32 %v2560, %v2574
    %v2577 = vmul.f32 %v2561, %v2575
    %v2579 = vlaneseq
    %v2580 = vshrl.u32 %v2579, 7
    %v2581 = vsub.s32 0, %v2580
    %v2582 = vrot.slane %v2550, %v2581
    %v2584 = vmul.f32 %v2576, %v2582
    %v2585 = vmul.f32 %v2577, %v2582
    %v2587 = vlaneseq
    %v2588 = vshrl.u32 %v2587, 7
    %v2589 = vsub.s32 0, %v2588
    %v2590 = vrot.slane %v2551, %v2589
    %v2592 = vadd.f32 %v2584, %v2590
    %v2593 = vadd.f32 %v2585, %v2590
    %v2594 = vld [vmem:[%s18] sm:$0xff]
    %v2595 = vld [vmem:[%s18 + $0x8] sm:$0xff]
    %v2596 = vld [vmem:[%s19] sm:$0x1]
    %v2598 = vlaneseq
    %v2599 = vshrl.u32 %v2598, 7
    %v2600 = vsub.s32 0, %v2599
    %v2601 = vrot.slane %v2596, %v2600
    %v2604 = vsel %vm978, %v2592, 0
    %v2607 = vsel %vm978, %v2593, 0
    %2609 = vmatprep.subr.mxu0 0.0
    %2610 = vmatpush1.msra.mxu0 %v2594
    %2611 = vmatprep.subr.mxu0 0.0
    %2612 = vmatpush1.msra.mxu0 %v2595
    %2613 = vmatprep.subr.mxu0 0.0
    %2614 = vmatpush1.msra.mxu0 0.0
    %2615 = vmatprep.subr.mxu0 0.0
    %2616 = vmatpush1.msra.mxu0 0.0
    %2617 = vmatprep.subr.mxu0 0.0
    %2618 = vmatpush1.msra.mxu0 0.0
    %2619 = vmatprep.subr.mxu0 0.0
    %2620 = vmatpush1.msra.mxu0 0.0
    %2621 = vmatprep.subr.mxu0 0.0
    %2622 = vmatpush1.msra.mxu0 0.0
    %2623 = vmatprep.subr.mxu0 0.0
    %2624 = vmatpush1.msra.mxu0 0.0
    %2625 = vmatprep.subr.mxu0 0.0
    %2626 = vmatpush1.msra.mxu0 0.0
    %2627 = vmatprep.subr.mxu0 0.0
    %2628 = vmatpush1.msra.mxu0 0.0
    %2629 = vmatprep.subr.mxu0 0.0
    %2630 = vmatpush1.msra.mxu0 0.0
    %2631 = vmatprep.subr.mxu0 0.0
    %2632 = vmatpush1.msra.mxu0 0.0
    %2633 = vmatprep.subr.mxu0 0.0
    %2634 = vmatpush1.msra.mxu0 0.0
    %2635 = vmatprep.subr.mxu0 0.0
    %2636 = vmatpush1.msra.mxu0 0.0
    %2637 = vmatprep.subr.mxu0 0.0
    %2638 = vmatpush1.msra.mxu0 0.0
    %2639 = vmatprep.subr.mxu0 0.0
    %2640 = vmatpush1.msra.mxu0 0.0
    %2641 = vmatprep.subr.mxu0 0.0
    %2642 = vmatpush1.msra.mxu0 0.0
    %2643 = vmatprep.subr.mxu0 0.0
    %2644 = vmatpush1.msra.mxu0 0.0
    %2645 = vmatprep.subr.mxu0 0.0
    %2646 = vmatpush1.msra.mxu0 0.0
    %2647 = vmatprep.subr.mxu0 0.0
    %2648 = vmatpush1.msra.mxu0 0.0
    %2649 = vmatprep.subr.mxu0 0.0
    %2650 = vmatpush1.msra.mxu0 0.0
    %2651 = vmatprep.subr.mxu0 0.0
    %2652 = vmatpush1.msra.mxu0 0.0
    %2653 = vmatprep.subr.mxu0 0.0
    %2654 = vmatpush1.msra.mxu0 0.0
    %2655 = vmatprep.subr.mxu0 0.0
    %2656 = vmatpush1.msra.mxu0 0.0
    %2657 = vmatprep.subr.mxu0 0.0
    %2658 = vmatpush1.msra.mxu0 0.0
    %2659 = vmatprep.subr.mxu0 0.0
    %2660 = vmatpush1.msra.mxu0 0.0
    %2661 = vmatprep.subr.mxu0 0.0
    %2662 = vmatpush1.msra.mxu0 0.0
    %2663 = vmatprep.subr.mxu0 0.0
    %2664 = vmatpush1.msra.mxu0 0.0
    %2665 = vmatprep.subr.mxu0 0.0
    %2666 = vmatpush1.msra.mxu0 0.0
    %2667 = vmatprep.subr.mxu0 0.0
    %2668 = vmatpush1.msra.mxu0 0.0
    %2669 = vmatprep.subr.mxu0 0.0
    %2670 = vmatpush1.msra.mxu0 0.0
    %2671 = vmatprep.subr.mxu0 0.0
    %2672 = vmatpush1.msra.mxu0 0.0
    %2673 = vmatprep.mubr.f32.mxu0 0.0
    %2674 = vmatmul.mubr.f32.gmra.mrb[0].mxu0 %v2604
    %v2675 = vpop.f32.mrb[0].mxu0
    %v2676 = vadd.f32 %v2601, %v2675
    %v2677 = vpop.f32.mrb[0].mxu0
    %2678 = vmatprep.mubr.f32.mxu0 0.0
    %2679 = vmatmul.mubr.f32.gmra.mrb[0].mxu0 %v2607
    %v2680 = vpop.f32.mrb[0].mxu0
    %v2681 = vadd.f32 %v2601, %v2680
    %v2682 = vpop.f32.mrb[0].mxu0
    %2683 = vdwg.mxu0
    %v2684 = vmul.f32 %v2676, 0.70710677
    %v2685 = vmul.f32 %v2681, 0.70710677
    %v2686 = vand.u32 2147483647, %v2684
    %v2687 = vand.u32 2147483647, %v2685
    %v2688 = vmul.f32 %v2686, 0.3275911
    %v2689 = vmul.f32 %v2687, 0.3275911
    %v2690 = vadd.f32 %v2688, 1.0
    %v2691 = vadd.f32 %v2689, 1.0
    %v2692 = vrcp.pop %v2690
    %v2693 = vmul.f32 1.0, %v2692
    %v2694 = vrcp.pop %v2691
    %v2695 = vmul.f32 1.0, %v2694
    %v2696 = vmul.f32 %v2693, 1.0614054
    %v2697 = vmul.f32 %v2695, 1.0614054
    %v2698 = vadd.f32 %v2696, -1.4531521
    %v2699 = vadd.f32 %v2697, -1.4531521
    %v2700 = vmul.f32 %v2693, %v2698
    %v2701 = vmul.f32 %v2695, %v2699
    %v2702 = vadd.f32 %v2700, 1.4214138
    %v2703 = vadd.f32 %v2701, 1.4214138
    %v2704 = vmul.f32 %v2693, %v2702
    %v2705 = vmul.f32 %v2695, %v2703
    %v2706 = vadd.f32 %v2704, -0.28449672
    %v2707 = vadd.f32 %v2705, -0.28449672
    %v2708 = vmul.f32 %v2693, %v2706
    %v2709 = vmul.f32 %v2695, %v2707
    %v2710 = vadd.f32 %v2708, 0.2548296
    %v2711 = vadd.f32 %v2709, 0.2548296
    %v2712 = vmul.f32 %v2693, %v2710
    %v2713 = vmul.f32 %v2695, %v2711
    %v2714 = vsub.f32 0.0, %v2686
    %v2715 = vsub.f32 0.0, %v2687
    %v2716 = vmul.f32 %v2714, %v2686
    %v2717 = vmul.f32 %v2715, %v2687
    %v2718 = vmul.f32 %v2716, 1.442695
    %v2719 = vpow.pop %v2718
    %v2720 = vmul.f32 %v2717, 1.442695
    %v2721 = vpow.pop %v2720
    %v2722 = vmul.f32 %v2712, %v2719
    %v2723 = vmul.f32 %v2713, %v2721
    %v2724 = vsub.f32 1.0, %v2722
    %v2725 = vsub.f32 1.0, %v2723
    %vm2726 = vcmp.ge.f32.partialorder %v2684, 0.0
    %vm2727 = vcmp.ge.f32.partialorder %v2685, 0.0
    %v2728 = vsub.f32 0.0, %v2724
    %v2729 = vsub.f32 0.0, %v2725
    %v2730 = vsel %vm2726, %v2724, %v2728
    %v2731 = vsel %vm2727, %v2725, %v2729
    %v2732 = vmul.f32 %v2676, 0.5
    %v2733 = vmul.f32 %v2681, 0.5
    %v2734 = vadd.f32 %v2730, 1.0
    %v2735 = vadd.f32 %v2731, 1.0
    %v2736 = vmul.f32 %v2732, %v2734
    %v2737 = vmul.f32 %v2733, %v2735
    %v2738 = vld [vmem:[%s20] sm:$0xff]
    %v2739 = vld [vmem:[%s20 + $0x8] sm:$0xff]
    %v2740 = vld [vmem:[%s20 + $0x10] sm:$0xff]
    %v2741 = vld [vmem:[%s20 + $0x18] sm:$0xff]
    %v2742 = vld [vmem:[%s21] sm:$0x1]
    %v2744 = vlaneseq
    %v2745 = vshrl.u32 %v2744, 7
    %v2746 = vsub.s32 0, %v2745
    %v2747 = vrot.slane %v2742, %v2746
    %v2750 = vsel %vm1174, %v2736, 0
    %v2753 = vsel %vm1174, %v2737, 0
    %2755 = vmatprep.subr.mxu0 0.0
    %2756 = vmatpush1.msra.mxu0 %v2738
    %2757 = vmatprep.subr.mxu0 0.0
    %2758 = vmatpush1.msra.mxu0 %v2739
    %2759 = vmatprep.subr.mxu0 0.0
    %2760 = vmatpush1.msra.mxu0 %v2740
    %2761 = vmatprep.subr.mxu0 0.0
    %2762 = vmatpush1.msra.mxu0 %v2741
    %2763 = vmatprep.subr.mxu0 0.0
    %2764 = vmatpush1.msra.mxu0 0.0
    %2765 = vmatprep.subr.mxu0 0.0
    %2766 = vmatpush1.msra.mxu0 0.0
    %2767 = vmatprep.subr.mxu0 0.0
    %2768 = vmatpush1.msra.mxu0 0.0
    %2769 = vmatprep.subr.mxu0 0.0
    %2770 = vmatpush1.msra.mxu0 0.0
    %2771 = vmatprep.subr.mxu0 0.0
    %2772 = vmatpush1.msra.mxu0 0.0
    %2773 = vmatprep.subr.mxu0 0.0
    %2774 = vmatpush1.msra.mxu0 0.0
    %2775 = vmatprep.subr.mxu0 0.0
    %2776 = vmatpush1.msra.mxu0 0.0
    %2777 = vmatprep.subr.mxu0 0.0
    %2778 = vmatpush1.msra.mxu0 0.0
    %2779 = vmatprep.subr.mxu0 0.0
    %2780 = vmatpush1.msra.mxu0 0.0
    %2781 = vmatprep.subr.mxu0 0.0
    %2782 = vmatpush1.msra.mxu0 0.0
    %2783 = vmatprep.subr.mxu0 0.0
    %2784 = vmatpush1.msra.mxu0 0.0
    %2785 = vmatprep.subr.mxu0 0.0
    %2786 = vmatpush1.msra.mxu0 0.0
    %2787 = vmatprep.subr.mxu0 0.0
    %2788 = vmatpush1.msra.mxu0 0.0
    %2789 = vmatprep.subr.mxu0 0.0
    %2790 = vmatpush1.msra.mxu0 0.0
    %2791 = vmatprep.subr.mxu0 0.0
    %2792 = vmatpush1.msra.mxu0 0.0
    %2793 = vmatprep.subr.mxu0 0.0
    %2794 = vmatpush1.msra.mxu0 0.0
    %2795 = vmatprep.subr.mxu0 0.0
    %2796 = vmatpush1.msra.mxu0 0.0
    %2797 = vmatprep.subr.mxu0 0.0
    %2798 = vmatpush1.msra.mxu0 0.0
    %2799 = vmatprep.subr.mxu0 0.0
    %2800 = vmatpush1.msra.mxu0 0.0
    %2801 = vmatprep.subr.mxu0 0.0
    %2802 = vmatpush1.msra.mxu0 0.0
    %2803 = vmatprep.subr.mxu0 0.0
    %2804 = vmatpush1.msra.mxu0 0.0
    %2805 = vmatprep.subr.mxu0 0.0
    %2806 = vmatpush1.msra.mxu0 0.0
    %2807 = vmatprep.subr.mxu0 0.0
    %2808 = vmatpush1.msra.mxu0 0.0
    %2809 = vmatprep.subr.mxu0 0.0
    %2810 = vmatpush1.msra.mxu0 0.0
    %2811 = vmatprep.subr.mxu0 0.0
    %2812 = vmatpush1.msra.mxu0 0.0
    %2813 = vmatprep.subr.mxu0 0.0
    %2814 = vmatpush1.msra.mxu0 0.0
    %2815 = vmatprep.subr.mxu0 0.0
    %2816 = vmatpush1.msra.mxu0 0.0
    %2817 = vmatprep.subr.mxu0 0.0
    %2818 = vmatpush1.msra.mxu0 0.0
    %2819 = vmatprep.mubr.f32.mxu0 0.0
    %2820 = vmatmul.mubr.f32.gmra.mrb[0].mxu0 %v2750
    %v2821 = vpop.f32.mrb[0].mxu0
    %v2822 = vadd.f32 %v2747, %v2821
    %v2823 = vpop.f32.mrb[0].mxu0
    %2824 = vmatprep.mubr.f32.mxu0 0.0
    %2825 = vmatmul.mubr.f32.gmra.mrb[0].mxu0 %v2753
    %v2826 = vpop.f32.mrb[0].mxu0
    %v2827 = vadd.f32 %v2747, %v2826
    %v2828 = vpop.f32.mrb[0].mxu0
    %2829 = vdwg.mxu0
    %v2830 = vadd.f32 %v2548, %v2822
    %v2831 = vadd.f32 %v2549, %v2827
    %s2832 = scalar_lea.vmem %s6, 1
    %v2833 = vld [vmem:[%s2832] sm:$0x1]
    %s2834 = scalar_lea.vmem %s7, 1
    %v2835 = vld [vmem:[%s2834] sm:$0x1]
    %v2836 = vsel %vm978, %v2830, 0.0
    %2837 = vadd.xlane.f32.xlu0 %v2836
    %v2838 = vpop.xlane.xlu0 %2837
    %v2839 = vsel %vm978, %v2831, 0.0
    %2840 = vadd.xlane.f32.xlu0 %v2839
    %v2841 = vpop.xlane.xlu0 %2840
    %v2842 = vmul.f32 %v2838, %v985
    %v2843 = vmul.f32 %v2841, %v985
    %v2844 = vsub.f32 %v2830, %v2842
    %v2845 = vsub.f32 %v2831, %v2843
    %v2846 = vmul.f32 %v2844, %v2844
    %v2847 = vmul.f32 %v2845, %v2845
    %v2848 = vsel %vm978, %v2846, 0.0
    %2849 = vadd.xlane.f32.xlu0 %v2848
    %v2850 = vpop.xlane.xlu0 %2849
    %v2851 = vsel %vm978, %v2847, 0.0
    %2852 = vadd.xlane.f32.xlu0 %v2851
    %v2853 = vpop.xlane.xlu0 %2852
    %v2854 = vmul.f32 %v2850, %v985
    %v2855 = vmul.f32 %v2853, %v985
    %v2856 = vadd.f32 %v2854, 1e-05
    %v2857 = vadd.f32 %v2855, 1e-05
    %v2858 = vrsqrt.pop %v2856
    %v2859 = vrsqrt.pop %v2857
    %v2860 = vmul.f32 %v2844, %v2858
    %v2861 = vmul.f32 %v2845, %v2859
    %v2863 = vlaneseq
    %v2864 = vshrl.u32 %v2863, 7
    %v2865 = vsub.s32 0, %v2864
    %v2866 = vrot.slane %v2833, %v2865
    %v2868 = vmul.f32 %v2860, %v2866
    %v2869 = vmul.f32 %v2861, %v2866
    %v2871 = vlaneseq
    %v2872 = vshrl.u32 %v2871, 7
    %v2873 = vsub.s32 0, %v2872
    %v2874 = vrot.slane %v2835, %v2873
    %v2876 = vadd.f32 %v2868, %v2874
    %v2877 = vadd.f32 %v2869, %v2874
    %2878 = vst.msk [vmem:[#allocation2 + $0x2] sm:$0x3f] %vm1022, %v2876
    %2880 = vrot.lane.b32.xlu0 %v2876, 16
    %v2881 = vpop.permute.xlu0 %2880
    %2883 = vst.msk [vmem:[#allocation2 + $0x1] sm:$0x7f] %vm1028, %v2881
    %2884 = vrot.lane.b32.xlu0 %v2876, 32
    %v2885 = vpop.permute.xlu0 %2884
    %2887 = vst.msk [vmem:[#allocation2] sm:$0xff] %vm1033, %v2885
    %2888 = vrot.lane.b32.xlu0 %v2876, 48
    %v2889 = vpop.permute.xlu0 %2888
    %2891 = vst.msk [vmem:[#allocation2 - $0x1] sm:$0xfe] %vm1038, %v2889
    %2892 = vrot.lane.b32.xlu0 %v2876, 64
    %v2893 = vpop.permute.xlu0 %2892
    %2895 = vst.msk [vmem:[#allocation2 - $0x2] sm:$0xfc] %vm1043, %v2893
    %2896 = vst.msk [vmem:[#allocation2 + $0xa] sm:$0x3f] %vm1022, %v2877
    %2898 = vrot.lane.b32.xlu0 %v2877, 16
    %v2899 = vpop.permute.xlu0 %2898
    %2901 = vst.msk [vmem:[#allocation2 + $0x9] sm:$0x7f] %vm1028, %v2899
    %2902 = vrot.lane.b32.xlu0 %v2877, 32
    %v2903 = vpop.permute.xlu0 %2902
    %2905 = vst.msk [vmem:[#allocation2 + $0x8] sm:$0xff] %vm1033, %v2903
    %2906 = vrot.lane.b32.xlu0 %v2877, 48
    %v2907 = vpop.permute.xlu0 %2906
    %2909 = vst.msk [vmem:[#allocation2 + $0x7] sm:$0xfe] %vm1038, %v2907
    %2910 = vrot.lane.b32.xlu0 %v2877, 64
    %v2911 = vpop.permute.xlu0 %2910
    %2913 = vst.msk [vmem:[#allocation2 + $0x6] sm:$0xfc] %vm1043, %v2911
    %v2914 = vld [vmem:[#allocation2] sm:$0xff]
    %v2915 = vld [vmem:[#allocation2 + $0x8] sm:$0xff]
    %s2916 = scalar_lea.vmem %s8, 80
    %v2917 = vld [vmem:[%s2916] sm:$0xff]
    %v2918 = vld [vmem:[%s2916 + $0x8] sm:$0xff]
    %v2919 = vld [vmem:[%s2916 + $0x10] sm:$0xff]
    %v2920 = vld [vmem:[%s2916 + $0x18] sm:$0xff]
    %v2921 = vld [vmem:[%s2916 + $0x20] sm:$0xff]
    %v2922 = vld [vmem:[%s2916 + $0x28] sm:$0xff]
    %v2923 = vld [vmem:[%s2916 + $0x30] sm:$0xff]
    %v2924 = vld [vmem:[%s2916 + $0x38] sm:$0xff]
    %v2925 = vld [vmem:[%s2916 + $0x40] sm:$0xff]
    %v2926 = vld [vmem:[%s2916 + $0x48] sm:$0xff]
    %s2927 = scalar_lea.vmem %s9, 1
    %v2928 = vld [vmem:[%s2927] sm:$0x1]
    %v2930 = vlaneseq
    %v2931 = vshrl.u32 %v2930, 7
    %v2932 = vsub.s32 0, %v2931
    %v2933 = vrot.slane %v2928, %v2932
    %v2936 = vsel %vm973, %v2914, 0
    %v2939 = vsel %vm973, %v2915, 0
    %2941 = vmatprep.subr.mxu0 0.0
    %2942 = vmatpush1.msra.mxu0 %v2917
    %2943 = vmatprep.subr.mxu0 0.0
    %2944 = vmatpush1.msra.mxu0 %v2918
    %2945 = vmatprep.subr.mxu0 0.0
    %2946 = vmatpush1.msra.mxu0 %v2919
    %2947 = vmatprep.subr.mxu0 0.0
    %2948 = vmatpush1.msra.mxu0 %v2920
    %2949 = vmatprep.subr.mxu0 0.0
    %2950 = vmatpush1.msra.mxu0 %v2921
    %2951 = vmatprep.subr.mxu0 0.0
    %2952 = vmatpush1.msra.mxu0 %v2922
    %2953 = vmatprep.subr.mxu0 0.0
    %2954 = vmatpush1.msra.mxu0 %v2923
    %2955 = vmatprep.subr.mxu0 0.0
    %2956 = vmatpush1.msra.mxu0 %v2924
    %2957 = vmatprep.subr.mxu0 0.0
    %2958 = vmatpush1.msra.mxu0 %v2925
    %2959 = vmatprep.subr.mxu0 0.0
    %2960 = vmatpush1.msra.mxu0 %v2926
    %2961 = vmatprep.subr.mxu0 0.0
    %2962 = vmatpush1.msra.mxu0 0.0
    %2963 = vmatprep.subr.mxu0 0.0
    %2964 = vmatpush1.msra.mxu0 0.0
    %2965 = vmatprep.subr.mxu0 0.0
    %2966 = vmatpush1.msra.mxu0 0.0
    %2967 = vmatprep.subr.mxu0 0.0
    %2968 = vmatpush1.msra.mxu0 0.0
    %2969 = vmatprep.subr.mxu0 0.0
    %2970 = vmatpush1.msra.mxu0 0.0
    %2971 = vmatprep.subr.mxu0 0.0
    %2972 = vmatpush1.msra.mxu0 0.0
    %2973 = vmatprep.subr.mxu0 0.0
    %2974 = vmatpush1.msra.mxu0 0.0
    %2975 = vmatprep.subr.mxu0 0.0
    %2976 = vmatpush1.msra.mxu0 0.0
    %2977 = vmatprep.subr.mxu0 0.0
    %2978 = vmatpush1.msra.mxu0 0.0
    %2979 = vmatprep.subr.mxu0 0.0
    %2980 = vmatpush1.msra.mxu0 0.0
    %2981 = vmatprep.subr.mxu0 0.0
    %2982 = vmatpush1.msra.mxu0 0.0
    %2983 = vmatprep.subr.mxu0 0.0
    %2984 = vmatpush1.msra.mxu0 0.0
    %2985 = vmatprep.subr.mxu0 0.0
    %2986 = vmatpush1.msra.mxu0 0.0
    %2987 = vmatprep.subr.mxu0 0.0
    %2988 = vmatpush1.msra.mxu0 0.0
    %2989 = vmatprep.subr.mxu0 0.0
    %2990 = vmatpush1.msra.mxu0 0.0
    %2991 = vmatprep.subr.mxu0 0.0
    %2992 = vmatpush1.msra.mxu0 0.0
    %2993 = vmatprep.subr.mxu0 0.0
    %2994 = vmatpush1.msra.mxu0 0.0
    %2995 = vmatprep.subr.mxu0 0.0
    %2996 = vmatpush1.msra.mxu0 0.0
    %2997 = vmatprep.subr.mxu0 0.0
    %2998 = vmatpush1.msra.mxu0 0.0
    %2999 = vmatprep.subr.mxu0 0.0
    %3000 = vmatpush1.msra.mxu0 0.0
    %3001 = vmatprep.subr.mxu0 0.0
    %3002 = vmatpush1.msra.mxu0 0.0
    %3003 = vmatprep.subr.mxu0 0.0
    %3004 = vmatpush1.msra.mxu0 0.0
    %3005 = vmatprep.mubr.f32.mxu0 0.0
    %3006 = vmatmul.mubr.f32.gmra.mrb[0].mxu0 %v2936
    %v3007 = vpop.f32.mrb[0].mxu0
    %v3008 = vadd.f32 %v2933, %v3007
    %v3009 = vpop.f32.mrb[0].mxu0
    %3010 = vmatprep.mubr.f32.mxu0 0.0
    %3011 = vmatmul.mubr.f32.gmra.mrb[0].mxu0 %v2939
    %v3012 = vpop.f32.mrb[0].mxu0
    %v3013 = vadd.f32 %v2933, %v3012
    %v3014 = vpop.f32.mrb[0].mxu0
    %3015 = vdwg.mxu0
    %s3016 = scalar_lea.vmem %s12, 32
    %v3017 = vld [vmem:[%s3016] sm:$0xff]
    %v3018 = vld [vmem:[%s3016 + $0x8] sm:$0xff]
    %v3019 = vld [vmem:[%s3016 + $0x10] sm:$0xff]
    %v3020 = vld [vmem:[%s3016 + $0x18] sm:$0xff]
    %s3021 = scalar_lea.vmem %s13, 1
    %v3022 = vld [vmem:[%s3021] sm:$0x1]
    %v3024 = vlaneseq
    %v3025 = vshrl.u32 %v3024, 7
    %v3026 = vsub.s32 0, %v3025
    %v3027 = vrot.slane %v3022, %v3026
    %v3030 = vsel %vm1174, %v3008, 0
    %v3033 = vsel %vm1174, %v3013, 0
    %3035 = vmatprep.subr.mxu0 0.0
    %3036 = vmatpush1.msra.mxu0 %v3017
    %3037 = vmatprep.subr.mxu0 0.0
    %3038 = vmatpush1.msra.mxu0 %v3018
    %3039 = vmatprep.subr.mxu0 0.0
    %3040 = vmatpush1.msra.mxu0 %v3019
    %3041 = vmatprep.subr.mxu0 0.0
    %3042 = vmatpush1.msra.mxu0 %v3020
    %3043 = vmatprep.subr.mxu0 0.0
    %3044 = vmatpush1.msra.mxu0 0.0
    %3045 = vmatprep.subr.mxu0 0.0
    %3046 = vmatpush1.msra.mxu0 0.0
    %3047 = vmatprep.subr.mxu0 0.0
    %3048 = vmatpush1.msra.mxu0 0.0
    %3049 = vmatprep.subr.mxu0 0.0
    %3050 = vmatpush1.msra.mxu0 0.0
    %3051 = vmatprep.subr.mxu0 0.0
    %3052 = vmatpush1.msra.mxu0 0.0
    %3053 = vmatprep.subr.mxu0 0.0
    %3054 = vmatpush1.msra.mxu0 0.0
    %3055 = vmatprep.subr.mxu0 0.0
    %3056 = vmatpush1.msra.mxu0 0.0
    %3057 = vmatprep.subr.mxu0 0.0
    %3058 = vmatpush1.msra.mxu0 0.0
    %3059 = vmatprep.subr.mxu0 0.0
    %3060 = vmatpush1.msra.mxu0 0.0
    %3061 = vmatprep.subr.mxu0 0.0
    %3062 = vmatpush1.msra.mxu0 0.0
    %3063 = vmatprep.subr.mxu0 0.0
    %3064 = vmatpush1.msra.mxu0 0.0
    %3065 = vmatprep.subr.mxu0 0.0
    %3066 = vmatpush1.msra.mxu0 0.0
    %3067 = vmatprep.subr.mxu0 0.0
    %3068 = vmatpush1.msra.mxu0 0.0
    %3069 = vmatprep.subr.mxu0 0.0
    %3070 = vmatpush1.msra.mxu0 0.0
    %3071 = vmatprep.subr.mxu0 0.0
    %3072 = vmatpush1.msra.mxu0 0.0
    %3073 = vmatprep.subr.mxu0 0.0
    %3074 = vmatpush1.msra.mxu0 0.0
    %3075 = vmatprep.subr.mxu0 0.0
    %3076 = vmatpush1.msra.mxu0 0.0
    %3077 = vmatprep.subr.mxu0 0.0
    %3078 = vmatpush1.msra.mxu0 0.0
    %3079 = vmatprep.subr.mxu0 0.0
    %3080 = vmatpush1.msra.mxu0 0.0
    %3081 = vmatprep.subr.mxu0 0.0
    %3082 = vmatpush1.msra.mxu0 0.0
    %3083 = vmatprep.subr.mxu0 0.0
    %3084 = vmatpush1.msra.mxu0 0.0
    %3085 = vmatprep.subr.mxu0 0.0
    %3086 = vmatpush1.msra.mxu0 0.0
    %3087 = vmatprep.subr.mxu0 0.0
    %3088 = vmatpush1.msra.mxu0 0.0
    %3089 = vmatprep.subr.mxu0 0.0
    %3090 = vmatpush1.msra.mxu0 0.0
    %3091 = vmatprep.subr.mxu0 0.0
    %3092 = vmatpush1.msra.mxu0 0.0
    %3093 = vmatprep.subr.mxu0 0.0
    %3094 = vmatpush1.msra.mxu0 0.0
    %3095 = vmatprep.subr.mxu0 0.0
    %3096 = vmatpush1.msra.mxu0 0.0
    %3097 = vmatprep.subr.mxu0 0.0
    %3098 = vmatpush1.msra.mxu0 0.0
    %3099 = vmatprep.mubr.f32.mxu0 0.0
    %3100 = vmatmul.mubr.f32.gmra.mrb[0].mxu0 %v3030
    %v3101 = vpop.f32.mrb[0].mxu0
    %v3102 = vadd.f32 %v3027, %v3101
    %v3103 = vpop.f32.mrb[0].mxu0
    %3104 = vmatprep.mubr.f32.mxu0 0.0
    %3105 = vmatmul.mubr.f32.gmra.mrb[0].mxu0 %v3033
    %v3106 = vpop.f32.mrb[0].mxu0
    %v3107 = vadd.f32 %v3027, %v3106
    %v3108 = vpop.f32.mrb[0].mxu0
    %3109 = vdwg.mxu0
    %s3110 = scalar_lea.vmem %s10, 16
    %v3111 = vld [vmem:[%s3110] sm:$0xff]
    %v3112 = vld [vmem:[%s3110 + $0x8] sm:$0xff]
    %s3113 = scalar_lea.vmem %s11, 1
    %v3114 = vld [vmem:[%s3113] sm:$0x1]
    %v3116 = vlaneseq
    %v3117 = vshrl.u32 %v3116, 7
    %v3118 = vsub.s32 0, %v3117
    %v3119 = vrot.slane %v3114, %v3118
    %v3121 = vsel %vm978, %v2876, 0
    %v3123 = vsel %vm978, %v2877, 0
    %3125 = vmatprep.subr.mxu0 0.0
    %3126 = vmatpush1.msra.mxu0 %v3111
    %3127 = vmatprep.subr.mxu0 0.0
    %3128 = vmatpush1.msra.mxu0 %v3112
    %3129 = vmatprep.subr.mxu0 0.0
    %3130 = vmatpush1.msra.mxu0 0.0
    %3131 = vmatprep.subr.mxu0 0.0
    %3132 = vmatpush1.msra.mxu0 0.0
    %3133 = vmatprep.subr.mxu0 0.0
    %3134 = vmatpush1.msra.mxu0 0.0
    %3135 = vmatprep.subr.mxu0 0.0
    %3136 = vmatpush1.msra.mxu0 0.0
    %3137 = vmatprep.subr.mxu0 0.0
    %3138 = vmatpush1.msra.mxu0 0.0
    %3139 = vmatprep.subr.mxu0 0.0
    %3140 = vmatpush1.msra.mxu0 0.0
    %3141 = vmatprep.subr.mxu0 0.0
    %3142 = vmatpush1.msra.mxu0 0.0
    %3143 = vmatprep.subr.mxu0 0.0
    %3144 = vmatpush1.msra.mxu0 0.0
    %3145 = vmatprep.subr.mxu0 0.0
    %3146 = vmatpush1.msra.mxu0 0.0
    %3147 = vmatprep.subr.mxu0 0.0
    %3148 = vmatpush1.msra.mxu0 0.0
    %3149 = vmatprep.subr.mxu0 0.0
    %3150 = vmatpush1.msra.mxu0 0.0
    %3151 = vmatprep.subr.mxu0 0.0
    %3152 = vmatpush1.msra.mxu0 0.0
    %3153 = vmatprep.subr.mxu0 0.0
    %3154 = vmatpush1.msra.mxu0 0.0
    %3155 = vmatprep.subr.mxu0 0.0
    %3156 = vmatpush1.msra.mxu0 0.0
    %3157 = vmatprep.subr.mxu0 0.0
    %3158 = vmatpush1.msra.mxu0 0.0
    %3159 = vmatprep.subr.mxu0 0.0
    %3160 = vmatpush1.msra.mxu0 0.0
    %3161 = vmatprep.subr.mxu0 0.0
    %3162 = vmatpush1.msra.mxu0 0.0
    %3163 = vmatprep.subr.mxu0 0.0
    %3164 = vmatpush1.msra.mxu0 0.0
    %3165 = vmatprep.subr.mxu0 0.0
    %3166 = vmatpush1.msra.mxu0 0.0
    %3167 = vmatprep.subr.mxu0 0.0
    %3168 = vmatpush1.msra.mxu0 0.0
    %3169 = vmatprep.subr.mxu0 0.0
    %3170 = vmatpush1.msra.mxu0 0.0
    %3171 = vmatprep.subr.mxu0 0.0
    %3172 = vmatpush1.msra.mxu0 0.0
    %3173 = vmatprep.subr.mxu0 0.0
    %3174 = vmatpush1.msra.mxu0 0.0
    %3175 = vmatprep.subr.mxu0 0.0
    %3176 = vmatpush1.msra.mxu0 0.0
    %3177 = vmatprep.subr.mxu0 0.0
    %3178 = vmatpush1.msra.mxu0 0.0
    %3179 = vmatprep.subr.mxu0 0.0
    %3180 = vmatpush1.msra.mxu0 0.0
    %3181 = vmatprep.subr.mxu0 0.0
    %3182 = vmatpush1.msra.mxu0 0.0
    %3183 = vmatprep.subr.mxu0 0.0
    %3184 = vmatpush1.msra.mxu0 0.0
    %3185 = vmatprep.subr.mxu0 0.0
    %3186 = vmatpush1.msra.mxu0 0.0
    %3187 = vmatprep.subr.mxu0 0.0
    %3188 = vmatpush1.msra.mxu0 0.0
    %3189 = vmatprep.mubr.f32.mxu0 0.0
    %3190 = vmatmul.mubr.f32.gmra.mrb[0].mxu0 %v3121
    %v3191 = vpop.f32.mrb[0].mxu0
    %v3192 = vadd.f32 %v3119, %v3191
    %v3193 = vpop.f32.mrb[0].mxu0
    %3194 = vmatprep.mubr.f32.mxu0 0.0
    %3195 = vmatmul.mubr.f32.gmra.mrb[0].mxu0 %v3123
    %v3196 = vpop.f32.mrb[0].mxu0
    %v3197 = vadd.f32 %v3119, %v3196
    %v3198 = vpop.f32.mrb[0].mxu0
    %3199 = vdwg.mxu0
    %v3200 = vmul.f32 %v3192, 0.5
    %v3201 = vmul.f32 %v3197, 0.5
    %3203 = vrot.lane.b32.xlu0 %v3192, 112
    %v3204 = vpop.permute.xlu0 %3203
    %v3205 = vmul.f32 %v3200, %v84
    %v3206 = vmul.f32 %v3200, %v89
    %v3207 = vmul.f32 %v3200, %v94
    %v3208 = vmul.f32 %v3200, %v99
    %v3210 = vsel %vm978, %v3205, 0
    %v3213 = vsel %vm978, %v3206, 0
    %v3216 = vsel %vm978, %v3207, 0
    %v3219 = vsel %vm978, %v3208, 0
    %v3222 = vsel %vm978, %v3102, 0
    %v3224 = vsel %vm978, %v3204, 0
    %3226 = vmatprep.subr.mxu0 0.0
    %3227 = vmatpush1.xpose.msra.mxu0 %v3222
    %3228 = vmatprep.subr.mxu0 0.0
    %3229 = vmatpush1.xpose.msra.mxu0 %v3224
    %3230 = vmatprep.subr.mxu0 0.0
    %3231 = vmatpush1.xpose.msra.mxu0 0.0
    %3232 = vmatprep.subr.mxu0 0.0
    %3233 = vmatpush1.xpose.msra.mxu0 0.0
    %3234 = vmatprep.subr.mxu0 0.0
    %3235 = vmatpush1.xpose.msra.mxu0 0.0
    %3236 = vmatprep.subr.mxu0 0.0
    %3237 = vmatpush1.xpose.msra.mxu0 0.0
    %3238 = vmatprep.subr.mxu0 0.0
    %3239 = vmatpush1.xpose.msra.mxu0 0.0
    %3240 = vmatprep.subr.mxu0 0.0
    %3241 = vmatpush1.xpose.msra.mxu0 0.0
    %3242 = vmatprep.subr.mxu0 0.0
    %3243 = vmatpush1.xpose.msra.mxu0 0.0
    %3244 = vmatprep.subr.mxu0 0.0
    %3245 = vmatpush1.xpose.msra.mxu0 0.0
    %3246 = vmatprep.subr.mxu0 0.0
    %3247 = vmatpush1.xpose.msra.mxu0 0.0
    %3248 = vmatprep.subr.mxu0 0.0
    %3249 = vmatpush1.xpose.msra.mxu0 0.0
    %3250 = vmatprep.subr.mxu0 0.0
    %3251 = vmatpush1.xpose.msra.mxu0 0.0
    %3252 = vmatprep.subr.mxu0 0.0
    %3253 = vmatpush1.xpose.msra.mxu0 0.0
    %3254 = vmatprep.subr.mxu0 0.0
    %3255 = vmatpush1.xpose.msra.mxu0 0.0
    %3256 = vmatprep.subr.mxu0 0.0
    %3257 = vmatpush1.xpose.msra.mxu0 0.0
    %3258 = vmatprep.subr.mxu0 0.0
    %3259 = vmatpush1.xpose.msra.mxu0 0.0
    %3260 = vmatprep.subr.mxu0 0.0
    %3261 = vmatpush1.xpose.msra.mxu0 0.0
    %3262 = vmatprep.subr.mxu0 0.0
    %3263 = vmatpush1.xpose.msra.mxu0 0.0
    %3264 = vmatprep.subr.mxu0 0.0
    %3265 = vmatpush1.xpose.msra.mxu0 0.0
    %3266 = vmatprep.subr.mxu0 0.0
    %3267 = vmatpush1.xpose.msra.mxu0 0.0
    %3268 = vmatprep.subr.mxu0 0.0
    %3269 = vmatpush1.xpose.msra.mxu0 0.0
    %3270 = vmatprep.subr.mxu0 0.0
    %3271 = vmatpush1.xpose.msra.mxu0 0.0
    %3272 = vmatprep.subr.mxu0 0.0
    %3273 = vmatpush1.xpose.msra.mxu0 0.0
    %3274 = vmatprep.subr.mxu0 0.0
    %3275 = vmatpush1.xpose.msra.mxu0 0.0
    %3276 = vmatprep.subr.mxu0 0.0
    %3277 = vmatpush1.xpose.msra.mxu0 0.0
    %3278 = vmatprep.subr.mxu0 0.0
    %3279 = vmatpush1.xpose.msra.mxu0 0.0
    %3280 = vmatprep.subr.mxu0 0.0
    %3281 = vmatpush1.xpose.msra.mxu0 0.0
    %3282 = vmatprep.subr.mxu0 0.0
    %3283 = vmatpush1.xpose.msra.mxu0 0.0
    %3284 = vmatprep.subr.mxu0 0.0
    %3285 = vmatpush1.xpose.msra.mxu0 0.0
    %3286 = vmatprep.subr.mxu0 0.0
    %3287 = vmatpush1.xpose.msra.mxu0 0.0
    %3288 = vmatprep.subr.mxu0 0.0
    %3289 = vmatpush1.xpose.msra.mxu0 0.0
    %3290 = vmatprep.mubr.f32.mxu0 0.0
    %3291 = vmatmul.mubr.f32.gmra.mrb[0].mxu0 %v3210
    %v3292 = vpop.f32.mrb[0].mxu0
    %v3293 = vadd.f32 0.0, %v3292
    %v3294 = vpop.f32.mrb[0].mxu0
    %3295 = vmatprep.mubr.f32.mxu0 0.0
    %3296 = vmatmul.mubr.f32.gmra.mrb[0].mxu0 %v3213
    %v3297 = vpop.f32.mrb[0].mxu0
    %v3298 = vadd.f32 0.0, %v3297
    %v3299 = vpop.f32.mrb[0].mxu0
    %3300 = vmatprep.mubr.f32.mxu0 0.0
    %3301 = vmatmul.mubr.f32.gmra.mrb[0].mxu0 %v3216
    %v3302 = vpop.f32.mrb[0].mxu0
    %v3303 = vadd.f32 0.0, %v3302
    %v3304 = vpop.f32.mrb[0].mxu0
    %3305 = vmatprep.mubr.f32.mxu0 0.0
    %3306 = vmatmul.mubr.f32.gmra.mrb[0].mxu0 %v3219
    %v3307 = vpop.f32.mrb[0].mxu0
    %v3308 = vadd.f32 0.0, %v3307
    %v3309 = vpop.f32.mrb[0].mxu0
    %3310 = vdwg.mxu0
    %v3311 = vsel %vm1455, %v3293, -inf
    %3312 = vmax.xlane.f32.xlu0 %v3311
    %v3313 = vpop.xlane.xlu0 %3312
    %v3314 = vsel %vm1455, %v3298, -inf
    %3315 = vmax.xlane.f32.xlu0 %v3314
    %v3316 = vpop.xlane.xlu0 %3315
    %v3317 = vsel %vm1455, %v3303, -inf
    %3318 = vmax.xlane.f32.xlu0 %v3317
    %v3319 = vpop.xlane.xlu0 %3318
    %v3320 = vsel %vm1455, %v3308, -inf
    %3321 = vmax.xlane.f32.xlu0 %v3320
    %v3322 = vpop.xlane.xlu0 %3321
    %v3323 = vsub.f32 %v3293, %v3313
    %v3324 = vsub.f32 %v3298, %v3316
    %v3325 = vsub.f32 %v3303, %v3319
    %v3326 = vsub.f32 %v3308, %v3322
    %v3327 = vmul.f32 %v3323, 1.442695
    %v3328 = vpow.pop %v3327
    %v3329 = vmul.f32 %v3324, 1.442695
    %v3330 = vpow.pop %v3329
    %v3331 = vmul.f32 %v3325, 1.442695
    %v3332 = vpow.pop %v3331
    %v3333 = vmul.f32 %v3326, 1.442695
    %v3334 = vpow.pop %v3333
    %v3335 = vsel %vm1455, %v3328, 0.0
    %3336 = vadd.xlane.f32.xlu0 %v3335
    %v3337 = vpop.xlane.xlu0 %3336
    %v3338 = vsel %vm1455, %v3330, 0.0
    %3339 = vadd.xlane.f32.xlu0 %v3338
    %v3340 = vpop.xlane.xlu0 %3339
    %v3341 = vsel %vm1455, %v3332, 0.0
    %3342 = vadd.xlane.f32.xlu0 %v3341
    %v3343 = vpop.xlane.xlu0 %3342
    %v3344 = vsel %vm1455, %v3334, 0.0
    %3345 = vadd.xlane.f32.xlu0 %v3344
    %v3346 = vpop.xlane.xlu0 %3345
    %v3347 = vrcp.pop %v3337
    %v3348 = vmul.f32 %v3328, %v3347
    %v3349 = vrcp.pop %v3340
    %v3350 = vmul.f32 %v3330, %v3349
    %v3351 = vrcp.pop %v3343
    %v3352 = vmul.f32 %v3332, %v3351
    %v3353 = vrcp.pop %v3346
    %v3354 = vmul.f32 %v3334, %v3353
    %v3355 = vsel %vm1500, %v3293, -inf
    %3356 = vmax.xlane.f32.xlu0 %v3355
    %v3357 = vpop.xlane.xlu0 %3356
    %v3358 = vsel %vm1500, %v3298, -inf
    %3359 = vmax.xlane.f32.xlu0 %v3358
    %v3360 = vpop.xlane.xlu0 %3359
    %v3361 = vsel %vm1500, %v3303, -inf
    %3362 = vmax.xlane.f32.xlu0 %v3361
    %v3363 = vpop.xlane.xlu0 %3362
    %v3364 = vsel %vm1500, %v3308, -inf
    %3365 = vmax.xlane.f32.xlu0 %v3364
    %v3366 = vpop.xlane.xlu0 %3365
    %v3367 = vsub.f32 %v3293, %v3357
    %v3368 = vsub.f32 %v3298, %v3360
    %v3369 = vsub.f32 %v3303, %v3363
    %v3370 = vsub.f32 %v3308, %v3366
    %v3371 = vmul.f32 %v3367, 1.442695
    %v3372 = vpow.pop %v3371
    %v3373 = vmul.f32 %v3368, 1.442695
    %v3374 = vpow.pop %v3373
    %v3375 = vmul.f32 %v3369, 1.442695
    %v3376 = vpow.pop %v3375
    %v3377 = vmul.f32 %v3370, 1.442695
    %v3378 = vpow.pop %v3377
    %3383 = vrot.lane.b32.xlu0 %v3372, 120
    %v3384 = vpop.permute.xlu0 %3383
    %3385 = vrot.lane.b32.xlu0 %v3374, 120
    %v3386 = vpop.permute.xlu0 %3385
    %3387 = vrot.lane.b32.xlu0 %v3376, 120
    %v3388 = vpop.permute.xlu0 %3387
    %3389 = vrot.lane.b32.xlu0 %v3378, 120
    %v3390 = vpop.permute.xlu0 %3389
    %v3395 = vsel %vm1455, %v3384, 0.0
    %3396 = vadd.xlane.f32.xlu0 %v3395
    %v3397 = vpop.xlane.xlu0 %3396
    %v3398 = vsel %vm1455, %v3386, 0.0
    %3399 = vadd.xlane.f32.xlu0 %v3398
    %v3400 = vpop.xlane.xlu0 %3399
    %v3401 = vsel %vm1455, %v3388, 0.0
    %3402 = vadd.xlane.f32.xlu0 %v3401
    %v3403 = vpop.xlane.xlu0 %3402
    %v3404 = vsel %vm1455, %v3390, 0.0
    %3405 = vadd.xlane.f32.xlu0 %v3404
    %v3406 = vpop.xlane.xlu0 %3405
    %v3407 = vrcp.pop %v3397
    %v3408 = vmul.f32 %v3372, %v3407
    %v3409 = vrcp.pop %v3400
    %v3410 = vmul.f32 %v3374, %v3409
    %v3411 = vrcp.pop %v3403
    %v3412 = vmul.f32 %v3376, %v3411
    %v3413 = vrcp.pop %v3406
    %v3414 = vmul.f32 %v3378, %v3413
    %3419 = vrot.lane.b32.xlu0 %v3408, 120
    %v3420 = vpop.permute.xlu0 %3419
    %3421 = vrot.lane.b32.xlu0 %v3410, 120
    %v3422 = vpop.permute.xlu0 %3421
    %3423 = vrot.lane.b32.xlu0 %v3412, 120
    %v3424 = vpop.permute.xlu0 %3423
    %3425 = vrot.lane.b32.xlu0 %v3414, 120
    %v3426 = vpop.permute.xlu0 %3425
    %v3431 = vadd.f32 %v3348, %v3420
    %v3432 = vadd.f32 %v3350, %v3422
    %v3433 = vadd.f32 %v3352, %v3424
    %v3434 = vadd.f32 %v3354, %v3426
    %v3435 = vmul.f32 %v3192, %v1583
    %v3436 = vmul.f32 %v3192, %v1588
    %3438 = vrot.lane.b32.xlu0 %v3436, 96
    %v3439 = vpop.permute.xlu0 %3438
    %v3442 = vsel %vm1455, %v3432, 0
    %3444 = vmatprep.subr.mxu0 0.0
    %3445 = vmatpush1.msra.mxu0 %v3439
    %3446 = vmatprep.subr.mxu0 0.0
    %3447 = vmatpush1.msra.mxu0 0.0
    %3448 = vmatprep.subr.mxu0 0.0
    %3449 = vmatpush1.msra.mxu0 0.0
    %3450 = vmatprep.subr.mxu0 0.0
    %3451 = vmatpush1.msra.mxu0 0.0
    %3452 = vmatprep.subr.mxu0 0.0
    %3453 = vmatpush1.msra.mxu0 0.0
    %3454 = vmatprep.subr.mxu0 0.0
    %3455 = vmatpush1.msra.mxu0 0.0
    %3456 = vmatprep.subr.mxu0 0.0
    %3457 = vmatpush1.msra.mxu0 0.0
    %3458 = vmatprep.subr.mxu0 0.0
    %3459 = vmatpush1.msra.mxu0 0.0
    %3460 = vmatprep.subr.mxu0 0.0
    %3461 = vmatpush1.msra.mxu0 0.0
    %3462 = vmatprep.subr.mxu0 0.0
    %3463 = vmatpush1.msra.mxu0 0.0
    %3464 = vmatprep.subr.mxu0 0.0
    %3465 = vmatpush1.msra.mxu0 0.0
    %3466 = vmatprep.subr.mxu0 0.0
    %3467 = vmatpush1.msra.mxu0 0.0
    %3468 = vmatprep.subr.mxu0 0.0
    %3469 = vmatpush1.msra.mxu0 0.0
    %3470 = vmatprep.subr.mxu0 0.0
    %3471 = vmatpush1.msra.mxu0 0.0
    %3472 = vmatprep.subr.mxu0 0.0
    %3473 = vmatpush1.msra.mxu0 0.0
    %3474 = vmatprep.subr.mxu0 0.0
    %3475 = vmatpush1.msra.mxu0 0.0
    %3476 = vmatprep.subr.mxu0 0.0
    %3477 = vmatpush1.msra.mxu0 0.0
    %3478 = vmatprep.subr.mxu0 0.0
    %3479 = vmatpush1.msra.mxu0 0.0
    %3480 = vmatprep.subr.mxu0 0.0
    %3481 = vmatpush1.msra.mxu0 0.0
    %3482 = vmatprep.subr.mxu0 0.0
    %3483 = vmatpush1.msra.mxu0 0.0
    %3484 = vmatprep.subr.mxu0 0.0
    %3485 = vmatpush1.msra.mxu0 0.0
    %3486 = vmatprep.subr.mxu0 0.0
    %3487 = vmatpush1.msra.mxu0 0.0
    %3488 = vmatprep.subr.mxu0 0.0
    %3489 = vmatpush1.msra.mxu0 0.0
    %3490 = vmatprep.subr.mxu0 0.0
    %3491 = vmatpush1.msra.mxu0 0.0
    %3492 = vmatprep.subr.mxu0 0.0
    %3493 = vmatpush1.msra.mxu0 0.0
    %3494 = vmatprep.subr.mxu0 0.0
    %3495 = vmatpush1.msra.mxu0 0.0
    %3496 = vmatprep.subr.mxu0 0.0
    %3497 = vmatpush1.msra.mxu0 0.0
    %3498 = vmatprep.subr.mxu0 0.0
    %3499 = vmatpush1.msra.mxu0 0.0
    %3500 = vmatprep.subr.mxu0 0.0
    %3501 = vmatpush1.msra.mxu0 0.0
    %3502 = vmatprep.subr.mxu0 0.0
    %3503 = vmatpush1.msra.mxu0 0.0
    %3504 = vmatprep.subr.mxu0 0.0
    %3505 = vmatpush1.msra.mxu0 0.0
    %3506 = vmatprep.subr.mxu0 0.0
    %3507 = vmatpush1.msra.mxu0 0.0
    %3508 = vmatprep.mubr.f32.mxu0 0.0
    %3509 = vmatmul.mubr.f32.gmra.mrb[0].mxu0 %v3442
    %v3510 = vpop.f32.mrb[0].mxu0
    %v3511 = vadd.f32 0.0, %v3510
    %v3512 = vpop.f32.mrb[0].mxu0
    %3513 = vdwg.mxu0
    %3515 = vrot.lane.b32.xlu0 %v3435, 96
    %v3516 = vpop.permute.xlu0 %3515
    %v3519 = vsel %vm1455, %v3431, 0
    %3521 = vmatprep.subr.mxu0 0.0
    %3522 = vmatpush1.msra.mxu0 %v3516
    %3523 = vmatprep.subr.mxu0 0.0
    %3524 = vmatpush1.msra.mxu0 0.0
    %3525 = vmatprep.subr.mxu0 0.0
    %3526 = vmatpush1.msra.mxu0 0.0
    %3527 = vmatprep.subr.mxu0 0.0
    %3528 = vmatpush1.msra.mxu0 0.0
    %3529 = vmatprep.subr.mxu0 0.0
    %3530 = vmatpush1.msra.mxu0 0.0
    %3531 = vmatprep.subr.mxu0 0.0
    %3532 = vmatpush1.msra.mxu0 0.0
    %3533 = vmatprep.subr.mxu0 0.0
    %3534 = vmatpush1.msra.mxu0 0.0
    %3535 = vmatprep.subr.mxu0 0.0
    %3536 = vmatpush1.msra.mxu0 0.0
    %3537 = vmatprep.subr.mxu0 0.0
    %3538 = vmatpush1.msra.mxu0 0.0
    %3539 = vmatprep.subr.mxu0 0.0
    %3540 = vmatpush1.msra.mxu0 0.0
    %3541 = vmatprep.subr.mxu0 0.0
    %3542 = vmatpush1.msra.mxu0 0.0
    %3543 = vmatprep.subr.mxu0 0.0
    %3544 = vmatpush1.msra.mxu0 0.0
    %3545 = vmatprep.subr.mxu0 0.0
    %3546 = vmatpush1.msra.mxu0 0.0
    %3547 = vmatprep.subr.mxu0 0.0
    %3548 = vmatpush1.msra.mxu0 0.0
    %3549 = vmatprep.subr.mxu0 0.0
    %3550 = vmatpush1.msra.mxu0 0.0
    %3551 = vmatprep.subr.mxu0 0.0
    %3552 = vmatpush1.msra.mxu0 0.0
    %3553 = vmatprep.subr.mxu0 0.0
    %3554 = vmatpush1.msra.mxu0 0.0
    %3555 = vmatprep.subr.mxu0 0.0
    %3556 = vmatpush1.msra.mxu0 0.0
    %3557 = vmatprep.subr.mxu0 0.0
    %3558 = vmatpush1.msra.mxu0 0.0
    %3559 = vmatprep.subr.mxu0 0.0
    %3560 = vmatpush1.msra.mxu0 0.0
    %3561 = vmatprep.subr.mxu0 0.0
    %3562 = vmatpush1.msra.mxu0 0.0
    %3563 = vmatprep.subr.mxu0 0.0
    %3564 = vmatpush1.msra.mxu0 0.0
    %3565 = vmatprep.subr.mxu0 0.0
    %3566 = vmatpush1.msra.mxu0 0.0
    %3567 = vmatprep.subr.mxu0 0.0
    %3568 = vmatpush1.msra.mxu0 0.0
    %3569 = vmatprep.subr.mxu0 0.0
    %3570 = vmatpush1.msra.mxu0 0.0
    %3571 = vmatprep.subr.mxu0 0.0
    %3572 = vmatpush1.msra.mxu0 0.0
    %3573 = vmatprep.subr.mxu0 0.0
    %3574 = vmatpush1.msra.mxu0 0.0
    %3575 = vmatprep.subr.mxu0 0.0
    %3576 = vmatpush1.msra.mxu0 0.0
    %3577 = vmatprep.subr.mxu0 0.0
    %3578 = vmatpush1.msra.mxu0 0.0
    %3579 = vmatprep.subr.mxu0 0.0
    %3580 = vmatpush1.msra.mxu0 0.0
    %3581 = vmatprep.subr.mxu0 0.0
    %3582 = vmatpush1.msra.mxu0 0.0
    %3583 = vmatprep.subr.mxu0 0.0
    %3584 = vmatpush1.msra.mxu0 0.0
    %3585 = vmatprep.mubr.f32.mxu0 0.0
    %3586 = vmatmul.mubr.f32.gmra.mrb[0].mxu0 %v3519
    %v3587 = vpop.f32.mrb[0].mxu0
    %v3588 = vadd.f32 %v3511, %v3587
    %v3589 = vpop.f32.mrb[0].mxu0
    %3590 = vdwg.mxu0
    %v3591 = vmul.f32 %v3192, %v1747
    %3593 = vrot.lane.b32.xlu0 %v3591, 96
    %v3594 = vpop.permute.xlu0 %3593
    %v3597 = vsel %vm1455, %v3433, 0
    %3599 = vmatprep.subr.mxu0 0.0
    %3600 = vmatpush1.msra.mxu0 %v3594
    %3601 = vmatprep.subr.mxu0 0.0
    %3602 = vmatpush1.msra.mxu0 0.0
    %3603 = vmatprep.subr.mxu0 0.0
    %3604 = vmatpush1.msra.mxu0 0.0
    %3605 = vmatprep.subr.mxu0 0.0
    %3606 = vmatpush1.msra.mxu0 0.0
    %3607 = vmatprep.subr.mxu0 0.0
    %3608 = vmatpush1.msra.mxu0 0.0
    %3609 = vmatprep.subr.mxu0 0.0
    %3610 = vmatpush1.msra.mxu0 0.0
    %3611 = vmatprep.subr.mxu0 0.0
    %3612 = vmatpush1.msra.mxu0 0.0
    %3613 = vmatprep.subr.mxu0 0.0
    %3614 = vmatpush1.msra.mxu0 0.0
    %3615 = vmatprep.subr.mxu0 0.0
    %3616 = vmatpush1.msra.mxu0 0.0
    %3617 = vmatprep.subr.mxu0 0.0
    %3618 = vmatpush1.msra.mxu0 0.0
    %3619 = vmatprep.subr.mxu0 0.0
    %3620 = vmatpush1.msra.mxu0 0.0
    %3621 = vmatprep.subr.mxu0 0.0
    %3622 = vmatpush1.msra.mxu0 0.0
    %3623 = vmatprep.subr.mxu0 0.0
    %3624 = vmatpush1.msra.mxu0 0.0
    %3625 = vmatprep.subr.mxu0 0.0
    %3626 = vmatpush1.msra.mxu0 0.0
    %3627 = vmatprep.subr.mxu0 0.0
    %3628 = vmatpush1.msra.mxu0 0.0
    %3629 = vmatprep.subr.mxu0 0.0
    %3630 = vmatpush1.msra.mxu0 0.0
    %3631 = vmatprep.subr.mxu0 0.0
    %3632 = vmatpush1.msra.mxu0 0.0
    %3633 = vmatprep.subr.mxu0 0.0
    %3634 = vmatpush1.msra.mxu0 0.0
    %3635 = vmatprep.subr.mxu0 0.0
    %3636 = vmatpush1.msra.mxu0 0.0
    %3637 = vmatprep.subr.mxu0 0.0
    %3638 = vmatpush1.msra.mxu0 0.0
    %3639 = vmatprep.subr.mxu0 0.0
    %3640 = vmatpush1.msra.mxu0 0.0
    %3641 = vmatprep.subr.mxu0 0.0
    %3642 = vmatpush1.msra.mxu0 0.0
    %3643 = vmatprep.subr.mxu0 0.0
    %3644 = vmatpush1.msra.mxu0 0.0
    %3645 = vmatprep.subr.mxu0 0.0
    %3646 = vmatpush1.msra.mxu0 0.0
    %3647 = vmatprep.subr.mxu0 0.0
    %3648 = vmatpush1.msra.mxu0 0.0
    %3649 = vmatprep.subr.mxu0 0.0
    %3650 = vmatpush1.msra.mxu0 0.0
    %3651 = vmatprep.subr.mxu0 0.0
    %3652 = vmatpush1.msra.mxu0 0.0
    %3653 = vmatprep.subr.mxu0 0.0
    %3654 = vmatpush1.msra.mxu0 0.0
    %3655 = vmatprep.subr.mxu0 0.0
    %3656 = vmatpush1.msra.mxu0 0.0
    %3657 = vmatprep.subr.mxu0 0.0
    %3658 = vmatpush1.msra.mxu0 0.0
    %3659 = vmatprep.subr.mxu0 0.0
    %3660 = vmatpush1.msra.mxu0 0.0
    %3661 = vmatprep.subr.mxu0 0.0
    %3662 = vmatpush1.msra.mxu0 0.0
    %3663 = vmatprep.mubr.f32.mxu0 0.0
    %3664 = vmatmul.mubr.f32.gmra.mrb[0].mxu0 %v3597
    %v3665 = vpop.f32.mrb[0].mxu0
    %v3666 = vadd.f32 0.0, %v3665
    %v3667 = vpop.f32.mrb[0].mxu0
    %3668 = vdwg.mxu0
    %v3669 = vadd.f32 %v3588, %v3666
    %v3670 = vmul.f32 %v3192, %v1830
    %3672 = vrot.lane.b32.xlu0 %v3670, 96
    %v3673 = vpop.permute.xlu0 %3672
    %v3676 = vsel %vm1455, %v3434, 0
    %3678 = vmatprep.subr.mxu0 0.0
    %3679 = vmatpush1.msra.mxu0 %v3673
    %3680 = vmatprep.subr.mxu0 0.0
    %3681 = vmatpush1.msra.mxu0 0.0
    %3682 = vmatprep.subr.mxu0 0.0
    %3683 = vmatpush1.msra.mxu0 0.0
    %3684 = vmatprep.subr.mxu0 0.0
    %3685 = vmatpush1.msra.mxu0 0.0
    %3686 = vmatprep.subr.mxu0 0.0
    %3687 = vmatpush1.msra.mxu0 0.0
    %3688 = vmatprep.subr.mxu0 0.0
    %3689 = vmatpush1.msra.mxu0 0.0
    %3690 = vmatprep.subr.mxu0 0.0
    %3691 = vmatpush1.msra.mxu0 0.0
    %3692 = vmatprep.subr.mxu0 0.0
    %3693 = vmatpush1.msra.mxu0 0.0
    %3694 = vmatprep.subr.mxu0 0.0
    %3695 = vmatpush1.msra.mxu0 0.0
    %3696 = vmatprep.subr.mxu0 0.0
    %3697 = vmatpush1.msra.mxu0 0.0
    %3698 = vmatprep.subr.mxu0 0.0
    %3699 = vmatpush1.msra.mxu0 0.0
    %3700 = vmatprep.subr.mxu0 0.0
    %3701 = vmatpush1.msra.mxu0 0.0
    %3702 = vmatprep.subr.mxu0 0.0
    %3703 = vmatpush1.msra.mxu0 0.0
    %3704 = vmatprep.subr.mxu0 0.0
    %3705 = vmatpush1.msra.mxu0 0.0
    %3706 = vmatprep.subr.mxu0 0.0
    %3707 = vmatpush1.msra.mxu0 0.0
    %3708 = vmatprep.subr.mxu0 0.0
    %3709 = vmatpush1.msra.mxu0 0.0
    %3710 = vmatprep.subr.mxu0 0.0
    %3711 = vmatpush1.msra.mxu0 0.0
    %3712 = vmatprep.subr.mxu0 0.0
    %3713 = vmatpush1.msra.mxu0 0.0
    %3714 = vmatprep.subr.mxu0 0.0
    %3715 = vmatpush1.msra.mxu0 0.0
    %3716 = vmatprep.subr.mxu0 0.0
    %3717 = vmatpush1.msra.mxu0 0.0
    %3718 = vmatprep.subr.mxu0 0.0
    %3719 = vmatpush1.msra.mxu0 0.0
    %3720 = vmatprep.subr.mxu0 0.0
    %3721 = vmatpush1.msra.mxu0 0.0
    %3722 = vmatprep.subr.mxu0 0.0
    %3723 = vmatpush1.msra.mxu0 0.0
    %3724 = vmatprep.subr.mxu0 0.0
    %3725 = vmatpush1.msra.mxu0 0.0
    %3726 = vmatprep.subr.mxu0 0.0
    %3727 = vmatpush1.msra.mxu0 0.0
    %3728 = vmatprep.subr.mxu0 0.0
    %3729 = vmatpush1.msra.mxu0 0.0
    %3730 = vmatprep.subr.mxu0 0.0
    %3731 = vmatpush1.msra.mxu0 0.0
    %3732 = vmatprep.subr.mxu0 0.0
    %3733 = vmatpush1.msra.mxu0 0.0
    %3734 = vmatprep.subr.mxu0 0.0
    %3735 = vmatpush1.msra.mxu0 0.0
    %3736 = vmatprep.subr.mxu0 0.0
    %3737 = vmatpush1.msra.mxu0 0.0
    %3738 = vmatprep.subr.mxu0 0.0
    %3739 = vmatpush1.msra.mxu0 0.0
    %3740 = vmatprep.subr.mxu0 0.0
    %3741 = vmatpush1.msra.mxu0 0.0
    %3742 = vmatprep.mubr.f32.mxu0 0.0
    %3743 = vmatmul.mubr.f32.gmra.mrb[0].mxu0 %v3676
    %v3744 = vpop.f32.mrb[0].mxu0
    %v3745 = vadd.f32 0.0, %v3744
    %v3746 = vpop.f32.mrb[0].mxu0
    %3747 = vdwg.mxu0
    %v3748 = vadd.f32 %v3669, %v3745
    %3750 = vrot.lane.b32.xlu0 %v3197, 112
    %v3751 = vpop.permute.xlu0 %3750
    %v3752 = vmul.f32 %v3201, %v84
    %v3753 = vmul.f32 %v3201, %v89
    %v3754 = vmul.f32 %v3201, %v94
    %v3755 = vmul.f32 %v3201, %v99
    %v3757 = vsel %vm978, %v3752, 0
    %v3760 = vsel %vm978, %v3753, 0
    %v3763 = vsel %vm978, %v3754, 0
    %v3766 = vsel %vm978, %v3755, 0
    %v3769 = vsel %vm978, %v3107, 0
    %v3771 = vsel %vm978, %v3751, 0
    %3773 = vmatprep.subr.mxu0 0.0
    %3774 = vmatpush1.xpose.msra.mxu0 %v3769
    %3775 = vmatprep.subr.mxu0 0.0
    %3776 = vmatpush1.xpose.msra.mxu0 %v3771
    %3777 = vmatprep.subr.mxu0 0.0
    %3778 = vmatpush1.xpose.msra.mxu0 0.0
    %3779 = vmatprep.subr.mxu0 0.0
    %3780 = vmatpush1.xpose.msra.mxu0 0.0
    %3781 = vmatprep.subr.mxu0 0.0
    %3782 = vmatpush1.xpose.msra.mxu0 0.0
    %3783 = vmatprep.subr.mxu0 0.0
    %3784 = vmatpush1.xpose.msra.mxu0 0.0
    %3785 = vmatprep.subr.mxu0 0.0
    %3786 = vmatpush1.xpose.msra.mxu0 0.0
    %3787 = vmatprep.subr.mxu0 0.0
    %3788 = vmatpush1.xpose.msra.mxu0 0.0
    %3789 = vmatprep.subr.mxu0 0.0
    %3790 = vmatpush1.xpose.msra.mxu0 0.0
    %3791 = vmatprep.subr.mxu0 0.0
    %3792 = vmatpush1.xpose.msra.mxu0 0.0
    %3793 = vmatprep.subr.mxu0 0.0
    %3794 = vmatpush1.xpose.msra.mxu0 0.0
    %3795 = vmatprep.subr.mxu0 0.0
    %3796 = vmatpush1.xpose.msra.mxu0 0.0
    %3797 = vmatprep.subr.mxu0 0.0
    %3798 = vmatpush1.xpose.msra.mxu0 0.0
    %3799 = vmatprep.subr.mxu0 0.0
    %3800 = vmatpush1.xpose.msra.mxu0 0.0
    %3801 = vmatprep.subr.mxu0 0.0
    %3802 = vmatpush1.xpose.msra.mxu0 0.0
    %3803 = vmatprep.subr.mxu0 0.0
    %3804 = vmatpush1.xpose.msra.mxu0 0.0
    %3805 = vmatprep.subr.mxu0 0.0
    %3806 = vmatpush1.xpose.msra.mxu0 0.0
    %3807 = vmatprep.subr.mxu0 0.0
    %3808 = vmatpush1.xpose.msra.mxu0 0.0
    %3809 = vmatprep.subr.mxu0 0.0
    %3810 = vmatpush1.xpose.msra.mxu0 0.0
    %3811 = vmatprep.subr.mxu0 0.0
    %3812 = vmatpush1.xpose.msra.mxu0 0.0
    %3813 = vmatprep.subr.mxu0 0.0
    %3814 = vmatpush1.xpose.msra.mxu0 0.0
    %3815 = vmatprep.subr.mxu0 0.0
    %3816 = vmatpush1.xpose.msra.mxu0 0.0
    %3817 = vmatprep.subr.mxu0 0.0
    %3818 = vmatpush1.xpose.msra.mxu0 0.0
    %3819 = vmatprep.subr.mxu0 0.0
    %3820 = vmatpush1.xpose.msra.mxu0 0.0
    %3821 = vmatprep.subr.mxu0 0.0
    %3822 = vmatpush1.xpose.msra.mxu0 0.0
    %3823 = vmatprep.subr.mxu0 0.0
    %3824 = vmatpush1.xpose.msra.mxu0 0.0
    %3825 = vmatprep.subr.mxu0 0.0
    %3826 = vmatpush1.xpose.msra.mxu0 0.0
    %3827 = vmatprep.subr.mxu0 0.0
    %3828 = vmatpush1.xpose.msra.mxu0 0.0
    %3829 = vmatprep.subr.mxu0 0.0
    %3830 = vmatpush1.xpose.msra.mxu0 0.0
    %3831 = vmatprep.subr.mxu0 0.0
    %3832 = vmatpush1.xpose.msra.mxu0 0.0
    %3833 = vmatprep.subr.mxu0 0.0
    %3834 = vmatpush1.xpose.msra.mxu0 0.0
    %3835 = vmatprep.subr.mxu0 0.0
    %3836 = vmatpush1.xpose.msra.mxu0 0.0
    %3837 = vmatprep.mubr.f32.mxu0 0.0
    %3838 = vmatmul.mubr.f32.gmra.mrb[0].mxu0 %v3757
    %v3839 = vpop.f32.mrb[0].mxu0
    %v3840 = vadd.f32 0.0, %v3839
    %v3841 = vpop.f32.mrb[0].mxu0
    %3842 = vmatprep.mubr.f32.mxu0 0.0
    %3843 = vmatmul.mubr.f32.gmra.mrb[0].mxu0 %v3760
    %v3844 = vpop.f32.mrb[0].mxu0
    %v3845 = vadd.f32 0.0, %v3844
    %v3846 = vpop.f32.mrb[0].mxu0
    %3847 = vmatprep.mubr.f32.mxu0 0.0
    %3848 = vmatmul.mubr.f32.gmra.mrb[0].mxu0 %v3763
    %v3849 = vpop.f32.mrb[0].mxu0
    %v3850 = vadd.f32 0.0, %v3849
    %v3851 = vpop.f32.mrb[0].mxu0
    %3852 = vmatprep.mubr.f32.mxu0 0.0
    %3853 = vmatmul.mubr.f32.gmra.mrb[0].mxu0 %v3766
    %v3854 = vpop.f32.mrb[0].mxu0
    %v3855 = vadd.f32 0.0, %v3854
    %v3856 = vpop.f32.mrb[0].mxu0
    %3857 = vdwg.mxu0
    %v3858 = vsel %vm1455, %v3840, -inf
    %3859 = vmax.xlane.f32.xlu0 %v3858
    %v3860 = vpop.xlane.xlu0 %3859
    %v3861 = vsel %vm1455, %v3845, -inf
    %3862 = vmax.xlane.f32.xlu0 %v3861
    %v3863 = vpop.xlane.xlu0 %3862
    %v3864 = vsel %vm1455, %v3850, -inf
    %3865 = vmax.xlane.f32.xlu0 %v3864
    %v3866 = vpop.xlane.xlu0 %3865
    %v3867 = vsel %vm1455, %v3855, -inf
    %3868 = vmax.xlane.f32.xlu0 %v3867
    %v3869 = vpop.xlane.xlu0 %3868
    %v3870 = vsub.f32 %v3840, %v3860
    %v3871 = vsub.f32 %v3845, %v3863
    %v3872 = vsub.f32 %v3850, %v3866
    %v3873 = vsub.f32 %v3855, %v3869
    %v3874 = vmul.f32 %v3870, 1.442695
    %v3875 = vpow.pop %v3874
    %v3876 = vmul.f32 %v3871, 1.442695
    %v3877 = vpow.pop %v3876
    %v3878 = vmul.f32 %v3872, 1.442695
    %v3879 = vpow.pop %v3878
    %v3880 = vmul.f32 %v3873, 1.442695
    %v3881 = vpow.pop %v3880
    %v3882 = vsel %vm1455, %v3875, 0.0
    %3883 = vadd.xlane.f32.xlu0 %v3882
    %v3884 = vpop.xlane.xlu0 %3883
    %v3885 = vsel %vm1455, %v3877, 0.0
    %3886 = vadd.xlane.f32.xlu0 %v3885
    %v3887 = vpop.xlane.xlu0 %3886
    %v3888 = vsel %vm1455, %v3879, 0.0
    %3889 = vadd.xlane.f32.xlu0 %v3888
    %v3890 = vpop.xlane.xlu0 %3889
    %v3891 = vsel %vm1455, %v3881, 0.0
    %3892 = vadd.xlane.f32.xlu0 %v3891
    %v3893 = vpop.xlane.xlu0 %3892
    %v3894 = vrcp.pop %v3884
    %v3895 = vmul.f32 %v3875, %v3894
    %v3896 = vrcp.pop %v3887
    %v3897 = vmul.f32 %v3877, %v3896
    %v3898 = vrcp.pop %v3890
    %v3899 = vmul.f32 %v3879, %v3898
    %v3900 = vrcp.pop %v3893
    %v3901 = vmul.f32 %v3881, %v3900
    %v3902 = vsel %vm1500, %v3840, -inf
    %3903 = vmax.xlane.f32.xlu0 %v3902
    %v3904 = vpop.xlane.xlu0 %3903
    %v3905 = vsel %vm1500, %v3845, -inf
    %3906 = vmax.xlane.f32.xlu0 %v3905
    %v3907 = vpop.xlane.xlu0 %3906
    %v3908 = vsel %vm1500, %v3850, -inf
    %3909 = vmax.xlane.f32.xlu0 %v3908
    %v3910 = vpop.xlane.xlu0 %3909
    %v3911 = vsel %vm1500, %v3855, -inf
    %3912 = vmax.xlane.f32.xlu0 %v3911
    %v3913 = vpop.xlane.xlu0 %3912
    %v3914 = vsub.f32 %v3840, %v3904
    %v3915 = vsub.f32 %v3845, %v3907
    %v3916 = vsub.f32 %v3850, %v3910
    %v3917 = vsub.f32 %v3855, %v3913
    %v3918 = vmul.f32 %v3914, 1.442695
    %v3919 = vpow.pop %v3918
    %v3920 = vmul.f32 %v3915, 1.442695
    %v3921 = vpow.pop %v3920
    %v3922 = vmul.f32 %v3916, 1.442695
    %v3923 = vpow.pop %v3922
    %v3924 = vmul.f32 %v3917, 1.442695
    %v3925 = vpow.pop %v3924
    %3930 = vrot.lane.b32.xlu0 %v3919, 120
    %v3931 = vpop.permute.xlu0 %3930
    %3932 = vrot.lane.b32.xlu0 %v3921, 120
    %v3933 = vpop.permute.xlu0 %3932
    %3934 = vrot.lane.b32.xlu0 %v3923, 120
    %v3935 = vpop.permute.xlu0 %3934
    %3936 = vrot.lane.b32.xlu0 %v3925, 120
    %v3937 = vpop.permute.xlu0 %3936
    %v3942 = vsel %vm1455, %v3931, 0.0
    %3943 = vadd.xlane.f32.xlu0 %v3942
    %v3944 = vpop.xlane.xlu0 %3943
    %v3945 = vsel %vm1455, %v3933, 0.0
    %3946 = vadd.xlane.f32.xlu0 %v3945
    %v3947 = vpop.xlane.xlu0 %3946
    %v3948 = vsel %vm1455, %v3935, 0.0
    %3949 = vadd.xlane.f32.xlu0 %v3948
    %v3950 = vpop.xlane.xlu0 %3949
    %v3951 = vsel %vm1455, %v3937, 0.0
    %3952 = vadd.xlane.f32.xlu0 %v3951
    %v3953 = vpop.xlane.xlu0 %3952
    %v3954 = vrcp.pop %v3944
    %v3955 = vmul.f32 %v3919, %v3954
    %v3956 = vrcp.pop %v3947
    %v3957 = vmul.f32 %v3921, %v3956
    %v3958 = vrcp.pop %v3950
    %v3959 = vmul.f32 %v3923, %v3958
    %v3960 = vrcp.pop %v3953
    %v3961 = vmul.f32 %v3925, %v3960
    %3966 = vrot.lane.b32.xlu0 %v3955, 120
    %v3967 = vpop.permute.xlu0 %3966
    %3968 = vrot.lane.b32.xlu0 %v3957, 120
    %v3969 = vpop.permute.xlu0 %3968
    %3970 = vrot.lane.b32.xlu0 %v3959, 120
    %v3971 = vpop.permute.xlu0 %3970
    %3972 = vrot.lane.b32.xlu0 %v3961, 120
    %v3973 = vpop.permute.xlu0 %3972
    %v3978 = vadd.f32 %v3895, %v3967
    %v3979 = vadd.f32 %v3897, %v3969
    %v3980 = vadd.f32 %v3899, %v3971
    %v3981 = vadd.f32 %v3901, %v3973
    %v3982 = vmul.f32 %v3197, %v1583
    %v3983 = vmul.f32 %v3197, %v1588
    %3985 = vrot.lane.b32.xlu0 %v3983, 96
    %v3986 = vpop.permute.xlu0 %3985
    %v3989 = vsel %vm1455, %v3979, 0
    %3991 = vmatprep.subr.mxu0 0.0
    %3992 = vmatpush1.msra.mxu0 %v3986
    %3993 = vmatprep.subr.mxu0 0.0
    %3994 = vmatpush1.msra.mxu0 0.0
    %3995 = vmatprep.subr.mxu0 0.0
    %3996 = vmatpush1.msra.mxu0 0.0
    %3997 = vmatprep.subr.mxu0 0.0
    %3998 = vmatpush1.msra.mxu0 0.0
    %3999 = vmatprep.subr.mxu0 0.0
    %4000 = vmatpush1.msra.mxu0 0.0
    %4001 = vmatprep.subr.mxu0 0.0
    %4002 = vmatpush1.msra.mxu0 0.0
    %4003 = vmatprep.subr.mxu0 0.0
    %4004 = vmatpush1.msra.mxu0 0.0
    %4005 = vmatprep.subr.mxu0 0.0
    %4006 = vmatpush1.msra.mxu0 0.0
    %4007 = vmatprep.subr.mxu0 0.0
    %4008 = vmatpush1.msra.mxu0 0.0
    %4009 = vmatprep.subr.mxu0 0.0
    %4010 = vmatpush1.msra.mxu0 0.0
    %4011 = vmatprep.subr.mxu0 0.0
    %4012 = vmatpush1.msra.mxu0 0.0
    %4013 = vmatprep.subr.mxu0 0.0
    %4014 = vmatpush1.msra.mxu0 0.0
    %4015 = vmatprep.subr.mxu0 0.0
    %4016 = vmatpush1.msra.mxu0 0.0
    %4017 = vmatprep.subr.mxu0 0.0
    %4018 = vmatpush1.msra.mxu0 0.0
    %4019 = vmatprep.subr.mxu0 0.0
    %4020 = vmatpush1.msra.mxu0 0.0
    %4021 = vmatprep.subr.mxu0 0.0
    %4022 = vmatpush1.msra.mxu0 0.0
    %4023 = vmatprep.subr.mxu0 0.0
    %4024 = vmatpush1.msra.mxu0 0.0
    %4025 = vmatprep.subr.mxu0 0.0
    %4026 = vmatpush1.msra.mxu0 0.0
    %4027 = vmatprep.subr.mxu0 0.0
    %4028 = vmatpush1.msra.mxu0 0.0
    %4029 = vmatprep.subr.mxu0 0.0
    %4030 = vmatpush1.msra.mxu0 0.0
    %4031 = vmatprep.subr.mxu0 0.0
    %4032 = vmatpush1.msra.mxu0 0.0
    %4033 = vmatprep.subr.mxu0 0.0
    %4034 = vmatpush1.msra.mxu0 0.0
    %4035 = vmatprep.subr.mxu0 0.0
    %4036 = vmatpush1.msra.mxu0 0.0
    %4037 = vmatprep.subr.mxu0 0.0
    %4038 = vmatpush1.msra.mxu0 0.0
    %4039 = vmatprep.subr.mxu0 0.0
    %4040 = vmatpush1.msra.mxu0 0.0
    %4041 = vmatprep.subr.mxu0 0.0
    %4042 = vmatpush1.msra.mxu0 0.0
    %4043 = vmatprep.subr.mxu0 0.0
    %4044 = vmatpush1.msra.mxu0 0.0
    %4045 = vmatprep.subr.mxu0 0.0
    %4046 = vmatpush1.msra.mxu0 0.0
    %4047 = vmatprep.subr.mxu0 0.0
    %4048 = vmatpush1.msra.mxu0 0.0
    %4049 = vmatprep.subr.mxu0 0.0
    %4050 = vmatpush1.msra.mxu0 0.0
    %4051 = vmatprep.subr.mxu0 0.0
    %4052 = vmatpush1.msra.mxu0 0.0
    %4053 = vmatprep.subr.mxu0 0.0
    %4054 = vmatpush1.msra.mxu0 0.0
    %4055 = vmatprep.mubr.f32.mxu0 0.0
    %4056 = vmatmul.mubr.f32.gmra.mrb[0].mxu0 %v3989
    %v4057 = vpop.f32.mrb[0].mxu0
    %v4058 = vadd.f32 0.0, %v4057
    %v4059 = vpop.f32.mrb[0].mxu0
    %4060 = vdwg.mxu0
    %4062 = vrot.lane.b32.xlu0 %v3982, 96
    %v4063 = vpop.permute.xlu0 %4062
    %v4066 = vsel %vm1455, %v3978, 0
    %4068 = vmatprep.subr.mxu0 0.0
    %4069 = vmatpush1.msra.mxu0 %v4063
    %4070 = vmatprep.subr.mxu0 0.0
    %4071 = vmatpush1.msra.mxu0 0.0
    %4072 = vmatprep.subr.mxu0 0.0
    %4073 = vmatpush1.msra.mxu0 0.0
    %4074 = vmatprep.subr.mxu0 0.0
    %4075 = vmatpush1.msra.mxu0 0.0
    %4076 = vmatprep.subr.mxu0 0.0
    %4077 = vmatpush1.msra.mxu0 0.0
    %4078 = vmatprep.subr.mxu0 0.0
    %4079 = vmatpush1.msra.mxu0 0.0
    %4080 = vmatprep.subr.mxu0 0.0
    %4081 = vmatpush1.msra.mxu0 0.0
    %4082 = vmatprep.subr.mxu0 0.0
    %4083 = vmatpush1.msra.mxu0 0.0
    %4084 = vmatprep.subr.mxu0 0.0
    %4085 = vmatpush1.msra.mxu0 0.0
    %4086 = vmatprep.subr.mxu0 0.0
    %4087 = vmatpush1.msra.mxu0 0.0
    %4088 = vmatprep.subr.mxu0 0.0
    %4089 = vmatpush1.msra.mxu0 0.0
    %4090 = vmatprep.subr.mxu0 0.0
    %4091 = vmatpush1.msra.mxu0 0.0
    %4092 = vmatprep.subr.mxu0 0.0
    %4093 = vmatpush1.msra.mxu0 0.0
    %4094 = vmatprep.subr.mxu0 0.0
    %4095 = vmatpush1.msra.mxu0 0.0
    %4096 = vmatprep.subr.mxu0 0.0
    %4097 = vmatpush1.msra.mxu0 0.0
    %4098 = vmatprep.subr.mxu0 0.0
    %4099 = vmatpush1.msra.mxu0 0.0
    %4100 = vmatprep.subr.mxu0 0.0
    %4101 = vmatpush1.msra.mxu0 0.0
    %4102 = vmatprep.subr.mxu0 0.0
    %4103 = vmatpush1.msra.mxu0 0.0
    %4104 = vmatprep.subr.mxu0 0.0
    %4105 = vmatpush1.msra.mxu0 0.0
    %4106 = vmatprep.subr.mxu0 0.0
    %4107 = vmatpush1.msra.mxu0 0.0
    %4108 = vmatprep.subr.mxu0 0.0
    %4109 = vmatpush1.msra.mxu0 0.0
    %4110 = vmatprep.subr.mxu0 0.0
    %4111 = vmatpush1.msra.mxu0 0.0
    %4112 = vmatprep.subr.mxu0 0.0
    %4113 = vmatpush1.msra.mxu0 0.0
    %4114 = vmatprep.subr.mxu0 0.0
    %4115 = vmatpush1.msra.mxu0 0.0
    %4116 = vmatprep.subr.mxu0 0.0
    %4117 = vmatpush1.msra.mxu0 0.0
    %4118 = vmatprep.subr.mxu0 0.0
    %4119 = vmatpush1.msra.mxu0 0.0
    %4120 = vmatprep.subr.mxu0 0.0
    %4121 = vmatpush1.msra.mxu0 0.0
    %4122 = vmatprep.subr.mxu0 0.0
    %4123 = vmatpush1.msra.mxu0 0.0
    %4124 = vmatprep.subr.mxu0 0.0
    %4125 = vmatpush1.msra.mxu0 0.0
    %4126 = vmatprep.subr.mxu0 0.0
    %4127 = vmatpush1.msra.mxu0 0.0
    %4128 = vmatprep.subr.mxu0 0.0
    %4129 = vmatpush1.msra.mxu0 0.0
    %4130 = vmatprep.subr.mxu0 0.0
    %4131 = vmatpush1.msra.mxu0 0.0
    %4132 = vmatprep.mubr.f32.mxu0 0.0
    %4133 = vmatmul.mubr.f32.gmra.mrb[0].mxu0 %v4066
    %v4134 = vpop.f32.mrb[0].mxu0
    %v4135 = vadd.f32 %v4058, %v4134
    %v4136 = vpop.f32.mrb[0].mxu0
    %4137 = vdwg.mxu0
    %v4138 = vmul.f32 %v3197, %v1747
    %4140 = vrot.lane.b32.xlu0 %v4138, 96
    %v4141 = vpop.permute.xlu0 %4140
    %v4144 = vsel %vm1455, %v3980, 0
    %4146 = vmatprep.subr.mxu0 0.0
    %4147 = vmatpush1.msra.mxu0 %v4141
    %4148 = vmatprep.subr.mxu0 0.0
    %4149 = vmatpush1.msra.mxu0 0.0
    %4150 = vmatprep.subr.mxu0 0.0
    %4151 = vmatpush1.msra.mxu0 0.0
    %4152 = vmatprep.subr.mxu0 0.0
    %4153 = vmatpush1.msra.mxu0 0.0
    %4154 = vmatprep.subr.mxu0 0.0
    %4155 = vmatpush1.msra.mxu0 0.0
    %4156 = vmatprep.subr.mxu0 0.0
    %4157 = vmatpush1.msra.mxu0 0.0
    %4158 = vmatprep.subr.mxu0 0.0
    %4159 = vmatpush1.msra.mxu0 0.0
    %4160 = vmatprep.subr.mxu0 0.0
    %4161 = vmatpush1.msra.mxu0 0.0
    %4162 = vmatprep.subr.mxu0 0.0
    %4163 = vmatpush1.msra.mxu0 0.0
    %4164 = vmatprep.subr.mxu0 0.0
    %4165 = vmatpush1.msra.mxu0 0.0
    %4166 = vmatprep.subr.mxu0 0.0
    %4167 = vmatpush1.msra.mxu0 0.0
    %4168 = vmatprep.subr.mxu0 0.0
    %4169 = vmatpush1.msra.mxu0 0.0
    %4170 = vmatprep.subr.mxu0 0.0
    %4171 = vmatpush1.msra.mxu0 0.0
    %4172 = vmatprep.subr.mxu0 0.0
    %4173 = vmatpush1.msra.mxu0 0.0
    %4174 = vmatprep.subr.mxu0 0.0
    %4175 = vmatpush1.msra.mxu0 0.0
    %4176 = vmatprep.subr.mxu0 0.0
    %4177 = vmatpush1.msra.mxu0 0.0
    %4178 = vmatprep.subr.mxu0 0.0
    %4179 = vmatpush1.msra.mxu0 0.0
    %4180 = vmatprep.subr.mxu0 0.0
    %4181 = vmatpush1.msra.mxu0 0.0
    %4182 = vmatprep.subr.mxu0 0.0
    %4183 = vmatpush1.msra.mxu0 0.0
    %4184 = vmatprep.subr.mxu0 0.0
    %4185 = vmatpush1.msra.mxu0 0.0
    %4186 = vmatprep.subr.mxu0 0.0
    %4187 = vmatpush1.msra.mxu0 0.0
    %4188 = vmatprep.subr.mxu0 0.0
    %4189 = vmatpush1.msra.mxu0 0.0
    %4190 = vmatprep.subr.mxu0 0.0
    %4191 = vmatpush1.msra.mxu0 0.0
    %4192 = vmatprep.subr.mxu0 0.0
    %4193 = vmatpush1.msra.mxu0 0.0
    %4194 = vmatprep.subr.mxu0 0.0
    %4195 = vmatpush1.msra.mxu0 0.0
    %4196 = vmatprep.subr.mxu0 0.0
    %4197 = vmatpush1.msra.mxu0 0.0
    %4198 = vmatprep.subr.mxu0 0.0
    %4199 = vmatpush1.msra.mxu0 0.0
    %4200 = vmatprep.subr.mxu0 0.0
    %4201 = vmatpush1.msra.mxu0 0.0
    %4202 = vmatprep.subr.mxu0 0.0
    %4203 = vmatpush1.msra.mxu0 0.0
    %4204 = vmatprep.subr.mxu0 0.0
    %4205 = vmatpush1.msra.mxu0 0.0
    %4206 = vmatprep.subr.mxu0 0.0
    %4207 = vmatpush1.msra.mxu0 0.0
    %4208 = vmatprep.subr.mxu0 0.0
    %4209 = vmatpush1.msra.mxu0 0.0
    %4210 = vmatprep.mubr.f32.mxu0 0.0
    %4211 = vmatmul.mubr.f32.gmra.mrb[0].mxu0 %v4144
    %v4212 = vpop.f32.mrb[0].mxu0
    %v4213 = vadd.f32 0.0, %v4212
    %v4214 = vpop.f32.mrb[0].mxu0
    %4215 = vdwg.mxu0
    %v4216 = vadd.f32 %v4135, %v4213
    %v4217 = vmul.f32 %v3197, %v1830
    %4219 = vrot.lane.b32.xlu0 %v4217, 96
    %v4220 = vpop.permute.xlu0 %4219
    %v4223 = vsel %vm1455, %v3981, 0
    %4225 = vmatprep.subr.mxu0 0.0
    %4226 = vmatpush1.msra.mxu0 %v4220
    %4227 = vmatprep.subr.mxu0 0.0
    %4228 = vmatpush1.msra.mxu0 0.0
    %4229 = vmatprep.subr.mxu0 0.0
    %4230 = vmatpush1.msra.mxu0 0.0
    %4231 = vmatprep.subr.mxu0 0.0
    %4232 = vmatpush1.msra.mxu0 0.0
    %4233 = vmatprep.subr.mxu0 0.0
    %4234 = vmatpush1.msra.mxu0 0.0
    %4235 = vmatprep.subr.mxu0 0.0
    %4236 = vmatpush1.msra.mxu0 0.0
    %4237 = vmatprep.subr.mxu0 0.0
    %4238 = vmatpush1.msra.mxu0 0.0
    %4239 = vmatprep.subr.mxu0 0.0
    %4240 = vmatpush1.msra.mxu0 0.0
    %4241 = vmatprep.subr.mxu0 0.0
    %4242 = vmatpush1.msra.mxu0 0.0
    %4243 = vmatprep.subr.mxu0 0.0
    %4244 = vmatpush1.msra.mxu0 0.0
    %4245 = vmatprep.subr.mxu0 0.0
    %4246 = vmatpush1.msra.mxu0 0.0
    %4247 = vmatprep.subr.mxu0 0.0
    %4248 = vmatpush1.msra.mxu0 0.0
    %4249 = vmatprep.subr.mxu0 0.0
    %4250 = vmatpush1.msra.mxu0 0.0
    %4251 = vmatprep.subr.mxu0 0.0
    %4252 = vmatpush1.msra.mxu0 0.0
    %4253 = vmatprep.subr.mxu0 0.0
    %4254 = vmatpush1.msra.mxu0 0.0
    %4255 = vmatprep.subr.mxu0 0.0
    %4256 = vmatpush1.msra.mxu0 0.0
    %4257 = vmatprep.subr.mxu0 0.0
    %4258 = vmatpush1.msra.mxu0 0.0
    %4259 = vmatprep.subr.mxu0 0.0
    %4260 = vmatpush1.msra.mxu0 0.0
    %4261 = vmatprep.subr.mxu0 0.0
    %4262 = vmatpush1.msra.mxu0 0.0
    %4263 = vmatprep.subr.mxu0 0.0
    %4264 = vmatpush1.msra.mxu0 0.0
    %4265 = vmatprep.subr.mxu0 0.0
    %4266 = vmatpush1.msra.mxu0 0.0
    %4267 = vmatprep.subr.mxu0 0.0
    %4268 = vmatpush1.msra.mxu0 0.0
    %4269 = vmatprep.subr.mxu0 0.0
    %4270 = vmatpush1.msra.mxu0 0.0
    %4271 = vmatprep.subr.mxu0 0.0
    %4272 = vmatpush1.msra.mxu0 0.0
    %4273 = vmatprep.subr.mxu0 0.0
    %4274 = vmatpush1.msra.mxu0 0.0
    %4275 = vmatprep.subr.mxu0 0.0
    %4276 = vmatpush1.msra.mxu0 0.0
    %4277 = vmatprep.subr.mxu0 0.0
    %4278 = vmatpush1.msra.mxu0 0.0
    %4279 = vmatprep.subr.mxu0 0.0
    %4280 = vmatpush1.msra.mxu0 0.0
    %4281 = vmatprep.subr.mxu0 0.0
    %4282 = vmatpush1.msra.mxu0 0.0
    %4283 = vmatprep.subr.mxu0 0.0
    %4284 = vmatpush1.msra.mxu0 0.0
    %4285 = vmatprep.subr.mxu0 0.0
    %4286 = vmatpush1.msra.mxu0 0.0
    %4287 = vmatprep.subr.mxu0 0.0
    %4288 = vmatpush1.msra.mxu0 0.0
    %4289 = vmatprep.mubr.f32.mxu0 0.0
    %4290 = vmatmul.mubr.f32.gmra.mrb[0].mxu0 %v4223
    %v4291 = vpop.f32.mrb[0].mxu0
    %v4292 = vadd.f32 0.0, %v4291
    %v4293 = vpop.f32.mrb[0].mxu0
    %4294 = vdwg.mxu0
    %v4295 = vadd.f32 %v4216, %v4292
    %s4296 = scalar_lea.vmem %s14, 16
    %v4297 = vld [vmem:[%s4296] sm:$0xff]
    %v4298 = vld [vmem:[%s4296 + $0x8] sm:$0xff]
    %s4299 = scalar_lea.vmem %s15, 1
    %v4300 = vld [vmem:[%s4299] sm:$0x1]
    %v4302 = vlaneseq
    %v4303 = vshrl.u32 %v4302, 7
    %v4304 = vsub.s32 0, %v4303
    %v4305 = vrot.slane %v4300, %v4304
    %v4308 = vsel %vm978, %v3748, 0
    %v4311 = vsel %vm978, %v4295, 0
    %4313 = vmatprep.subr.mxu0 0.0
    %4314 = vmatpush1.msra.mxu0 %v4297
    %4315 = vmatprep.subr.mxu0 0.0
    %4316 = vmatpush1.msra.mxu0 %v4298
    %4317 = vmatprep.subr.mxu0 0.0
    %4318 = vmatpush1.msra.mxu0 0.0
    %4319 = vmatprep.subr.mxu0 0.0
    %4320 = vmatpush1.msra.mxu0 0.0
    %4321 = vmatprep.subr.mxu0 0.0
    %4322 = vmatpush1.msra.mxu0 0.0
    %4323 = vmatprep.subr.mxu0 0.0
    %4324 = vmatpush1.msra.mxu0 0.0
    %4325 = vmatprep.subr.mxu0 0.0
    %4326 = vmatpush1.msra.mxu0 0.0
    %4327 = vmatprep.subr.mxu0 0.0
    %4328 = vmatpush1.msra.mxu0 0.0
    %4329 = vmatprep.subr.mxu0 0.0
    %4330 = vmatpush1.msra.mxu0 0.0
    %4331 = vmatprep.subr.mxu0 0.0
    %4332 = vmatpush1.msra.mxu0 0.0
    %4333 = vmatprep.subr.mxu0 0.0
    %4334 = vmatpush1.msra.mxu0 0.0
    %4335 = vmatprep.subr.mxu0 0.0
    %4336 = vmatpush1.msra.mxu0 0.0
    %4337 = vmatprep.subr.mxu0 0.0
    %4338 = vmatpush1.msra.mxu0 0.0
    %4339 = vmatprep.subr.mxu0 0.0
    %4340 = vmatpush1.msra.mxu0 0.0
    %4341 = vmatprep.subr.mxu0 0.0
    %4342 = vmatpush1.msra.mxu0 0.0
    %4343 = vmatprep.subr.mxu0 0.0
    %4344 = vmatpush1.msra.mxu0 0.0
    %4345 = vmatprep.subr.mxu0 0.0
    %4346 = vmatpush1.msra.mxu0 0.0
    %4347 = vmatprep.subr.mxu0 0.0
    %4348 = vmatpush1.msra.mxu0 0.0
    %4349 = vmatprep.subr.mxu0 0.0
    %4350 = vmatpush1.msra.mxu0 0.0
    %4351 = vmatprep.subr.mxu0 0.0
    %4352 = vmatpush1.msra.mxu0 0.0
    %4353 = vmatprep.subr.mxu0 0.0
    %4354 = vmatpush1.msra.mxu0 0.0
    %4355 = vmatprep.subr.mxu0 0.0
    %4356 = vmatpush1.msra.mxu0 0.0
    %4357 = vmatprep.subr.mxu0 0.0
    %4358 = vmatpush1.msra.mxu0 0.0
    %4359 = vmatprep.subr.mxu0 0.0
    %4360 = vmatpush1.msra.mxu0 0.0
    %4361 = vmatprep.subr.mxu0 0.0
    %4362 = vmatpush1.msra.mxu0 0.0
    %4363 = vmatprep.subr.mxu0 0.0
    %4364 = vmatpush1.msra.mxu0 0.0
    %4365 = vmatprep.subr.mxu0 0.0
    %4366 = vmatpush1.msra.mxu0 0.0
    %4367 = vmatprep.subr.mxu0 0.0
    %4368 = vmatpush1.msra.mxu0 0.0
    %4369 = vmatprep.subr.mxu0 0.0
    %4370 = vmatpush1.msra.mxu0 0.0
    %4371 = vmatprep.subr.mxu0 0.0
    %4372 = vmatpush1.msra.mxu0 0.0
    %4373 = vmatprep.subr.mxu0 0.0
    %4374 = vmatpush1.msra.mxu0 0.0
    %4375 = vmatprep.subr.mxu0 0.0
    %4376 = vmatpush1.msra.mxu0 0.0
    %4377 = vmatprep.mubr.f32.mxu0 0.0
    %4378 = vmatmul.mubr.f32.gmra.mrb[0].mxu0 %v4308
    %v4379 = vpop.f32.mrb[0].mxu0
    %v4380 = vadd.f32 %v4305, %v4379
    %v4381 = vpop.f32.mrb[0].mxu0
    %4382 = vmatprep.mubr.f32.mxu0 0.0
    %4383 = vmatmul.mubr.f32.gmra.mrb[0].mxu0 %v4311
    %v4384 = vpop.f32.mrb[0].mxu0
    %v4385 = vadd.f32 %v4305, %v4384
    %v4386 = vpop.f32.mrb[0].mxu0
    %4387 = vdwg.mxu0
    %v4388 = vadd.f32 %v2830, %v4380
    %v4389 = vadd.f32 %v2831, %v4385
    %s4390 = scalar_lea.vmem %s16, 1
    %v4391 = vld [vmem:[%s4390] sm:$0x1]
    %s4392 = scalar_lea.vmem %s17, 1
    %v4393 = vld [vmem:[%s4392] sm:$0x1]
    %v4394 = vsel %vm978, %v4388, 0.0
    %4395 = vadd.xlane.f32.xlu0 %v4394
    %v4396 = vpop.xlane.xlu0 %4395
    %v4397 = vsel %vm978, %v4389, 0.0
    %4398 = vadd.xlane.f32.xlu0 %v4397
    %v4399 = vpop.xlane.xlu0 %4398
    %v4400 = vmul.f32 %v4396, %v985
    %v4401 = vmul.f32 %v4399, %v985
    %v4402 = vsub.f32 %v4388, %v4400
    %v4403 = vsub.f32 %v4389, %v4401
    %v4404 = vmul.f32 %v4402, %v4402
    %v4405 = vmul.f32 %v4403, %v4403
    %v4406 = vsel %vm978, %v4404, 0.0
    %4407 = vadd.xlane.f32.xlu0 %v4406
    %v4408 = vpop.xlane.xlu0 %4407
    %v4409 = vsel %vm978, %v4405, 0.0
    %4410 = vadd.xlane.f32.xlu0 %v4409
    %v4411 = vpop.xlane.xlu0 %4410
    %v4412 = vmul.f32 %v4408, %v985
    %v4413 = vmul.f32 %v4411, %v985
    %v4414 = vadd.f32 %v4412, 1e-05
    %v4415 = vadd.f32 %v4413, 1e-05
    %v4416 = vrsqrt.pop %v4414
    %v4417 = vrsqrt.pop %v4415
    %v4418 = vmul.f32 %v4402, %v4416
    %v4419 = vmul.f32 %v4403, %v4417
    %v4421 = vlaneseq
    %v4422 = vshrl.u32 %v4421, 7
    %v4423 = vsub.s32 0, %v4422
    %v4424 = vrot.slane %v4391, %v4423
    %v4426 = vmul.f32 %v4418, %v4424
    %v4427 = vmul.f32 %v4419, %v4424
    %v4429 = vlaneseq
    %v4430 = vshrl.u32 %v4429, 7
    %v4431 = vsub.s32 0, %v4430
    %v4432 = vrot.slane %v4393, %v4431
    %v4434 = vadd.f32 %v4426, %v4432
    %v4435 = vadd.f32 %v4427, %v4432
    %s4436 = scalar_lea.vmem %s18, 16
    %v4437 = vld [vmem:[%s4436] sm:$0xff]
    %v4438 = vld [vmem:[%s4436 + $0x8] sm:$0xff]
    %s4439 = scalar_lea.vmem %s19, 1
    %v4440 = vld [vmem:[%s4439] sm:$0x1]
    %v4442 = vlaneseq
    %v4443 = vshrl.u32 %v4442, 7
    %v4444 = vsub.s32 0, %v4443
    %v4445 = vrot.slane %v4440, %v4444
    %v4448 = vsel %vm978, %v4434, 0
    %v4451 = vsel %vm978, %v4435, 0
    %4453 = vmatprep.subr.mxu0 0.0
    %4454 = vmatpush1.msra.mxu0 %v4437
    %4455 = vmatprep.subr.mxu0 0.0
    %4456 = vmatpush1.msra.mxu0 %v4438
    %4457 = vmatprep.subr.mxu0 0.0
    %4458 = vmatpush1.msra.mxu0 0.0
    %4459 = vmatprep.subr.mxu0 0.0
    %4460 = vmatpush1.msra.mxu0 0.0
    %4461 = vmatprep.subr.mxu0 0.0
    %4462 = vmatpush1.msra.mxu0 0.0
    %4463 = vmatprep.subr.mxu0 0.0
    %4464 = vmatpush1.msra.mxu0 0.0
    %4465 = vmatprep.subr.mxu0 0.0
    %4466 = vmatpush1.msra.mxu0 0.0
    %4467 = vmatprep.subr.mxu0 0.0
    %4468 = vmatpush1.msra.mxu0 0.0
    %4469 = vmatprep.subr.mxu0 0.0
    %4470 = vmatpush1.msra.mxu0 0.0
    %4471 = vmatprep.subr.mxu0 0.0
    %4472 = vmatpush1.msra.mxu0 0.0
    %4473 = vmatprep.subr.mxu0 0.0
    %4474 = vmatpush1.msra.mxu0 0.0
    %4475 = vmatprep.subr.mxu0 0.0
    %4476 = vmatpush1.msra.mxu0 0.0
    %4477 = vmatprep.subr.mxu0 0.0
    %4478 = vmatpush1.msra.mxu0 0.0
    %4479 = vmatprep.subr.mxu0 0.0
    %4480 = vmatpush1.msra.mxu0 0.0
    %4481 = vmatprep.subr.mxu0 0.0
    %4482 = vmatpush1.msra.mxu0 0.0
    %4483 = vmatprep.subr.mxu0 0.0
    %4484 = vmatpush1.msra.mxu0 0.0
    %4485 = vmatprep.subr.mxu0 0.0
    %4486 = vmatpush1.msra.mxu0 0.0
    %4487 = vmatprep.subr.mxu0 0.0
    %4488 = vmatpush1.msra.mxu0 0.0
    %4489 = vmatprep.subr.mxu0 0.0
    %4490 = vmatpush1.msra.mxu0 0.0
    %4491 = vmatprep.subr.mxu0 0.0
    %4492 = vmatpush1.msra.mxu0 0.0
    %4493 = vmatprep.subr.mxu0 0.0
    %4494 = vmatpush1.msra.mxu0 0.0
    %4495 = vmatprep.subr.mxu0 0.0
    %4496 = vmatpush1.msra.mxu0 0.0
    %4497 = vmatprep.subr.mxu0 0.0
    %4498 = vmatpush1.msra.mxu0 0.0
    %4499 = vmatprep.subr.mxu0 0.0
    %4500 = vmatpush1.msra.mxu0 0.0
    %4501 = vmatprep.subr.mxu0 0.0
    %4502 = vmatpush1.msra.mxu0 0.0
    %4503 = vmatprep.subr.mxu0 0.0
    %4504 = vmatpush1.msra.mxu0 0.0
    %4505 = vmatprep.subr.mxu0 0.0
    %4506 = vmatpush1.msra.mxu0 0.0
    %4507 = vmatprep.subr.mxu0 0.0
    %4508 = vmatpush1.msra.mxu0 0.0
    %4509 = vmatprep.subr.mxu0 0.0
    %4510 = vmatpush1.msra.mxu0 0.0
    %4511 = vmatprep.subr.mxu0 0.0
    %4512 = vmatpush1.msra.mxu0 0.0
    %4513 = vmatprep.subr.mxu0 0.0
    %4514 = vmatpush1.msra.mxu0 0.0
    %4515 = vmatprep.subr.mxu0 0.0
    %4516 = vmatpush1.msra.mxu0 0.0
    %4517 = vmatprep.mubr.f32.mxu0 0.0
    %4518 = vmatmul.mubr.f32.gmra.mrb[0].mxu0 %v4448
    %v4519 = vpop.f32.mrb[0].mxu0
    %v4520 = vadd.f32 %v4445, %v4519
    %v4521 = vpop.f32.mrb[0].mxu0
    %4522 = vmatprep.mubr.f32.mxu0 0.0
    %4523 = vmatmul.mubr.f32.gmra.mrb[0].mxu0 %v4451
    %v4524 = vpop.f32.mrb[0].mxu0
    %v4525 = vadd.f32 %v4445, %v4524
    %v4526 = vpop.f32.mrb[0].mxu0
    %4527 = vdwg.mxu0
    %v4528 = vmul.f32 %v4520, 0.70710677
    %v4529 = vmul.f32 %v4525, 0.70710677
    %v4530 = vand.u32 2147483647, %v4528
    %v4531 = vand.u32 2147483647, %v4529
    %v4532 = vmul.f32 %v4530, 0.3275911
    %v4533 = vmul.f32 %v4531, 0.3275911
    %v4534 = vadd.f32 %v4532, 1.0
    %v4535 = vadd.f32 %v4533, 1.0
    %v4536 = vrcp.pop %v4534
    %v4537 = vmul.f32 1.0, %v4536
    %v4538 = vrcp.pop %v4535
    %v4539 = vmul.f32 1.0, %v4538
    %v4540 = vmul.f32 %v4537, 1.0614054
    %v4541 = vmul.f32 %v4539, 1.0614054
    %v4542 = vadd.f32 %v4540, -1.4531521
    %v4543 = vadd.f32 %v4541, -1.4531521
    %v4544 = vmul.f32 %v4537, %v4542
    %v4545 = vmul.f32 %v4539, %v4543
    %v4546 = vadd.f32 %v4544, 1.4214138
    %v4547 = vadd.f32 %v4545, 1.4214138
    %v4548 = vmul.f32 %v4537, %v4546
    %v4549 = vmul.f32 %v4539, %v4547
    %v4550 = vadd.f32 %v4548, -0.28449672
    %v4551 = vadd.f32 %v4549, -0.28449672
    %v4552 = vmul.f32 %v4537, %v4550
    %v4553 = vmul.f32 %v4539, %v4551
    %v4554 = vadd.f32 %v4552, 0.2548296
    %v4555 = vadd.f32 %v4553, 0.2548296
    %v4556 = vmul.f32 %v4537, %v4554
    %v4557 = vmul.f32 %v4539, %v4555
    %v4558 = vsub.f32 0.0, %v4530
    %v4559 = vsub.f32 0.0, %v4531
    %v4560 = vmul.f32 %v4558, %v4530
    %v4561 = vmul.f32 %v4559, %v4531
    %v4562 = vmul.f32 %v4560, 1.442695
    %v4563 = vpow.pop %v4562
    %v4564 = vmul.f32 %v4561, 1.442695
    %v4565 = vpow.pop %v4564
    %v4566 = vmul.f32 %v4556, %v4563
    %v4567 = vmul.f32 %v4557, %v4565
    %v4568 = vsub.f32 1.0, %v4566
    %v4569 = vsub.f32 1.0, %v4567
    %vm4570 = vcmp.ge.f32.partialorder %v4528, 0.0
    %vm4571 = vcmp.ge.f32.partialorder %v4529, 0.0
    %v4572 = vsub.f32 0.0, %v4568
    %v4573 = vsub.f32 0.0, %v4569
    %v4574 = vsel %vm4570, %v4568, %v4572
    %v4575 = vsel %vm4571, %v4569, %v4573
    %v4576 = vmul.f32 %v4520, 0.5
    %v4577 = vmul.f32 %v4525, 0.5
    %v4578 = vadd.f32 %v4574, 1.0
    %v4579 = vadd.f32 %v4575, 1.0
    %v4580 = vmul.f32 %v4576, %v4578
    %v4581 = vmul.f32 %v4577, %v4579
    %s4582 = scalar_lea.vmem %s20, 32
    %v4583 = vld [vmem:[%s4582] sm:$0xff]
    %v4584 = vld [vmem:[%s4582 + $0x8] sm:$0xff]
    %v4585 = vld [vmem:[%s4582 + $0x10] sm:$0xff]
    %v4586 = vld [vmem:[%s4582 + $0x18] sm:$0xff]
    %s4587 = scalar_lea.vmem %s21, 1
    %v4588 = vld [vmem:[%s4587] sm:$0x1]
    %v4590 = vlaneseq
    %v4591 = vshrl.u32 %v4590, 7
    %v4592 = vsub.s32 0, %v4591
    %v4593 = vrot.slane %v4588, %v4592
    %v4596 = vsel %vm1174, %v4580, 0
    %v4599 = vsel %vm1174, %v4581, 0
    %4601 = vmatprep.subr.mxu0 0.0
    %4602 = vmatpush1.msra.mxu0 %v4583
    %4603 = vmatprep.subr.mxu0 0.0
    %4604 = vmatpush1.msra.mxu0 %v4584
    %4605 = vmatprep.subr.mxu0 0.0
    %4606 = vmatpush1.msra.mxu0 %v4585
    %4607 = vmatprep.subr.mxu0 0.0
    %4608 = vmatpush1.msra.mxu0 %v4586
    %4609 = vmatprep.subr.mxu0 0.0
    %4610 = vmatpush1.msra.mxu0 0.0
    %4611 = vmatprep.subr.mxu0 0.0
    %4612 = vmatpush1.msra.mxu0 0.0
    %4613 = vmatprep.subr.mxu0 0.0
    %4614 = vmatpush1.msra.mxu0 0.0
    %4615 = vmatprep.subr.mxu0 0.0
    %4616 = vmatpush1.msra.mxu0 0.0
    %4617 = vmatprep.subr.mxu0 0.0
    %4618 = vmatpush1.msra.mxu0 0.0
    %4619 = vmatprep.subr.mxu0 0.0
    %4620 = vmatpush1.msra.mxu0 0.0
    %4621 = vmatprep.subr.mxu0 0.0
    %4622 = vmatpush1.msra.mxu0 0.0
    %4623 = vmatprep.subr.mxu0 0.0
    %4624 = vmatpush1.msra.mxu0 0.0
    %4625 = vmatprep.subr.mxu0 0.0
    %4626 = vmatpush1.msra.mxu0 0.0
    %4627 = vmatprep.subr.mxu0 0.0
    %4628 = vmatpush1.msra.mxu0 0.0
    %4629 = vmatprep.subr.mxu0 0.0
    %4630 = vmatpush1.msra.mxu0 0.0
    %4631 = vmatprep.subr.mxu0 0.0
    %4632 = vmatpush1.msra.mxu0 0.0
    %4633 = vmatprep.subr.mxu0 0.0
    %4634 = vmatpush1.msra.mxu0 0.0
    %4635 = vmatprep.subr.mxu0 0.0
    %4636 = vmatpush1.msra.mxu0 0.0
    %4637 = vmatprep.subr.mxu0 0.0
    %4638 = vmatpush1.msra.mxu0 0.0
    %4639 = vmatprep.subr.mxu0 0.0
    %4640 = vmatpush1.msra.mxu0 0.0
    %4641 = vmatprep.subr.mxu0 0.0
    %4642 = vmatpush1.msra.mxu0 0.0
    %4643 = vmatprep.subr.mxu0 0.0
    %4644 = vmatpush1.msra.mxu0 0.0
    %4645 = vmatprep.subr.mxu0 0.0
    %4646 = vmatpush1.msra.mxu0 0.0
    %4647 = vmatprep.subr.mxu0 0.0
    %4648 = vmatpush1.msra.mxu0 0.0
    %4649 = vmatprep.subr.mxu0 0.0
    %4650 = vmatpush1.msra.mxu0 0.0
    %4651 = vmatprep.subr.mxu0 0.0
    %4652 = vmatpush1.msra.mxu0 0.0
    %4653 = vmatprep.subr.mxu0 0.0
    %4654 = vmatpush1.msra.mxu0 0.0
    %4655 = vmatprep.subr.mxu0 0.0
    %4656 = vmatpush1.msra.mxu0 0.0
    %4657 = vmatprep.subr.mxu0 0.0
    %4658 = vmatpush1.msra.mxu0 0.0
    %4659 = vmatprep.subr.mxu0 0.0
    %4660 = vmatpush1.msra.mxu0 0.0
    %4661 = vmatprep.subr.mxu0 0.0
    %4662 = vmatpush1.msra.mxu0 0.0
    %4663 = vmatprep.subr.mxu0 0.0
    %4664 = vmatpush1.msra.mxu0 0.0
    %4665 = vmatprep.mubr.f32.mxu0 0.0
    %4666 = vmatmul.mubr.f32.gmra.mrb[0].mxu0 %v4596
    %v4667 = vpop.f32.mrb[0].mxu0
    %v4668 = vadd.f32 %v4593, %v4667
    %v4669 = vpop.f32.mrb[0].mxu0
    %4670 = vmatprep.mubr.f32.mxu0 0.0
    %4671 = vmatmul.mubr.f32.gmra.mrb[0].mxu0 %v4599
    %v4672 = vpop.f32.mrb[0].mxu0
    %v4673 = vadd.f32 %v4593, %v4672
    %v4674 = vpop.f32.mrb[0].mxu0
    %4675 = vdwg.mxu0
    %v4676 = vadd.f32 %v4388, %v4668
    %v4677 = vadd.f32 %v4389, %v4673
    %v4678 = vld [vmem:[%s23] sm:$0x1]
    %v4679 = vld [vmem:[%s22] sm:$0xff]
    %v4680 = vld [vmem:[%s22 + $0x8] sm:$0xff]
    %v4682 = vsel %vm978, %v4676, 0
    %4684 = vmatprep.subr.mxu0 0.0
    %4685 = vmatpush1.msra.mxu0 %v4679
    %4686 = vmatprep.subr.mxu0 0.0
    %4687 = vmatpush1.msra.mxu0 %v4680
    %4688 = vmatprep.subr.mxu0 0.0
    %4689 = vmatpush1.msra.mxu0 0.0
    %4690 = vmatprep.subr.mxu0 0.0
    %4691 = vmatpush1.msra.mxu0 0.0
    %4692 = vmatprep.subr.mxu0 0.0
    %4693 = vmatpush1.msra.mxu0 0.0
    %4694 = vmatprep.subr.mxu0 0.0
    %4695 = vmatpush1.msra.mxu0 0.0
    %4696 = vmatprep.subr.mxu0 0.0
    %4697 = vmatpush1.msra.mxu0 0.0
    %4698 = vmatprep.subr.mxu0 0.0
    %4699 = vmatpush1.msra.mxu0 0.0
    %4700 = vmatprep.subr.mxu0 0.0
    %4701 = vmatpush1.msra.mxu0 0.0
    %4702 = vmatprep.subr.mxu0 0.0
    %4703 = vmatpush1.msra.mxu0 0.0
    %4704 = vmatprep.subr.mxu0 0.0
    %4705 = vmatpush1.msra.mxu0 0.0
    %4706 = vmatprep.subr.mxu0 0.0
    %4707 = vmatpush1.msra.mxu0 0.0
    %4708 = vmatprep.subr.mxu0 0.0
    %4709 = vmatpush1.msra.mxu0 0.0
    %4710 = vmatprep.subr.mxu0 0.0
    %4711 = vmatpush1.msra.mxu0 0.0
    %4712 = vmatprep.subr.mxu0 0.0
    %4713 = vmatpush1.msra.mxu0 0.0
    %4714 = vmatprep.subr.mxu0 0.0
    %4715 = vmatpush1.msra.mxu0 0.0
    %4716 = vmatprep.subr.mxu0 0.0
    %4717 = vmatpush1.msra.mxu0 0.0
    %4718 = vmatprep.subr.mxu0 0.0
    %4719 = vmatpush1.msra.mxu0 0.0
    %4720 = vmatprep.subr.mxu0 0.0
    %4721 = vmatpush1.msra.mxu0 0.0
    %4722 = vmatprep.subr.mxu0 0.0
    %4723 = vmatpush1.msra.mxu0 0.0
    %4724 = vmatprep.subr.mxu0 0.0
    %4725 = vmatpush1.msra.mxu0 0.0
    %4726 = vmatprep.subr.mxu0 0.0
    %4727 = vmatpush1.msra.mxu0 0.0
    %4728 = vmatprep.subr.mxu0 0.0
    %4729 = vmatpush1.msra.mxu0 0.0
    %4730 = vmatprep.subr.mxu0 0.0
    %4731 = vmatpush1.msra.mxu0 0.0
    %4732 = vmatprep.subr.mxu0 0.0
    %4733 = vmatpush1.msra.mxu0 0.0
    %4734 = vmatprep.subr.mxu0 0.0
    %4735 = vmatpush1.msra.mxu0 0.0
    %4736 = vmatprep.subr.mxu0 0.0
    %4737 = vmatpush1.msra.mxu0 0.0
    %4738 = vmatprep.subr.mxu0 0.0
    %4739 = vmatpush1.msra.mxu0 0.0
    %4740 = vmatprep.subr.mxu0 0.0
    %4741 = vmatpush1.msra.mxu0 0.0
    %4742 = vmatprep.subr.mxu0 0.0
    %4743 = vmatpush1.msra.mxu0 0.0
    %4744 = vmatprep.subr.mxu0 0.0
    %4745 = vmatpush1.msra.mxu0 0.0
    %4746 = vmatprep.subr.mxu0 0.0
    %4747 = vmatpush1.msra.mxu0 0.0
    %4748 = vmatprep.mubr.f32.mxu0 0.0
    %4749 = vmatmul.mubr.f32.gmra.mrb[0].mxu0 %v4682
    %v4750 = vpop.f32.mrb[0].mxu0
    %v4751 = vadd.f32 0.0, %v4750
    %v4752 = vpop.f32.mrb[0].mxu0
    %4753 = vdwg.mxu0
    %v4754 = vadd.f32 %v4678, %v4751
    %v4755 = vld [vmem:[%s22 + $0x10] sm:$0xff]
    %v4756 = vld [vmem:[%s22 + $0x18] sm:$0xff]
    %v4757 = vrot.slane %v4676, 1
    %v4758 = vsel %vm978, %v4757, 0
    %4760 = vmatprep.subr.mxu0 0.0
    %4761 = vmatpush1.msra.mxu0 %v4755
    %4762 = vmatprep.subr.mxu0 0.0
    %4763 = vmatpush1.msra.mxu0 %v4756
    %4764 = vmatprep.subr.mxu0 0.0
    %4765 = vmatpush1.msra.mxu0 0.0
    %4766 = vmatprep.subr.mxu0 0.0
    %4767 = vmatpush1.msra.mxu0 0.0
    %4768 = vmatprep.subr.mxu0 0.0
    %4769 = vmatpush1.msra.mxu0 0.0
    %4770 = vmatprep.subr.mxu0 0.0
    %4771 = vmatpush1.msra.mxu0 0.0
    %4772 = vmatprep.subr.mxu0 0.0
    %4773 = vmatpush1.msra.mxu0 0.0
    %4774 = vmatprep.subr.mxu0 0.0
    %4775 = vmatpush1.msra.mxu0 0.0
    %4776 = vmatprep.subr.mxu0 0.0
    %4777 = vmatpush1.msra.mxu0 0.0
    %4778 = vmatprep.subr.mxu0 0.0
    %4779 = vmatpush1.msra.mxu0 0.0
    %4780 = vmatprep.subr.mxu0 0.0
    %4781 = vmatpush1.msra.mxu0 0.0
    %4782 = vmatprep.subr.mxu0 0.0
    %4783 = vmatpush1.msra.mxu0 0.0
    %4784 = vmatprep.subr.mxu0 0.0
    %4785 = vmatpush1.msra.mxu0 0.0
    %4786 = vmatprep.subr.mxu0 0.0
    %4787 = vmatpush1.msra.mxu0 0.0
    %4788 = vmatprep.subr.mxu0 0.0
    %4789 = vmatpush1.msra.mxu0 0.0
    %4790 = vmatprep.subr.mxu0 0.0
    %4791 = vmatpush1.msra.mxu0 0.0
    %4792 = vmatprep.subr.mxu0 0.0
    %4793 = vmatpush1.msra.mxu0 0.0
    %4794 = vmatprep.subr.mxu0 0.0
    %4795 = vmatpush1.msra.mxu0 0.0
    %4796 = vmatprep.subr.mxu0 0.0
    %4797 = vmatpush1.msra.mxu0 0.0
    %4798 = vmatprep.subr.mxu0 0.0
    %4799 = vmatpush1.msra.mxu0 0.0
    %4800 = vmatprep.subr.mxu0 0.0
    %4801 = vmatpush1.msra.mxu0 0.0
    %4802 = vmatprep.subr.mxu0 0.0
    %4803 = vmatpush1.msra.mxu0 0.0
    %4804 = vmatprep.subr.mxu0 0.0
    %4805 = vmatpush1.msra.mxu0 0.0
    %4806 = vmatprep.subr.mxu0 0.0
    %4807 = vmatpush1.msra.mxu0 0.0
    %4808 = vmatprep.subr.mxu0 0.0
    %4809 = vmatpush1.msra.mxu0 0.0
    %4810 = vmatprep.subr.mxu0 0.0
    %4811 = vmatpush1.msra.mxu0 0.0
    %4812 = vmatprep.subr.mxu0 0.0
    %4813 = vmatpush1.msra.mxu0 0.0
    %4814 = vmatprep.subr.mxu0 0.0
    %4815 = vmatpush1.msra.mxu0 0.0
    %4816 = vmatprep.subr.mxu0 0.0
    %4817 = vmatpush1.msra.mxu0 0.0
    %4818 = vmatprep.subr.mxu0 0.0
    %4819 = vmatpush1.msra.mxu0 0.0
    %4820 = vmatprep.subr.mxu0 0.0
    %4821 = vmatpush1.msra.mxu0 0.0
    %4822 = vmatprep.subr.mxu0 0.0
    %4823 = vmatpush1.msra.mxu0 0.0
    %4824 = vmatprep.mubr.f32.mxu0 0.0
    %4825 = vmatmul.mubr.f32.gmra.mrb[0].mxu0 %v4758
    %v4826 = vpop.f32.mrb[0].mxu0
    %v4827 = vadd.f32 0.0, %v4826
    %v4828 = vpop.f32.mrb[0].mxu0
    %4829 = vdwg.mxu0
    %v4830 = vadd.f32 %v4754, %v4827
    %v4831 = vld [vmem:[%s22 + $0x20] sm:$0xff]
    %v4832 = vld [vmem:[%s22 + $0x28] sm:$0xff]
    %v4833 = vrot.slane %v4676, 2
    %v4834 = vsel %vm978, %v4833, 0
    %4836 = vmatprep.subr.mxu0 0.0
    %4837 = vmatpush1.msra.mxu0 %v4831
    %4838 = vmatprep.subr.mxu0 0.0
    %4839 = vmatpush1.msra.mxu0 %v4832
    %4840 = vmatprep.subr.mxu0 0.0
    %4841 = vmatpush1.msra.mxu0 0.0
    %4842 = vmatprep.subr.mxu0 0.0
    %4843 = vmatpush1.msra.mxu0 0.0
    %4844 = vmatprep.subr.mxu0 0.0
    %4845 = vmatpush1.msra.mxu0 0.0
    %4846 = vmatprep.subr.mxu0 0.0
    %4847 = vmatpush1.msra.mxu0 0.0
    %4848 = vmatprep.subr.mxu0 0.0
    %4849 = vmatpush1.msra.mxu0 0.0
    %4850 = vmatprep.subr.mxu0 0.0
    %4851 = vmatpush1.msra.mxu0 0.0
    %4852 = vmatprep.subr.mxu0 0.0
    %4853 = vmatpush1.msra.mxu0 0.0
    %4854 = vmatprep.subr.mxu0 0.0
    %4855 = vmatpush1.msra.mxu0 0.0
    %4856 = vmatprep.subr.mxu0 0.0
    %4857 = vmatpush1.msra.mxu0 0.0
    %4858 = vmatprep.subr.mxu0 0.0
    %4859 = vmatpush1.msra.mxu0 0.0
    %4860 = vmatprep.subr.mxu0 0.0
    %4861 = vmatpush1.msra.mxu0 0.0
    %4862 = vmatprep.subr.mxu0 0.0
    %4863 = vmatpush1.msra.mxu0 0.0
    %4864 = vmatprep.subr.mxu0 0.0
    %4865 = vmatpush1.msra.mxu0 0.0
    %4866 = vmatprep.subr.mxu0 0.0
    %4867 = vmatpush1.msra.mxu0 0.0
    %4868 = vmatprep.subr.mxu0 0.0
    %4869 = vmatpush1.msra.mxu0 0.0
    %4870 = vmatprep.subr.mxu0 0.0
    %4871 = vmatpush1.msra.mxu0 0.0
    %4872 = vmatprep.subr.mxu0 0.0
    %4873 = vmatpush1.msra.mxu0 0.0
    %4874 = vmatprep.subr.mxu0 0.0
    %4875 = vmatpush1.msra.mxu0 0.0
    %4876 = vmatprep.subr.mxu0 0.0
    %4877 = vmatpush1.msra.mxu0 0.0
    %4878 = vmatprep.subr.mxu0 0.0
    %4879 = vmatpush1.msra.mxu0 0.0
    %4880 = vmatprep.subr.mxu0 0.0
    %4881 = vmatpush1.msra.mxu0 0.0
    %4882 = vmatprep.subr.mxu0 0.0
    %4883 = vmatpush1.msra.mxu0 0.0
    %4884 = vmatprep.subr.mxu0 0.0
    %4885 = vmatpush1.msra.mxu0 0.0
    %4886 = vmatprep.subr.mxu0 0.0
    %4887 = vmatpush1.msra.mxu0 0.0
    %4888 = vmatprep.subr.mxu0 0.0
    %4889 = vmatpush1.msra.mxu0 0.0
    %4890 = vmatprep.subr.mxu0 0.0
    %4891 = vmatpush1.msra.mxu0 0.0
    %4892 = vmatprep.subr.mxu0 0.0
    %4893 = vmatpush1.msra.mxu0 0.0
    %4894 = vmatprep.subr.mxu0 0.0
    %4895 = vmatpush1.msra.mxu0 0.0
    %4896 = vmatprep.subr.mxu0 0.0
    %4897 = vmatpush1.msra.mxu0 0.0
    %4898 = vmatprep.subr.mxu0 0.0
    %4899 = vmatpush1.msra.mxu0 0.0
    %4900 = vmatprep.mubr.f32.mxu0 0.0
    %4901 = vmatmul.mubr.f32.gmra.mrb[0].mxu0 %v4834
    %v4902 = vpop.f32.mrb[0].mxu0
    %v4903 = vadd.f32 0.0, %v4902
    %v4904 = vpop.f32.mrb[0].mxu0
    %4905 = vdwg.mxu0
    %v4906 = vadd.f32 %v4830, %v4903
    %v4907 = vld [vmem:[%s22 + $0x30] sm:$0xff]
    %v4908 = vld [vmem:[%s22 + $0x38] sm:$0xff]
    %v4909 = vrot.slane %v4676, 3
    %v4910 = vsel %vm978, %v4909, 0
    %4912 = vmatprep.subr.mxu0 0.0
    %4913 = vmatpush1.msra.mxu0 %v4907
    %4914 = vmatprep.subr.mxu0 0.0
    %4915 = vmatpush1.msra.mxu0 %v4908
    %4916 = vmatprep.subr.mxu0 0.0
    %4917 = vmatpush1.msra.mxu0 0.0
    %4918 = vmatprep.subr.mxu0 0.0
    %4919 = vmatpush1.msra.mxu0 0.0
    %4920 = vmatprep.subr.mxu0 0.0
    %4921 = vmatpush1.msra.mxu0 0.0
    %4922 = vmatprep.subr.mxu0 0.0
    %4923 = vmatpush1.msra.mxu0 0.0
    %4924 = vmatprep.subr.mxu0 0.0
    %4925 = vmatpush1.msra.mxu0 0.0
    %4926 = vmatprep.subr.mxu0 0.0
    %4927 = vmatpush1.msra.mxu0 0.0
    %4928 = vmatprep.subr.mxu0 0.0
    %4929 = vmatpush1.msra.mxu0 0.0
    %4930 = vmatprep.subr.mxu0 0.0
    %4931 = vmatpush1.msra.mxu0 0.0
    %4932 = vmatprep.subr.mxu0 0.0
    %4933 = vmatpush1.msra.mxu0 0.0
    %4934 = vmatprep.subr.mxu0 0.0
    %4935 = vmatpush1.msra.mxu0 0.0
    %4936 = vmatprep.subr.mxu0 0.0
    %4937 = vmatpush1.msra.mxu0 0.0
    %4938 = vmatprep.subr.mxu0 0.0
    %4939 = vmatpush1.msra.mxu0 0.0
    %4940 = vmatprep.subr.mxu0 0.0
    %4941 = vmatpush1.msra.mxu0 0.0
    %4942 = vmatprep.subr.mxu0 0.0
    %4943 = vmatpush1.msra.mxu0 0.0
    %4944 = vmatprep.subr.mxu0 0.0
    %4945 = vmatpush1.msra.mxu0 0.0
    %4946 = vmatprep.subr.mxu0 0.0
    %4947 = vmatpush1.msra.mxu0 0.0
    %4948 = vmatprep.subr.mxu0 0.0
    %4949 = vmatpush1.msra.mxu0 0.0
    %4950 = vmatprep.subr.mxu0 0.0
    %4951 = vmatpush1.msra.mxu0 0.0
    %4952 = vmatprep.subr.mxu0 0.0
    %4953 = vmatpush1.msra.mxu0 0.0
    %4954 = vmatprep.subr.mxu0 0.0
    %4955 = vmatpush1.msra.mxu0 0.0
    %4956 = vmatprep.subr.mxu0 0.0
    %4957 = vmatpush1.msra.mxu0 0.0
    %4958 = vmatprep.subr.mxu0 0.0
    %4959 = vmatpush1.msra.mxu0 0.0
    %4960 = vmatprep.subr.mxu0 0.0
    %4961 = vmatpush1.msra.mxu0 0.0
    %4962 = vmatprep.subr.mxu0 0.0
    %4963 = vmatpush1.msra.mxu0 0.0
    %4964 = vmatprep.subr.mxu0 0.0
    %4965 = vmatpush1.msra.mxu0 0.0
    %4966 = vmatprep.subr.mxu0 0.0
    %4967 = vmatpush1.msra.mxu0 0.0
    %4968 = vmatprep.subr.mxu0 0.0
    %4969 = vmatpush1.msra.mxu0 0.0
    %4970 = vmatprep.subr.mxu0 0.0
    %4971 = vmatpush1.msra.mxu0 0.0
    %4972 = vmatprep.subr.mxu0 0.0
    %4973 = vmatpush1.msra.mxu0 0.0
    %4974 = vmatprep.subr.mxu0 0.0
    %4975 = vmatpush1.msra.mxu0 0.0
    %4976 = vmatprep.mubr.f32.mxu0 0.0
    %4977 = vmatmul.mubr.f32.gmra.mrb[0].mxu0 %v4910
    %v4978 = vpop.f32.mrb[0].mxu0
    %v4979 = vadd.f32 0.0, %v4978
    %v4980 = vpop.f32.mrb[0].mxu0
    %4981 = vdwg.mxu0
    %v4982 = vadd.f32 %v4906, %v4979
    %v4983 = vld [vmem:[%s22 + $0x40] sm:$0xff]
    %v4984 = vld [vmem:[%s22 + $0x48] sm:$0xff]
    %v4985 = vrot.slane %v4676, 4
    %v4986 = vsel %vm978, %v4985, 0
    %4988 = vmatprep.subr.mxu0 0.0
    %4989 = vmatpush1.msra.mxu0 %v4983
    %4990 = vmatprep.subr.mxu0 0.0
    %4991 = vmatpush1.msra.mxu0 %v4984
    %4992 = vmatprep.subr.mxu0 0.0
    %4993 = vmatpush1.msra.mxu0 0.0
    %4994 = vmatprep.subr.mxu0 0.0
    %4995 = vmatpush1.msra.mxu0 0.0
    %4996 = vmatprep.subr.mxu0 0.0
    %4997 = vmatpush1.msra.mxu0 0.0
    %4998 = vmatprep.subr.mxu0 0.0
    %4999 = vmatpush1.msra.mxu0 0.0
    %5000 = vmatprep.subr.mxu0 0.0
    %5001 = vmatpush1.msra.mxu0 0.0
    %5002 = vmatprep.subr.mxu0 0.0
    %5003 = vmatpush1.msra.mxu0 0.0
    %5004 = vmatprep.subr.mxu0 0.0
    %5005 = vmatpush1.msra.mxu0 0.0
    %5006 = vmatprep.subr.mxu0 0.0
    %5007 = vmatpush1.msra.mxu0 0.0
    %5008 = vmatprep.subr.mxu0 0.0
    %5009 = vmatpush1.msra.mxu0 0.0
    %5010 = vmatprep.subr.mxu0 0.0
    %5011 = vmatpush1.msra.mxu0 0.0
    %5012 = vmatprep.subr.mxu0 0.0
    %5013 = vmatpush1.msra.mxu0 0.0
    %5014 = vmatprep.subr.mxu0 0.0
    %5015 = vmatpush1.msra.mxu0 0.0
    %5016 = vmatprep.subr.mxu0 0.0
    %5017 = vmatpush1.msra.mxu0 0.0
    %5018 = vmatprep.subr.mxu0 0.0
    %5019 = vmatpush1.msra.mxu0 0.0
    %5020 = vmatprep.subr.mxu0 0.0
    %5021 = vmatpush1.msra.mxu0 0.0
    %5022 = vmatprep.subr.mxu0 0.0
    %5023 = vmatpush1.msra.mxu0 0.0
    %5024 = vmatprep.subr.mxu0 0.0
    %5025 = vmatpush1.msra.mxu0 0.0
    %5026 = vmatprep.subr.mxu0 0.0
    %5027 = vmatpush1.msra.mxu0 0.0
    %5028 = vmatprep.subr.mxu0 0.0
    %5029 = vmatpush1.msra.mxu0 0.0
    %5030 = vmatprep.subr.mxu0 0.0
    %5031 = vmatpush1.msra.mxu0 0.0
    %5032 = vmatprep.subr.mxu0 0.0
    %5033 = vmatpush1.msra.mxu0 0.0
    %5034 = vmatprep.subr.mxu0 0.0
    %5035 = vmatpush1.msra.mxu0 0.0
    %5036 = vmatprep.subr.mxu0 0.0
    %5037 = vmatpush1.msra.mxu0 0.0
    %5038 = vmatprep.subr.mxu0 0.0
    %5039 = vmatpush1.msra.mxu0 0.0
    %5040 = vmatprep.subr.mxu0 0.0
    %5041 = vmatpush1.msra.mxu0 0.0
    %5042 = vmatprep.subr.mxu0 0.0
    %5043 = vmatpush1.msra.mxu0 0.0
    %5044 = vmatprep.subr.mxu0 0.0
    %5045 = vmatpush1.msra.mxu0 0.0
    %5046 = vmatprep.subr.mxu0 0.0
    %5047 = vmatpush1.msra.mxu0 0.0
    %5048 = vmatprep.subr.mxu0 0.0
    %5049 = vmatpush1.msra.mxu0 0.0
    %5050 = vmatprep.subr.mxu0 0.0
    %5051 = vmatpush1.msra.mxu0 0.0
    %5052 = vmatprep.mubr.f32.mxu0 0.0
    %5053 = vmatmul.mubr.f32.gmra.mrb[0].mxu0 %v4986
    %v5054 = vpop.f32.mrb[0].mxu0
    %v5055 = vadd.f32 0.0, %v5054
    %v5056 = vpop.f32.mrb[0].mxu0
    %5057 = vdwg.mxu0
    %v5058 = vadd.f32 %v4982, %v5055
    %v5059 = vld [vmem:[%s22 + $0x50] sm:$0xff]
    %v5060 = vld [vmem:[%s22 + $0x58] sm:$0xff]
    %v5061 = vrot.slane %v4676, 5
    %v5062 = vsel %vm978, %v5061, 0
    %5064 = vmatprep.subr.mxu0 0.0
    %5065 = vmatpush1.msra.mxu0 %v5059
    %5066 = vmatprep.subr.mxu0 0.0
    %5067 = vmatpush1.msra.mxu0 %v5060
    %5068 = vmatprep.subr.mxu0 0.0
    %5069 = vmatpush1.msra.mxu0 0.0
    %5070 = vmatprep.subr.mxu0 0.0
    %5071 = vmatpush1.msra.mxu0 0.0
    %5072 = vmatprep.subr.mxu0 0.0
    %5073 = vmatpush1.msra.mxu0 0.0
    %5074 = vmatprep.subr.mxu0 0.0
    %5075 = vmatpush1.msra.mxu0 0.0
    %5076 = vmatprep.subr.mxu0 0.0
    %5077 = vmatpush1.msra.mxu0 0.0
    %5078 = vmatprep.subr.mxu0 0.0
    %5079 = vmatpush1.msra.mxu0 0.0
    %5080 = vmatprep.subr.mxu0 0.0
    %5081 = vmatpush1.msra.mxu0 0.0
    %5082 = vmatprep.subr.mxu0 0.0
    %5083 = vmatpush1.msra.mxu0 0.0
    %5084 = vmatprep.subr.mxu0 0.0
    %5085 = vmatpush1.msra.mxu0 0.0
    %5086 = vmatprep.subr.mxu0 0.0
    %5087 = vmatpush1.msra.mxu0 0.0
    %5088 = vmatprep.subr.mxu0 0.0
    %5089 = vmatpush1.msra.mxu0 0.0
    %5090 = vmatprep.subr.mxu0 0.0
    %5091 = vmatpush1.msra.mxu0 0.0
    %5092 = vmatprep.subr.mxu0 0.0
    %5093 = vmatpush1.msra.mxu0 0.0
    %5094 = vmatprep.subr.mxu0 0.0
    %5095 = vmatpush1.msra.mxu0 0.0
    %5096 = vmatprep.subr.mxu0 0.0
    %5097 = vmatpush1.msra.mxu0 0.0
    %5098 = vmatprep.subr.mxu0 0.0
    %5099 = vmatpush1.msra.mxu0 0.0
    %5100 = vmatprep.subr.mxu0 0.0
    %5101 = vmatpush1.msra.mxu0 0.0
    %5102 = vmatprep.subr.mxu0 0.0
    %5103 = vmatpush1.msra.mxu0 0.0
    %5104 = vmatprep.subr.mxu0 0.0
    %5105 = vmatpush1.msra.mxu0 0.0
    %5106 = vmatprep.subr.mxu0 0.0
    %5107 = vmatpush1.msra.mxu0 0.0
    %5108 = vmatprep.subr.mxu0 0.0
    %5109 = vmatpush1.msra.mxu0 0.0
    %5110 = vmatprep.subr.mxu0 0.0
    %5111 = vmatpush1.msra.mxu0 0.0
    %5112 = vmatprep.subr.mxu0 0.0
    %5113 = vmatpush1.msra.mxu0 0.0
    %5114 = vmatprep.subr.mxu0 0.0
    %5115 = vmatpush1.msra.mxu0 0.0
    %5116 = vmatprep.subr.mxu0 0.0
    %5117 = vmatpush1.msra.mxu0 0.0
    %5118 = vmatprep.subr.mxu0 0.0
    %5119 = vmatpush1.msra.mxu0 0.0
    %5120 = vmatprep.subr.mxu0 0.0
    %5121 = vmatpush1.msra.mxu0 0.0
    %5122 = vmatprep.subr.mxu0 0.0
    %5123 = vmatpush1.msra.mxu0 0.0
    %5124 = vmatprep.subr.mxu0 0.0
    %5125 = vmatpush1.msra.mxu0 0.0
    %5126 = vmatprep.subr.mxu0 0.0
    %5127 = vmatpush1.msra.mxu0 0.0
    %5128 = vmatprep.mubr.f32.mxu0 0.0
    %5129 = vmatmul.mubr.f32.gmra.mrb[0].mxu0 %v5062
    %v5130 = vpop.f32.mrb[0].mxu0
    %v5131 = vadd.f32 0.0, %v5130
    %v5132 = vpop.f32.mrb[0].mxu0
    %5133 = vdwg.mxu0
    %v5134 = vadd.f32 %v5058, %v5131
    %v5135 = vld [vmem:[%s22 + $0x60] sm:$0xff]
    %v5136 = vld [vmem:[%s22 + $0x68] sm:$0xff]
    %v5137 = vrot.slane %v4676, 6
    %v5138 = vsel %vm978, %v5137, 0
    %5140 = vmatprep.subr.mxu0 0.0
    %5141 = vmatpush1.msra.mxu0 %v5135
    %5142 = vmatprep.subr.mxu0 0.0
    %5143 = vmatpush1.msra.mxu0 %v5136
    %5144 = vmatprep.subr.mxu0 0.0
    %5145 = vmatpush1.msra.mxu0 0.0
    %5146 = vmatprep.subr.mxu0 0.0
    %5147 = vmatpush1.msra.mxu0 0.0
    %5148 = vmatprep.subr.mxu0 0.0
    %5149 = vmatpush1.msra.mxu0 0.0
    %5150 = vmatprep.subr.mxu0 0.0
    %5151 = vmatpush1.msra.mxu0 0.0
    %5152 = vmatprep.subr.mxu0 0.0
    %5153 = vmatpush1.msra.mxu0 0.0
    %5154 = vmatprep.subr.mxu0 0.0
    %5155 = vmatpush1.msra.mxu0 0.0
    %5156 = vmatprep.subr.mxu0 0.0
    %5157 = vmatpush1.msra.mxu0 0.0
    %5158 = vmatprep.subr.mxu0 0.0
    %5159 = vmatpush1.msra.mxu0 0.0
    %5160 = vmatprep.subr.mxu0 0.0
    %5161 = vmatpush1.msra.mxu0 0.0
    %5162 = vmatprep.subr.mxu0 0.0
    %5163 = vmatpush1.msra.mxu0 0.0
    %5164 = vmatprep.subr.mxu0 0.0
    %5165 = vmatpush1.msra.mxu0 0.0
    %5166 = vmatprep.subr.mxu0 0.0
    %5167 = vmatpush1.msra.mxu0 0.0
    %5168 = vmatprep.subr.mxu0 0.0
    %5169 = vmatpush1.msra.mxu0 0.0
    %5170 = vmatprep.subr.mxu0 0.0
    %5171 = vmatpush1.msra.mxu0 0.0
    %5172 = vmatprep.subr.mxu0 0.0
    %5173 = vmatpush1.msra.mxu0 0.0
    %5174 = vmatprep.subr.mxu0 0.0
    %5175 = vmatpush1.msra.mxu0 0.0
    %5176 = vmatprep.subr.mxu0 0.0
    %5177 = vmatpush1.msra.mxu0 0.0
    %5178 = vmatprep.subr.mxu0 0.0
    %5179 = vmatpush1.msra.mxu0 0.0
    %5180 = vmatprep.subr.mxu0 0.0
    %5181 = vmatpush1.msra.mxu0 0.0
    %5182 = vmatprep.subr.mxu0 0.0
    %5183 = vmatpush1.msra.mxu0 0.0
    %5184 = vmatprep.subr.mxu0 0.0
    %5185 = vmatpush1.msra.mxu0 0.0
    %5186 = vmatprep.subr.mxu0 0.0
    %5187 = vmatpush1.msra.mxu0 0.0
    %5188 = vmatprep.subr.mxu0 0.0
    %5189 = vmatpush1.msra.mxu0 0.0
    %5190 = vmatprep.subr.mxu0 0.0
    %5191 = vmatpush1.msra.mxu0 0.0
    %5192 = vmatprep.subr.mxu0 0.0
    %5193 = vmatpush1.msra.mxu0 0.0
    %5194 = vmatprep.subr.mxu0 0.0
    %5195 = vmatpush1.msra.mxu0 0.0
    %5196 = vmatprep.subr.mxu0 0.0
    %5197 = vmatpush1.msra.mxu0 0.0
    %5198 = vmatprep.subr.mxu0 0.0
    %5199 = vmatpush1.msra.mxu0 0.0
    %5200 = vmatprep.subr.mxu0 0.0
    %5201 = vmatpush1.msra.mxu0 0.0
    %5202 = vmatprep.subr.mxu0 0.0
    %5203 = vmatpush1.msra.mxu0 0.0
    %5204 = vmatprep.mubr.f32.mxu0 0.0
    %5205 = vmatmul.mubr.f32.gmra.mrb[0].mxu0 %v5138
    %v5206 = vpop.f32.mrb[0].mxu0
    %v5207 = vadd.f32 0.0, %v5206
    %v5208 = vpop.f32.mrb[0].mxu0
    %5209 = vdwg.mxu0
    %v5210 = vadd.f32 %v5134, %v5207
    %v5211 = vld [vmem:[%s22 + $0x70] sm:$0xff]
    %v5212 = vld [vmem:[%s22 + $0x78] sm:$0xff]
    %v5213 = vrot.slane %v4676, 7
    %v5214 = vsel %vm978, %v5213, 0
    %5216 = vmatprep.subr.mxu0 0.0
    %5217 = vmatpush1.msra.mxu0 %v5211
    %5218 = vmatprep.subr.mxu0 0.0
    %5219 = vmatpush1.msra.mxu0 %v5212
    %5220 = vmatprep.subr.mxu0 0.0
    %5221 = vmatpush1.msra.mxu0 0.0
    %5222 = vmatprep.subr.mxu0 0.0
    %5223 = vmatpush1.msra.mxu0 0.0
    %5224 = vmatprep.subr.mxu0 0.0
    %5225 = vmatpush1.msra.mxu0 0.0
    %5226 = vmatprep.subr.mxu0 0.0
    %5227 = vmatpush1.msra.mxu0 0.0
    %5228 = vmatprep.subr.mxu0 0.0
    %5229 = vmatpush1.msra.mxu0 0.0
    %5230 = vmatprep.subr.mxu0 0.0
    %5231 = vmatpush1.msra.mxu0 0.0
    %5232 = vmatprep.subr.mxu0 0.0
    %5233 = vmatpush1.msra.mxu0 0.0
    %5234 = vmatprep.subr.mxu0 0.0
    %5235 = vmatpush1.msra.mxu0 0.0
    %5236 = vmatprep.subr.mxu0 0.0
    %5237 = vmatpush1.msra.mxu0 0.0
    %5238 = vmatprep.subr.mxu0 0.0
    %5239 = vmatpush1.msra.mxu0 0.0
    %5240 = vmatprep.subr.mxu0 0.0
    %5241 = vmatpush1.msra.mxu0 0.0
    %5242 = vmatprep.subr.mxu0 0.0
    %5243 = vmatpush1.msra.mxu0 0.0
    %5244 = vmatprep.subr.mxu0 0.0
    %5245 = vmatpush1.msra.mxu0 0.0
    %5246 = vmatprep.subr.mxu0 0.0
    %5247 = vmatpush1.msra.mxu0 0.0
    %5248 = vmatprep.subr.mxu0 0.0
    %5249 = vmatpush1.msra.mxu0 0.0
    %5250 = vmatprep.subr.mxu0 0.0
    %5251 = vmatpush1.msra.mxu0 0.0
    %5252 = vmatprep.subr.mxu0 0.0
    %5253 = vmatpush1.msra.mxu0 0.0
    %5254 = vmatprep.subr.mxu0 0.0
    %5255 = vmatpush1.msra.mxu0 0.0
    %5256 = vmatprep.subr.mxu0 0.0
    %5257 = vmatpush1.msra.mxu0 0.0
    %5258 = vmatprep.subr.mxu0 0.0
    %5259 = vmatpush1.msra.mxu0 0.0
    %5260 = vmatprep.subr.mxu0 0.0
    %5261 = vmatpush1.msra.mxu0 0.0
    %5262 = vmatprep.subr.mxu0 0.0
    %5263 = vmatpush1.msra.mxu0 0.0
    %5264 = vmatprep.subr.mxu0 0.0
    %5265 = vmatpush1.msra.mxu0 0.0
    %5266 = vmatprep.subr.mxu0 0.0
    %5267 = vmatpush1.msra.mxu0 0.0
    %5268 = vmatprep.subr.mxu0 0.0
    %5269 = vmatpush1.msra.mxu0 0.0
    %5270 = vmatprep.subr.mxu0 0.0
    %5271 = vmatpush1.msra.mxu0 0.0
    %5272 = vmatprep.subr.mxu0 0.0
    %5273 = vmatpush1.msra.mxu0 0.0
    %5274 = vmatprep.subr.mxu0 0.0
    %5275 = vmatpush1.msra.mxu0 0.0
    %5276 = vmatprep.subr.mxu0 0.0
    %5277 = vmatpush1.msra.mxu0 0.0
    %5278 = vmatprep.subr.mxu0 0.0
    %5279 = vmatpush1.msra.mxu0 0.0
    %5280 = vmatprep.mubr.f32.mxu0 0.0
    %5281 = vmatmul.mubr.f32.gmra.mrb[0].mxu0 %v5214
    %v5282 = vpop.f32.mrb[0].mxu0
    %v5283 = vadd.f32 0.0, %v5282
    %v5284 = vpop.f32.mrb[0].mxu0
    %5285 = vdwg.mxu0
    %v5286 = vadd.f32 %v5210, %v5283
    %vm5287 = vcmask 24576
    %5288 = vst.msk [vmem:[#allocation3] sm:$0x1] %vm5287, %v5286
    %v5289 = vld [vmem:[%s23] sm:$0x1]
    %v5290 = vld [vmem:[%s22] sm:$0xff]
    %v5291 = vld [vmem:[%s22 + $0x8] sm:$0xff]
    %v5293 = vsel %vm978, %v4677, 0
    %5295 = vmatprep.subr.mxu0 0.0
    %5296 = vmatpush1.msra.mxu0 %v5290
    %5297 = vmatprep.subr.mxu0 0.0
    %5298 = vmatpush1.msra.mxu0 %v5291
    %5299 = vmatprep.subr.mxu0 0.0
    %5300 = vmatpush1.msra.mxu0 0.0
    %5301 = vmatprep.subr.mxu0 0.0
    %5302 = vmatpush1.msra.mxu0 0.0
    %5303 = vmatprep.subr.mxu0 0.0
    %5304 = vmatpush1.msra.mxu0 0.0
    %5305 = vmatprep.subr.mxu0 0.0
    %5306 = vmatpush1.msra.mxu0 0.0
    %5307 = vmatprep.subr.mxu0 0.0
    %5308 = vmatpush1.msra.mxu0 0.0
    %5309 = vmatprep.subr.mxu0 0.0
    %5310 = vmatpush1.msra.mxu0 0.0
    %5311 = vmatprep.subr.mxu0 0.0
    %5312 = vmatpush1.msra.mxu0 0.0
    %5313 = vmatprep.subr.mxu0 0.0
    %5314 = vmatpush1.msra.mxu0 0.0
    %5315 = vmatprep.subr.mxu0 0.0
    %5316 = vmatpush1.msra.mxu0 0.0
    %5317 = vmatprep.subr.mxu0 0.0
    %5318 = vmatpush1.msra.mxu0 0.0
    %5319 = vmatprep.subr.mxu0 0.0
    %5320 = vmatpush1.msra.mxu0 0.0
    %5321 = vmatprep.subr.mxu0 0.0
    %5322 = vmatpush1.msra.mxu0 0.0
    %5323 = vmatprep.subr.mxu0 0.0
    %5324 = vmatpush1.msra.mxu0 0.0
    %5325 = vmatprep.subr.mxu0 0.0
    %5326 = vmatpush1.msra.mxu0 0.0
    %5327 = vmatprep.subr.mxu0 0.0
    %5328 = vmatpush1.msra.mxu0 0.0
    %5329 = vmatprep.subr.mxu0 0.0
    %5330 = vmatpush1.msra.mxu0 0.0
    %5331 = vmatprep.subr.mxu0 0.0
    %5332 = vmatpush1.msra.mxu0 0.0
    %5333 = vmatprep.subr.mxu0 0.0
    %5334 = vmatpush1.msra.mxu0 0.0
    %5335 = vmatprep.subr.mxu0 0.0
    %5336 = vmatpush1.msra.mxu0 0.0
    %5337 = vmatprep.subr.mxu0 0.0
    %5338 = vmatpush1.msra.mxu0 0.0
    %5339 = vmatprep.subr.mxu0 0.0
    %5340 = vmatpush1.msra.mxu0 0.0
    %5341 = vmatprep.subr.mxu0 0.0
    %5342 = vmatpush1.msra.mxu0 0.0
    %5343 = vmatprep.subr.mxu0 0.0
    %5344 = vmatpush1.msra.mxu0 0.0
    %5345 = vmatprep.subr.mxu0 0.0
    %5346 = vmatpush1.msra.mxu0 0.0
    %5347 = vmatprep.subr.mxu0 0.0
    %5348 = vmatpush1.msra.mxu0 0.0
    %5349 = vmatprep.subr.mxu0 0.0
    %5350 = vmatpush1.msra.mxu0 0.0
    %5351 = vmatprep.subr.mxu0 0.0
    %5352 = vmatpush1.msra.mxu0 0.0
    %5353 = vmatprep.subr.mxu0 0.0
    %5354 = vmatpush1.msra.mxu0 0.0
    %5355 = vmatprep.subr.mxu0 0.0
    %5356 = vmatpush1.msra.mxu0 0.0
    %5357 = vmatprep.subr.mxu0 0.0
    %5358 = vmatpush1.msra.mxu0 0.0
    %5359 = vmatprep.mubr.f32.mxu0 0.0
    %5360 = vmatmul.mubr.f32.gmra.mrb[0].mxu0 %v5293
    %v5361 = vpop.f32.mrb[0].mxu0
    %v5362 = vadd.f32 0.0, %v5361
    %v5363 = vpop.f32.mrb[0].mxu0
    %5364 = vdwg.mxu0
    %v5365 = vadd.f32 %v5289, %v5362
    %v5366 = vld [vmem:[%s22 + $0x10] sm:$0xff]
    %v5367 = vld [vmem:[%s22 + $0x18] sm:$0xff]
    %v5368 = vrot.slane %v4677, 1
    %v5369 = vsel %vm978, %v5368, 0
    %5371 = vmatprep.subr.mxu0 0.0
    %5372 = vmatpush1.msra.mxu0 %v5366
    %5373 = vmatprep.subr.mxu0 0.0
    %5374 = vmatpush1.msra.mxu0 %v5367
    %5375 = vmatprep.subr.mxu0 0.0
    %5376 = vmatpush1.msra.mxu0 0.0
    %5377 = vmatprep.subr.mxu0 0.0
    %5378 = vmatpush1.msra.mxu0 0.0
    %5379 = vmatprep.subr.mxu0 0.0
    %5380 = vmatpush1.msra.mxu0 0.0
    %5381 = vmatprep.subr.mxu0 0.0
    %5382 = vmatpush1.msra.mxu0 0.0
    %5383 = vmatprep.subr.mxu0 0.0
    %5384 = vmatpush1.msra.mxu0 0.0
    %5385 = vmatprep.subr.mxu0 0.0
    %5386 = vmatpush1.msra.mxu0 0.0
    %5387 = vmatprep.subr.mxu0 0.0
    %5388 = vmatpush1.msra.mxu0 0.0
    %5389 = vmatprep.subr.mxu0 0.0
    %5390 = vmatpush1.msra.mxu0 0.0
    %5391 = vmatprep.subr.mxu0 0.0
    %5392 = vmatpush1.msra.mxu0 0.0
    %5393 = vmatprep.subr.mxu0 0.0
    %5394 = vmatpush1.msra.mxu0 0.0
    %5395 = vmatprep.subr.mxu0 0.0
    %5396 = vmatpush1.msra.mxu0 0.0
    %5397 = vmatprep.subr.mxu0 0.0
    %5398 = vmatpush1.msra.mxu0 0.0
    %5399 = vmatprep.subr.mxu0 0.0
    %5400 = vmatpush1.msra.mxu0 0.0
    %5401 = vmatprep.subr.mxu0 0.0
    %5402 = vmatpush1.msra.mxu0 0.0
    %5403 = vmatprep.subr.mxu0 0.0
    %5404 = vmatpush1.msra.mxu0 0.0
    %5405 = vmatprep.subr.mxu0 0.0
    %5406 = vmatpush1.msra.mxu0 0.0
    %5407 = vmatprep.subr.mxu0 0.0
    %5408 = vmatpush1.msra.mxu0 0.0
    %5409 = vmatprep.subr.mxu0 0.0
    %5410 = vmatpush1.msra.mxu0 0.0
    %5411 = vmatprep.subr.mxu0 0.0
    %5412 = vmatpush1.msra.mxu0 0.0
    %5413 = vmatprep.subr.mxu0 0.0
    %5414 = vmatpush1.msra.mxu0 0.0
    %5415 = vmatprep.subr.mxu0 0.0
    %5416 = vmatpush1.msra.mxu0 0.0
    %5417 = vmatprep.subr.mxu0 0.0
    %5418 = vmatpush1.msra.mxu0 0.0
    %5419 = vmatprep.subr.mxu0 0.0
    %5420 = vmatpush1.msra.mxu0 0.0
    %5421 = vmatprep.subr.mxu0 0.0
    %5422 = vmatpush1.msra.mxu0 0.0
    %5423 = vmatprep.subr.mxu0 0.0
    %5424 = vmatpush1.msra.mxu0 0.0
    %5425 = vmatprep.subr.mxu0 0.0
    %5426 = vmatpush1.msra.mxu0 0.0
    %5427 = vmatprep.subr.mxu0 0.0
    %5428 = vmatpush1.msra.mxu0 0.0
    %5429 = vmatprep.subr.mxu0 0.0
    %5430 = vmatpush1.msra.mxu0 0.0
    %5431 = vmatprep.subr.mxu0 0.0
    %5432 = vmatpush1.msra.mxu0 0.0
    %5433 = vmatprep.subr.mxu0 0.0
    %5434 = vmatpush1.msra.mxu0 0.0
    %5435 = vmatprep.mubr.f32.mxu0 0.0
    %5436 = vmatmul.mubr.f32.gmra.mrb[0].mxu0 %v5369
    %v5437 = vpop.f32.mrb[0].mxu0
    %v5438 = vadd.f32 0.0, %v5437
    %v5439 = vpop.f32.mrb[0].mxu0
    %5440 = vdwg.mxu0
    %v5441 = vadd.f32 %v5365, %v5438
    %v5442 = vld [vmem:[%s22 + $0x20] sm:$0xff]
    %v5443 = vld [vmem:[%s22 + $0x28] sm:$0xff]
    %v5444 = vrot.slane %v4677, 2
    %v5445 = vsel %vm978, %v5444, 0
    %5447 = vmatprep.subr.mxu0 0.0
    %5448 = vmatpush1.msra.mxu0 %v5442
    %5449 = vmatprep.subr.mxu0 0.0
    %5450 = vmatpush1.msra.mxu0 %v5443
    %5451 = vmatprep.subr.mxu0 0.0
    %5452 = vmatpush1.msra.mxu0 0.0
    %5453 = vmatprep.subr.mxu0 0.0
    %5454 = vmatpush1.msra.mxu0 0.0
    %5455 = vmatprep.subr.mxu0 0.0
    %5456 = vmatpush1.msra.mxu0 0.0
    %5457 = vmatprep.subr.mxu0 0.0
    %5458 = vmatpush1.msra.mxu0 0.0
    %5459 = vmatprep.subr.mxu0 0.0
    %5460 = vmatpush1.msra.mxu0 0.0
    %5461 = vmatprep.subr.mxu0 0.0
    %5462 = vmatpush1.msra.mxu0 0.0
    %5463 = vmatprep.subr.mxu0 0.0
    %5464 = vmatpush1.msra.mxu0 0.0
    %5465 = vmatprep.subr.mxu0 0.0
    %5466 = vmatpush1.msra.mxu0 0.0
    %5467 = vmatprep.subr.mxu0 0.0
    %5468 = vmatpush1.msra.mxu0 0.0
    %5469 = vmatprep.subr.mxu0 0.0
    %5470 = vmatpush1.msra.mxu0 0.0
    %5471 = vmatprep.subr.mxu0 0.0
    %5472 = vmatpush1.msra.mxu0 0.0
    %5473 = vmatprep.subr.mxu0 0.0
    %5474 = vmatpush1.msra.mxu0 0.0
    %5475 = vmatprep.subr.mxu0 0.0
    %5476 = vmatpush1.msra.mxu0 0.0
    %5477 = vmatprep.subr.mxu0 0.0
    %5478 = vmatpush1.msra.mxu0 0.0
    %5479 = vmatprep.subr.mxu0 0.0
    %5480 = vmatpush1.msra.mxu0 0.0
    %5481 = vmatprep.subr.mxu0 0.0
    %5482 = vmatpush1.msra.mxu0 0.0
    %5483 = vmatprep.subr.mxu0 0.0
    %5484 = vmatpush1.msra.mxu0 0.0
    %5485 = vmatprep.subr.mxu0 0.0
    %5486 = vmatpush1.msra.mxu0 0.0
    %5487 = vmatprep.subr.mxu0 0.0
    %5488 = vmatpush1.msra.mxu0 0.0
    %5489 = vmatprep.subr.mxu0 0.0
    %5490 = vmatpush1.msra.mxu0 0.0
    %5491 = vmatprep.subr.mxu0 0.0
    %5492 = vmatpush1.msra.mxu0 0.0
    %5493 = vmatprep.subr.mxu0 0.0
    %5494 = vmatpush1.msra.mxu0 0.0
    %5495 = vmatprep.subr.mxu0 0.0
    %5496 = vmatpush1.msra.mxu0 0.0
    %5497 = vmatprep.subr.mxu0 0.0
    %5498 = vmatpush1.msra.mxu0 0.0
    %5499 = vmatprep.subr.mxu0 0.0
    %5500 = vmatpush1.msra.mxu0 0.0
    %5501 = vmatprep.subr.mxu0 0.0
    %5502 = vmatpush1.msra.mxu0 0.0
    %5503 = vmatprep.subr.mxu0 0.0
    %5504 = vmatpush1.msra.mxu0 0.0
    %5505 = vmatprep.subr.mxu0 0.0
    %5506 = vmatpush1.msra.mxu0 0.0
    %5507 = vmatprep.subr.mxu0 0.0
    %5508 = vmatpush1.msra.mxu0 0.0
    %5509 = vmatprep.subr.mxu0 0.0
    %5510 = vmatpush1.msra.mxu0 0.0
    %5511 = vmatprep.mubr.f32.mxu0 0.0
    %5512 = vmatmul.mubr.f32.gmra.mrb[0].mxu0 %v5445
    %v5513 = vpop.f32.mrb[0].mxu0
    %v5514 = vadd.f32 0.0, %v5513
    %v5515 = vpop.f32.mrb[0].mxu0
    %5516 = vdwg.mxu0
    %v5517 = vadd.f32 %v5441, %v5514
    %v5518 = vld [vmem:[%s22 + $0x30] sm:$0xff]
    %v5519 = vld [vmem:[%s22 + $0x38] sm:$0xff]
    %v5520 = vrot.slane %v4677, 3
    %v5521 = vsel %vm978, %v5520, 0
    %5523 = vmatprep.subr.mxu0 0.0
    %5524 = vmatpush1.msra.mxu0 %v5518
    %5525 = vmatprep.subr.mxu0 0.0
    %5526 = vmatpush1.msra.mxu0 %v5519
    %5527 = vmatprep.subr.mxu0 0.0
    %5528 = vmatpush1.msra.mxu0 0.0
    %5529 = vmatprep.subr.mxu0 0.0
    %5530 = vmatpush1.msra.mxu0 0.0
    %5531 = vmatprep.subr.mxu0 0.0
    %5532 = vmatpush1.msra.mxu0 0.0
    %5533 = vmatprep.subr.mxu0 0.0
    %5534 = vmatpush1.msra.mxu0 0.0
    %5535 = vmatprep.subr.mxu0 0.0
    %5536 = vmatpush1.msra.mxu0 0.0
    %5537 = vmatprep.subr.mxu0 0.0
    %5538 = vmatpush1.msra.mxu0 0.0
    %5539 = vmatprep.subr.mxu0 0.0
    %5540 = vmatpush1.msra.mxu0 0.0
    %5541 = vmatprep.subr.mxu0 0.0
    %5542 = vmatpush1.msra.mxu0 0.0
    %5543 = vmatprep.subr.mxu0 0.0
    %5544 = vmatpush1.msra.mxu0 0.0
    %5545 = vmatprep.subr.mxu0 0.0
    %5546 = vmatpush1.msra.mxu0 0.0
    %5547 = vmatprep.subr.mxu0 0.0
    %5548 = vmatpush1.msra.mxu0 0.0
    %5549 = vmatprep.subr.mxu0 0.0
    %5550 = vmatpush1.msra.mxu0 0.0
    %5551 = vmatprep.subr.mxu0 0.0
    %5552 = vmatpush1.msra.mxu0 0.0
    %5553 = vmatprep.subr.mxu0 0.0
    %5554 = vmatpush1.msra.mxu0 0.0
    %5555 = vmatprep.subr.mxu0 0.0
    %5556 = vmatpush1.msra.mxu0 0.0
    %5557 = vmatprep.subr.mxu0 0.0
    %5558 = vmatpush1.msra.mxu0 0.0
    %5559 = vmatprep.subr.mxu0 0.0
    %5560 = vmatpush1.msra.mxu0 0.0
    %5561 = vmatprep.subr.mxu0 0.0
    %5562 = vmatpush1.msra.mxu0 0.0
    %5563 = vmatprep.subr.mxu0 0.0
    %5564 = vmatpush1.msra.mxu0 0.0
    %5565 = vmatprep.subr.mxu0 0.0
    %5566 = vmatpush1.msra.mxu0 0.0
    %5567 = vmatprep.subr.mxu0 0.0
    %5568 = vmatpush1.msra.mxu0 0.0
    %5569 = vmatprep.subr.mxu0 0.0
    %5570 = vmatpush1.msra.mxu0 0.0
    %5571 = vmatprep.subr.mxu0 0.0
    %5572 = vmatpush1.msra.mxu0 0.0
    %5573 = vmatprep.subr.mxu0 0.0
    %5574 = vmatpush1.msra.mxu0 0.0
    %5575 = vmatprep.subr.mxu0 0.0
    %5576 = vmatpush1.msra.mxu0 0.0
    %5577 = vmatprep.subr.mxu0 0.0
    %5578 = vmatpush1.msra.mxu0 0.0
    %5579 = vmatprep.subr.mxu0 0.0
    %5580 = vmatpush1.msra.mxu0 0.0
    %5581 = vmatprep.subr.mxu0 0.0
    %5582 = vmatpush1.msra.mxu0 0.0
    %5583 = vmatprep.subr.mxu0 0.0
    %5584 = vmatpush1.msra.mxu0 0.0
    %5585 = vmatprep.subr.mxu0 0.0
    %5586 = vmatpush1.msra.mxu0 0.0
    %5587 = vmatprep.mubr.f32.mxu0 0.0
    %5588 = vmatmul.mubr.f32.gmra.mrb[0].mxu0 %v5521
    %v5589 = vpop.f32.mrb[0].mxu0
    %v5590 = vadd.f32 0.0, %v5589
    %v5591 = vpop.f32.mrb[0].mxu0
    %5592 = vdwg.mxu0
    %v5593 = vadd.f32 %v5517, %v5590
    %v5594 = vld [vmem:[%s22 + $0x40] sm:$0xff]
    %v5595 = vld [vmem:[%s22 + $0x48] sm:$0xff]
    %v5596 = vrot.slane %v4677, 4
    %v5597 = vsel %vm978, %v5596, 0
    %5599 = vmatprep.subr.mxu0 0.0
    %5600 = vmatpush1.msra.mxu0 %v5594
    %5601 = vmatprep.subr.mxu0 0.0
    %5602 = vmatpush1.msra.mxu0 %v5595
    %5603 = vmatprep.subr.mxu0 0.0
    %5604 = vmatpush1.msra.mxu0 0.0
    %5605 = vmatprep.subr.mxu0 0.0
    %5606 = vmatpush1.msra.mxu0 0.0
    %5607 = vmatprep.subr.mxu0 0.0
    %5608 = vmatpush1.msra.mxu0 0.0
    %5609 = vmatprep.subr.mxu0 0.0
    %5610 = vmatpush1.msra.mxu0 0.0
    %5611 = vmatprep.subr.mxu0 0.0
    %5612 = vmatpush1.msra.mxu0 0.0
    %5613 = vmatprep.subr.mxu0 0.0
    %5614 = vmatpush1.msra.mxu0 0.0
    %5615 = vmatprep.subr.mxu0 0.0
    %5616 = vmatpush1.msra.mxu0 0.0
    %5617 = vmatprep.subr.mxu0 0.0
    %5618 = vmatpush1.msra.mxu0 0.0
    %5619 = vmatprep.subr.mxu0 0.0
    %5620 = vmatpush1.msra.mxu0 0.0
    %5621 = vmatprep.subr.mxu0 0.0
    %5622 = vmatpush1.msra.mxu0 0.0
    %5623 = vmatprep.subr.mxu0 0.0
    %5624 = vmatpush1.msra.mxu0 0.0
    %5625 = vmatprep.subr.mxu0 0.0
    %5626 = vmatpush1.msra.mxu0 0.0
    %5627 = vmatprep.subr.mxu0 0.0
    %5628 = vmatpush1.msra.mxu0 0.0
    %5629 = vmatprep.subr.mxu0 0.0
    %5630 = vmatpush1.msra.mxu0 0.0
    %5631 = vmatprep.subr.mxu0 0.0
    %5632 = vmatpush1.msra.mxu0 0.0
    %5633 = vmatprep.subr.mxu0 0.0
    %5634 = vmatpush1.msra.mxu0 0.0
    %5635 = vmatprep.subr.mxu0 0.0
    %5636 = vmatpush1.msra.mxu0 0.0
    %5637 = vmatprep.subr.mxu0 0.0
    %5638 = vmatpush1.msra.mxu0 0.0
    %5639 = vmatprep.subr.mxu0 0.0
    %5640 = vmatpush1.msra.mxu0 0.0
    %5641 = vmatprep.subr.mxu0 0.0
    %5642 = vmatpush1.msra.mxu0 0.0
    %5643 = vmatprep.subr.mxu0 0.0
    %5644 = vmatpush1.msra.mxu0 0.0
    %5645 = vmatprep.subr.mxu0 0.0
    %5646 = vmatpush1.msra.mxu0 0.0
    %5647 = vmatprep.subr.mxu0 0.0
    %5648 = vmatpush1.msra.mxu0 0.0
    %5649 = vmatprep.subr.mxu0 0.0
    %5650 = vmatpush1.msra.mxu0 0.0
    %5651 = vmatprep.subr.mxu0 0.0
    %5652 = vmatpush1.msra.mxu0 0.0
    %5653 = vmatprep.subr.mxu0 0.0
    %5654 = vmatpush1.msra.mxu0 0.0
    %5655 = vmatprep.subr.mxu0 0.0
    %5656 = vmatpush1.msra.mxu0 0.0
    %5657 = vmatprep.subr.mxu0 0.0
    %5658 = vmatpush1.msra.mxu0 0.0
    %5659 = vmatprep.subr.mxu0 0.0
    %5660 = vmatpush1.msra.mxu0 0.0
    %5661 = vmatprep.subr.mxu0 0.0
    %5662 = vmatpush1.msra.mxu0 0.0
    %5663 = vmatprep.mubr.f32.mxu0 0.0
    %5664 = vmatmul.mubr.f32.gmra.mrb[0].mxu0 %v5597
    %v5665 = vpop.f32.mrb[0].mxu0
    %v5666 = vadd.f32 0.0, %v5665
    %v5667 = vpop.f32.mrb[0].mxu0
    %5668 = vdwg.mxu0
    %v5669 = vadd.f32 %v5593, %v5666
    %v5670 = vld [vmem:[%s22 + $0x50] sm:$0xff]
    %v5671 = vld [vmem:[%s22 + $0x58] sm:$0xff]
    %v5672 = vrot.slane %v4677, 5
    %v5673 = vsel %vm978, %v5672, 0
    %5675 = vmatprep.subr.mxu0 0.0
    %5676 = vmatpush1.msra.mxu0 %v5670
    %5677 = vmatprep.subr.mxu0 0.0
    %5678 = vmatpush1.msra.mxu0 %v5671
    %5679 = vmatprep.subr.mxu0 0.0
    %5680 = vmatpush1.msra.mxu0 0.0
    %5681 = vmatprep.subr.mxu0 0.0
    %5682 = vmatpush1.msra.mxu0 0.0
    %5683 = vmatprep.subr.mxu0 0.0
    %5684 = vmatpush1.msra.mxu0 0.0
    %5685 = vmatprep.subr.mxu0 0.0
    %5686 = vmatpush1.msra.mxu0 0.0
    %5687 = vmatprep.subr.mxu0 0.0
    %5688 = vmatpush1.msra.mxu0 0.0
    %5689 = vmatprep.subr.mxu0 0.0
    %5690 = vmatpush1.msra.mxu0 0.0
    %5691 = vmatprep.subr.mxu0 0.0
    %5692 = vmatpush1.msra.mxu0 0.0
    %5693 = vmatprep.subr.mxu0 0.0
    %5694 = vmatpush1.msra.mxu0 0.0
    %5695 = vmatprep.subr.mxu0 0.0
    %5696 = vmatpush1.msra.mxu0 0.0
    %5697 = vmatprep.subr.mxu0 0.0
    %5698 = vmatpush1.msra.mxu0 0.0
    %5699 = vmatprep.subr.mxu0 0.0
    %5700 = vmatpush1.msra.mxu0 0.0
    %5701 = vmatprep.subr.mxu0 0.0
    %5702 = vmatpush1.msra.mxu0 0.0
    %5703 = vmatprep.subr.mxu0 0.0
    %5704 = vmatpush1.msra.mxu0 0.0
    %5705 = vmatprep.subr.mxu0 0.0
    %5706 = vmatpush1.msra.mxu0 0.0
    %5707 = vmatprep.subr.mxu0 0.0
    %5708 = vmatpush1.msra.mxu0 0.0
    %5709 = vmatprep.subr.mxu0 0.0
    %5710 = vmatpush1.msra.mxu0 0.0
    %5711 = vmatprep.subr.mxu0 0.0
    %5712 = vmatpush1.msra.mxu0 0.0
    %5713 = vmatprep.subr.mxu0 0.0
    %5714 = vmatpush1.msra.mxu0 0.0
    %5715 = vmatprep.subr.mxu0 0.0
    %5716 = vmatpush1.msra.mxu0 0.0
    %5717 = vmatprep.subr.mxu0 0.0
    %5718 = vmatpush1.msra.mxu0 0.0
    %5719 = vmatprep.subr.mxu0 0.0
    %5720 = vmatpush1.msra.mxu0 0.0
    %5721 = vmatprep.subr.mxu0 0.0
    %5722 = vmatpush1.msra.mxu0 0.0
    %5723 = vmatprep.subr.mxu0 0.0
    %5724 = vmatpush1.msra.mxu0 0.0
    %5725 = vmatprep.subr.mxu0 0.0
    %5726 = vmatpush1.msra.mxu0 0.0
    %5727 = vmatprep.subr.mxu0 0.0
    %5728 = vmatpush1.msra.mxu0 0.0
    %5729 = vmatprep.subr.mxu0 0.0
    %5730 = vmatpush1.msra.mxu0 0.0
    %5731 = vmatprep.subr.mxu0 0.0
    %5732 = vmatpush1.msra.mxu0 0.0
    %5733 = vmatprep.subr.mxu0 0.0
    %5734 = vmatpush1.msra.mxu0 0.0
    %5735 = vmatprep.subr.mxu0 0.0
    %5736 = vmatpush1.msra.mxu0 0.0
    %5737 = vmatprep.subr.mxu0 0.0
    %5738 = vmatpush1.msra.mxu0 0.0
    %5739 = vmatprep.mubr.f32.mxu0 0.0
    %5740 = vmatmul.mubr.f32.gmra.mrb[0].mxu0 %v5673
    %v5741 = vpop.f32.mrb[0].mxu0
    %v5742 = vadd.f32 0.0, %v5741
    %v5743 = vpop.f32.mrb[0].mxu0
    %5744 = vdwg.mxu0
    %v5745 = vadd.f32 %v5669, %v5742
    %v5746 = vld [vmem:[%s22 + $0x60] sm:$0xff]
    %v5747 = vld [vmem:[%s22 + $0x68] sm:$0xff]
    %v5748 = vrot.slane %v4677, 6
    %v5749 = vsel %vm978, %v5748, 0
    %5751 = vmatprep.subr.mxu0 0.0
    %5752 = vmatpush1.msra.mxu0 %v5746
    %5753 = vmatprep.subr.mxu0 0.0
    %5754 = vmatpush1.msra.mxu0 %v5747
    %5755 = vmatprep.subr.mxu0 0.0
    %5756 = vmatpush1.msra.mxu0 0.0
    %5757 = vmatprep.subr.mxu0 0.0
    %5758 = vmatpush1.msra.mxu0 0.0
    %5759 = vmatprep.subr.mxu0 0.0
    %5760 = vmatpush1.msra.mxu0 0.0
    %5761 = vmatprep.subr.mxu0 0.0
    %5762 = vmatpush1.msra.mxu0 0.0
    %5763 = vmatprep.subr.mxu0 0.0
    %5764 = vmatpush1.msra.mxu0 0.0
    %5765 = vmatprep.subr.mxu0 0.0
    %5766 = vmatpush1.msra.mxu0 0.0
    %5767 = vmatprep.subr.mxu0 0.0
    %5768 = vmatpush1.msra.mxu0 0.0
    %5769 = vmatprep.subr.mxu0 0.0
    %5770 = vmatpush1.msra.mxu0 0.0
    %5771 = vmatprep.subr.mxu0 0.0
    %5772 = vmatpush1.msra.mxu0 0.0
    %5773 = vmatprep.subr.mxu0 0.0
    %5774 = vmatpush1.msra.mxu0 0.0
    %5775 = vmatprep.subr.mxu0 0.0
    %5776 = vmatpush1.msra.mxu0 0.0
    %5777 = vmatprep.subr.mxu0 0.0
    %5778 = vmatpush1.msra.mxu0 0.0
    %5779 = vmatprep.subr.mxu0 0.0
    %5780 = vmatpush1.msra.mxu0 0.0
    %5781 = vmatprep.subr.mxu0 0.0
    %5782 = vmatpush1.msra.mxu0 0.0
    %5783 = vmatprep.subr.mxu0 0.0
    %5784 = vmatpush1.msra.mxu0 0.0
    %5785 = vmatprep.subr.mxu0 0.0
    %5786 = vmatpush1.msra.mxu0 0.0
    %5787 = vmatprep.subr.mxu0 0.0
    %5788 = vmatpush1.msra.mxu0 0.0
    %5789 = vmatprep.subr.mxu0 0.0
    %5790 = vmatpush1.msra.mxu0 0.0
    %5791 = vmatprep.subr.mxu0 0.0
    %5792 = vmatpush1.msra.mxu0 0.0
    %5793 = vmatprep.subr.mxu0 0.0
    %5794 = vmatpush1.msra.mxu0 0.0
    %5795 = vmatprep.subr.mxu0 0.0
    %5796 = vmatpush1.msra.mxu0 0.0
    %5797 = vmatprep.subr.mxu0 0.0
    %5798 = vmatpush1.msra.mxu0 0.0
    %5799 = vmatprep.subr.mxu0 0.0
    %5800 = vmatpush1.msra.mxu0 0.0
    %5801 = vmatprep.subr.mxu0 0.0
    %5802 = vmatpush1.msra.mxu0 0.0
    %5803 = vmatprep.subr.mxu0 0.0
    %5804 = vmatpush1.msra.mxu0 0.0
    %5805 = vmatprep.subr.mxu0 0.0
    %5806 = vmatpush1.msra.mxu0 0.0
    %5807 = vmatprep.subr.mxu0 0.0
    %5808 = vmatpush1.msra.mxu0 0.0
    %5809 = vmatprep.subr.mxu0 0.0
    %5810 = vmatpush1.msra.mxu0 0.0
    %5811 = vmatprep.subr.mxu0 0.0
    %5812 = vmatpush1.msra.mxu0 0.0
    %5813 = vmatprep.subr.mxu0 0.0
    %5814 = vmatpush1.msra.mxu0 0.0
    %5815 = vmatprep.mubr.f32.mxu0 0.0
    %5816 = vmatmul.mubr.f32.gmra.mrb[0].mxu0 %v5749
    %v5817 = vpop.f32.mrb[0].mxu0
    %v5818 = vadd.f32 0.0, %v5817
    %v5819 = vpop.f32.mrb[0].mxu0
    %5820 = vdwg.mxu0
    %v5821 = vadd.f32 %v5745, %v5818
    %v5822 = vld [vmem:[%s22 + $0x70] sm:$0xff]
    %v5823 = vld [vmem:[%s22 + $0x78] sm:$0xff]
    %v5824 = vrot.slane %v4677, 7
    %v5825 = vsel %vm978, %v5824, 0
    %5827 = vmatprep.subr.mxu0 0.0
    %5828 = vmatpush1.msra.mxu0 %v5822
    %5829 = vmatprep.subr.mxu0 0.0
    %5830 = vmatpush1.msra.mxu0 %v5823
    %5831 = vmatprep.subr.mxu0 0.0
    %5832 = vmatpush1.msra.mxu0 0.0
    %5833 = vmatprep.subr.mxu0 0.0
    %5834 = vmatpush1.msra.mxu0 0.0
    %5835 = vmatprep.subr.mxu0 0.0
    %5836 = vmatpush1.msra.mxu0 0.0
    %5837 = vmatprep.subr.mxu0 0.0
    %5838 = vmatpush1.msra.mxu0 0.0
    %5839 = vmatprep.subr.mxu0 0.0
    %5840 = vmatpush1.msra.mxu0 0.0
    %5841 = vmatprep.subr.mxu0 0.0
    %5842 = vmatpush1.msra.mxu0 0.0
    %5843 = vmatprep.subr.mxu0 0.0
    %5844 = vmatpush1.msra.mxu0 0.0
    %5845 = vmatprep.subr.mxu0 0.0
    %5846 = vmatpush1.msra.mxu0 0.0
    %5847 = vmatprep.subr.mxu0 0.0
    %5848 = vmatpush1.msra.mxu0 0.0
    %5849 = vmatprep.subr.mxu0 0.0
    %5850 = vmatpush1.msra.mxu0 0.0
    %5851 = vmatprep.subr.mxu0 0.0
    %5852 = vmatpush1.msra.mxu0 0.0
    %5853 = vmatprep.subr.mxu0 0.0
    %5854 = vmatpush1.msra.mxu0 0.0
    %5855 = vmatprep.subr.mxu0 0.0
    %5856 = vmatpush1.msra.mxu0 0.0
    %5857 = vmatprep.subr.mxu0 0.0
    %5858 = vmatpush1.msra.mxu0 0.0
    %5859 = vmatprep.subr.mxu0 0.0
    %5860 = vmatpush1.msra.mxu0 0.0
    %5861 = vmatprep.subr.mxu0 0.0
    %5862 = vmatpush1.msra.mxu0 0.0
    %5863 = vmatprep.subr.mxu0 0.0
    %5864 = vmatpush1.msra.mxu0 0.0
    %5865 = vmatprep.subr.mxu0 0.0
    %5866 = vmatpush1.msra.mxu0 0.0
    %5867 = vmatprep.subr.mxu0 0.0
    %5868 = vmatpush1.msra.mxu0 0.0
    %5869 = vmatprep.subr.mxu0 0.0
    %5870 = vmatpush1.msra.mxu0 0.0
    %5871 = vmatprep.subr.mxu0 0.0
    %5872 = vmatpush1.msra.mxu0 0.0
    %5873 = vmatprep.subr.mxu0 0.0
    %5874 = vmatpush1.msra.mxu0 0.0
    %5875 = vmatprep.subr.mxu0 0.0
    %5876 = vmatpush1.msra.mxu0 0.0
    %5877 = vmatprep.subr.mxu0 0.0
    %5878 = vmatpush1.msra.mxu0 0.0
    %5879 = vmatprep.subr.mxu0 0.0
    %5880 = vmatpush1.msra.mxu0 0.0
    %5881 = vmatprep.subr.mxu0 0.0
    %5882 = vmatpush1.msra.mxu0 0.0
    %5883 = vmatprep.subr.mxu0 0.0
    %5884 = vmatpush1.msra.mxu0 0.0
    %5885 = vmatprep.subr.mxu0 0.0
    %5886 = vmatpush1.msra.mxu0 0.0
    %5887 = vmatprep.subr.mxu0 0.0
    %5888 = vmatpush1.msra.mxu0 0.0
    %5889 = vmatprep.subr.mxu0 0.0
    %5890 = vmatpush1.msra.mxu0 0.0
    %5891 = vmatprep.mubr.f32.mxu0 0.0
    %5892 = vmatmul.mubr.f32.gmra.mrb[0].mxu0 %v5825
    %v5893 = vpop.f32.mrb[0].mxu0
    %v5894 = vadd.f32 0.0, %v5893
    %v5895 = vpop.f32.mrb[0].mxu0
    %5896 = vdwg.mxu0
    %v5897 = vadd.f32 %v5821, %v5894
    %5898 = vst.msk [vmem:[#allocation3 + $0x1] sm:$0x1] %vm5287, %v5897
    // Predicated region
    $region98: #{_lambda_.1} parent=1 // pred_check
      _
    $region99: #{_lambda_.1} parent=1 // pred_check_branch
      %5900 = sbr.rel (0) target = $region101
    $region100: #{_lambda_.1} parent=1 // pred_region
      %s5902 = ssub.s32 32, 32
      %5903 = vsyncadd [#allocation4], %s5902
      %s5905 = sshll.u32 [#allocation3], 4
      %s5906 = int_to_ptr.vmem [resolvable:$true] %s5905
      %5908 = dma.vmem_to_hbm [thread:$0]  %s5906, 32, %s24, [#allocation4]
    $region101: #{_lambda_.1} parent=1 // pred_fallthru
      _
    // Predicated region
    $region102: #{_lambda_.1} parent=1 // pred_check
      _
    $region103: #{_lambda_.1} parent=1 // pred_check_branch
      %5910 = sbr.rel (0) target = $region105
    $region104: #{_lambda_.1} parent=1 // pred_region
      %5911 = dma.done [#allocation4], 32
    $region105: #{_lambda_.1} parent=1 // pred_fallthru
      _
    %5912 = vsyncpa [#allocation4], 1

</llo_original>
